<compile_context>
chip_gen: v7x
topology: tpu7x:2x2x1
jax: 0.10.0
libtpu: 0.0.40
codegen_flags: <defaults>
</compile_context>

<pallas_src>
import numpy as np
import jax
import jax.numpy as jnp
from jax.experimental import pallas as pl
from jax.experimental.pallas import tpu as pltpu


MXU_ROW_TARGET = 256     # fill the bf16 MXU's M dimension
MXU_ROW_CAP = 4096       # keep per-step VMEM / vreg pressure bounded


def _pick_nblk(n, rows):
    """Smallest divisor of n giving >= MXU_ROW_TARGET matmul rows (capped)."""
    divs = [d for d in range(1, n + 1) if n % d == 0]
    ok = [d for d in divs if d * rows <= MXU_ROW_CAP] or divs[:1]
    for d in ok:
        if d * rows >= MXU_ROW_TARGET:
            return d
    return ok[-1]


def phase_split_pad(x_nhwc, s):
    """ZeroPad2d(1) + stride-phase split (used only for strided first convs).
    Phase (py, px) holds padded pixels (s*q+py, s*r+px) so a stride-s 3x3 tap
    becomes a unit-stride window of one phase inside the kernel."""
    N, H, W, C = x_nhwc.shape
    Hp = -(-(H + 2) // s)
    Wp = -(-(W + 2) // s)
    pb = Hp * s - (H + 2)
    pr = Wp * s - (W + 2)
    xp = jnp.pad(x_nhwc, ((0, 0), (1, 1 + pb), (1, 1 + pr), (0, 0)))
    x6 = xp.reshape(N, Hp, s, Wp, s, C).transpose(0, 2, 4, 1, 3, 5)
    return x6.reshape(N, s * s, Hp, Wp, C), Hp, Wp


# ----------------------------------------------------------------------------
# Kernel 1: fused conv block — chain of (ZeroPad + 3x3 conv + folded BN + ReLU).
# Grid over image groups; intermediate activations live in bf16 VMEM scratch.
# ----------------------------------------------------------------------------
def run_conv_block(x_nhwc, layers):
    """x_nhwc: (N, H, W, Cin) f32.  layers[l]: {'w': bf16 (3, 3*Cin_l, Cout),
    'scale'/'bias': f32 (1, Cout), 'stride': int (only layer 0 may be > 1)}.
    Returns ((N, Ho*Wo, Cout) f32, Ho, Wo)."""
    N, H, W, Cin = x_nhwc.shape
    s0 = int(layers[0]['stride'])
    Cout = int(layers[0]['w'].shape[-1])
    Ho = (H - 1) // s0 + 1
    Wo = (W - 1) // s0 + 1
    n_layers = len(layers)
    n_buf = min(n_layers - 1, 2)
    N_blk = _pick_nblk(N, Ho * Wo)
    M = N_blk * Ho * Wo

    if s0 > 1:
        xin, Hp, Wp = phase_split_pad(x_nhwc, s0)
        in0_spec = pl.BlockSpec((N_blk, s0 * s0, Hp, Wp, Cin),
                                lambda n: (n, 0, 0, 0, 0))
    else:
        xin = x_nhwc
        in0_spec = pl.BlockSpec((N_blk, H, W, Cin), lambda n: (n, 0, 0, 0))

    def kernel(*args):
        x_ref = args[0]
        lrefs = args[1:1 + 3 * n_layers]
        o_ref = args[1 + 3 * n_layers]
        scratch = args[2 + 3 * n_layers:]
        if s0 == 1:
            xin_buf, bufs = scratch[0], scratch[1:]
        else:
            xin_buf, bufs = None, scratch

        def zero_border(buf):
            nb, hb, wb, cb = buf.shape
            zr = jnp.zeros((nb, 1, wb, cb), buf.dtype)
            zc = jnp.zeros((nb, hb, 1, cb), buf.dtype)
            buf[:, 0:1, :, :] = zr
            buf[:, hb - 1:hb, :, :] = zr
            buf[:, :, 0:1, :] = zc
            buf[:, :, wb - 1:wb, :] = zc

        # Only the 1-px halo is cleared per step; interiors are fully
        # overwritten before every read (parallel-grid safe, minimal vst).
        for buf in bufs:
            zero_border(buf)

        def conv_layer(get_tap, w_ref, sc_ref, bi_ref):
            # Per-ky accumulation: 3 bf16 dots of K = 3*Cin_l.
            acc = None
            for ky in range(3):
                pat = jnp.concatenate([get_tap(ky, kx) for kx in range(3)],
                                      axis=-1)
                pat = pat.reshape(M, pat.shape[-1])
                part = jnp.dot(pat, w_ref[ky],
                               preferred_element_type=jnp.float32)
                acc = part if acc is None else acc + part
            return jnp.maximum(acc * sc_ref[...] + bi_ref[...], 0.0)  # (M, Cout) f32

        # ---- layer 0 (possibly strided) ----
        if s0 == 1:
            zero_border(xin_buf)
            xin_buf[:, 1:H + 1, 1:W + 1, :] = x_ref[...].astype(jnp.bfloat16)

            def tap0(ky, kx):
                return xin_buf[:, ky:ky + Ho, kx:kx + Wo, :]
        else:
            def tap0(ky, kx):
                p = (ky % s0) * s0 + (kx % s0)
                return x_ref[:, p, ky // s0:ky // s0 + Ho,
                             kx // s0:kx // s0 + Wo, :].astype(jnp.bfloat16)

        y = conv_layer(tap0, lrefs[0], lrefs[1], lrefs[2])

        # ---- layers 1..n-1 (stride 1, activations resident in bf16 VMEM) ----
        for l in range(1, n_layers):
            buf = bufs[(l - 1) % 2]
            buf[:, 1:Ho + 1, 1:Wo + 1, :] = (
                y.reshape(N_blk, Ho, Wo, Cout).astype(jnp.bfloat16))

            def tap(ky, kx, buf=buf):
                return buf[:, ky:ky + Ho, kx:kx + Wo, :]

            y = conv_layer(tap, lrefs[3 * l], lrefs[3 * l + 1], lrefs[3 * l + 2])

        o_ref[...] = y.reshape(N_blk, Ho * Wo, Cout)

    in_specs = [in0_spec]
    inputs = [xin]
    for ly in layers:
        kdim = int(ly['w'].shape[1])
        in_specs += [pl.BlockSpec((3, kdim, Cout), lambda n: (0, 0, 0)),
                     pl.BlockSpec((1, Cout), lambda n: (0, 0)),
                     pl.BlockSpec((1, Cout), lambda n: (0, 0))]
        inputs += [ly['w'], ly['scale'], ly['bias']]

    scratch = []
    if s0 == 1:
        scratch.append(pltpu.VMEM((N_blk, H + 2, W + 2, Cin), jnp.bfloat16))
    scratch += [pltpu.VMEM((N_blk, Ho + 2, Wo + 2, Cout), jnp.bfloat16)
                for _ in range(n_buf)]

    out = pl.pallas_call(
        kernel,
        out_shape=jax.ShapeDtypeStruct((N, Ho * Wo, Cout), jnp.float32),
        grid_spec=pltpu.PrefetchScalarGridSpec(
            num_scalar_prefetch=0,
            grid=(N // N_blk,),
            in_specs=in_specs,
            out_specs=pl.BlockSpec((N_blk, Ho * Wo, Cout), lambda n: (n, 0, 0)),
            scratch_shapes=scratch,
        ),
        compiler_params=pltpu.CompilerParams(dimension_semantics=("parallel",)),
    )(*inputs)
    return out, Ho, Wo


# ----------------------------------------------------------------------------
# Kernel 2: fused AttFusion + deblock (ConvTranspose2d k==stride + BN + ReLU).
# Grid over samples; scalar-prefetched offsets/lengths drive one contiguous
# Lmax-row DMA gather of the sample's agents; deconv is a single bf16 matmul.
# ----------------------------------------------------------------------------
def run_fusion_deconv(x_flat, off_arr, len_arr, Lmax, Hc, Wc, db):
    Ntot, HW, C = x_flat.shape
    B = int(off_arr.shape[0])
    inv_sqrt = float(1.0 / np.sqrt(C))
    has_deconv = db is not None

    # Zero-pad by Lmax rows so a contiguous Lmax-row gather never reads OOB;
    # foreign / padded rows are masked out of the softmax & weighted sum.
    x_src = jnp.concatenate(
        [x_flat, jnp.zeros((Lmax, HW, C), x_flat.dtype)], axis=0)

    if has_deconv:
        k, Cu = int(db['k']), int(db['cout'])
        kk = k * k * Cu
        out_shape = jax.ShapeDtypeStruct((B, Hc, k, Wc, k * Cu), jnp.float32)
        out_spec = pl.BlockSpec((1, Hc, k, Wc, k * Cu),
                                lambda b, off, ln: (b, 0, 0, 0, 0))
        extra_in = [db['w'], db['scale'], db['bias']]
        extra_specs = [pl.BlockSpec((C, kk), lambda b, off, ln: (0, 0)),
                       pl.BlockSpec((1, kk), lambda b, off, ln: (0, 0)),
                       pl.BlockSpec((1, kk), lambda b, off, ln: (0, 0))]
    else:
        k = Cu = kk = 0
        out_shape = jax.ShapeDtypeStruct((B, HW, C), jnp.float32)
        out_spec = pl.BlockSpec((1, HW, C), lambda b, off, ln: (b, 0, 0))
        extra_in, extra_specs = [], []

    def kernel(off_ref, len_ref, x_hbm, *rest):
        if has_deconv:
            wd_ref, sc_ref, bi_ref, o_ref, xbuf, sem = rest
        else:
            o_ref, xbuf, sem = rest
            wd_ref = sc_ref = bi_ref = None

        b = pl.program_id(0)
        off = off_ref[b]
        L = len_ref[b]

        # One contiguous DMA of the sample's (<= Lmax) agent rows from HBM.
        # TODO(synk): double-buffer the next sample's gather behind this
        #             sample's compute once B grows beyond a couple of samples.
        cp = pltpu.make_async_copy(x_hbm.at[pl.ds(off, Lmax)], xbuf, sem.at[0])
        cp.start()
        cp.wait()

        x = xbuf[...]                                        # (Lmax, HW, C) f32
        x0 = x[0]                                            # ego agent = query
        scores = jnp.sum(x0[None, :, :] * x, axis=-1) * inv_sqrt    # (Lmax, HW)
        ids = jax.lax.broadcasted_iota(jnp.int32, (Lmax, HW), 0)
        valid = ids < L
        scores = jnp.where(valid, scores, jnp.float32(-1e30))       # f32 path
        m = jnp.max(scores, axis=0, keepdims=True)
        e = jnp.exp(scores - m)
        w = e * pl.reciprocal(jnp.sum(e, axis=0, keepdims=True), approx=True)
        contrib = jnp.where(valid[:, :, None], w[:, :, None] * x, 0.0)
        fused = jnp.sum(contrib, axis=0)                     # (HW, C) f32

        if has_deconv:
            # Single bf16 MXU dot over all k*k*Cu deconv output columns.
            y = jnp.dot(fused.astype(jnp.bfloat16), wd_ref[...],
                        preferred_element_type=jnp.float32)
            y = jnp.maximum(y * sc_ref[...] + bi_ref[...], 0.0)     # (HW, k*k*Cu)
            for ky in range(k):
                o_ref[0, :, ky, :, :] = (
                    y[:, ky * k * Cu:(ky + 1) * k * Cu].reshape(Hc, Wc, k * Cu))
        else:
            o_ref[0] = fused

    y = pl.pallas_call(
        kernel,
        out_shape=out_shape,
        grid_spec=pltpu.PrefetchScalarGridSpec(
            num_scalar_prefetch=2,
            grid=(B,),
            in_specs=[pl.BlockSpec(memory_space=pl.ANY)] + extra_specs,
            out_specs=out_spec,
            scratch_shapes=[pltpu.VMEM((Lmax, HW, C), jnp.float32),
                            pltpu.SemaphoreType.DMA((1,))],
        ),
        compiler_params=pltpu.CompilerParams(dimension_semantics=("parallel",)),
    )(off_arr, len_arr, x_src, *extra_in)

    if has_deconv:
        return y.reshape(B, Hc * k, Wc * k, Cu)              # metadata-only
    return y.reshape(B, Hc, Wc, C)


# ----------------------------------------------------------------------------
# Parameter initialization (deterministic synthetic; mirrors module __init__).
# Matmul weights stored in bf16 once; BN folded into f32 scale/bias.
# ----------------------------------------------------------------------------
def init_params(key, cfg, input_channels):
    eps = 0.001
    layer_nums = cfg['layer_nums']
    layer_strides = cfg['layer_strides']
    num_filters = cfg['num_filters']
    ups_strides = cfg.get('upsample_strides', [])
    num_ups = cfg.get('num_upsample_filter', [])
    c_in_list = [input_channels] + list(num_filters[:-1])

    def bn_fold(kb, c):
        k1, k2 = jax.random.split(kb)
        gamma = 1.0 + 0.1 * jax.random.normal(k1, (c,), jnp.float32)
        beta = 0.1 * jax.random.normal(k2, (c,), jnp.float32)
        return gamma / jnp.sqrt(1.0 + eps), beta   # running_mean=0, running_var=1

    def conv_layer_params(kw, kb, ci, co, stride):
        w = 0.1 * jax.random.normal(kw, (3, 3, ci, co), jnp.float32)
        sc, bi = bn_fold(kb, co)
        return {'w': w.reshape(3, 3 * ci, co).astype(jnp.bfloat16),
                'scale': sc.reshape(1, co), 'bias': bi.reshape(1, co),
                'stride': stride}

    params = {'blocks': [], 'deblocks': []}
    for idx in range(len(layer_nums)):
        layers = []
        cin, cout = c_in_list[idx], num_filters[idx]
        key, kw, kb = jax.random.split(key, 3)
        layers.append(conv_layer_params(kw, kb, cin, cout, int(layer_strides[idx])))
        for _ in range(layer_nums[idx]):
            key, kw, kb = jax.random.split(key, 3)
            layers.append(conv_layer_params(kw, kb, cout, cout, 1))
        params['blocks'].append(layers)

        if len(ups_strides) > 0:
            s = int(ups_strides[idx])
            cu = int(num_ups[idx])
            key, kw, kb = jax.random.split(key, 3)
            # torch ConvTranspose2d weight (Cin, Cout, k, k) -> cols (ky, kx, cu)
            wT = 0.1 * jax.random.normal(kw, (cout, cu, s, s), jnp.float32)
            wd = wT.transpose(0, 2, 3, 1).reshape(cout, s * s * cu)
            sc, bi = bn_fold(kb, cu)
            params['deblocks'].append({
                'w': wd.astype(jnp.bfloat16),
                'scale': jnp.tile(sc, s * s).reshape(1, s * s * cu),
                'bias': jnp.tile(bi, s * s).reshape(1, s * s * cu),
                'k': s, 'cout': cu})
    return params


# ----------------------------------------------------------------------------
# Forward pass (glue in plain JAX, hot paths in the two fused Pallas kernels).
# ----------------------------------------------------------------------------
def att_bev_backbone_forward(params, data_dict, cfg):
    spatial_features = data_dict['spatial_features']        # (Ntot, Cin, H, W)
    record_len = np.asarray(data_dict['record_len'])          # static per trace
    pairwise_t_matrix = data_dict['pairwise_t_matrix']        # (B, L, L, 4, 4)

    H, W = spatial_features.shape[2:]
    discrete_ratio = cfg['voxel_size'][0]
    downsample_rate = 1

    # pairwise_t_matrix normalization (reproduced for fidelity; the scaled-dot
    # AttFusion used here does not consume it).
    ptm = pairwise_t_matrix[:, :, :, jnp.array([0, 1]), :][:, :, :, :, jnp.array([0, 1, 3])]
    ptm = ptm.at[..., 0, 1].multiply(H / W)
    ptm = ptm.at[..., 1, 0].multiply(W / H)
    ptm = ptm.at[..., 0, 2].set(ptm[..., 0, 2] / (downsample_rate * discrete_ratio * W) * 2)
    ptm = ptm.at[..., 1, 2].set(ptm[..., 1, 2] / (downsample_rate * discrete_ratio * H) * 2)

    B = len(record_len)
    Lmax = pairwise_t_matrix.shape[1]
    offsets = np.concatenate([[0], np.cumsum(record_len)[:-1]]).astype(np.int32)
    off_arr = jnp.asarray(offsets, jnp.int32)
    len_arr = jnp.asarray(record_len, jnp.int32)

    x = jnp.transpose(spatial_features, (0, 2, 3, 1))        # NCHW -> NHWC
    ups = []
    ret = dict(data_dict)

    for i, block in enumerate(params['blocks']):
        x_flat, Hc, Wc = run_conv_block(x, block)            # (Ntot, Hc*Wc, Cc)
        Ntot, _, Cc = x_flat.shape
        x = x_flat.reshape(Ntot, Hc, Wc, Cc)                 # metadata-only

        stride = int(H // Hc)
        ret['spatial_features_%dx' % stride] = jnp.transpose(x, (0, 3, 1, 2))

        db = params['deblocks'][i] if len(params['deblocks']) > 0 else None
        ups.append(run_fusion_deconv(x_flat, off_arr, len_arr, Lmax, Hc, Wc, db))

    xcat = jnp.concatenate(ups, axis=-1) if len(ups) > 1 else ups[0]
    # TODO(synk): extra final deblock (len(upsample_strides) > num_levels) not
    #             in this config and not implemented.
    ret['spatial_features_2d'] = jnp.transpose(xcat, (0, 3, 1, 2))   # NCHW
    return ret


# ----------------------------------------------------------------------------
if __name__ == "__main__":
    model_cfg = {
        'voxel_size': [0.4, 0.4, 4],
        'layer_nums': [2, 2],
        'layer_strides': [1, 2],
        'num_filters': [16, 32],
        'upsample_strides': [1, 2],
        'num_upsample_filter': [16, 16],
    }
    input_channels = 8
    H = W = 16
    record_len = np.array([2, 3], dtype=np.int32)   # B = 2 samples, 2 and 3 agents
    B = len(record_len)
    Lmax = 5
    Ntot = int(record_len.sum())

    key = jax.random.PRNGKey(0)
    key, kx, kp, kparams = jax.random.split(key, 4)
    spatial_features = jax.random.normal(kx, (Ntot, input_channels, H, W), jnp.float32)
    pairwise_t_matrix = jax.random.normal(kp, (B, Lmax, Lmax, 4, 4), jnp.float32)

    params = init_params(kparams, model_cfg, input_channels)
    data_dict = {
        'spatial_features': spatial_features,
        'record_len': record_len,
        'pairwise_t_matrix': pairwise_t_matrix,
    }

    out = att_bev_backbone_forward(params, data_dict, model_cfg)
    feat2d = jax.block_until_ready(out['spatial_features_2d'])

    expected_c = sum(model_cfg['num_upsample_filter'])
    assert feat2d.shape == (B, expected_c, H, W), feat2d.shape
    assert out['spatial_features_1x'].shape == (Ntot, 16, 16, 16)
    assert out['spatial_features_2x'].shape == (Ntot, 32, 8, 8)
    assert bool(jnp.all(jnp.isfinite(feat2d)))
    print("KERNEL_OK")
</pallas_src>

<mosaic_0001>
module attributes {stable_mosaic.version = 11 : i64} {
  func.func @kernel(%arg0: i32, %arg1: memref<1x16x16x8xf32, #tpu.memory_space<vmem>>, %arg2: memref<3x24x16xbf16, #tpu.memory_space<vmem>>, %arg3: memref<1x16xf32, #tpu.memory_space<vmem>>, %arg4: memref<1x16xf32, #tpu.memory_space<vmem>>, %arg5: memref<3x48x16xbf16, #tpu.memory_space<vmem>>, %arg6: memref<1x16xf32, #tpu.memory_space<vmem>>, %arg7: memref<1x16xf32, #tpu.memory_space<vmem>>, %arg8: memref<3x48x16xbf16, #tpu.memory_space<vmem>>, %arg9: memref<1x16xf32, #tpu.memory_space<vmem>>, %arg10: memref<1x16xf32, #tpu.memory_space<vmem>>, %arg11: memref<1x256x16xf32, #tpu.memory_space<vmem>>, %arg12: memref<1x18x18x8xbf16, #tpu.memory_space<vmem>>, %arg13: memref<1x18x18x16xbf16, #tpu.memory_space<vmem>>, %arg14: memref<1x18x18x16xbf16, #tpu.memory_space<vmem>>) attributes {dimension_semantics = [#tpu.dimension_semantics<parallel>], iteration_bounds = array<i64: 5>, scalar_prefetch = 0 : i64, scratch_operands = 3 : i64, tpu.core_type = #tpu.core_type<tc>, window_params = [{transform_indices = @transform_0, window_bounds = array<i64: 1, 16, 16, 8>}, {pipeline_mode = #tpu.pipeline_mode<synchronous>, transform_indices = @transform_1, window_bounds = array<i64: 3, 24, 16>}, {pipeline_mode = #tpu.pipeline_mode<synchronous>, transform_indices = @transform_2, window_bounds = array<i64: 1, 16>}, {pipeline_mode = #tpu.pipeline_mode<synchronous>, transform_indices = @transform_3, window_bounds = array<i64: 1, 16>}, {pipeline_mode = #tpu.pipeline_mode<synchronous>, transform_indices = @transform_4, window_bounds = array<i64: 3, 48, 16>}, {pipeline_mode = #tpu.pipeline_mode<synchronous>, transform_indices = @transform_5, window_bounds = array<i64: 1, 16>}, {pipeline_mode = #tpu.pipeline_mode<synchronous>, transform_indices = @transform_6, window_bounds = array<i64: 1, 16>}, {pipeline_mode = #tpu.pipeline_mode<synchronous>, transform_indices = @transform_7, window_bounds = array<i64: 3, 48, 16>}, {pipeline_mode = #tpu.pipeline_mode<synchronous>, transform_indices = @transform_8, window_bounds = array<i64: 1, 16>}, {pipeline_mode = #tpu.pipeline_mode<synchronous>, transform_indices = @transform_9, window_bounds = array<i64: 1, 16>}, {transform_indices = @transform_10, window_bounds = array<i64: 1, 256, 16>}]} {
    %cst = arith.constant 0.000000e+00 : bf16
    %0 = vector.broadcast %cst : bf16 to vector<1x1x18x16xbf16>
    %cst_0 = arith.constant 0.000000e+00 : bf16
    %1 = vector.broadcast %cst_0 : bf16 to vector<1x18x1x16xbf16>
    %c0 = arith.constant 0 : index
    %c0_1 = arith.constant 0 : index
    %c0_2 = arith.constant 0 : index
    %c0_3 = arith.constant 0 : index
    %2 = vector.load %arg13[%c0, %c0_1, %c0_2, %c0_3] : memref<1x18x18x16xbf16, #tpu.memory_space<vmem>>, vector<1x1x18x16xbf16>
    tpu.vector_store %arg13[%c0, %c0_1, %c0_2, %c0_3], %0 {strides = array<i32>} : memref<1x18x18x16xbf16, #tpu.memory_space<vmem>>, vector<1x1x18x16xbf16>,
    %c0_4 = arith.constant 0 : index
    %c17 = arith.constant 17 : index
    %c0_5 = arith.constant 0 : index
    %c0_6 = arith.constant 0 : index
    %3 = vector.load %arg13[%c0_4, %c17, %c0_5, %c0_6] : memref<1x18x18x16xbf16, #tpu.memory_space<vmem>>, vector<1x1x18x16xbf16>
    tpu.vector_store %arg13[%c0_4, %c17, %c0_5, %c0_6], %0 {strides = array<i32>} : memref<1x18x18x16xbf16, #tpu.memory_space<vmem>>, vector<1x1x18x16xbf16>,
    %c0_7 = arith.constant 0 : index
    %c0_8 = arith.constant 0 : index
    %c0_9 = arith.constant 0 : index
    %c0_10 = arith.constant 0 : index
    %4 = vector.load %arg13[%c0_7, %c0_8, %c0_9, %c0_10] : memref<1x18x18x16xbf16, #tpu.memory_space<vmem>>, vector<1x18x1x16xbf16>
    tpu.vector_store %arg13[%c0_7, %c0_8, %c0_9, %c0_10], %1 {strides = array<i32>} : memref<1x18x18x16xbf16, #tpu.memory_space<vmem>>, vector<1x18x1x16xbf16>,
    %c0_11 = arith.constant 0 : index
    %c0_12 = arith.constant 0 : index
    %c17_13 = arith.constant 17 : index
    %c0_14 = arith.constant 0 : index
    %5 = vector.load %arg13[%c0_11, %c0_12, %c17_13, %c0_14] : memref<1x18x18x16xbf16, #tpu.memory_space<vmem>>, vector<1x18x1x16xbf16>
    tpu.vector_store %arg13[%c0_11, %c0_12, %c17_13, %c0_14], %1 {strides = array<i32>} : memref<1x18x18x16xbf16, #tpu.memory_space<vmem>>, vector<1x18x1x16xbf16>,
    %cst_15 = arith.constant 0.000000e+00 : bf16
    %6 = vector.broadcast %cst_15 : bf16 to vector<1x1x18x16xbf16>
    %cst_16 = arith.constant 0.000000e+00 : bf16
    %7 = vector.broadcast %cst_16 : bf16 to vector<1x18x1x16xbf16>
    %c0_17 = arith.constant 0 : index
    %c0_18 = arith.constant 0 : index
    %c0_19 = arith.constant 0 : index
    %c0_20 = arith.constant 0 : index
    %8 = vector.load %arg14[%c0_17, %c0_18, %c0_19, %c0_20] : memref<1x18x18x16xbf16, #tpu.memory_space<vmem>>, vector<1x1x18x16xbf16>
    tpu.vector_store %arg14[%c0_17, %c0_18, %c0_19, %c0_20], %6 {strides = array<i32>} : memref<1x18x18x16xbf16, #tpu.memory_space<vmem>>, vector<1x1x18x16xbf16>,
    %c0_21 = arith.constant 0 : index
    %c17_22 = arith.constant 17 : index
    %c0_23 = arith.constant 0 : index
    %c0_24 = arith.constant 0 : index
    %9 = vector.load %arg14[%c0_21, %c17_22, %c0_23, %c0_24] : memref<1x18x18x16xbf16, #tpu.memory_space<vmem>>, vector<1x1x18x16xbf16>
    tpu.vector_store %arg14[%c0_21, %c17_22, %c0_23, %c0_24], %6 {strides = array<i32>} : memref<1x18x18x16xbf16, #tpu.memory_space<vmem>>, vector<1x1x18x16xbf16>,
    %c0_25 = arith.constant 0 : index
    %c0_26 = arith.constant 0 : index
    %c0_27 = arith.constant 0 : index
    %c0_28 = arith.constant 0 : index
    %10 = vector.load %arg14[%c0_25, %c0_26, %c0_27, %c0_28] : memref<1x18x18x16xbf16, #tpu.memory_space<vmem>>, vector<1x18x1x16xbf16>
    tpu.vector_store %arg14[%c0_25, %c0_26, %c0_27, %c0_28], %7 {strides = array<i32>} : memref<1x18x18x16xbf16, #tpu.memory_space<vmem>>, vector<1x18x1x16xbf16>,
    %c0_29 = arith.constant 0 : index
    %c0_30 = arith.constant 0 : index
    %c17_31 = arith.constant 17 : index
    %c0_32 = arith.constant 0 : index
    %11 = vector.load %arg14[%c0_29, %c0_30, %c17_31, %c0_32] : memref<1x18x18x16xbf16, #tpu.memory_space<vmem>>, vector<1x18x1x16xbf16>
    tpu.vector_store %arg14[%c0_29, %c0_30, %c17_31, %c0_32], %7 {strides = array<i32>} : memref<1x18x18x16xbf16, #tpu.memory_space<vmem>>, vector<1x18x1x16xbf16>,
    %cst_33 = arith.constant 0.000000e+00 : bf16
    %12 = vector.broadcast %cst_33 : bf16 to vector<1x1x18x8xbf16>
    %cst_34 = arith.constant 0.000000e+00 : bf16
    %13 = vector.broadcast %cst_34 : bf16 to vector<1x18x1x8xbf16>
    %c0_35 = arith.constant 0 : index
    %c0_36 = arith.constant 0 : index
    %c0_37 = arith.constant 0 : index
    %c0_38 = arith.constant 0 : index
    %14 = vector.load %arg12[%c0_35, %c0_36, %c0_37, %c0_38] : memref<1x18x18x8xbf16, #tpu.memory_space<vmem>>, vector<1x1x18x8xbf16>
    tpu.vector_store %arg12[%c0_35, %c0_36, %c0_37, %c0_38], %12 {strides = array<i32>} : memref<1x18x18x8xbf16, #tpu.memory_space<vmem>>, vector<1x1x18x8xbf16>,
    %c0_39 = arith.constant 0 : index
    %c17_40 = arith.constant 17 : index
    %c0_41 = arith.constant 0 : index
    %c0_42 = arith.constant 0 : index
    %15 = vector.load %arg12[%c0_39, %c17_40, %c0_41, %c0_42] : memref<1x18x18x8xbf16, #tpu.memory_space<vmem>>, vector<1x1x18x8xbf16>
    tpu.vector_store %arg12[%c0_39, %c17_40, %c0_41, %c0_42], %12 {strides = array<i32>} : memref<1x18x18x8xbf16, #tpu.memory_space<vmem>>, vector<1x1x18x8xbf16>,
    %c0_43 = arith.constant 0 : index
    %c0_44 = arith.constant 0 : index
    %c0_45 = arith.constant 0 : index
    %c0_46 = arith.constant 0 : index
    %16 = vector.load %arg12[%c0_43, %c0_44, %c0_45, %c0_46] : memref<1x18x18x8xbf16, #tpu.memory_space<vmem>>, vector<1x18x1x8xbf16>
    tpu.vector_store %arg12[%c0_43, %c0_44, %c0_45, %c0_46], %13 {strides = array<i32>} : memref<1x18x18x8xbf16, #tpu.memory_space<vmem>>, vector<1x18x1x8xbf16>,
    %c0_47 = arith.constant 0 : index
    %c0_48 = arith.constant 0 : index
    %c17_49 = arith.constant 17 : index
    %c0_50 = arith.constant 0 : index
    %17 = vector.load %arg12[%c0_47, %c0_48, %c17_49, %c0_50] : memref<1x18x18x8xbf16, #tpu.memory_space<vmem>>, vector<1x18x1x8xbf16>
    tpu.vector_store %arg12[%c0_47, %c0_48, %c17_49, %c0_50], %13 {strides = array<i32>} : memref<1x18x18x8xbf16, #tpu.memory_space<vmem>>, vector<1x18x1x8xbf16>,
    %c0_51 = arith.constant 0 : index
    %c0_52 = arith.constant 0 : index
    %c0_53 = arith.constant 0 : index
    %c0_54 = arith.constant 0 : index
    %18 = vector.load %arg1[%c0_51, %c0_52, %c0_53, %c0_54] : memref<1x16x16x8xf32, #tpu.memory_space<vmem>>, vector<1x16x16x8xf32>
    %19 = arith.truncf %18 : vector<1x16x16x8xf32> to vector<1x16x16x8xbf16>
    %c0_55 = arith.constant 0 : index
    %c1 = arith.constant 1 : index
    %c1_56 = arith.constant 1 : index
    %c0_57 = arith.constant 0 : index
    %20 = vector.load %arg12[%c0_55, %c1, %c1_56, %c0_57] : memref<1x18x18x8xbf16, #tpu.memory_space<vmem>>, vector<1x16x16x8xbf16>
    tpu.vector_store %arg12[%c0_55, %c1, %c1_56, %c0_57], %19 {strides = array<i32>} : memref<1x18x18x8xbf16, #tpu.memory_space<vmem>>, vector<1x16x16x8xbf16>,
    %c0_58 = arith.constant 0 : index
    %c0_59 = arith.constant 0 : index
    %c0_60 = arith.constant 0 : index
    %c0_61 = arith.constant 0 : index
    %21 = vector.load %arg12[%c0_58, %c0_59, %c0_60, %c0_61] : memref<1x18x18x8xbf16, #tpu.memory_space<vmem>>, vector<1x16x16x8xbf16>
    %c0_62 = arith.constant 0 : index
    %c0_63 = arith.constant 0 : index
    %c1_64 = arith.constant 1 : index
    %c0_65 = arith.constant 0 : index
    %22 = vector.load %arg12[%c0_62, %c0_63, %c1_64, %c0_65] : memref<1x18x18x8xbf16, #tpu.memory_space<vmem>>, vector<1x16x16x8xbf16>
    %c0_66 = arith.constant 0 : index
    %c0_67 = arith.constant 0 : index
    %c2 = arith.constant 2 : index
    %c0_68 = arith.constant 0 : index
    %23 = vector.load %arg12[%c0_66, %c0_67, %c2, %c0_68] : memref<1x18x18x8xbf16, #tpu.memory_space<vmem>>, vector<1x16x16x8xbf16>
    %24 = tpu.concatenate %21, %22, %23 in 3 : vector<1x16x16x8xbf16>, vector<1x16x16x8xbf16>, vector<1x16x16x8xbf16> -> vector<1x16x16x24xbf16>
    %25 = vector.shape_cast %24 : vector<1x16x16x24xbf16> to vector<256x24xbf16>
    %c0_69 = arith.constant 0 : index
    %c0_70 = arith.constant 0 : index
    %c0_71 = arith.constant 0 : index
    %26 = vector.load %arg2[%c0_69, %c0_70, %c0_71] : memref<3x24x16xbf16, #tpu.memory_space<vmem>>, vector<1x24x16xbf16>
    %27 = vector.shape_cast %26 : vector<1x24x16xbf16> to vector<24x16xbf16>
    %cst_72 = arith.constant dense<0.000000e+00> : vector<256x16xf32>
    %28 = tpu.matmul %25, %27, %cst_72 {dimension_numbers = #tpu.dot_dimension_numbers<[1], [0], [0], [1], [0, 0, 1, 1], [], []>} : vector<256x24xbf16>, vector<24x16xbf16>, vector<256x16xf32> -> vector<256x16xf32>
    %c0_73 = arith.constant 0 : index
    %c1_74 = arith.constant 1 : index
    %c0_75 = arith.constant 0 : index
    %c0_76 = arith.constant 0 : index
    %29 = vector.load %arg12[%c0_73, %c1_74, %c0_75, %c0_76] : memref<1x18x18x8xbf16, #tpu.memory_space<vmem>>, vector<1x16x16x8xbf16>
    %c0_77 = arith.constant 0 : index
    %c1_78 = arith.constant 1 : index
    %c1_79 = arith.constant 1 : index
    %c0_80 = arith.constant 0 : index
    %30 = vector.load %arg12[%c0_77, %c1_78, %c1_79, %c0_80] : memref<1x18x18x8xbf16, #tpu.memory_space<vmem>>, vector<1x16x16x8xbf16>
    %c0_81 = arith.constant 0 : index
    %c1_82 = arith.constant 1 : index
    %c2_83 = arith.constant 2 : index
    %c0_84 = arith.constant 0 : index
    %31 = vector.load %arg12[%c0_81, %c1_82, %c2_83, %c0_84] : memref<1x18x18x8xbf16, #tpu.memory_space<vmem>>, vector<1x16x16x8xbf16>
    %32 = tpu.concatenate %29, %30, %31 in 3 : vector<1x16x16x8xbf16>, vector<1x16x16x8xbf16>, vector<1x16x16x8xbf16> -> vector<1x16x16x24xbf16>
    %33 = vector.shape_cast %32 : vector<1x16x16x24xbf16> to vector<256x24xbf16>
    %c1_85 = arith.constant 1 : index
    %c0_86 = arith.constant 0 : index
    %c0_87 = arith.constant 0 : index
    %34 = vector.load %arg2[%c1_85, %c0_86, %c0_87] : memref<3x24x16xbf16, #tpu.memory_space<vmem>>, vector<1x24x16xbf16>
    %35 = vector.shape_cast %34 : vector<1x24x16xbf16> to vector<24x16xbf16>
    %cst_88 = arith.constant dense<0.000000e+00> : vector<256x16xf32>
    %36 = tpu.matmul %33, %35, %cst_88 {dimension_numbers = #tpu.dot_dimension_numbers<[1], [0], [0], [1], [0, 0, 1, 1], [], []>} : vector<256x24xbf16>, vector<24x16xbf16>, vector<256x16xf32> -> vector<256x16xf32>
    %37 = arith.addf %28, %36 : vector<256x16xf32>
    %c0_89 = arith.constant 0 : index
    %c2_90 = arith.constant 2 : index
    %c0_91 = arith.constant 0 : index
    %c0_92 = arith.constant 0 : index
    %38 = vector.load %arg12[%c0_89, %c2_90, %c0_91, %c0_92] : memref<1x18x18x8xbf16, #tpu.memory_space<vmem>>, vector<1x16x16x8xbf16>
    %c0_93 = arith.constant 0 : index
    %c2_94 = arith.constant 2 : index
    %c1_95 = arith.constant 1 : index
    %c0_96 = arith.constant 0 : index
    %39 = vector.load %arg12[%c0_93, %c2_94, %c1_95, %c0_96] : memref<1x18x18x8xbf16, #tpu.memory_space<vmem>>, vector<1x16x16x8xbf16>
    %c0_97 = arith.constant 0 : index
    %c2_98 = arith.constant 2 : index
    %c2_99 = arith.constant 2 : index
    %c0_100 = arith.constant 0 : index
    %40 = vector.load %arg12[%c0_97, %c2_98, %c2_99, %c0_100] : memref<1x18x18x8xbf16, #tpu.memory_space<vmem>>, vector<1x16x16x8xbf16>
    %41 = tpu.concatenate %38, %39, %40 in 3 : vector<1x16x16x8xbf16>, vector<1x16x16x8xbf16>, vector<1x16x16x8xbf16> -> vector<1x16x16x24xbf16>
    %42 = vector.shape_cast %41 : vector<1x16x16x24xbf16> to vector<256x24xbf16>
    %c2_101 = arith.constant 2 : index
    %c0_102 = arith.constant 0 : index
    %c0_103 = arith.constant 0 : index
    %43 = vector.load %arg2[%c2_101, %c0_102, %c0_103] : memref<3x24x16xbf16, #tpu.memory_space<vmem>>, vector<1x24x16xbf16>
    %44 = vector.shape_cast %43 : vector<1x24x16xbf16> to vector<24x16xbf16>
    %cst_104 = arith.constant dense<0.000000e+00> : vector<256x16xf32>
    %45 = tpu.matmul %42, %44, %cst_104 {dimension_numbers = #tpu.dot_dimension_numbers<[1], [0], [0], [1], [0, 0, 1, 1], [], []>} : vector<256x24xbf16>, vector<24x16xbf16>, vector<256x16xf32> -> vector<256x16xf32>
    %46 = arith.addf %37, %45 : vector<256x16xf32>
    %c0_105 = arith.constant 0 : index
    %c0_106 = arith.constant 0 : index
    %47 = vector.load %arg3[%c0_105, %c0_106] : memref<1x16xf32, #tpu.memory_space<vmem>>, vector<1x16xf32>
    %48 = vector.broadcast %47 : vector<1x16xf32> to vector<256x16xf32>
    %49 = arith.mulf %46, %48 : vector<256x16xf32>
    %c0_107 = arith.constant 0 : index
    %c0_108 = arith.constant 0 : index
    %50 = vector.load %arg4[%c0_107, %c0_108] : memref<1x16xf32, #tpu.memory_space<vmem>>, vector<1x16xf32>
    %51 = vector.broadcast %50 : vector<1x16xf32> to vector<256x16xf32>
    %52 = arith.addf %49, %51 : vector<256x16xf32>
    %cst_109 = arith.constant 0.000000e+00 : f32
    %53 = vector.broadcast %cst_109 : f32 to vector<256x16xf32>
    %54 = arith.maximumf %52, %53 : vector<256x16xf32>
    %55 = vector.shape_cast %54 : vector<256x16xf32> to vector<1x16x16x16xf32>
    %56 = arith.truncf %55 : vector<1x16x16x16xf32> to vector<1x16x16x16xbf16>
    %c0_110 = arith.constant 0 : index
    %c1_111 = arith.constant 1 : index
    %c1_112 = arith.constant 1 : index
    %c0_113 = arith.constant 0 : index
    %57 = vector.load %arg13[%c0_110, %c1_111, %c1_112, %c0_113] : memref<1x18x18x16xbf16, #tpu.memory_space<vmem>>, vector<1x16x16x16xbf16>
    tpu.vector_store %arg13[%c0_110, %c1_111, %c1_112, %c0_113], %56 {strides = array<i32>} : memref<1x18x18x16xbf16, #tpu.memory_space<vmem>>, vector<1x16x16x16xbf16>,
    %c0_114 = arith.constant 0 : index
    %c0_115 = arith.constant 0 : index
    %c0_116 = arith.constant 0 : index
    %c0_117 = arith.constant 0 : index
    %58 = vector.load %arg13[%c0_114, %c0_115, %c0_116, %c0_117] : memref<1x18x18x16xbf16, #tpu.memory_space<vmem>>, vector<1x16x16x16xbf16>
    %c0_118 = arith.constant 0 : index
    %c0_119 = arith.constant 0 : index
    %c1_120 = arith.constant 1 : index
    %c0_121 = arith.constant 0 : index
    %59 = vector.load %arg13[%c0_118, %c0_119, %c1_120, %c0_121] : memref<1x18x18x16xbf16, #tpu.memory_space<vmem>>, vector<1x16x16x16xbf16>
    %c0_122 = arith.constant 0 : index
    %c0_123 = arith.constant 0 : index
    %c2_124 = arith.constant 2 : index
    %c0_125 = arith.constant 0 : index
    %60 = vector.load %arg13[%c0_122, %c0_123, %c2_124, %c0_125] : memref<1x18x18x16xbf16, #tpu.memory_space<vmem>>, vector<1x16x16x16xbf16>
    %61 = tpu.concatenate %58, %59, %60 in 3 : vector<1x16x16x16xbf16>, vector<1x16x16x16xbf16>, vector<1x16x16x16xbf16> -> vector<1x16x16x48xbf16>
    %62 = vector.shape_cast %61 : vector<1x16x16x48xbf16> to vector<256x48xbf16>
    %c0_126 = arith.constant 0 : index
    %c0_127 = arith.constant 0 : index
    %c0_128 = arith.constant 0 : index
    %63 = vector.load %arg5[%c0_126, %c0_127, %c0_128] : memref<3x48x16xbf16, #tpu.memory_space<vmem>>, vector<1x48x16xbf16>
    %64 = vector.shape_cast %63 : vector<1x48x16xbf16> to vector<48x16xbf16>
    %cst_129 = arith.constant dense<0.000000e+00> : vector<256x16xf32>
    %65 = tpu.matmul %62, %64, %cst_129 {dimension_numbers = #tpu.dot_dimension_numbers<[1], [0], [0], [1], [0, 0, 1, 1], [], []>} : vector<256x48xbf16>, vector<48x16xbf16>, vector<256x16xf32> -> vector<256x16xf32>
    %c0_130 = arith.constant 0 : index
    %c1_131 = arith.constant 1 : index
    %c0_132 = arith.constant 0 : index
    %c0_133 = arith.constant 0 : index
    %66 = vector.load %arg13[%c0_130, %c1_131, %c0_132, %c0_133] : memref<1x18x18x16xbf16, #tpu.memory_space<vmem>>, vector<1x16x16x16xbf16>
    %c0_134 = arith.constant 0 : index
    %c1_135 = arith.constant 1 : index
    %c1_136 = arith.constant 1 : index
    %c0_137 = arith.constant 0 : index
    %67 = vector.load %arg13[%c0_134, %c1_135, %c1_136, %c0_137] : memref<1x18x18x16xbf16, #tpu.memory_space<vmem>>, vector<1x16x16x16xbf16>
    %c0_138 = arith.constant 0 : index
    %c1_139 = arith.constant 1 : index
    %c2_140 = arith.constant 2 : index
    %c0_141 = arith.constant 0 : index
    %68 = vector.load %arg13[%c0_138, %c1_139, %c2_140, %c0_141] : memref<1x18x18x16xbf16, #tpu.memory_space<vmem>>, vector<1x16x16x16xbf16>
    %69 = tpu.concatenate %66, %67, %68 in 3 : vector<1x16x16x16xbf16>, vector<1x16x16x16xbf16>, vector<1x16x16x16xbf16> -> vector<1x16x16x48xbf16>
    %70 = vector.shape_cast %69 : vector<1x16x16x48xbf16> to vector<256x48xbf16>
    %c1_142 = arith.constant 1 : index
    %c0_143 = arith.constant 0 : index
    %c0_144 = arith.constant 0 : index
    %71 = vector.load %arg5[%c1_142, %c0_143, %c0_144] : memref<3x48x16xbf16, #tpu.memory_space<vmem>>, vector<1x48x16xbf16>
    %72 = vector.shape_cast %71 : vector<1x48x16xbf16> to vector<48x16xbf16>
    %cst_145 = arith.constant dense<0.000000e+00> : vector<256x16xf32>
    %73 = tpu.matmul %70, %72, %cst_145 {dimension_numbers = #tpu.dot_dimension_numbers<[1], [0], [0], [1], [0, 0, 1, 1], [], []>} : vector<256x48xbf16>, vector<48x16xbf16>, vector<256x16xf32> -> vector<256x16xf32>
    %74 = arith.addf %65, %73 : vector<256x16xf32>
    %c0_146 = arith.constant 0 : index
    %c2_147 = arith.constant 2 : index
    %c0_148 = arith.constant 0 : index
    %c0_149 = arith.constant 0 : index
    %75 = vector.load %arg13[%c0_146, %c2_147, %c0_148, %c0_149] : memref<1x18x18x16xbf16, #tpu.memory_space<vmem>>, vector<1x16x16x16xbf16>
    %c0_150 = arith.constant 0 : index
    %c2_151 = arith.constant 2 : index
    %c1_152 = arith.constant 1 : index
    %c0_153 = arith.constant 0 : index
    %76 = vector.load %arg13[%c0_150, %c2_151, %c1_152, %c0_153] : memref<1x18x18x16xbf16, #tpu.memory_space<vmem>>, vector<1x16x16x16xbf16>
    %c0_154 = arith.constant 0 : index
    %c2_155 = arith.constant 2 : index
    %c2_156 = arith.constant 2 : index
    %c0_157 = arith.constant 0 : index
    %77 = vector.load %arg13[%c0_154, %c2_155, %c2_156, %c0_157] : memref<1x18x18x16xbf16, #tpu.memory_space<vmem>>, vector<1x16x16x16xbf16>
    %78 = tpu.concatenate %75, %76, %77 in 3 : vector<1x16x16x16xbf16>, vector<1x16x16x16xbf16>, vector<1x16x16x16xbf16> -> vector<1x16x16x48xbf16>
    %79 = vector.shape_cast %78 : vector<1x16x16x48xbf16> to vector<256x48xbf16>
    %c2_158 = arith.constant 2 : index
    %c0_159 = arith.constant 0 : index
    %c0_160 = arith.constant 0 : index
    %80 = vector.load %arg5[%c2_158, %c0_159, %c0_160] : memref<3x48x16xbf16, #tpu.memory_space<vmem>>, vector<1x48x16xbf16>
    %81 = vector.shape_cast %80 : vector<1x48x16xbf16> to vector<48x16xbf16>
    %cst_161 = arith.constant dense<0.000000e+00> : vector<256x16xf32>
    %82 = tpu.matmul %79, %81, %cst_161 {dimension_numbers = #tpu.dot_dimension_numbers<[1], [0], [0], [1], [0, 0, 1, 1], [], []>} : vector<256x48xbf16>, vector<48x16xbf16>, vector<256x16xf32> -> vector<256x16xf32>
    %83 = arith.addf %74, %82 : vector<256x16xf32>
    %c0_162 = arith.constant 0 : index
    %c0_163 = arith.constant 0 : index
    %84 = vector.load %arg6[%c0_162, %c0_163] : memref<1x16xf32, #tpu.memory_space<vmem>>, vector<1x16xf32>
    %85 = vector.broadcast %84 : vector<1x16xf32> to vector<256x16xf32>
    %86 = arith.mulf %83, %85 : vector<256x16xf32>
    %c0_164 = arith.constant 0 : index
    %c0_165 = arith.constant 0 : index
    %87 = vector.load %arg7[%c0_164, %c0_165] : memref<1x16xf32, #tpu.memory_space<vmem>>, vector<1x16xf32>
    %88 = vector.broadcast %87 : vector<1x16xf32> to vector<256x16xf32>
    %89 = arith.addf %86, %88 : vector<256x16xf32>
    %cst_166 = arith.constant 0.000000e+00 : f32
    %90 = vector.broadcast %cst_166 : f32 to vector<256x16xf32>
    %91 = arith.maximumf %89, %90 : vector<256x16xf32>
    %92 = vector.shape_cast %91 : vector<256x16xf32> to vector<1x16x16x16xf32>
    %93 = arith.truncf %92 : vector<1x16x16x16xf32> to vector<1x16x16x16xbf16>
    %c0_167 = arith.constant 0 : index
    %c1_168 = arith.constant 1 : index
    %c1_169 = arith.constant 1 : index
    %c0_170 = arith.constant 0 : index
    %94 = vector.load %arg14[%c0_167, %c1_168, %c1_169, %c0_170] : memref<1x18x18x16xbf16, #tpu.memory_space<vmem>>, vector<1x16x16x16xbf16>
    tpu.vector_store %arg14[%c0_167, %c1_168, %c1_169, %c0_170], %93 {strides = array<i32>} : memref<1x18x18x16xbf16, #tpu.memory_space<vmem>>, vector<1x16x16x16xbf16>,
    %c0_171 = arith.constant 0 : index
    %c0_172 = arith.constant 0 : index
    %c0_173 = arith.constant 0 : index
    %c0_174 = arith.constant 0 : index
    %95 = vector.load %arg14[%c0_171, %c0_172, %c0_173, %c0_174] : memref<1x18x18x16xbf16, #tpu.memory_space<vmem>>, vector<1x16x16x16xbf16>
    %c0_175 = arith.constant 0 : index
    %c0_176 = arith.constant 0 : index
    %c1_177 = arith.constant 1 : index
    %c0_178 = arith.constant 0 : index
    %96 = vector.load %arg14[%c0_175, %c0_176, %c1_177, %c0_178] : memref<1x18x18x16xbf16, #tpu.memory_space<vmem>>, vector<1x16x16x16xbf16>
    %c0_179 = arith.constant 0 : index
    %c0_180 = arith.constant 0 : index
    %c2_181 = arith.constant 2 : index
    %c0_182 = arith.constant 0 : index
    %97 = vector.load %arg14[%c0_179, %c0_180, %c2_181, %c0_182] : memref<1x18x18x16xbf16, #tpu.memory_space<vmem>>, vector<1x16x16x16xbf16>
    %98 = tpu.concatenate %95, %96, %97 in 3 : vector<1x16x16x16xbf16>, vector<1x16x16x16xbf16>, vector<1x16x16x16xbf16> -> vector<1x16x16x48xbf16>
    %99 = vector.shape_cast %98 : vector<1x16x16x48xbf16> to vector<256x48xbf16>
    %c0_183 = arith.constant 0 : index
    %c0_184 = arith.constant 0 : index
    %c0_185 = arith.constant 0 : index
    %100 = vector.load %arg8[%c0_183, %c0_184, %c0_185] : memref<3x48x16xbf16, #tpu.memory_space<vmem>>, vector<1x48x16xbf16>
    %101 = vector.shape_cast %100 : vector<1x48x16xbf16> to vector<48x16xbf16>
    %cst_186 = arith.constant dense<0.000000e+00> : vector<256x16xf32>
    %102 = tpu.matmul %99, %101, %cst_186 {dimension_numbers = #tpu.dot_dimension_numbers<[1], [0], [0], [1], [0, 0, 1, 1], [], []>} : vector<256x48xbf16>, vector<48x16xbf16>, vector<256x16xf32> -> vector<256x16xf32>
    %c0_187 = arith.constant 0 : index
    %c1_188 = arith.constant 1 : index
    %c0_189 = arith.constant 0 : index
    %c0_190 = arith.constant 0 : index
    %103 = vector.load %arg14[%c0_187, %c1_188, %c0_189, %c0_190] : memref<1x18x18x16xbf16, #tpu.memory_space<vmem>>, vector<1x16x16x16xbf16>
    %c0_191 = arith.constant 0 : index
    %c1_192 = arith.constant 1 : index
    %c1_193 = arith.constant 1 : index
    %c0_194 = arith.constant 0 : index
    %104 = vector.load %arg14[%c0_191, %c1_192, %c1_193, %c0_194] : memref<1x18x18x16xbf16, #tpu.memory_space<vmem>>, vector<1x16x16x16xbf16>
    %c0_195 = arith.constant 0 : index
    %c1_196 = arith.constant 1 : index
    %c2_197 = arith.constant 2 : index
    %c0_198 = arith.constant 0 : index
    %105 = vector.load %arg14[%c0_195, %c1_196, %c2_197, %c0_198] : memref<1x18x18x16xbf16, #tpu.memory_space<vmem>>, vector<1x16x16x16xbf16>
    %106 = tpu.concatenate %103, %104, %105 in 3 : vector<1x16x16x16xbf16>, vector<1x16x16x16xbf16>, vector<1x16x16x16xbf16> -> vector<1x16x16x48xbf16>
    %107 = vector.shape_cast %106 : vector<1x16x16x48xbf16> to vector<256x48xbf16>
    %c1_199 = arith.constant 1 : index
    %c0_200 = arith.constant 0 : index
    %c0_201 = arith.constant 0 : index
    %108 = vector.load %arg8[%c1_199, %c0_200, %c0_201] : memref<3x48x16xbf16, #tpu.memory_space<vmem>>, vector<1x48x16xbf16>
    %109 = vector.shape_cast %108 : vector<1x48x16xbf16> to vector<48x16xbf16>
    %cst_202 = arith.constant dense<0.000000e+00> : vector<256x16xf32>
    %110 = tpu.matmul %107, %109, %cst_202 {dimension_numbers = #tpu.dot_dimension_numbers<[1], [0], [0], [1], [0, 0, 1, 1], [], []>} : vector<256x48xbf16>, vector<48x16xbf16>, vector<256x16xf32> -> vector<256x16xf32>
    %111 = arith.addf %102, %110 : vector<256x16xf32>
    %c0_203 = arith.constant 0 : index
    %c2_204 = arith.constant 2 : index
    %c0_205 = arith.constant 0 : index
    %c0_206 = arith.constant 0 : index
    %112 = vector.load %arg14[%c0_203, %c2_204, %c0_205, %c0_206] : memref<1x18x18x16xbf16, #tpu.memory_space<vmem>>, vector<1x16x16x16xbf16>
    %c0_207 = arith.constant 0 : index
    %c2_208 = arith.constant 2 : index
    %c1_209 = arith.constant 1 : index
    %c0_210 = arith.constant 0 : index
    %113 = vector.load %arg14[%c0_207, %c2_208, %c1_209, %c0_210] : memref<1x18x18x16xbf16, #tpu.memory_space<vmem>>, vector<1x16x16x16xbf16>
    %c0_211 = arith.constant 0 : index
    %c2_212 = arith.constant 2 : index
    %c2_213 = arith.constant 2 : index
    %c0_214 = arith.constant 0 : index
    %114 = vector.load %arg14[%c0_211, %c2_212, %c2_213, %c0_214] : memref<1x18x18x16xbf16, #tpu.memory_space<vmem>>, vector<1x16x16x16xbf16>
    %115 = tpu.concatenate %112, %113, %114 in 3 : vector<1x16x16x16xbf16>, vector<1x16x16x16xbf16>, vector<1x16x16x16xbf16> -> vector<1x16x16x48xbf16>
    %116 = vector.shape_cast %115 : vector<1x16x16x48xbf16> to vector<256x48xbf16>
    %c2_215 = arith.constant 2 : index
    %c0_216 = arith.constant 0 : index
    %c0_217 = arith.constant 0 : index
    %117 = vector.load %arg8[%c2_215, %c0_216, %c0_217] : memref<3x48x16xbf16, #tpu.memory_space<vmem>>, vector<1x48x16xbf16>
    %118 = vector.shape_cast %117 : vector<1x48x16xbf16> to vector<48x16xbf16>
    %cst_218 = arith.constant dense<0.000000e+00> : vector<256x16xf32>
    %119 = tpu.matmul %116, %118, %cst_218 {dimension_numbers = #tpu.dot_dimension_numbers<[1], [0], [0], [1], [0, 0, 1, 1], [], []>} : vector<256x48xbf16>, vector<48x16xbf16>, vector<256x16xf32> -> vector<256x16xf32>
    %120 = arith.addf %111, %119 : vector<256x16xf32>
    %c0_219 = arith.constant 0 : index
    %c0_220 = arith.constant 0 : index
    %121 = vector.load %arg9[%c0_219, %c0_220] : memref<1x16xf32, #tpu.memory_space<vmem>>, vector<1x16xf32>
    %122 = vector.broadcast %121 : vector<1x16xf32> to vector<256x16xf32>
    %123 = arith.mulf %120, %122 : vector<256x16xf32>
    %c0_221 = arith.constant 0 : index
    %c0_222 = arith.constant 0 : index
    %124 = vector.load %arg10[%c0_221, %c0_222] : memref<1x16xf32, #tpu.memory_space<vmem>>, vector<1x16xf32>
    %125 = vector.broadcast %124 : vector<1x16xf32> to vector<256x16xf32>
    %126 = arith.addf %123, %125 : vector<256x16xf32>
    %cst_223 = arith.constant 0.000000e+00 : f32
    %127 = vector.broadcast %cst_223 : f32 to vector<256x16xf32>
    %128 = arith.maximumf %126, %127 : vector<256x16xf32>
    %129 = vector.shape_cast %128 : vector<256x16xf32> to vector<1x256x16xf32>
    %c0_224 = arith.constant 0 : index
    %c0_225 = arith.constant 0 : index
    %c0_226 = arith.constant 0 : index
    %130 = vector.load %arg11[%c0_224, %c0_225, %c0_226] : memref<1x256x16xf32, #tpu.memory_space<vmem>>, vector<1x256x16xf32>
    tpu.vector_store %arg11[%c0_224, %c0_225, %c0_226], %129 {strides = array<i32>} : memref<1x256x16xf32, #tpu.memory_space<vmem>>, vector<1x256x16xf32>,
    return
  }
  func.func @transform_0(%arg0: i32) -> (i32, i32, i32, i32) {
    %c0_i32 = arith.constant 0 : i32
    %c0_i32_0 = arith.constant 0 : i32
    %c0_i32_1 = arith.constant 0 : i32
    %c0_i32_2 = arith.constant 0 : i32
    return %arg0, %c0_i32, %c0_i32_0, %c0_i32_1 : i32, i32, i32, i32
  }
  func.func @transform_1(%arg0: i32) -> (i32, i32, i32) {
    %c0_i32 = arith.constant 0 : i32
    %c0_i32_0 = arith.constant 0 : i32
    %c0_i32_1 = arith.constant 0 : i32
    %c0_i32_2 = arith.constant 0 : i32
    return %c0_i32, %c0_i32_0, %c0_i32_1 : i32, i32, i32
  }
  func.func @transform_2(%arg0: i32) -> (i32, i32) {
    %c0_i32 = arith.constant 0 : i32
    %c0_i32_0 = arith.constant 0 : i32
    %c0_i32_1 = arith.constant 0 : i32
    return %c0_i32, %c0_i32_0 : i32, i32
  }
  func.func @transform_3(%arg0: i32) -> (i32, i32) {
    %c0_i32 = arith.constant 0 : i32
    %c0_i32_0 = arith.constant 0 : i32
    %c0_i32_1 = arith.constant 0 : i32
    return %c0_i32, %c0_i32_0 : i32, i32
  }
  func.func @transform_4(%arg0: i32) -> (i32, i32, i32) {
    %c0_i32 = arith.constant 0 : i32
    %c0_i32_0 = arith.constant 0 : i32
    %c0_i32_1 = arith.constant 0 : i32
    %c0_i32_2 = arith.constant 0 : i32
    return %c0_i32, %c0_i32_0, %c0_i32_1 : i32, i32, i32
  }
  func.func @transform_5(%arg0: i32) -> (i32, i32) {
    %c0_i32 = arith.constant 0 : i32
    %c0_i32_0 = arith.constant 0 : i32
    %c0_i32_1 = arith.constant 0 : i32
    return %c0_i32, %c0_i32_0 : i32, i32
  }
  func.func @transform_6(%arg0: i32) -> (i32, i32) {
    %c0_i32 = arith.constant 0 : i32
    %c0_i32_0 = arith.constant 0 : i32
    %c0_i32_1 = arith.constant 0 : i32
    return %c0_i32, %c0_i32_0 : i32, i32
  }
  func.func @transform_7(%arg0: i32) -> (i32, i32, i32) {
    %c0_i32 = arith.constant 0 : i32
    %c0_i32_0 = arith.constant 0 : i32
    %c0_i32_1 = arith.constant 0 : i32
    %c0_i32_2 = arith.constant 0 : i32
    return %c0_i32, %c0_i32_0, %c0_i32_1 : i32, i32, i32
  }
  func.func @transform_8(%arg0: i32) -> (i32, i32) {
    %c0_i32 = arith.constant 0 : i32
    %c0_i32_0 = arith.constant 0 : i32
    %c0_i32_1 = arith.constant 0 : i32
    return %c0_i32, %c0_i32_0 : i32, i32
  }
  func.func @transform_9(%arg0: i32) -> (i32, i32) {
    %c0_i32 = arith.constant 0 : i32
    %c0_i32_0 = arith.constant 0 : i32
    %c0_i32_1 = arith.constant 0 : i32
    return %c0_i32, %c0_i32_0 : i32, i32
  }
  func.func @transform_10(%arg0: i32) -> (i32, i32, i32) {
    %c0_i32 = arith.constant 0 : i32
    %c0_i32_0 = arith.constant 0 : i32
    %c0_i32_1 = arith.constant 0 : i32
    return %arg0, %c0_i32, %c0_i32_0 : i32, i32, i32
  }
}

</mosaic_0001>

<llo_original>
// kernel: tpu_custom_call.1
$region0: #{tpu_custom_call.1}
  #allocation0 [shape = 'u32[]', space=smem, size = 0x4, offset = 0x4, fixed_abs, tag = 'smem constant byte address 0x4 - core index']
  #allocation1 [shape = 'u32[144,128]{1,0:T(1,128)}', space=vmem, size = 0x12000, scoped, tag = 'internal scratch']
  #allocation2 [shape = 'bf16[1,18,18,8]{3,2,1,0:T(8,128)(2,1)}', space=vmem, size = 0x1b000, scoped, tag = 'scratch operand']
  #allocation3 [shape = 'bf16[1,18,18,16]{3,2,1,0:T(8,128)(2,1)}', space=vmem, size = 0x1b000, scoped, tag = 'scratch operand']
  #allocation4 [shape = 'bf16[1,18,18,16]{3,2,1,0:T(8,128)(2,1)}', space=vmem, size = 0x1b000, scoped, tag = 'scratch operand']
  %s0 = inlined_call_operand.vmem [shape: f32[5,16,16,8], index: 0, kind: input, shape index: {}]
  %s1 = inlined_call_operand.vmem [shape: bf16[3,24,16], index: 1, kind: input, shape index: {}]
  %s2 = inlined_call_operand.vmem [shape: f32[1,16], index: 2, kind: input, shape index: {}]
  %s3 = inlined_call_operand.vmem [shape: f32[1,16], index: 3, kind: input, shape index: {}]
  %s4 = inlined_call_operand.vmem [shape: bf16[3,48,16], index: 4, kind: input, shape index: {}]
  %s5 = inlined_call_operand.vmem [shape: f32[1,16], index: 5, kind: input, shape index: {}]
  %s6 = inlined_call_operand.vmem [shape: f32[1,16], index: 6, kind: input, shape index: {}]
  %s7 = inlined_call_operand.vmem [shape: bf16[3,48,16], index: 7, kind: input, shape index: {}]
  %s8 = inlined_call_operand.vmem [shape: f32[1,16], index: 8, kind: input, shape index: {}]
  %s9 = inlined_call_operand.vmem [shape: f32[1,16], index: 9, kind: input, shape index: {}]
  %s10 = inlined_call_operand.vmem [shape: f32[5,256,16], index: 10, kind: output, shape index: {}]
  %s11 = sld [smem:[#allocation0]]
  $region73: #{tpu_custom_call.1} parent=0
    _
  %s13 = ssub.s32 1, %s11
  %s14 = scalar_select 0, %s13, %s11
  loop: start=0, step=1, limit=7
  $region2: #{tpu_custom_call.1} parent=0 // loop_pre_header
    _
  $region3: #{tpu_custom_call.1} parent=0 // loop_header
    %s16 = sphi 0, %s20
    %p17 = scmp.ge.s32.totalorder %s16, 7
    %s26 = sphi 0, %s28
    %s29 = sphi 0, %s26
    %s30 = sphi 0, %s29
    %s46 = sphi 0, %s30
    %s50 = sphi 0, %s50
    %s52 = sphi 0, %s50
    %s53 = sphi 0, %s52
    %s67 = sphi 0, %s53
    %s71 = sphi 0, %s71
    %s73 = sphi 0, %s71
    %s74 = sphi 0, %s73
    %s88 = sphi 0, %s74
    %s92 = sphi 0, %s92
    %s94 = sphi 0, %s92
    %s95 = sphi 0, %s94
    %s109 = sphi 0, %s95
    %s113 = sphi 0, %s113
    %s115 = sphi 0, %s113
    %s116 = sphi 0, %s115
    %s130 = sphi 0, %s116
    %s134 = sphi 0, %s134
    %s136 = sphi 0, %s134
    %s137 = sphi 0, %s136
    %s151 = sphi 0, %s137
    %s155 = sphi 0, %s155
    %s157 = sphi 0, %s155
    %s158 = sphi 0, %s157
    %s172 = sphi 0, %s158
    %s176 = sphi 0, %s176
    %s178 = sphi 0, %s176
    %s179 = sphi 0, %s178
    %s193 = sphi 0, %s179
    %s197 = sphi 0, %s197
    %s199 = sphi 0, %s197
    %s200 = sphi 0, %s199
    %s214 = sphi 0, %s200
    %s218 = sphi 0, %s218
    %s220 = sphi 0, %s218
    %s221 = sphi 0, %s220
    %s235 = sphi 0, %s221
    %s241 = sphi 0, %s243
    %s244 = sphi 0, %s241
    %s245 = sphi 0, %s244
    %s261 = sphi 0, %s245
  $region4: #{tpu_custom_call.1} parent=0 // loop_header_branch
    %19 = sbr.rel (%p17) target = $region8
  $region5: #{tpu_custom_call.1} parent=0 // loop_body
    %s21 = ssub.s32 %s16, 1
    %s22 = ssub.s32 %s16, 2
    %s23 = sadd.s32 %s16, 1
    %s24 = ssub.s32 %s16, %s23
    %p25 = scmp.eq.s32.totalorder %s24, 0
    %s27 = sadd.s32 %s26, 1
    %s28 = scalar_select %p25, %s26, %s27
    %p31 = pneg %p25
    %p32 = scmp.eq.s32.totalorder %s16, 4
    %p33 = por %p31, %p32
    %p34 = scmp.ne.s32.totalorder %s26, %s29
    %p35 = scmp.eq.s32.totalorder %s16, 0
    %p36 = por %p34, %p35
    %p37 = scmp.ne.s32.totalorder %s26, %s29
    %p38 = scmp.eq.s32.totalorder %s21, 4
    %p39 = por %p37, %p38
    %p40 = scmp.ne.s32.totalorder %s29, %s30
    %p41 = scmp.eq.s32.totalorder %s21, 0
    %p42 = por %p40, %p41
    %p43 = scmp.ne.s32.totalorder %s29, %s30
    %p44 = scmp.eq.s32.totalorder %s22, 4
    %p45 = por %p43, %p44
    %p47 = scmp.ne.s32.totalorder %s30, %s46
    %p48 = scmp.eq.s32.totalorder %s22, 0
    %p49 = por %p47, %p48
    %s51 = sadd.s32 %s50, 1
    %p54 = scmp.eq.s32.totalorder %s16, 4
    %p55 = scmp.ne.s32.totalorder %s50, %s52
    %p56 = scmp.eq.s32.totalorder %s16, 0
    %p57 = por %p55, %p56
    %p58 = scmp.ne.s32.totalorder %s50, %s52
    %p59 = scmp.eq.s32.totalorder %s21, 4
    %p60 = por %p58, %p59
    %p61 = scmp.ne.s32.totalorder %s52, %s53
    %p62 = scmp.eq.s32.totalorder %s21, 0
    %p63 = por %p61, %p62
    %p64 = scmp.ne.s32.totalorder %s52, %s53
    %p65 = scmp.eq.s32.totalorder %s22, 4
    %p66 = por %p64, %p65
    %p68 = scmp.ne.s32.totalorder %s53, %s67
    %p69 = scmp.eq.s32.totalorder %s22, 0
    %p70 = por %p68, %p69
    %s72 = sadd.s32 %s71, 1
    %p75 = scmp.eq.s32.totalorder %s16, 4
    %p76 = scmp.ne.s32.totalorder %s71, %s73
    %p77 = scmp.eq.s32.totalorder %s16, 0
    %p78 = por %p76, %p77
    %p79 = scmp.ne.s32.totalorder %s71, %s73
    %p80 = scmp.eq.s32.totalorder %s21, 4
    %p81 = por %p79, %p80
    %p82 = scmp.ne.s32.totalorder %s73, %s74
    %p83 = scmp.eq.s32.totalorder %s21, 0
    %p84 = por %p82, %p83
    %p85 = scmp.ne.s32.totalorder %s73, %s74
    %p86 = scmp.eq.s32.totalorder %s22, 4
    %p87 = por %p85, %p86
    %p89 = scmp.ne.s32.totalorder %s74, %s88
    %p90 = scmp.eq.s32.totalorder %s22, 0
    %p91 = por %p89, %p90
    %s93 = sadd.s32 %s92, 1
    %p96 = scmp.eq.s32.totalorder %s16, 4
    %p97 = scmp.ne.s32.totalorder %s92, %s94
    %p98 = scmp.eq.s32.totalorder %s16, 0
    %p99 = por %p97, %p98
    %p100 = scmp.ne.s32.totalorder %s92, %s94
    %p101 = scmp.eq.s32.totalorder %s21, 4
    %p102 = por %p100, %p101
    %p103 = scmp.ne.s32.totalorder %s94, %s95
    %p104 = scmp.eq.s32.totalorder %s21, 0
    %p105 = por %p103, %p104
    %p106 = scmp.ne.s32.totalorder %s94, %s95
    %p107 = scmp.eq.s32.totalorder %s22, 4
    %p108 = por %p106, %p107
    %p110 = scmp.ne.s32.totalorder %s95, %s109
    %p111 = scmp.eq.s32.totalorder %s22, 0
    %p112 = por %p110, %p111
    %s114 = sadd.s32 %s113, 1
    %p117 = scmp.eq.s32.totalorder %s16, 4
    %p118 = scmp.ne.s32.totalorder %s113, %s115
    %p119 = scmp.eq.s32.totalorder %s16, 0
    %p120 = por %p118, %p119
    %p121 = scmp.ne.s32.totalorder %s113, %s115
    %p122 = scmp.eq.s32.totalorder %s21, 4
    %p123 = por %p121, %p122
    %p124 = scmp.ne.s32.totalorder %s115, %s116
    %p125 = scmp.eq.s32.totalorder %s21, 0
    %p126 = por %p124, %p125
    %p127 = scmp.ne.s32.totalorder %s115, %s116
    %p128 = scmp.eq.s32.totalorder %s22, 4
    %p129 = por %p127, %p128
    %p131 = scmp.ne.s32.totalorder %s116, %s130
    %p132 = scmp.eq.s32.totalorder %s22, 0
    %p133 = por %p131, %p132
    %s135 = sadd.s32 %s134, 1
    %p138 = scmp.eq.s32.totalorder %s16, 4
    %p139 = scmp.ne.s32.totalorder %s134, %s136
    %p140 = scmp.eq.s32.totalorder %s16, 0
    %p141 = por %p139, %p140
    %p142 = scmp.ne.s32.totalorder %s134, %s136
    %p143 = scmp.eq.s32.totalorder %s21, 4
    %p144 = por %p142, %p143
    %p145 = scmp.ne.s32.totalorder %s136, %s137
    %p146 = scmp.eq.s32.totalorder %s21, 0
    %p147 = por %p145, %p146
    %p148 = scmp.ne.s32.totalorder %s136, %s137
    %p149 = scmp.eq.s32.totalorder %s22, 4
    %p150 = por %p148, %p149
    %p152 = scmp.ne.s32.totalorder %s137, %s151
    %p153 = scmp.eq.s32.totalorder %s22, 0
    %p154 = por %p152, %p153
    %s156 = sadd.s32 %s155, 1
    %p159 = scmp.eq.s32.totalorder %s16, 4
    %p160 = scmp.ne.s32.totalorder %s155, %s157
    %p161 = scmp.eq.s32.totalorder %s16, 0
    %p162 = por %p160, %p161
    %p163 = scmp.ne.s32.totalorder %s155, %s157
    %p164 = scmp.eq.s32.totalorder %s21, 4
    %p165 = por %p163, %p164
    %p166 = scmp.ne.s32.totalorder %s157, %s158
    %p167 = scmp.eq.s32.totalorder %s21, 0
    %p168 = por %p166, %p167
    %p169 = scmp.ne.s32.totalorder %s157, %s158
    %p170 = scmp.eq.s32.totalorder %s22, 4
    %p171 = por %p169, %p170
    %p173 = scmp.ne.s32.totalorder %s158, %s172
    %p174 = scmp.eq.s32.totalorder %s22, 0
    %p175 = por %p173, %p174
    %s177 = sadd.s32 %s176, 1
    %p180 = scmp.eq.s32.totalorder %s16, 4
    %p181 = scmp.ne.s32.totalorder %s176, %s178
    %p182 = scmp.eq.s32.totalorder %s16, 0
    %p183 = por %p181, %p182
    %p184 = scmp.ne.s32.totalorder %s176, %s178
    %p185 = scmp.eq.s32.totalorder %s21, 4
    %p186 = por %p184, %p185
    %p187 = scmp.ne.s32.totalorder %s178, %s179
    %p188 = scmp.eq.s32.totalorder %s21, 0
    %p189 = por %p187, %p188
    %p190 = scmp.ne.s32.totalorder %s178, %s179
    %p191 = scmp.eq.s32.totalorder %s22, 4
    %p192 = por %p190, %p191
    %p194 = scmp.ne.s32.totalorder %s179, %s193
    %p195 = scmp.eq.s32.totalorder %s22, 0
    %p196 = por %p194, %p195
    %s198 = sadd.s32 %s197, 1
    %p201 = scmp.eq.s32.totalorder %s16, 4
    %p202 = scmp.ne.s32.totalorder %s197, %s199
    %p203 = scmp.eq.s32.totalorder %s16, 0
    %p204 = por %p202, %p203
    %p205 = scmp.ne.s32.totalorder %s197, %s199
    %p206 = scmp.eq.s32.totalorder %s21, 4
    %p207 = por %p205, %p206
    %p208 = scmp.ne.s32.totalorder %s199, %s200
    %p209 = scmp.eq.s32.totalorder %s21, 0
    %p210 = por %p208, %p209
    %p211 = scmp.ne.s32.totalorder %s199, %s200
    %p212 = scmp.eq.s32.totalorder %s22, 4
    %p213 = por %p211, %p212
    %p215 = scmp.ne.s32.totalorder %s200, %s214
    %p216 = scmp.eq.s32.totalorder %s22, 0
    %p217 = por %p215, %p216
    %s219 = sadd.s32 %s218, 1
    %p222 = scmp.eq.s32.totalorder %s16, 4
    %p223 = scmp.ne.s32.totalorder %s218, %s220
    %p224 = scmp.eq.s32.totalorder %s16, 0
    %p225 = por %p223, %p224
    %p226 = scmp.ne.s32.totalorder %s218, %s220
    %p227 = scmp.eq.s32.totalorder %s21, 4
    %p228 = por %p226, %p227
    %p229 = scmp.ne.s32.totalorder %s220, %s221
    %p230 = scmp.eq.s32.totalorder %s21, 0
    %p231 = por %p229, %p230
    %p232 = scmp.ne.s32.totalorder %s220, %s221
    %p233 = scmp.eq.s32.totalorder %s22, 4
    %p234 = por %p232, %p233
    %p236 = scmp.ne.s32.totalorder %s221, %s235
    %p237 = scmp.eq.s32.totalorder %s22, 0
    %p238 = por %p236, %p237
    %s239 = ssub.s32 %s16, %s23
    %p240 = scmp.eq.s32.totalorder %s239, 0
    %s242 = sadd.s32 %s241, 1
    %s243 = scalar_select %p240, %s241, %s242
    %p246 = pneg %p240
    %p247 = scmp.eq.s32.totalorder %s16, 4
    %p248 = por %p246, %p247
    %p249 = scmp.ne.s32.totalorder %s241, %s244
    %p250 = scmp.eq.s32.totalorder %s16, 0
    %p251 = por %p249, %p250
    %p252 = scmp.ne.s32.totalorder %s241, %s244
    %p253 = scmp.eq.s32.totalorder %s21, 4
    %p254 = por %p252, %p253
    %p255 = scmp.ne.s32.totalorder %s244, %s245
    %p256 = scmp.eq.s32.totalorder %s21, 0
    %p257 = por %p255, %p256
    %p258 = scmp.ne.s32.totalorder %s244, %s245
    %p259 = scmp.eq.s32.totalorder %s22, 4
    %p260 = por %p258, %p259
    %p262 = scmp.ne.s32.totalorder %s245, %s261
    %p263 = scmp.eq.s32.totalorder %s22, 0
    %p264 = por %p262, %p263
    %p265 = scmp.le.s32.totalorder 1, %s16
    %p266 = scmp.lt.s32.totalorder %s16, 6
    %p267 = pnand %p265, %p266
    %p268 = pneg %p267
    // Predicated region
    $region9: #{tpu_custom_call.1} parent=5 // pred_check
      _
    $region10: #{tpu_custom_call.1} parent=5 // pred_check_branch
      %270 = sbr.rel (%p267) target = $region12
    $region11: #{tpu_custom_call.1} parent=5 // pred_region
      %s271 = ssub.s32 %s16, 1
      // Predicated region
      $region13: #{tpu_custom_call.1} parent=11 // pred_check
        %p272 = pneg %p63
      $region14: #{tpu_custom_call.1} parent=11 // pred_check_branch
        %274 = sbr.rel (%p272) target = $region16
      $region15: #{tpu_custom_call.1} parent=11 // pred_region
        _
      $region16: #{tpu_custom_call.1} parent=11 // pred_fallthru
        _
      // Predicated region
      $region17: #{tpu_custom_call.1} parent=11 // pred_check
        %p275 = pneg %p84
      $region18: #{tpu_custom_call.1} parent=11 // pred_check_branch
        %277 = sbr.rel (%p275) target = $region20
      $region19: #{tpu_custom_call.1} parent=11 // pred_region
        _
      $region20: #{tpu_custom_call.1} parent=11 // pred_fallthru
        _
      // Predicated region
      $region21: #{tpu_custom_call.1} parent=11 // pred_check
        %p278 = pneg %p105
      $region22: #{tpu_custom_call.1} parent=11 // pred_check_branch
        %280 = sbr.rel (%p278) target = $region24
      $region23: #{tpu_custom_call.1} parent=11 // pred_region
        _
      $region24: #{tpu_custom_call.1} parent=11 // pred_fallthru
        _
      // Predicated region
      $region25: #{tpu_custom_call.1} parent=11 // pred_check
        %p281 = pneg %p126
      $region26: #{tpu_custom_call.1} parent=11 // pred_check_branch
        %283 = sbr.rel (%p281) target = $region28
      $region27: #{tpu_custom_call.1} parent=11 // pred_region
        _
      $region28: #{tpu_custom_call.1} parent=11 // pred_fallthru
        _
      // Predicated region
      $region29: #{tpu_custom_call.1} parent=11 // pred_check
        %p284 = pneg %p147
      $region30: #{tpu_custom_call.1} parent=11 // pred_check_branch
        %286 = sbr.rel (%p284) target = $region32
      $region31: #{tpu_custom_call.1} parent=11 // pred_region
        _
      $region32: #{tpu_custom_call.1} parent=11 // pred_fallthru
        _
      // Predicated region
      $region33: #{tpu_custom_call.1} parent=11 // pred_check
        %p287 = pneg %p168
      $region34: #{tpu_custom_call.1} parent=11 // pred_check_branch
        %289 = sbr.rel (%p287) target = $region36
      $region35: #{tpu_custom_call.1} parent=11 // pred_region
        _
      $region36: #{tpu_custom_call.1} parent=11 // pred_fallthru
        _
      // Predicated region
      $region37: #{tpu_custom_call.1} parent=11 // pred_check
        %p290 = pneg %p189
      $region38: #{tpu_custom_call.1} parent=11 // pred_check_branch
        %292 = sbr.rel (%p290) target = $region40
      $region39: #{tpu_custom_call.1} parent=11 // pred_region
        _
      $region40: #{tpu_custom_call.1} parent=11 // pred_fallthru
        _
      // Predicated region
      $region41: #{tpu_custom_call.1} parent=11 // pred_check
        %p293 = pneg %p210
      $region42: #{tpu_custom_call.1} parent=11 // pred_check_branch
        %295 = sbr.rel (%p293) target = $region44
      $region43: #{tpu_custom_call.1} parent=11 // pred_region
        _
      $region44: #{tpu_custom_call.1} parent=11 // pred_fallthru
        _
      // Predicated region
      $region45: #{tpu_custom_call.1} parent=11 // pred_check
        %p296 = pneg %p231
      $region46: #{tpu_custom_call.1} parent=11 // pred_check_branch
        %298 = sbr.rel (%p296) target = $region48
      $region47: #{tpu_custom_call.1} parent=11 // pred_region
        _
      $region48: #{tpu_custom_call.1} parent=11 // pred_fallthru
        _
    $region12: #{tpu_custom_call.1} parent=5 // pred_fallthru
      _
    %p299 = scmp.lt.s32.totalorder %s16, 5
    // Predicated region
    $region49: #{tpu_custom_call.1} parent=5 // pred_check
      %p300 = pneg %p299
    $region50: #{tpu_custom_call.1} parent=5 // pred_check_branch
      %302 = sbr.rel (%p300) target = $region52
    $region51: #{tpu_custom_call.1} parent=5 // pred_region
      // Predicated region
      $region53: #{tpu_custom_call.1} parent=51 // pred_check
        %p303 = pneg %p36
      $region54: #{tpu_custom_call.1} parent=51 // pred_check_branch
        %305 = sbr.rel (%p303) target = $region56
      $region55: #{tpu_custom_call.1} parent=51 // pred_region
        %p306 = scmp.lt.s32.totalorder %s16, 4
        %s307 = scalar_select %p306, %s16, 4
        %s308 = smul.addr %s307, 32
        %s309 = smul.addr %s308, 8
        %s310 = scalar_lea.vmem %s0, %s309
      $region56: #{tpu_custom_call.1} parent=51 // pred_fallthru
        _
    $region52: #{tpu_custom_call.1} parent=5 // pred_fallthru
      _
    %p311 = scmp.le.s32.totalorder 1, %s16
    %p312 = scmp.lt.s32.totalorder %s16, 6
    %p313 = pnand %p311, %p312
    %p314 = pneg %p313
    // Predicated region
    $region57: #{tpu_custom_call.1} parent=5 // pred_check
      _
    $region58: #{tpu_custom_call.1} parent=5 // pred_check_branch
      %316 = sbr.rel (%p313) target = $region60
    $region59: #{tpu_custom_call.1} parent=5 // pred_region
      %s317 = ssub.s32 %s16, 1
      %p318 = scmp.lt.s32.totalorder %s21, 4
      %s319 = scalar_select %p318, %s21, 4
      %s320 = smul.addr %s319, 32
      %s321 = smul.addr %s320, 8
      %s322 = scalar_lea.vmem %s0, %s321
      %p323 = pneg %p42
      %p324 = pneg %p39
      %p325 = pneg %p63
      %p326 = pneg %p60
      %p327 = pneg %p84
      %p328 = pneg %p81
      %p329 = pneg %p105
      %p330 = pneg %p102
      %p331 = pneg %p126
      %p332 = pneg %p123
      %p333 = pneg %p147
      %p334 = pneg %p144
      %p335 = pneg %p168
      %p336 = pneg %p165
      %p337 = pneg %p189
      %p338 = pneg %p186
      %p339 = pneg %p210
      %p340 = pneg %p207
      %p341 = pneg %p231
      %p342 = pneg %p228
      %p343 = pneg %p257
      %p344 = pneg %p254
      %p345 = scmp.lt.s32.totalorder %s21, 4
      %s346 = scalar_select %p345, %s21, 4
      %s347 = smul.addr %s346, 32
      %s348 = smul.addr %s347, 8
      %s349 = scalar_lea.vmem %s10, %s348
      %p350 = scmp.lt.s32.totalorder %s21, 4
      %s351 = scalar_select %p350, %s21, 4
      %s352 = smul.addr %s351, 32
      %s353 = smul.addr %s352, 8
      %s354 = scalar_lea.vmem %s0, %s353
      %p355 = scmp.lt.s32.totalorder %s21, 4
      %s356 = scalar_select %p355, %s21, 4
      %s357 = smul.addr %s356, 32
      %s358 = smul.addr %s357, 8
      %s359 = scalar_lea.vmem %s10, %s358
      %vm361 = vcmask 125952
      %362 = vst.msk [vmem:[#allocation3] sm:$0xf] %vm361, 0
      %363 = vst.msk [vmem:[#allocation3 + $0x4] sm:$0xf] %vm361, 0
      %vm364 = vcmask 122880
      %365 = vst.msk [vmem:[#allocation3 + $0x8] sm:$0x1] %vm364, 0
      %s366 = scalar_lea.vmem [#allocation3], 204
      %367 = vst.msk [vmem:[%s366] sm:$0xf] %vm361, 0
      %368 = vst.msk [vmem:[%s366 + $0x4] sm:$0xf] %vm361, 0
      %369 = vst.msk [vmem:[%s366 + $0x8] sm:$0x1] %vm364, 0
      %vm370 = vcmask 122880
      %vm371 = vsmask.f32 256
      %vm372 = vmand %vm370, %vm371
      %v373 = vld [vmem:[#allocation3] sm:$0x1]
      %v374 = vsel %vm372, 0, %v373
      %375 = vst [vmem:[#allocation3] sm:$0x1] %v374
      %v376 = vld [vmem:[#allocation3 + $0xc] sm:$0x1]
      %v377 = vsel %vm372, 0, %v376
      %378 = vst [vmem:[#allocation3 + $0xc] sm:$0x1] %v377
      %v379 = vld [vmem:[#allocation3 + $0x18] sm:$0x1]
      %v380 = vsel %vm372, 0, %v379
      %381 = vst [vmem:[#allocation3 + $0x18] sm:$0x1] %v380
      %v382 = vld [vmem:[#allocation3 + $0x24] sm:$0x1]
      %v383 = vsel %vm372, 0, %v382
      %384 = vst [vmem:[#allocation3 + $0x24] sm:$0x1] %v383
      %v385 = vld [vmem:[#allocation3 + $0x30] sm:$0x1]
      %v386 = vsel %vm372, 0, %v385
      %387 = vst [vmem:[#allocation3 + $0x30] sm:$0x1] %v386
      %v388 = vld [vmem:[#allocation3 + $0x3c] sm:$0x1]
      %v389 = vsel %vm372, 0, %v388
      %390 = vst [vmem:[#allocation3 + $0x3c] sm:$0x1] %v389
      %v391 = vld [vmem:[#allocation3 + $0x48] sm:$0x1]
      %v392 = vsel %vm372, 0, %v391
      %393 = vst [vmem:[#allocation3 + $0x48] sm:$0x1] %v392
      %v394 = vld [vmem:[#allocation3 + $0x54] sm:$0x1]
      %v395 = vsel %vm372, 0, %v394
      %396 = vst [vmem:[#allocation3 + $0x54] sm:$0x1] %v395
      %v397 = vld [vmem:[#allocation3 + $0x60] sm:$0x1]
      %v398 = vsel %vm372, 0, %v397
      %399 = vst [vmem:[#allocation3 + $0x60] sm:$0x1] %v398
      %v400 = vld [vmem:[#allocation3 + $0x6c] sm:$0x1]
      %v401 = vsel %vm372, 0, %v400
      %402 = vst [vmem:[#allocation3 + $0x6c] sm:$0x1] %v401
      %v403 = vld [vmem:[#allocation3 + $0x78] sm:$0x1]
      %v404 = vsel %vm372, 0, %v403
      %405 = vst [vmem:[#allocation3 + $0x78] sm:$0x1] %v404
      %v406 = vld [vmem:[#allocation3 + $0x84] sm:$0x1]
      %v407 = vsel %vm372, 0, %v406
      %408 = vst [vmem:[#allocation3 + $0x84] sm:$0x1] %v407
      %v409 = vld [vmem:[#allocation3 + $0x90] sm:$0x1]
      %v410 = vsel %vm372, 0, %v409
      %411 = vst [vmem:[#allocation3 + $0x90] sm:$0x1] %v410
      %v412 = vld [vmem:[#allocation3 + $0x9c] sm:$0x1]
      %v413 = vsel %vm372, 0, %v412
      %414 = vst [vmem:[#allocation3 + $0x9c] sm:$0x1] %v413
      %v415 = vld [vmem:[#allocation3 + $0xa8] sm:$0x1]
      %v416 = vsel %vm372, 0, %v415
      %417 = vst [vmem:[#allocation3 + $0xa8] sm:$0x1] %v416
      %v418 = vld [vmem:[#allocation3 + $0xb4] sm:$0x1]
      %v419 = vsel %vm372, 0, %v418
      %420 = vst [vmem:[#allocation3 + $0xb4] sm:$0x1] %v419
      %v421 = vld [vmem:[#allocation3 + $0xc0] sm:$0x1]
      %v422 = vsel %vm372, 0, %v421
      %423 = vst [vmem:[#allocation3 + $0xc0] sm:$0x1] %v422
      %v424 = vld [vmem:[#allocation3 + $0xcc] sm:$0x1]
      %v425 = vsel %vm372, 0, %v424
      %426 = vst [vmem:[#allocation3 + $0xcc] sm:$0x1] %v425
      %vm427 = vsmask.f32 7938
      %vm428 = vmand %vm370, %vm427
      %v429 = vld [vmem:[#allocation3 + $0x8] sm:$0x1]
      %v430 = vsel %vm428, 0, %v429
      %431 = vst [vmem:[#allocation3 + $0x8] sm:$0x1] %v430
      %v432 = vld [vmem:[#allocation3 + $0x14] sm:$0x1]
      %v433 = vsel %vm428, 0, %v432
      %434 = vst [vmem:[#allocation3 + $0x14] sm:$0x1] %v433
      %v435 = vld [vmem:[#allocation3 + $0x20] sm:$0x1]
      %v436 = vsel %vm428, 0, %v435
      %437 = vst [vmem:[#allocation3 + $0x20] sm:$0x1] %v436
      %v438 = vld [vmem:[#allocation3 + $0x2c] sm:$0x1]
      %v439 = vsel %vm428, 0, %v438
      %440 = vst [vmem:[#allocation3 + $0x2c] sm:$0x1] %v439
      %v441 = vld [vmem:[#allocation3 + $0x38] sm:$0x1]
      %v442 = vsel %vm428, 0, %v441
      %443 = vst [vmem:[#allocation3 + $0x38] sm:$0x1] %v442
      %v444 = vld [vmem:[#allocation3 + $0x44] sm:$0x1]
      %v445 = vsel %vm428, 0, %v444
      %446 = vst [vmem:[#allocation3 + $0x44] sm:$0x1] %v445
      %v447 = vld [vmem:[#allocation3 + $0x50] sm:$0x1]
      %v448 = vsel %vm428, 0, %v447
      %449 = vst [vmem:[#allocation3 + $0x50] sm:$0x1] %v448
      %v450 = vld [vmem:[#allocation3 + $0x5c] sm:$0x1]
      %v451 = vsel %vm428, 0, %v450
      %452 = vst [vmem:[#allocation3 + $0x5c] sm:$0x1] %v451
      %v453 = vld [vmem:[#allocation3 + $0x68] sm:$0x1]
      %v454 = vsel %vm428, 0, %v453
      %455 = vst [vmem:[#allocation3 + $0x68] sm:$0x1] %v454
      %v456 = vld [vmem:[#allocation3 + $0x74] sm:$0x1]
      %v457 = vsel %vm428, 0, %v456
      %458 = vst [vmem:[#allocation3 + $0x74] sm:$0x1] %v457
      %v459 = vld [vmem:[#allocation3 + $0x80] sm:$0x1]
      %v460 = vsel %vm428, 0, %v459
      %461 = vst [vmem:[#allocation3 + $0x80] sm:$0x1] %v460
      %v462 = vld [vmem:[#allocation3 + $0x8c] sm:$0x1]
      %v463 = vsel %vm428, 0, %v462
      %464 = vst [vmem:[#allocation3 + $0x8c] sm:$0x1] %v463
      %v465 = vld [vmem:[#allocation3 + $0x98] sm:$0x1]
      %v466 = vsel %vm428, 0, %v465
      %467 = vst [vmem:[#allocation3 + $0x98] sm:$0x1] %v466
      %v468 = vld [vmem:[#allocation3 + $0xa4] sm:$0x1]
      %v469 = vsel %vm428, 0, %v468
      %470 = vst [vmem:[#allocation3 + $0xa4] sm:$0x1] %v469
      %v471 = vld [vmem:[#allocation3 + $0xb0] sm:$0x1]
      %v472 = vsel %vm428, 0, %v471
      %473 = vst [vmem:[#allocation3 + $0xb0] sm:$0x1] %v472
      %v474 = vld [vmem:[#allocation3 + $0xbc] sm:$0x1]
      %v475 = vsel %vm428, 0, %v474
      %476 = vst [vmem:[#allocation3 + $0xbc] sm:$0x1] %v475
      %v477 = vld [vmem:[#allocation3 + $0xc8] sm:$0x1]
      %v478 = vsel %vm428, 0, %v477
      %479 = vst [vmem:[#allocation3 + $0xc8] sm:$0x1] %v478
      %v480 = vld [vmem:[#allocation3 + $0xd4] sm:$0x1]
      %v481 = vsel %vm428, 0, %v480
      %482 = vst [vmem:[#allocation3 + $0xd4] sm:$0x1] %v481
      %483 = vst.msk [vmem:[#allocation4] sm:$0xf] %vm361, 0
      %484 = vst.msk [vmem:[#allocation4 + $0x4] sm:$0xf] %vm361, 0
      %485 = vst.msk [vmem:[#allocation4 + $0x8] sm:$0x1] %vm364, 0
      %s486 = scalar_lea.vmem [#allocation4], 204
      %487 = vst.msk [vmem:[%s486] sm:$0xf] %vm361, 0
      %488 = vst.msk [vmem:[%s486 + $0x4] sm:$0xf] %vm361, 0
      %489 = vst.msk [vmem:[%s486 + $0x8] sm:$0x1] %vm364, 0
      %v490 = vld [vmem:[#allocation4] sm:$0x1]
      %v491 = vsel %vm372, 0, %v490
      %492 = vst [vmem:[#allocation4] sm:$0x1] %v491
      %v493 = vld [vmem:[#allocation4 + $0xc] sm:$0x1]
      %v494 = vsel %vm372, 0, %v493
      %495 = vst [vmem:[#allocation4 + $0xc] sm:$0x1] %v494
      %v496 = vld [vmem:[#allocation4 + $0x18] sm:$0x1]
      %v497 = vsel %vm372, 0, %v496
      %498 = vst [vmem:[#allocation4 + $0x18] sm:$0x1] %v497
      %v499 = vld [vmem:[#allocation4 + $0x24] sm:$0x1]
      %v500 = vsel %vm372, 0, %v499
      %501 = vst [vmem:[#allocation4 + $0x24] sm:$0x1] %v500
      %v502 = vld [vmem:[#allocation4 + $0x30] sm:$0x1]
      %v503 = vsel %vm372, 0, %v502
      %504 = vst [vmem:[#allocation4 + $0x30] sm:$0x1] %v503
      %v505 = vld [vmem:[#allocation4 + $0x3c] sm:$0x1]
      %v506 = vsel %vm372, 0, %v505
      %507 = vst [vmem:[#allocation4 + $0x3c] sm:$0x1] %v506
      %v508 = vld [vmem:[#allocation4 + $0x48] sm:$0x1]
      %v509 = vsel %vm372, 0, %v508
      %510 = vst [vmem:[#allocation4 + $0x48] sm:$0x1] %v509
      %v511 = vld [vmem:[#allocation4 + $0x54] sm:$0x1]
      %v512 = vsel %vm372, 0, %v511
      %513 = vst [vmem:[#allocation4 + $0x54] sm:$0x1] %v512
      %v514 = vld [vmem:[#allocation4 + $0x60] sm:$0x1]
      %v515 = vsel %vm372, 0, %v514
      %516 = vst [vmem:[#allocation4 + $0x60] sm:$0x1] %v515
      %v517 = vld [vmem:[#allocation4 + $0x6c] sm:$0x1]
      %v518 = vsel %vm372, 0, %v517
      %519 = vst [vmem:[#allocation4 + $0x6c] sm:$0x1] %v518
      %v520 = vld [vmem:[#allocation4 + $0x78] sm:$0x1]
      %v521 = vsel %vm372, 0, %v520
      %522 = vst [vmem:[#allocation4 + $0x78] sm:$0x1] %v521
      %v523 = vld [vmem:[#allocation4 + $0x84] sm:$0x1]
      %v524 = vsel %vm372, 0, %v523
      %525 = vst [vmem:[#allocation4 + $0x84] sm:$0x1] %v524
      %v526 = vld [vmem:[#allocation4 + $0x90] sm:$0x1]
      %v527 = vsel %vm372, 0, %v526
      %528 = vst [vmem:[#allocation4 + $0x90] sm:$0x1] %v527
      %v529 = vld [vmem:[#allocation4 + $0x9c] sm:$0x1]
      %v530 = vsel %vm372, 0, %v529
      %531 = vst [vmem:[#allocation4 + $0x9c] sm:$0x1] %v530
      %v532 = vld [vmem:[#allocation4 + $0xa8] sm:$0x1]
      %v533 = vsel %vm372, 0, %v532
      %534 = vst [vmem:[#allocation4 + $0xa8] sm:$0x1] %v533
      %v535 = vld [vmem:[#allocation4 + $0xb4] sm:$0x1]
      %v536 = vsel %vm372, 0, %v535
      %537 = vst [vmem:[#allocation4 + $0xb4] sm:$0x1] %v536
      %v538 = vld [vmem:[#allocation4 + $0xc0] sm:$0x1]
      %v539 = vsel %vm372, 0, %v538
      %540 = vst [vmem:[#allocation4 + $0xc0] sm:$0x1] %v539
      %v541 = vld [vmem:[#allocation4 + $0xcc] sm:$0x1]
      %v542 = vsel %vm372, 0, %v541
      %543 = vst [vmem:[#allocation4 + $0xcc] sm:$0x1] %v542
      %v544 = vld [vmem:[#allocation4 + $0x8] sm:$0x1]
      %v545 = vsel %vm428, 0, %v544
      %546 = vst [vmem:[#allocation4 + $0x8] sm:$0x1] %v545
      %v547 = vld [vmem:[#allocation4 + $0x14] sm:$0x1]
      %v548 = vsel %vm428, 0, %v547
      %549 = vst [vmem:[#allocation4 + $0x14] sm:$0x1] %v548
      %v550 = vld [vmem:[#allocation4 + $0x20] sm:$0x1]
      %v551 = vsel %vm428, 0, %v550
      %552 = vst [vmem:[#allocation4 + $0x20] sm:$0x1] %v551
      %v553 = vld [vmem:[#allocation4 + $0x2c] sm:$0x1]
      %v554 = vsel %vm428, 0, %v553
      %555 = vst [vmem:[#allocation4 + $0x2c] sm:$0x1] %v554
      %v556 = vld [vmem:[#allocation4 + $0x38] sm:$0x1]
      %v557 = vsel %vm428, 0, %v556
      %558 = vst [vmem:[#allocation4 + $0x38] sm:$0x1] %v557
      %v559 = vld [vmem:[#allocation4 + $0x44] sm:$0x1]
      %v560 = vsel %vm428, 0, %v559
      %561 = vst [vmem:[#allocation4 + $0x44] sm:$0x1] %v560
      %v562 = vld [vmem:[#allocation4 + $0x50] sm:$0x1]
      %v563 = vsel %vm428, 0, %v562
      %564 = vst [vmem:[#allocation4 + $0x50] sm:$0x1] %v563
      %v565 = vld [vmem:[#allocation4 + $0x5c] sm:$0x1]
      %v566 = vsel %vm428, 0, %v565
      %567 = vst [vmem:[#allocation4 + $0x5c] sm:$0x1] %v566
      %v568 = vld [vmem:[#allocation4 + $0x68] sm:$0x1]
      %v569 = vsel %vm428, 0, %v568
      %570 = vst [vmem:[#allocation4 + $0x68] sm:$0x1] %v569
      %v571 = vld [vmem:[#allocation4 + $0x74] sm:$0x1]
      %v572 = vsel %vm428, 0, %v571
      %573 = vst [vmem:[#allocation4 + $0x74] sm:$0x1] %v572
      %v574 = vld [vmem:[#allocation4 + $0x80] sm:$0x1]
      %v575 = vsel %vm428, 0, %v574
      %576 = vst [vmem:[#allocation4 + $0x80] sm:$0x1] %v575
      %v577 = vld [vmem:[#allocation4 + $0x8c] sm:$0x1]
      %v578 = vsel %vm428, 0, %v577
      %579 = vst [vmem:[#allocation4 + $0x8c] sm:$0x1] %v578
      %v580 = vld [vmem:[#allocation4 + $0x98] sm:$0x1]
      %v581 = vsel %vm428, 0, %v580
      %582 = vst [vmem:[#allocation4 + $0x98] sm:$0x1] %v581
      %v583 = vld [vmem:[#allocation4 + $0xa4] sm:$0x1]
      %v584 = vsel %vm428, 0, %v583
      %585 = vst [vmem:[#allocation4 + $0xa4] sm:$0x1] %v584
      %v586 = vld [vmem:[#allocation4 + $0xb0] sm:$0x1]
      %v587 = vsel %vm428, 0, %v586
      %588 = vst [vmem:[#allocation4 + $0xb0] sm:$0x1] %v587
      %v589 = vld [vmem:[#allocation4 + $0xbc] sm:$0x1]
      %v590 = vsel %vm428, 0, %v589
      %591 = vst [vmem:[#allocation4 + $0xbc] sm:$0x1] %v590
      %v592 = vld [vmem:[#allocation4 + $0xc8] sm:$0x1]
      %v593 = vsel %vm428, 0, %v592
      %594 = vst [vmem:[#allocation4 + $0xc8] sm:$0x1] %v593
      %v595 = vld [vmem:[#allocation4 + $0xd4] sm:$0x1]
      %v596 = vsel %vm428, 0, %v595
      %597 = vst [vmem:[#allocation4 + $0xd4] sm:$0x1] %v596
      %vm598 = vcmask 60416
      %599 = vst.msk [vmem:[#allocation2] sm:$0xf] %vm598, 0
      %600 = vst.msk [vmem:[#allocation2 + $0x4] sm:$0xf] %vm598, 0
      %vm601 = vcmask 57344
      %602 = vst.msk [vmem:[#allocation2 + $0x8] sm:$0x1] %vm601, 0
      %s603 = scalar_lea.vmem [#allocation2], 204
      %604 = vst.msk [vmem:[%s603] sm:$0xf] %vm598, 0
      %605 = vst.msk [vmem:[%s603 + $0x4] sm:$0xf] %vm598, 0
      %606 = vst.msk [vmem:[%s603 + $0x8] sm:$0x1] %vm601, 0
      %vm607 = vcmask 57344
      %vm608 = vmand %vm607, %vm371
      %v609 = vld [vmem:[#allocation2] sm:$0x1]
      %v610 = vsel %vm608, 0, %v609
      %611 = vst [vmem:[#allocation2] sm:$0x1] %v610
      %v612 = vld [vmem:[#allocation2 + $0xc] sm:$0x1]
      %v613 = vsel %vm608, 0, %v612
      %614 = vst [vmem:[#allocation2 + $0xc] sm:$0x1] %v613
      %v615 = vld [vmem:[#allocation2 + $0x18] sm:$0x1]
      %v616 = vsel %vm608, 0, %v615
      %617 = vst [vmem:[#allocation2 + $0x18] sm:$0x1] %v616
      %v618 = vld [vmem:[#allocation2 + $0x24] sm:$0x1]
      %v619 = vsel %vm608, 0, %v618
      %620 = vst [vmem:[#allocation2 + $0x24] sm:$0x1] %v619
      %v621 = vld [vmem:[#allocation2 + $0x30] sm:$0x1]
      %v622 = vsel %vm608, 0, %v621
      %623 = vst [vmem:[#allocation2 + $0x30] sm:$0x1] %v622
      %v624 = vld [vmem:[#allocation2 + $0x3c] sm:$0x1]
      %v625 = vsel %vm608, 0, %v624
      %626 = vst [vmem:[#allocation2 + $0x3c] sm:$0x1] %v625
      %v627 = vld [vmem:[#allocation2 + $0x48] sm:$0x1]
      %v628 = vsel %vm608, 0, %v627
      %629 = vst [vmem:[#allocation2 + $0x48] sm:$0x1] %v628
      %v630 = vld [vmem:[#allocation2 + $0x54] sm:$0x1]
      %v631 = vsel %vm608, 0, %v630
      %632 = vst [vmem:[#allocation2 + $0x54] sm:$0x1] %v631
      %v633 = vld [vmem:[#allocation2 + $0x60] sm:$0x1]
      %v634 = vsel %vm608, 0, %v633
      %635 = vst [vmem:[#allocation2 + $0x60] sm:$0x1] %v634
      %v636 = vld [vmem:[#allocation2 + $0x6c] sm:$0x1]
      %v637 = vsel %vm608, 0, %v636
      %638 = vst [vmem:[#allocation2 + $0x6c] sm:$0x1] %v637
      %v639 = vld [vmem:[#allocation2 + $0x78] sm:$0x1]
      %v640 = vsel %vm608, 0, %v639
      %641 = vst [vmem:[#allocation2 + $0x78] sm:$0x1] %v640
      %v642 = vld [vmem:[#allocation2 + $0x84] sm:$0x1]
      %v643 = vsel %vm608, 0, %v642
      %644 = vst [vmem:[#allocation2 + $0x84] sm:$0x1] %v643
      %v645 = vld [vmem:[#allocation2 + $0x90] sm:$0x1]
      %v646 = vsel %vm608, 0, %v645
      %647 = vst [vmem:[#allocation2 + $0x90] sm:$0x1] %v646
      %v648 = vld [vmem:[#allocation2 + $0x9c] sm:$0x1]
      %v649 = vsel %vm608, 0, %v648
      %650 = vst [vmem:[#allocation2 + $0x9c] sm:$0x1] %v649
      %v651 = vld [vmem:[#allocation2 + $0xa8] sm:$0x1]
      %v652 = vsel %vm608, 0, %v651
      %653 = vst [vmem:[#allocation2 + $0xa8] sm:$0x1] %v652
      %v654 = vld [vmem:[#allocation2 + $0xb4] sm:$0x1]
      %v655 = vsel %vm608, 0, %v654
      %656 = vst [vmem:[#allocation2 + $0xb4] sm:$0x1] %v655
      %v657 = vld [vmem:[#allocation2 + $0xc0] sm:$0x1]
      %v658 = vsel %vm608, 0, %v657
      %659 = vst [vmem:[#allocation2 + $0xc0] sm:$0x1] %v658
      %v660 = vld [vmem:[#allocation2 + $0xcc] sm:$0x1]
      %v661 = vsel %vm608, 0, %v660
      %662 = vst [vmem:[#allocation2 + $0xcc] sm:$0x1] %v661
      %vm663 = vmand %vm607, %vm427
      %v664 = vld [vmem:[#allocation2 + $0x8] sm:$0x1]
      %v665 = vsel %vm663, 0, %v664
      %666 = vst [vmem:[#allocation2 + $0x8] sm:$0x1] %v665
      %v667 = vld [vmem:[#allocation2 + $0x14] sm:$0x1]
      %v668 = vsel %vm663, 0, %v667
      %669 = vst [vmem:[#allocation2 + $0x14] sm:$0x1] %v668
      %v670 = vld [vmem:[#allocation2 + $0x20] sm:$0x1]
      %v671 = vsel %vm663, 0, %v670
      %672 = vst [vmem:[#allocation2 + $0x20] sm:$0x1] %v671
      %v673 = vld [vmem:[#allocation2 + $0x2c] sm:$0x1]
      %v674 = vsel %vm663, 0, %v673
      %675 = vst [vmem:[#allocation2 + $0x2c] sm:$0x1] %v674
      %v676 = vld [vmem:[#allocation2 + $0x38] sm:$0x1]
      %v677 = vsel %vm663, 0, %v676
      %678 = vst [vmem:[#allocation2 + $0x38] sm:$0x1] %v677
      %v679 = vld [vmem:[#allocation2 + $0x44] sm:$0x1]
      %v680 = vsel %vm663, 0, %v679
      %681 = vst [vmem:[#allocation2 + $0x44] sm:$0x1] %v680
      %v682 = vld [vmem:[#allocation2 + $0x50] sm:$0x1]
      %v683 = vsel %vm663, 0, %v682
      %684 = vst [vmem:[#allocation2 + $0x50] sm:$0x1] %v683
      %v685 = vld [vmem:[#allocation2 + $0x5c] sm:$0x1]
      %v686 = vsel %vm663, 0, %v685
      %687 = vst [vmem:[#allocation2 + $0x5c] sm:$0x1] %v686
      %v688 = vld [vmem:[#allocation2 + $0x68] sm:$0x1]
      %v689 = vsel %vm663, 0, %v688
      %690 = vst [vmem:[#allocation2 + $0x68] sm:$0x1] %v689
      %v691 = vld [vmem:[#allocation2 + $0x74] sm:$0x1]
      %v692 = vsel %vm663, 0, %v691
      %693 = vst [vmem:[#allocation2 + $0x74] sm:$0x1] %v692
      %v694 = vld [vmem:[#allocation2 + $0x80] sm:$0x1]
      %v695 = vsel %vm663, 0, %v694
      %696 = vst [vmem:[#allocation2 + $0x80] sm:$0x1] %v695
      %v697 = vld [vmem:[#allocation2 + $0x8c] sm:$0x1]
      %v698 = vsel %vm663, 0, %v697
      %699 = vst [vmem:[#allocation2 + $0x8c] sm:$0x1] %v698
      %v700 = vld [vmem:[#allocation2 + $0x98] sm:$0x1]
      %v701 = vsel %vm663, 0, %v700
      %702 = vst [vmem:[#allocation2 + $0x98] sm:$0x1] %v701
      %v703 = vld [vmem:[#allocation2 + $0xa4] sm:$0x1]
      %v704 = vsel %vm663, 0, %v703
      %705 = vst [vmem:[#allocation2 + $0xa4] sm:$0x1] %v704
      %v706 = vld [vmem:[#allocation2 + $0xb0] sm:$0x1]
      %v707 = vsel %vm663, 0, %v706
      %708 = vst [vmem:[#allocation2 + $0xb0] sm:$0x1] %v707
      %v709 = vld [vmem:[#allocation2 + $0xbc] sm:$0x1]
      %v710 = vsel %vm663, 0, %v709
      %711 = vst [vmem:[#allocation2 + $0xbc] sm:$0x1] %v710
      %v712 = vld [vmem:[#allocation2 + $0xc8] sm:$0x1]
      %v713 = vsel %vm663, 0, %v712
      %714 = vst [vmem:[#allocation2 + $0xc8] sm:$0x1] %v713
      %v715 = vld [vmem:[#allocation2 + $0xd4] sm:$0x1]
      %v716 = vsel %vm663, 0, %v715
      %717 = vst [vmem:[#allocation2 + $0xd4] sm:$0x1] %v716
      %v718 = vld [vmem:[%s354] sm:$0xff]
      %v719 = vld [vmem:[%s354 + $0x8] sm:$0xff]
      %v720 = vld [vmem:[%s354 + $0x10] sm:$0xff]
      %v721 = vld [vmem:[%s354 + $0x18] sm:$0xff]
      %v722 = vld [vmem:[%s354 + $0x20] sm:$0xff]
      %v723 = vld [vmem:[%s354 + $0x28] sm:$0xff]
      %v724 = vld [vmem:[%s354 + $0x30] sm:$0xff]
      %v725 = vld [vmem:[%s354 + $0x38] sm:$0xff]
      %v726 = vld [vmem:[%s354 + $0x40] sm:$0xff]
      %v727 = vld [vmem:[%s354 + $0x48] sm:$0xff]
      %v728 = vld [vmem:[%s354 + $0x50] sm:$0xff]
      %v729 = vld [vmem:[%s354 + $0x58] sm:$0xff]
      %v730 = vld [vmem:[%s354 + $0x60] sm:$0xff]
      %v731 = vld [vmem:[%s354 + $0x68] sm:$0xff]
      %v732 = vld [vmem:[%s354 + $0x70] sm:$0xff]
      %v733 = vld [vmem:[%s354 + $0x78] sm:$0xff]
      %v734 = vld [vmem:[%s354 + $0x80] sm:$0xff]
      %v735 = vld [vmem:[%s354 + $0x88] sm:$0xff]
      %v736 = vld [vmem:[%s354 + $0x90] sm:$0xff]
      %v737 = vld [vmem:[%s354 + $0x98] sm:$0xff]
      %v738 = vld [vmem:[%s354 + $0xa0] sm:$0xff]
      %v739 = vld [vmem:[%s354 + $0xa8] sm:$0xff]
      %v740 = vld [vmem:[%s354 + $0xb0] sm:$0xff]
      %v741 = vld [vmem:[%s354 + $0xb8] sm:$0xff]
      %v742 = vld [vmem:[%s354 + $0xc0] sm:$0xff]
      %v743 = vld [vmem:[%s354 + $0xc8] sm:$0xff]
      %v744 = vld [vmem:[%s354 + $0xd0] sm:$0xff]
      %v745 = vld [vmem:[%s354 + $0xd8] sm:$0xff]
      %v746 = vld [vmem:[%s354 + $0xe0] sm:$0xff]
      %v747 = vld [vmem:[%s354 + $0xe8] sm:$0xff]
      %v748 = vld [vmem:[%s354 + $0xf0] sm:$0xff]
      %v749 = vld [vmem:[%s354 + $0xf8] sm:$0xff]
      %v750 = vpack.c.bf16 %v719, %v718
      %v751 = vpack.c.bf16 %v721, %v720
      %v752 = vpack.c.bf16 %v723, %v722
      %v753 = vpack.c.bf16 %v725, %v724
      %v754 = vpack.c.bf16 %v727, %v726
      %v755 = vpack.c.bf16 %v729, %v728
      %v756 = vpack.c.bf16 %v731, %v730
      %v757 = vpack.c.bf16 %v733, %v732
      %v758 = vpack.c.bf16 %v735, %v734
      %v759 = vpack.c.bf16 %v737, %v736
      %v760 = vpack.c.bf16 %v739, %v738
      %v761 = vpack.c.bf16 %v741, %v740
      %v762 = vpack.c.bf16 %v743, %v742
      %v763 = vpack.c.bf16 %v745, %v744
      %v764 = vpack.c.bf16 %v747, %v746
      %v765 = vpack.c.bf16 %v749, %v748
      %v782 = vunpack.c.l.b16 %v750
      %v783 = vunpack.c.h.b16 %v750
      %v784 = vunpack.c.l.b16 %v751
      %v785 = vunpack.c.h.b16 %v751
      %v786 = vunpack.c.l.b16 %v752
      %v787 = vunpack.c.h.b16 %v752
      %v788 = vunpack.c.l.b16 %v753
      %v789 = vunpack.c.h.b16 %v753
      %v790 = vunpack.c.l.b16 %v754
      %v791 = vunpack.c.h.b16 %v754
      %v792 = vunpack.c.l.b16 %v755
      %v793 = vunpack.c.h.b16 %v755
      %v794 = vunpack.c.l.b16 %v756
      %v795 = vunpack.c.h.b16 %v756
      %v796 = vunpack.c.l.b16 %v757
      %v797 = vunpack.c.h.b16 %v757
      %v798 = vunpack.c.l.b16 %v758
      %v799 = vunpack.c.h.b16 %v758
      %v800 = vunpack.c.l.b16 %v759
      %v801 = vunpack.c.h.b16 %v759
      %v802 = vunpack.c.l.b16 %v760
      %v803 = vunpack.c.h.b16 %v760
      %v804 = vunpack.c.l.b16 %v761
      %v805 = vunpack.c.h.b16 %v761
      %v806 = vunpack.c.l.b16 %v762
      %v807 = vunpack.c.h.b16 %v762
      %v808 = vunpack.c.l.b16 %v763
      %v809 = vunpack.c.h.b16 %v763
      %v810 = vunpack.c.l.b16 %v764
      %v811 = vunpack.c.h.b16 %v764
      %v812 = vunpack.c.l.b16 %v765
      %v813 = vunpack.c.h.b16 %v765
      %v814 = vpack.c.b16 %v782, %v782
      %v815 = vpack.c.b16 %v783, %v783
      %v816 = vpack.c.b16 %v784, %v784
      %v817 = vpack.c.b16 %v785, %v785
      %v818 = vpack.c.b16 %v786, %v786
      %v819 = vpack.c.b16 %v787, %v787
      %v820 = vpack.c.b16 %v788, %v788
      %v821 = vpack.c.b16 %v789, %v789
      %v822 = vpack.c.b16 %v790, %v790
      %v823 = vpack.c.b16 %v791, %v791
      %v824 = vpack.c.b16 %v792, %v792
      %v825 = vpack.c.b16 %v793, %v793
      %v826 = vpack.c.b16 %v794, %v794
      %v827 = vpack.c.b16 %v795, %v795
      %v828 = vpack.c.b16 %v796, %v796
      %v829 = vpack.c.b16 %v797, %v797
      %v830 = vpack.c.b16 %v798, %v798
      %v831 = vpack.c.b16 %v799, %v799
      %v832 = vpack.c.b16 %v800, %v800
      %v833 = vpack.c.b16 %v801, %v801
      %v834 = vpack.c.b16 %v802, %v802
      %v835 = vpack.c.b16 %v803, %v803
      %v836 = vpack.c.b16 %v804, %v804
      %v837 = vpack.c.b16 %v805, %v805
      %v838 = vpack.c.b16 %v806, %v806
      %v839 = vpack.c.b16 %v807, %v807
      %v840 = vpack.c.b16 %v808, %v808
      %v841 = vpack.c.b16 %v809, %v809
      %v842 = vpack.c.b16 %v810, %v810
      %v843 = vpack.c.b16 %v811, %v811
      %v844 = vpack.c.b16 %v812, %v812
      %v845 = vpack.c.b16 %v813, %v813
      %vm846 = vsmask.f32 4368
      %vm847 = vmor %vm371, %vm846
      %v849 = vshrl.u32 %v814, 16
      %v851 = vrot.slane %v849, 7
      %v852 = vshll.u32 %v814, 16
      %v854 = vor.u32 %v851, %v852
      %v855 = vrot.slane %v851, 4
      %v857 = vshrl.u32 %v815, 16
      %v859 = vrot.slane %v857, 7
      %v860 = vshll.u32 %v815, 16
      %v862 = vor.u32 %v859, %v860
      %v863 = vsel %vm847, %v855, %v862
      %v864 = vrot.slane %v859, 4
      %v866 = vshrl.u32 %v816, 16
      %v868 = vrot.slane %v866, 7
      %v869 = vshll.u32 %v816, 16
      %v871 = vor.u32 %v868, %v869
      %v872 = vrot.slane %v868, 4
      %v874 = vshrl.u32 %v817, 16
      %v876 = vrot.slane %v874, 7
      %v877 = vshll.u32 %v817, 16
      %v879 = vor.u32 %v876, %v877
      %v880 = vsel %vm847, %v872, %v879
      %v881 = vrot.slane %v876, 4
      %v883 = vshrl.u32 %v818, 16
      %v885 = vrot.slane %v883, 7
      %v886 = vshll.u32 %v818, 16
      %v888 = vor.u32 %v885, %v886
      %v889 = vrot.slane %v885, 4
      %v891 = vshrl.u32 %v819, 16
      %v893 = vrot.slane %v891, 7
      %v894 = vshll.u32 %v819, 16
      %v896 = vor.u32 %v893, %v894
      %v897 = vsel %vm847, %v889, %v896
      %v898 = vrot.slane %v893, 4
      %v900 = vshrl.u32 %v820, 16
      %v902 = vrot.slane %v900, 7
      %v903 = vshll.u32 %v820, 16
      %v905 = vor.u32 %v902, %v903
      %v906 = vrot.slane %v902, 4
      %v908 = vshrl.u32 %v821, 16
      %v910 = vrot.slane %v908, 7
      %v911 = vshll.u32 %v821, 16
      %v913 = vor.u32 %v910, %v911
      %v914 = vsel %vm847, %v906, %v913
      %v915 = vrot.slane %v910, 4
      %v917 = vshrl.u32 %v822, 16
      %v919 = vrot.slane %v917, 7
      %v920 = vshll.u32 %v822, 16
      %v922 = vor.u32 %v919, %v920
      %v923 = vrot.slane %v919, 4
      %v925 = vshrl.u32 %v823, 16
      %v927 = vrot.slane %v925, 7
      %v928 = vshll.u32 %v823, 16
      %v930 = vor.u32 %v927, %v928
      %v931 = vsel %vm847, %v923, %v930
      %v932 = vrot.slane %v927, 4
      %v934 = vshrl.u32 %v824, 16
      %v936 = vrot.slane %v934, 7
      %v937 = vshll.u32 %v824, 16
      %v939 = vor.u32 %v936, %v937
      %v940 = vrot.slane %v936, 4
      %v942 = vshrl.u32 %v825, 16
      %v944 = vrot.slane %v942, 7
      %v945 = vshll.u32 %v825, 16
      %v947 = vor.u32 %v944, %v945
      %v948 = vsel %vm847, %v940, %v947
      %v949 = vrot.slane %v944, 4
      %v951 = vshrl.u32 %v826, 16
      %v953 = vrot.slane %v951, 7
      %v954 = vshll.u32 %v826, 16
      %v956 = vor.u32 %v953, %v954
      %v957 = vrot.slane %v953, 4
      %v959 = vshrl.u32 %v827, 16
      %v961 = vrot.slane %v959, 7
      %v962 = vshll.u32 %v827, 16
      %v964 = vor.u32 %v961, %v962
      %v965 = vsel %vm847, %v957, %v964
      %v966 = vrot.slane %v961, 4
      %v968 = vshrl.u32 %v828, 16
      %v970 = vrot.slane %v968, 7
      %v971 = vshll.u32 %v828, 16
      %v973 = vor.u32 %v970, %v971
      %v974 = vrot.slane %v970, 4
      %v976 = vshrl.u32 %v829, 16
      %v978 = vrot.slane %v976, 7
      %v979 = vshll.u32 %v829, 16
      %v981 = vor.u32 %v978, %v979
      %v982 = vsel %vm847, %v974, %v981
      %v983 = vrot.slane %v978, 4
      %v985 = vshrl.u32 %v830, 16
      %v987 = vrot.slane %v985, 7
      %v988 = vshll.u32 %v830, 16
      %v990 = vor.u32 %v987, %v988
      %v991 = vrot.slane %v987, 4
      %v993 = vshrl.u32 %v831, 16
      %v995 = vrot.slane %v993, 7
      %v996 = vshll.u32 %v831, 16
      %v998 = vor.u32 %v995, %v996
      %v999 = vsel %vm847, %v991, %v998
      %v1000 = vrot.slane %v995, 4
      %v1002 = vshrl.u32 %v832, 16
      %v1004 = vrot.slane %v1002, 7
      %v1005 = vshll.u32 %v832, 16
      %v1007 = vor.u32 %v1004, %v1005
      %v1008 = vrot.slane %v1004, 4
      %v1010 = vshrl.u32 %v833, 16
      %v1012 = vrot.slane %v1010, 7
      %v1013 = vshll.u32 %v833, 16
      %v1015 = vor.u32 %v1012, %v1013
      %v1016 = vsel %vm847, %v1008, %v1015
      %v1017 = vrot.slane %v1012, 4
      %v1019 = vshrl.u32 %v834, 16
      %v1021 = vrot.slane %v1019, 7
      %v1022 = vshll.u32 %v834, 16
      %v1024 = vor.u32 %v1021, %v1022
      %v1025 = vrot.slane %v1021, 4
      %v1027 = vshrl.u32 %v835, 16
      %v1029 = vrot.slane %v1027, 7
      %v1030 = vshll.u32 %v835, 16
      %v1032 = vor.u32 %v1029, %v1030
      %v1033 = vsel %vm847, %v1025, %v1032
      %v1034 = vrot.slane %v1029, 4
      %v1036 = vshrl.u32 %v836, 16
      %v1038 = vrot.slane %v1036, 7
      %v1039 = vshll.u32 %v836, 16
      %v1041 = vor.u32 %v1038, %v1039
      %v1042 = vrot.slane %v1038, 4
      %v1044 = vshrl.u32 %v837, 16
      %v1046 = vrot.slane %v1044, 7
      %v1047 = vshll.u32 %v837, 16
      %v1049 = vor.u32 %v1046, %v1047
      %v1050 = vsel %vm847, %v1042, %v1049
      %v1051 = vrot.slane %v1046, 4
      %v1053 = vshrl.u32 %v838, 16
      %v1055 = vrot.slane %v1053, 7
      %v1056 = vshll.u32 %v838, 16
      %v1058 = vor.u32 %v1055, %v1056
      %v1059 = vrot.slane %v1055, 4
      %v1061 = vshrl.u32 %v839, 16
      %v1063 = vrot.slane %v1061, 7
      %v1064 = vshll.u32 %v839, 16
      %v1066 = vor.u32 %v1063, %v1064
      %v1067 = vsel %vm847, %v1059, %v1066
      %v1068 = vrot.slane %v1063, 4
      %v1070 = vshrl.u32 %v840, 16
      %v1072 = vrot.slane %v1070, 7
      %v1073 = vshll.u32 %v840, 16
      %v1075 = vor.u32 %v1072, %v1073
      %v1076 = vrot.slane %v1072, 4
      %v1078 = vshrl.u32 %v841, 16
      %v1080 = vrot.slane %v1078, 7
      %v1081 = vshll.u32 %v841, 16
      %v1083 = vor.u32 %v1080, %v1081
      %v1084 = vsel %vm847, %v1076, %v1083
      %v1085 = vrot.slane %v1080, 4
      %v1087 = vshrl.u32 %v842, 16
      %v1089 = vrot.slane %v1087, 7
      %v1090 = vshll.u32 %v842, 16
      %v1092 = vor.u32 %v1089, %v1090
      %v1093 = vrot.slane %v1089, 4
      %v1095 = vshrl.u32 %v843, 16
      %v1097 = vrot.slane %v1095, 7
      %v1098 = vshll.u32 %v843, 16
      %v1100 = vor.u32 %v1097, %v1098
      %v1101 = vsel %vm847, %v1093, %v1100
      %v1102 = vrot.slane %v1097, 4
      %v1104 = vshrl.u32 %v844, 16
      %v1106 = vrot.slane %v1104, 7
      %v1107 = vshll.u32 %v844, 16
      %v1109 = vor.u32 %v1106, %v1107
      %v1110 = vrot.slane %v1106, 4
      %v1112 = vshrl.u32 %v845, 16
      %v1114 = vrot.slane %v1112, 7
      %v1115 = vshll.u32 %v845, 16
      %v1117 = vor.u32 %v1114, %v1115
      %v1118 = vsel %vm847, %v1110, %v1117
      %v1119 = vrot.slane %v1114, 4
      %s1168 = scalar_lea.vmem [#allocation2], 12
      %vm1169 = vcmask 60416
      %vm1170 = vmand %vm1169, %vm427
      %v1171 = vld [vmem:[%s1168] sm:$0xf]
      %v1172 = vsel %vm1170, %v854, %v1171
      %1173 = vst [vmem:[%s1168] sm:$0xf] %v1172
      %1174 = vst.msk [vmem:[%s1168 + $0x4] sm:$0xf] %vm598, %v863
      %v1175 = vld [vmem:[%s1168 + $0x8] sm:$0x1]
      %v1176 = vsel %vm608, %v864, %v1175
      %1177 = vst [vmem:[%s1168 + $0x8] sm:$0x1] %v1176
      %v1178 = vld [vmem:[%s1168 + $0xc] sm:$0xf]
      %v1179 = vsel %vm1170, %v871, %v1178
      %1180 = vst [vmem:[%s1168 + $0xc] sm:$0xf] %v1179
      %1181 = vst.msk [vmem:[%s1168 + $0x10] sm:$0xf] %vm598, %v880
      %v1182 = vld [vmem:[%s1168 + $0x14] sm:$0x1]
      %v1183 = vsel %vm608, %v881, %v1182
      %1184 = vst [vmem:[%s1168 + $0x14] sm:$0x1] %v1183
      %v1185 = vld [vmem:[%s1168 + $0x18] sm:$0xf]
      %v1186 = vsel %vm1170, %v888, %v1185
      %1187 = vst [vmem:[%s1168 + $0x18] sm:$0xf] %v1186
      %1188 = vst.msk [vmem:[%s1168 + $0x1c] sm:$0xf] %vm598, %v897
      %v1189 = vld [vmem:[%s1168 + $0x20] sm:$0x1]
      %v1190 = vsel %vm608, %v898, %v1189
      %1191 = vst [vmem:[%s1168 + $0x20] sm:$0x1] %v1190
      %v1192 = vld [vmem:[%s1168 + $0x24] sm:$0xf]
      %v1193 = vsel %vm1170, %v905, %v1192
      %1194 = vst [vmem:[%s1168 + $0x24] sm:$0xf] %v1193
      %1195 = vst.msk [vmem:[%s1168 + $0x28] sm:$0xf] %vm598, %v914
      %v1196 = vld [vmem:[%s1168 + $0x2c] sm:$0x1]
      %v1197 = vsel %vm608, %v915, %v1196
      %1198 = vst [vmem:[%s1168 + $0x2c] sm:$0x1] %v1197
      %v1199 = vld [vmem:[%s1168 + $0x30] sm:$0xf]
      %v1200 = vsel %vm1170, %v922, %v1199
      %1201 = vst [vmem:[%s1168 + $0x30] sm:$0xf] %v1200
      %1202 = vst.msk [vmem:[%s1168 + $0x34] sm:$0xf] %vm598, %v931
      %v1203 = vld [vmem:[%s1168 + $0x38] sm:$0x1]
      %v1204 = vsel %vm608, %v932, %v1203
      %1205 = vst [vmem:[%s1168 + $0x38] sm:$0x1] %v1204
      %v1206 = vld [vmem:[%s1168 + $0x3c] sm:$0xf]
      %v1207 = vsel %vm1170, %v939, %v1206
      %1208 = vst [vmem:[%s1168 + $0x3c] sm:$0xf] %v1207
      %1209 = vst.msk [vmem:[%s1168 + $0x40] sm:$0xf] %vm598, %v948
      %v1210 = vld [vmem:[%s1168 + $0x44] sm:$0x1]
      %v1211 = vsel %vm608, %v949, %v1210
      %1212 = vst [vmem:[%s1168 + $0x44] sm:$0x1] %v1211
      %v1213 = vld [vmem:[%s1168 + $0x48] sm:$0xf]
      %v1214 = vsel %vm1170, %v956, %v1213
      %1215 = vst [vmem:[%s1168 + $0x48] sm:$0xf] %v1214
      %1216 = vst.msk [vmem:[%s1168 + $0x4c] sm:$0xf] %vm598, %v965
      %v1217 = vld [vmem:[%s1168 + $0x50] sm:$0x1]
      %v1218 = vsel %vm608, %v966, %v1217
      %1219 = vst [vmem:[%s1168 + $0x50] sm:$0x1] %v1218
      %v1220 = vld [vmem:[%s1168 + $0x54] sm:$0xf]
      %v1221 = vsel %vm1170, %v973, %v1220
      %1222 = vst [vmem:[%s1168 + $0x54] sm:$0xf] %v1221
      %1223 = vst.msk [vmem:[%s1168 + $0x58] sm:$0xf] %vm598, %v982
      %v1224 = vld [vmem:[%s1168 + $0x5c] sm:$0x1]
      %v1225 = vsel %vm608, %v983, %v1224
      %1226 = vst [vmem:[%s1168 + $0x5c] sm:$0x1] %v1225
      %v1227 = vld [vmem:[%s1168 + $0x60] sm:$0xf]
      %v1228 = vsel %vm1170, %v990, %v1227
      %1229 = vst [vmem:[%s1168 + $0x60] sm:$0xf] %v1228
      %1230 = vst.msk [vmem:[%s1168 + $0x64] sm:$0xf] %vm598, %v999
      %v1231 = vld [vmem:[%s1168 + $0x68] sm:$0x1]
      %v1232 = vsel %vm608, %v1000, %v1231
      %1233 = vst [vmem:[%s1168 + $0x68] sm:$0x1] %v1232
      %v1234 = vld [vmem:[%s1168 + $0x6c] sm:$0xf]
      %v1235 = vsel %vm1170, %v1007, %v1234
      %1236 = vst [vmem:[%s1168 + $0x6c] sm:$0xf] %v1235
      %1237 = vst.msk [vmem:[%s1168 + $0x70] sm:$0xf] %vm598, %v1016
      %v1238 = vld [vmem:[%s1168 + $0x74] sm:$0x1]
      %v1239 = vsel %vm608, %v1017, %v1238
      %1240 = vst [vmem:[%s1168 + $0x74] sm:$0x1] %v1239
      %v1241 = vld [vmem:[%s1168 + $0x78] sm:$0xf]
      %v1242 = vsel %vm1170, %v1024, %v1241
      %1243 = vst [vmem:[%s1168 + $0x78] sm:$0xf] %v1242
      %1244 = vst.msk [vmem:[%s1168 + $0x7c] sm:$0xf] %vm598, %v1033
      %v1245 = vld [vmem:[%s1168 + $0x80] sm:$0x1]
      %v1246 = vsel %vm608, %v1034, %v1245
      %1247 = vst [vmem:[%s1168 + $0x80] sm:$0x1] %v1246
      %v1248 = vld [vmem:[%s1168 + $0x84] sm:$0xf]
      %v1249 = vsel %vm1170, %v1041, %v1248
      %1250 = vst [vmem:[%s1168 + $0x84] sm:$0xf] %v1249
      %1251 = vst.msk [vmem:[%s1168 + $0x88] sm:$0xf] %vm598, %v1050
      %v1252 = vld [vmem:[%s1168 + $0x8c] sm:$0x1]
      %v1253 = vsel %vm608, %v1051, %v1252
      %1254 = vst [vmem:[%s1168 + $0x8c] sm:$0x1] %v1253
      %v1255 = vld [vmem:[%s1168 + $0x90] sm:$0xf]
      %v1256 = vsel %vm1170, %v1058, %v1255
      %1257 = vst [vmem:[%s1168 + $0x90] sm:$0xf] %v1256
      %1258 = vst.msk [vmem:[%s1168 + $0x94] sm:$0xf] %vm598, %v1067
      %v1259 = vld [vmem:[%s1168 + $0x98] sm:$0x1]
      %v1260 = vsel %vm608, %v1068, %v1259
      %1261 = vst [vmem:[%s1168 + $0x98] sm:$0x1] %v1260
      %v1262 = vld [vmem:[%s1168 + $0x9c] sm:$0xf]
      %v1263 = vsel %vm1170, %v1075, %v1262
      %1264 = vst [vmem:[%s1168 + $0x9c] sm:$0xf] %v1263
      %1265 = vst.msk [vmem:[%s1168 + $0xa0] sm:$0xf] %vm598, %v1084
      %v1266 = vld [vmem:[%s1168 + $0xa4] sm:$0x1]
      %v1267 = vsel %vm608, %v1085, %v1266
      %1268 = vst [vmem:[%s1168 + $0xa4] sm:$0x1] %v1267
      %v1269 = vld [vmem:[%s1168 + $0xa8] sm:$0xf]
      %v1270 = vsel %vm1170, %v1092, %v1269
      %1271 = vst [vmem:[%s1168 + $0xa8] sm:$0xf] %v1270
      %1272 = vst.msk [vmem:[%s1168 + $0xac] sm:$0xf] %vm598, %v1101
      %v1273 = vld [vmem:[%s1168 + $0xb0] sm:$0x1]
      %v1274 = vsel %vm608, %v1102, %v1273
      %1275 = vst [vmem:[%s1168 + $0xb0] sm:$0x1] %v1274
      %v1276 = vld [vmem:[%s1168 + $0xb4] sm:$0xf]
      %v1277 = vsel %vm1170, %v1109, %v1276
      %1278 = vst [vmem:[%s1168 + $0xb4] sm:$0xf] %v1277
      %1279 = vst.msk [vmem:[%s1168 + $0xb8] sm:$0xf] %vm598, %v1118
      %v1280 = vld [vmem:[%s1168 + $0xbc] sm:$0x1]
      %v1281 = vsel %vm608, %v1119, %v1280
      %1282 = vst [vmem:[%s1168 + $0xbc] sm:$0x1] %v1281
      %v1283 = vld [vmem:[#allocation2] sm:$0xf]
      %v1284 = vld [vmem:[#allocation2 + $0x4] sm:$0xf]
      %v1285 = vld [vmem:[#allocation2 + $0xc] sm:$0xf]
      %v1286 = vld [vmem:[#allocation2 + $0x10] sm:$0xf]
      %v1287 = vld [vmem:[#allocation2 + $0x18] sm:$0xf]
      %v1288 = vld [vmem:[#allocation2 + $0x1c] sm:$0xf]
      %v1289 = vld [vmem:[#allocation2 + $0x24] sm:$0xf]
      %v1290 = vld [vmem:[#allocation2 + $0x28] sm:$0xf]
      %v1291 = vld [vmem:[#allocation2 + $0x30] sm:$0xf]
      %v1292 = vld [vmem:[#allocation2 + $0x34] sm:$0xf]
      %v1293 = vld [vmem:[#allocation2 + $0x3c] sm:$0xf]
      %v1294 = vld [vmem:[#allocation2 + $0x40] sm:$0xf]
      %v1295 = vld [vmem:[#allocation2 + $0x48] sm:$0xf]
      %v1296 = vld [vmem:[#allocation2 + $0x4c] sm:$0xf]
      %v1297 = vld [vmem:[#allocation2 + $0x54] sm:$0xf]
      %v1298 = vld [vmem:[#allocation2 + $0x58] sm:$0xf]
      %v1299 = vld [vmem:[#allocation2 + $0x60] sm:$0xf]
      %v1300 = vld [vmem:[#allocation2 + $0x64] sm:$0xf]
      %v1301 = vld [vmem:[#allocation2 + $0x6c] sm:$0xf]
      %v1302 = vld [vmem:[#allocation2 + $0x70] sm:$0xf]
      %v1303 = vld [vmem:[#allocation2 + $0x78] sm:$0xf]
      %v1304 = vld [vmem:[#allocation2 + $0x7c] sm:$0xf]
      %v1305 = vld [vmem:[#allocation2 + $0x84] sm:$0xf]
      %v1306 = vld [vmem:[#allocation2 + $0x88] sm:$0xf]
      %v1307 = vld [vmem:[#allocation2 + $0x90] sm:$0xf]
      %v1308 = vld [vmem:[#allocation2 + $0x94] sm:$0xf]
      %v1309 = vld [vmem:[#allocation2 + $0x9c] sm:$0xf]
      %v1310 = vld [vmem:[#allocation2 + $0xa0] sm:$0xf]
      %v1311 = vld [vmem:[#allocation2 + $0xa8] sm:$0xf]
      %v1312 = vld [vmem:[#allocation2 + $0xac] sm:$0xf]
      %v1313 = vld [vmem:[#allocation2 + $0xb4] sm:$0xf]
      %v1314 = vld [vmem:[#allocation2 + $0xb8] sm:$0xf]
      %v1315 = vld [vmem:[#allocation2 + $0x8] sm:$0x1]
      %v1316 = vld [vmem:[#allocation2 + $0x14] sm:$0x1]
      %v1317 = vld [vmem:[#allocation2 + $0x20] sm:$0x1]
      %v1318 = vld [vmem:[#allocation2 + $0x2c] sm:$0x1]
      %v1319 = vld [vmem:[#allocation2 + $0x38] sm:$0x1]
      %v1320 = vld [vmem:[#allocation2 + $0x44] sm:$0x1]
      %v1321 = vld [vmem:[#allocation2 + $0x50] sm:$0x1]
      %v1322 = vld [vmem:[#allocation2 + $0x5c] sm:$0x1]
      %v1323 = vld [vmem:[#allocation2 + $0x68] sm:$0x1]
      %v1324 = vld [vmem:[#allocation2 + $0x74] sm:$0x1]
      %v1325 = vld [vmem:[#allocation2 + $0x80] sm:$0x1]
      %v1326 = vld [vmem:[#allocation2 + $0x8c] sm:$0x1]
      %v1327 = vld [vmem:[#allocation2 + $0x98] sm:$0x1]
      %v1328 = vld [vmem:[#allocation2 + $0xa4] sm:$0x1]
      %v1329 = vld [vmem:[#allocation2 + $0xb0] sm:$0x1]
      %v1330 = vld [vmem:[#allocation2 + $0xbc] sm:$0x1]
      %v1331 = vld [vmem:[#allocation2] sm:$0xe]
      %v1332 = vld [vmem:[#allocation2 + $0xc] sm:$0xe]
      %v1333 = vld [vmem:[#allocation2 + $0x18] sm:$0xe]
      %v1334 = vld [vmem:[#allocation2 + $0x24] sm:$0xe]
      %v1335 = vld [vmem:[#allocation2 + $0x30] sm:$0xe]
      %v1336 = vld [vmem:[#allocation2 + $0x3c] sm:$0xe]
      %v1337 = vld [vmem:[#allocation2 + $0x48] sm:$0xe]
      %v1338 = vld [vmem:[#allocation2 + $0x54] sm:$0xe]
      %v1339 = vld [vmem:[#allocation2 + $0x60] sm:$0xe]
      %v1340 = vld [vmem:[#allocation2 + $0x6c] sm:$0xe]
      %v1341 = vld [vmem:[#allocation2 + $0x78] sm:$0xe]
      %v1342 = vld [vmem:[#allocation2 + $0x84] sm:$0xe]
      %v1343 = vld [vmem:[#allocation2 + $0x90] sm:$0xe]
      %v1344 = vld [vmem:[#allocation2 + $0x9c] sm:$0xe]
      %v1345 = vld [vmem:[#allocation2 + $0xa8] sm:$0xe]
      %v1346 = vld [vmem:[#allocation2 + $0xb4] sm:$0xe]
      %v1379 = vunpack.c.l.b16 %v1283
      %v1380 = vunpack.c.l.b16 %v1284
      %v1381 = vunpack.c.l.b16 %v1285
      %v1382 = vunpack.c.l.b16 %v1286
      %v1383 = vunpack.c.l.b16 %v1287
      %v1384 = vunpack.c.l.b16 %v1288
      %v1385 = vunpack.c.l.b16 %v1289
      %v1386 = vunpack.c.l.b16 %v1290
      %v1387 = vunpack.c.l.b16 %v1291
      %v1388 = vunpack.c.l.b16 %v1292
      %v1389 = vunpack.c.l.b16 %v1293
      %v1390 = vunpack.c.l.b16 %v1294
      %v1391 = vunpack.c.l.b16 %v1295
      %v1392 = vunpack.c.l.b16 %v1296
      %v1393 = vunpack.c.l.b16 %v1297
      %v1394 = vunpack.c.l.b16 %v1298
      %v1395 = vunpack.c.l.b16 %v1299
      %v1396 = vunpack.c.l.b16 %v1300
      %v1397 = vunpack.c.l.b16 %v1301
      %v1398 = vunpack.c.l.b16 %v1302
      %v1399 = vunpack.c.l.b16 %v1303
      %v1400 = vunpack.c.l.b16 %v1304
      %v1401 = vunpack.c.l.b16 %v1305
      %v1402 = vunpack.c.l.b16 %v1306
      %v1403 = vunpack.c.l.b16 %v1307
      %v1404 = vunpack.c.l.b16 %v1308
      %v1405 = vunpack.c.l.b16 %v1309
      %v1406 = vunpack.c.l.b16 %v1310
      %v1407 = vunpack.c.l.b16 %v1311
      %v1408 = vunpack.c.l.b16 %v1312
      %v1409 = vunpack.c.l.b16 %v1313
      %v1410 = vunpack.c.l.b16 %v1314
      %v1411 = vpack.c.b16 %v1380, %v1379
      %v1412 = vpack.c.b16 %v1382, %v1381
      %v1413 = vpack.c.b16 %v1384, %v1383
      %v1414 = vpack.c.b16 %v1386, %v1385
      %v1415 = vpack.c.b16 %v1388, %v1387
      %v1416 = vpack.c.b16 %v1390, %v1389
      %v1417 = vpack.c.b16 %v1392, %v1391
      %v1418 = vpack.c.b16 %v1394, %v1393
      %v1419 = vpack.c.b16 %v1396, %v1395
      %v1420 = vpack.c.b16 %v1398, %v1397
      %v1421 = vpack.c.b16 %v1400, %v1399
      %v1422 = vpack.c.b16 %v1402, %v1401
      %v1423 = vpack.c.b16 %v1404, %v1403
      %v1424 = vpack.c.b16 %v1406, %v1405
      %v1425 = vpack.c.b16 %v1408, %v1407
      %v1426 = vpack.c.b16 %v1410, %v1409
      %v1443 = vunpack.c.l.b16 %v1315
      %v1444 = vunpack.c.l.b16 %v1316
      %v1445 = vunpack.c.l.b16 %v1317
      %v1446 = vunpack.c.l.b16 %v1318
      %v1447 = vunpack.c.l.b16 %v1319
      %v1448 = vunpack.c.l.b16 %v1320
      %v1449 = vunpack.c.l.b16 %v1321
      %v1450 = vunpack.c.l.b16 %v1322
      %v1451 = vunpack.c.l.b16 %v1323
      %v1452 = vunpack.c.l.b16 %v1324
      %v1453 = vunpack.c.l.b16 %v1325
      %v1454 = vunpack.c.l.b16 %v1326
      %v1455 = vunpack.c.l.b16 %v1327
      %v1456 = vunpack.c.l.b16 %v1328
      %v1457 = vunpack.c.l.b16 %v1329
      %v1458 = vunpack.c.l.b16 %v1330
      %v1459 = vpack.c.b16 %v1443, %v1443
      %v1460 = vpack.c.b16 %v1444, %v1444
      %v1461 = vpack.c.b16 %v1445, %v1445
      %v1462 = vpack.c.b16 %v1446, %v1446
      %v1463 = vpack.c.b16 %v1447, %v1447
      %v1464 = vpack.c.b16 %v1448, %v1448
      %v1465 = vpack.c.b16 %v1449, %v1449
      %v1466 = vpack.c.b16 %v1450, %v1450
      %v1467 = vpack.c.b16 %v1451, %v1451
      %v1468 = vpack.c.b16 %v1452, %v1452
      %v1469 = vpack.c.b16 %v1453, %v1453
      %v1470 = vpack.c.b16 %v1454, %v1454
      %v1471 = vpack.c.b16 %v1455, %v1455
      %v1472 = vpack.c.b16 %v1456, %v1456
      %v1473 = vpack.c.b16 %v1457, %v1457
      %v1474 = vpack.c.b16 %v1458, %v1458
      %vm1475 = vsmask.f32 7424
      %v1477 = vshrl.u32 %v1411, 16
      %v1479 = vshll.u32 %v1411, 16
      %v1481 = vrot.slane %v1479, 1
      %v1482 = vor.u32 %v1477, %v1481
      %v1484 = vshll.u32 %v1459, 16
      %v1486 = vrot.slane %v1484, 1
      %v1487 = vsel %vm1475, %v1482, %v1486
      %v1489 = vshrl.u32 %v1412, 16
      %v1491 = vshll.u32 %v1412, 16
      %v1493 = vrot.slane %v1491, 1
      %v1494 = vor.u32 %v1489, %v1493
      %v1496 = vshll.u32 %v1460, 16
      %v1498 = vrot.slane %v1496, 1
      %v1499 = vsel %vm1475, %v1494, %v1498
      %v1501 = vshrl.u32 %v1413, 16
      %v1503 = vshll.u32 %v1413, 16
      %v1505 = vrot.slane %v1503, 1
      %v1506 = vor.u32 %v1501, %v1505
      %v1508 = vshll.u32 %v1461, 16
      %v1510 = vrot.slane %v1508, 1
      %v1511 = vsel %vm1475, %v1506, %v1510
      %v1513 = vshrl.u32 %v1414, 16
      %v1515 = vshll.u32 %v1414, 16
      %v1517 = vrot.slane %v1515, 1
      %v1518 = vor.u32 %v1513, %v1517
      %v1520 = vshll.u32 %v1462, 16
      %v1522 = vrot.slane %v1520, 1
      %v1523 = vsel %vm1475, %v1518, %v1522
      %v1525 = vshrl.u32 %v1415, 16
      %v1527 = vshll.u32 %v1415, 16
      %v1529 = vrot.slane %v1527, 1
      %v1530 = vor.u32 %v1525, %v1529
      %v1532 = vshll.u32 %v1463, 16
      %v1534 = vrot.slane %v1532, 1
      %v1535 = vsel %vm1475, %v1530, %v1534
      %v1537 = vshrl.u32 %v1416, 16
      %v1539 = vshll.u32 %v1416, 16
      %v1541 = vrot.slane %v1539, 1
      %v1542 = vor.u32 %v1537, %v1541
      %v1544 = vshll.u32 %v1464, 16
      %v1546 = vrot.slane %v1544, 1
      %v1547 = vsel %vm1475, %v1542, %v1546
      %v1549 = vshrl.u32 %v1417, 16
      %v1551 = vshll.u32 %v1417, 16
      %v1553 = vrot.slane %v1551, 1
      %v1554 = vor.u32 %v1549, %v1553
      %v1556 = vshll.u32 %v1465, 16
      %v1558 = vrot.slane %v1556, 1
      %v1559 = vsel %vm1475, %v1554, %v1558
      %v1561 = vshrl.u32 %v1418, 16
      %v1563 = vshll.u32 %v1418, 16
      %v1565 = vrot.slane %v1563, 1
      %v1566 = vor.u32 %v1561, %v1565
      %v1568 = vshll.u32 %v1466, 16
      %v1570 = vrot.slane %v1568, 1
      %v1571 = vsel %vm1475, %v1566, %v1570
      %v1573 = vshrl.u32 %v1419, 16
      %v1575 = vshll.u32 %v1419, 16
      %v1577 = vrot.slane %v1575, 1
      %v1578 = vor.u32 %v1573, %v1577
      %v1580 = vshll.u32 %v1467, 16
      %v1582 = vrot.slane %v1580, 1
      %v1583 = vsel %vm1475, %v1578, %v1582
      %v1585 = vshrl.u32 %v1420, 16
      %v1587 = vshll.u32 %v1420, 16
      %v1589 = vrot.slane %v1587, 1
      %v1590 = vor.u32 %v1585, %v1589
      %v1592 = vshll.u32 %v1468, 16
      %v1594 = vrot.slane %v1592, 1
      %v1595 = vsel %vm1475, %v1590, %v1594
      %v1597 = vshrl.u32 %v1421, 16
      %v1599 = vshll.u32 %v1421, 16
      %v1601 = vrot.slane %v1599, 1
      %v1602 = vor.u32 %v1597, %v1601
      %v1604 = vshll.u32 %v1469, 16
      %v1606 = vrot.slane %v1604, 1
      %v1607 = vsel %vm1475, %v1602, %v1606
      %v1609 = vshrl.u32 %v1422, 16
      %v1611 = vshll.u32 %v1422, 16
      %v1613 = vrot.slane %v1611, 1
      %v1614 = vor.u32 %v1609, %v1613
      %v1616 = vshll.u32 %v1470, 16
      %v1618 = vrot.slane %v1616, 1
      %v1619 = vsel %vm1475, %v1614, %v1618
      %v1621 = vshrl.u32 %v1423, 16
      %v1623 = vshll.u32 %v1423, 16
      %v1625 = vrot.slane %v1623, 1
      %v1626 = vor.u32 %v1621, %v1625
      %v1628 = vshll.u32 %v1471, 16
      %v1630 = vrot.slane %v1628, 1
      %v1631 = vsel %vm1475, %v1626, %v1630
      %v1633 = vshrl.u32 %v1424, 16
      %v1635 = vshll.u32 %v1424, 16
      %v1637 = vrot.slane %v1635, 1
      %v1638 = vor.u32 %v1633, %v1637
      %v1640 = vshll.u32 %v1472, 16
      %v1642 = vrot.slane %v1640, 1
      %v1643 = vsel %vm1475, %v1638, %v1642
      %v1645 = vshrl.u32 %v1425, 16
      %v1647 = vshll.u32 %v1425, 16
      %v1649 = vrot.slane %v1647, 1
      %v1650 = vor.u32 %v1645, %v1649
      %v1652 = vshll.u32 %v1473, 16
      %v1654 = vrot.slane %v1652, 1
      %v1655 = vsel %vm1475, %v1650, %v1654
      %v1657 = vshrl.u32 %v1426, 16
      %v1659 = vshll.u32 %v1426, 16
      %v1661 = vrot.slane %v1659, 1
      %v1662 = vor.u32 %v1657, %v1661
      %v1664 = vshll.u32 %v1474, 16
      %v1666 = vrot.slane %v1664, 1
      %v1667 = vsel %vm1475, %v1662, %v1666
      %1668 = vrot.lane.b32.xlu0 %v1487, 8
      %v1669 = vpop.permute.xlu0 %1668
      %1670 = vrot.lane.b32.xlu0 %v1499, 8
      %v1671 = vpop.permute.xlu0 %1670
      %1672 = vrot.lane.b32.xlu0 %v1511, 8
      %v1673 = vpop.permute.xlu0 %1672
      %1674 = vrot.lane.b32.xlu0 %v1523, 8
      %v1675 = vpop.permute.xlu0 %1674
      %1676 = vrot.lane.b32.xlu0 %v1535, 8
      %v1677 = vpop.permute.xlu0 %1676
      %1678 = vrot.lane.b32.xlu0 %v1547, 8
      %v1679 = vpop.permute.xlu0 %1678
      %1680 = vrot.lane.b32.xlu0 %v1559, 8
      %v1681 = vpop.permute.xlu0 %1680
      %1682 = vrot.lane.b32.xlu0 %v1571, 8
      %v1683 = vpop.permute.xlu0 %1682
      %1684 = vrot.lane.b32.xlu0 %v1583, 8
      %v1685 = vpop.permute.xlu0 %1684
      %1686 = vrot.lane.b32.xlu0 %v1595, 8
      %v1687 = vpop.permute.xlu0 %1686
      %1688 = vrot.lane.b32.xlu0 %v1607, 8
      %v1689 = vpop.permute.xlu0 %1688
      %1690 = vrot.lane.b32.xlu0 %v1619, 8
      %v1691 = vpop.permute.xlu0 %1690
      %1692 = vrot.lane.b32.xlu0 %v1631, 8
      %v1693 = vpop.permute.xlu0 %1692
      %1694 = vrot.lane.b32.xlu0 %v1643, 8
      %v1695 = vpop.permute.xlu0 %1694
      %1696 = vrot.lane.b32.xlu0 %v1655, 8
      %v1697 = vpop.permute.xlu0 %1696
      %1698 = vrot.lane.b32.xlu0 %v1667, 8
      %v1699 = vpop.permute.xlu0 %1698
      %v1716 = vunpack.c.l.b16 %v1331
      %v1717 = vunpack.c.l.b16 %v1332
      %v1718 = vunpack.c.l.b16 %v1333
      %v1719 = vunpack.c.l.b16 %v1334
      %v1720 = vunpack.c.l.b16 %v1335
      %v1721 = vunpack.c.l.b16 %v1336
      %v1722 = vunpack.c.l.b16 %v1337
      %v1723 = vunpack.c.l.b16 %v1338
      %v1724 = vunpack.c.l.b16 %v1339
      %v1725 = vunpack.c.l.b16 %v1340
      %v1726 = vunpack.c.l.b16 %v1341
      %v1727 = vunpack.c.l.b16 %v1342
      %v1728 = vunpack.c.l.b16 %v1343
      %v1729 = vunpack.c.l.b16 %v1344
      %v1730 = vunpack.c.l.b16 %v1345
      %v1731 = vunpack.c.l.b16 %v1346
      %v1732 = vpack.c.b16 %v1380, %v1716
      %v1733 = vpack.c.b16 %v1382, %v1717
      %v1734 = vpack.c.b16 %v1384, %v1718
      %v1735 = vpack.c.b16 %v1386, %v1719
      %v1736 = vpack.c.b16 %v1388, %v1720
      %v1737 = vpack.c.b16 %v1390, %v1721
      %v1738 = vpack.c.b16 %v1392, %v1722
      %v1739 = vpack.c.b16 %v1394, %v1723
      %v1740 = vpack.c.b16 %v1396, %v1724
      %v1741 = vpack.c.b16 %v1398, %v1725
      %v1742 = vpack.c.b16 %v1400, %v1726
      %v1743 = vpack.c.b16 %v1402, %v1727
      %v1744 = vpack.c.b16 %v1404, %v1728
      %v1745 = vpack.c.b16 %v1406, %v1729
      %v1746 = vpack.c.b16 %v1408, %v1730
      %v1747 = vpack.c.b16 %v1410, %v1731
      %vm1748 = vcmask 1046528
      %v1749 = vrot.slane %v1732, 1
      %v1750 = vrot.slane %v1459, 1
      %v1751 = vsel %vm1748, %v1749, %v1750
      %v1752 = vrot.slane %v1733, 1
      %v1753 = vrot.slane %v1460, 1
      %v1754 = vsel %vm1748, %v1752, %v1753
      %v1755 = vrot.slane %v1734, 1
      %v1756 = vrot.slane %v1461, 1
      %v1757 = vsel %vm1748, %v1755, %v1756
      %v1758 = vrot.slane %v1735, 1
      %v1759 = vrot.slane %v1462, 1
      %v1760 = vsel %vm1748, %v1758, %v1759
      %v1761 = vrot.slane %v1736, 1
      %v1762 = vrot.slane %v1463, 1
      %v1763 = vsel %vm1748, %v1761, %v1762
      %v1764 = vrot.slane %v1737, 1
      %v1765 = vrot.slane %v1464, 1
      %v1766 = vsel %vm1748, %v1764, %v1765
      %v1767 = vrot.slane %v1738, 1
      %v1768 = vrot.slane %v1465, 1
      %v1769 = vsel %vm1748, %v1767, %v1768
      %v1770 = vrot.slane %v1739, 1
      %v1771 = vrot.slane %v1466, 1
      %v1772 = vsel %vm1748, %v1770, %v1771
      %v1773 = vrot.slane %v1740, 1
      %v1774 = vrot.slane %v1467, 1
      %v1775 = vsel %vm1748, %v1773, %v1774
      %v1776 = vrot.slane %v1741, 1
      %v1777 = vrot.slane %v1468, 1
      %v1778 = vsel %vm1748, %v1776, %v1777
      %v1779 = vrot.slane %v1742, 1
      %v1780 = vrot.slane %v1469, 1
      %v1781 = vsel %vm1748, %v1779, %v1780
      %v1782 = vrot.slane %v1743, 1
      %v1783 = vrot.slane %v1470, 1
      %v1784 = vsel %vm1748, %v1782, %v1783
      %v1785 = vrot.slane %v1744, 1
      %v1786 = vrot.slane %v1471, 1
      %v1787 = vsel %vm1748, %v1785, %v1786
      %v1788 = vrot.slane %v1745, 1
      %v1789 = vrot.slane %v1472, 1
      %v1790 = vsel %vm1748, %v1788, %v1789
      %v1791 = vrot.slane %v1746, 1
      %v1792 = vrot.slane %v1473, 1
      %v1793 = vsel %vm1748, %v1791, %v1792
      %v1794 = vrot.slane %v1747, 1
      %v1795 = vrot.slane %v1474, 1
      %v1796 = vsel %vm1748, %v1794, %v1795
      %1797 = vrot.lane.b32.xlu0 %v1751, 16
      %v1798 = vpop.permute.xlu0 %1797
      %1799 = vrot.lane.b32.xlu0 %v1754, 16
      %v1800 = vpop.permute.xlu0 %1799
      %1801 = vrot.lane.b32.xlu0 %v1757, 16
      %v1802 = vpop.permute.xlu0 %1801
      %1803 = vrot.lane.b32.xlu0 %v1760, 16
      %v1804 = vpop.permute.xlu0 %1803
      %1805 = vrot.lane.b32.xlu0 %v1763, 16
      %v1806 = vpop.permute.xlu0 %1805
      %1807 = vrot.lane.b32.xlu0 %v1766, 16
      %v1808 = vpop.permute.xlu0 %1807
      %1809 = vrot.lane.b32.xlu0 %v1769, 16
      %v1810 = vpop.permute.xlu0 %1809
      %1811 = vrot.lane.b32.xlu0 %v1772, 16
      %v1812 = vpop.permute.xlu0 %1811
      %1813 = vrot.lane.b32.xlu0 %v1775, 16
      %v1814 = vpop.permute.xlu0 %1813
      %1815 = vrot.lane.b32.xlu0 %v1778, 16
      %v1816 = vpop.permute.xlu0 %1815
      %1817 = vrot.lane.b32.xlu0 %v1781, 16
      %v1818 = vpop.permute.xlu0 %1817
      %1819 = vrot.lane.b32.xlu0 %v1784, 16
      %v1820 = vpop.permute.xlu0 %1819
      %1821 = vrot.lane.b32.xlu0 %v1787, 16
      %v1822 = vpop.permute.xlu0 %1821
      %1823 = vrot.lane.b32.xlu0 %v1790, 16
      %v1824 = vpop.permute.xlu0 %1823
      %1825 = vrot.lane.b32.xlu0 %v1793, 16
      %v1826 = vpop.permute.xlu0 %1825
      %1827 = vrot.lane.b32.xlu0 %v1796, 16
      %v1828 = vpop.permute.xlu0 %1827
      %vm1829 = vcmask 64512
      %v1831 = vsel %vm1829, %v1411, %v1669
      %v1833 = vsel %vm1829, %v1412, %v1671
      %v1835 = vsel %vm1829, %v1413, %v1673
      %v1837 = vsel %vm1829, %v1414, %v1675
      %v1839 = vsel %vm1829, %v1415, %v1677
      %v1841 = vsel %vm1829, %v1416, %v1679
      %v1843 = vsel %vm1829, %v1417, %v1681
      %v1845 = vsel %vm1829, %v1418, %v1683
      %v1847 = vsel %vm1829, %v1419, %v1685
      %v1849 = vsel %vm1829, %v1420, %v1687
      %v1851 = vsel %vm1829, %v1421, %v1689
      %v1853 = vsel %vm1829, %v1422, %v1691
      %v1855 = vsel %vm1829, %v1423, %v1693
      %v1857 = vsel %vm1829, %v1424, %v1695
      %v1859 = vsel %vm1829, %v1425, %v1697
      %v1861 = vsel %vm1829, %v1426, %v1699
      %vm1862 = vcmask 130048
      %v1864 = vsel %vm1862, %v1831, %v1798
      %v1866 = vsel %vm1862, %v1833, %v1800
      %v1868 = vsel %vm1862, %v1835, %v1802
      %v1870 = vsel %vm1862, %v1837, %v1804
      %v1872 = vsel %vm1862, %v1839, %v1806
      %v1874 = vsel %vm1862, %v1841, %v1808
      %v1876 = vsel %vm1862, %v1843, %v1810
      %v1878 = vsel %vm1862, %v1845, %v1812
      %v1880 = vsel %vm1862, %v1847, %v1814
      %v1882 = vsel %vm1862, %v1849, %v1816
      %v1884 = vsel %vm1862, %v1851, %v1818
      %v1886 = vsel %vm1862, %v1853, %v1820
      %v1888 = vsel %vm1862, %v1855, %v1822
      %v1890 = vsel %vm1862, %v1857, %v1824
      %v1892 = vsel %vm1862, %v1859, %v1826
      %v1894 = vsel %vm1862, %v1861, %v1828
      %v1895 = vld [vmem:[%s1] sm:$0xf]
      %v1896 = vld [vmem:[%s1 + $0x4] sm:$0xf]
      %v1897 = vld [vmem:[%s1 + $0x8] sm:$0xf]
      %v1898 = vld [vmem:[%s1168] sm:$0xf]
      %v1899 = vld [vmem:[%s1168 + $0x4] sm:$0xf]
      %v1900 = vld [vmem:[%s1168 + $0xc] sm:$0xf]
      %v1901 = vld [vmem:[%s1168 + $0x10] sm:$0xf]
      %v1902 = vld [vmem:[%s1168 + $0x18] sm:$0xf]
      %v1903 = vld [vmem:[%s1168 + $0x1c] sm:$0xf]
      %v1904 = vld [vmem:[%s1168 + $0x24] sm:$0xf]
      %v1905 = vld [vmem:[%s1168 + $0x28] sm:$0xf]
      %v1906 = vld [vmem:[%s1168 + $0x30] sm:$0xf]
      %v1907 = vld [vmem:[%s1168 + $0x34] sm:$0xf]
      %v1908 = vld [vmem:[%s1168 + $0x3c] sm:$0xf]
      %v1909 = vld [vmem:[%s1168 + $0x40] sm:$0xf]
      %v1910 = vld [vmem:[%s1168 + $0x48] sm:$0xf]
      %v1911 = vld [vmem:[%s1168 + $0x4c] sm:$0xf]
      %v1912 = vld [vmem:[%s1168 + $0x54] sm:$0xf]
      %v1913 = vld [vmem:[%s1168 + $0x58] sm:$0xf]
      %v1914 = vld [vmem:[%s1168 + $0x60] sm:$0xf]
      %v1915 = vld [vmem:[%s1168 + $0x64] sm:$0xf]
      %v1916 = vld [vmem:[%s1168 + $0x6c] sm:$0xf]
      %v1917 = vld [vmem:[%s1168 + $0x70] sm:$0xf]
      %v1918 = vld [vmem:[%s1168 + $0x78] sm:$0xf]
      %v1919 = vld [vmem:[%s1168 + $0x7c] sm:$0xf]
      %v1920 = vld [vmem:[%s1168 + $0x84] sm:$0xf]
      %v1921 = vld [vmem:[%s1168 + $0x88] sm:$0xf]
      %v1922 = vld [vmem:[%s1168 + $0x90] sm:$0xf]
      %v1923 = vld [vmem:[%s1168 + $0x94] sm:$0xf]
      %v1924 = vld [vmem:[%s1168 + $0x9c] sm:$0xf]
      %v1925 = vld [vmem:[%s1168 + $0xa0] sm:$0xf]
      %v1926 = vld [vmem:[%s1168 + $0xa8] sm:$0xf]
      %v1927 = vld [vmem:[%s1168 + $0xac] sm:$0xf]
      %v1928 = vld [vmem:[%s1168 + $0xb4] sm:$0xf]
      %v1929 = vld [vmem:[%s1168 + $0xb8] sm:$0xf]
      %v1930 = vld [vmem:[%s1168 + $0x8] sm:$0x1]
      %v1931 = vld [vmem:[%s1168 + $0x14] sm:$0x1]
      %v1932 = vld [vmem:[%s1168 + $0x20] sm:$0x1]
      %v1933 = vld [vmem:[%s1168 + $0x2c] sm:$0x1]
      %v1934 = vld [vmem:[%s1168 + $0x38] sm:$0x1]
      %v1935 = vld [vmem:[%s1168 + $0x44] sm:$0x1]
      %v1936 = vld [vmem:[%s1168 + $0x50] sm:$0x1]
      %v1937 = vld [vmem:[%s1168 + $0x5c] sm:$0x1]
      %v1938 = vld [vmem:[%s1168 + $0x68] sm:$0x1]
      %v1939 = vld [vmem:[%s1168 + $0x74] sm:$0x1]
      %v1940 = vld [vmem:[%s1168 + $0x80] sm:$0x1]
      %v1941 = vld [vmem:[%s1168 + $0x8c] sm:$0x1]
      %v1942 = vld [vmem:[%s1168 + $0x98] sm:$0x1]
      %v1943 = vld [vmem:[%s1168 + $0xa4] sm:$0x1]
      %v1944 = vld [vmem:[%s1168 + $0xb0] sm:$0x1]
      %v1945 = vld [vmem:[%s1168 + $0xbc] sm:$0x1]
      %v1946 = vld [vmem:[%s1168] sm:$0xe]
      %v1947 = vld [vmem:[%s1168 + $0xc] sm:$0xe]
      %v1948 = vld [vmem:[%s1168 + $0x18] sm:$0xe]
      %v1949 = vld [vmem:[%s1168 + $0x24] sm:$0xe]
      %v1950 = vld [vmem:[%s1168 + $0x30] sm:$0xe]
      %v1951 = vld [vmem:[%s1168 + $0x3c] sm:$0xe]
      %v1952 = vld [vmem:[%s1168 + $0x48] sm:$0xe]
      %v1953 = vld [vmem:[%s1168 + $0x54] sm:$0xe]
      %v1954 = vld [vmem:[%s1168 + $0x60] sm:$0xe]
      %v1955 = vld [vmem:[%s1168 + $0x6c] sm:$0xe]
      %v1956 = vld [vmem:[%s1168 + $0x78] sm:$0xe]
      %v1957 = vld [vmem:[%s1168 + $0x84] sm:$0xe]
      %v1958 = vld [vmem:[%s1168 + $0x90] sm:$0xe]
      %v1959 = vld [vmem:[%s1168 + $0x9c] sm:$0xe]
      %v1960 = vld [vmem:[%s1168 + $0xa8] sm:$0xe]
      %v1961 = vld [vmem:[%s1168 + $0xb4] sm:$0xe]
      %v1994 = vunpack.c.l.b16 %v1898
      %v1995 = vunpack.c.l.b16 %v1899
      %v1996 = vunpack.c.l.b16 %v1900
      %v1997 = vunpack.c.l.b16 %v1901
      %v1998 = vunpack.c.l.b16 %v1902
      %v1999 = vunpack.c.l.b16 %v1903
      %v2000 = vunpack.c.l.b16 %v1904
      %v2001 = vunpack.c.l.b16 %v1905
      %v2002 = vunpack.c.l.b16 %v1906
      %v2003 = vunpack.c.l.b16 %v1907
      %v2004 = vunpack.c.l.b16 %v1908
      %v2005 = vunpack.c.l.b16 %v1909
      %v2006 = vunpack.c.l.b16 %v1910
      %v2007 = vunpack.c.l.b16 %v1911
      %v2008 = vunpack.c.l.b16 %v1912
      %v2009 = vunpack.c.l.b16 %v1913
      %v2010 = vunpack.c.l.b16 %v1914
      %v2011 = vunpack.c.l.b16 %v1915
      %v2012 = vunpack.c.l.b16 %v1916
      %v2013 = vunpack.c.l.b16 %v1917
      %v2014 = vunpack.c.l.b16 %v1918
      %v2015 = vunpack.c.l.b16 %v1919
      %v2016 = vunpack.c.l.b16 %v1920
      %v2017 = vunpack.c.l.b16 %v1921
      %v2018 = vunpack.c.l.b16 %v1922
      %v2019 = vunpack.c.l.b16 %v1923
      %v2020 = vunpack.c.l.b16 %v1924
      %v2021 = vunpack.c.l.b16 %v1925
      %v2022 = vunpack.c.l.b16 %v1926
      %v2023 = vunpack.c.l.b16 %v1927
      %v2024 = vunpack.c.l.b16 %v1928
      %v2025 = vunpack.c.l.b16 %v1929
      %v2026 = vpack.c.b16 %v1995, %v1994
      %v2027 = vpack.c.b16 %v1997, %v1996
      %v2028 = vpack.c.b16 %v1999, %v1998
      %v2029 = vpack.c.b16 %v2001, %v2000
      %v2030 = vpack.c.b16 %v2003, %v2002
      %v2031 = vpack.c.b16 %v2005, %v2004
      %v2032 = vpack.c.b16 %v2007, %v2006
      %v2033 = vpack.c.b16 %v2009, %v2008
      %v2034 = vpack.c.b16 %v2011, %v2010
      %v2035 = vpack.c.b16 %v2013, %v2012
      %v2036 = vpack.c.b16 %v2015, %v2014
      %v2037 = vpack.c.b16 %v2017, %v2016
      %v2038 = vpack.c.b16 %v2019, %v2018
      %v2039 = vpack.c.b16 %v2021, %v2020
      %v2040 = vpack.c.b16 %v2023, %v2022
      %v2041 = vpack.c.b16 %v2025, %v2024
      %v2058 = vunpack.c.l.b16 %v1930
      %v2059 = vunpack.c.l.b16 %v1931
      %v2060 = vunpack.c.l.b16 %v1932
      %v2061 = vunpack.c.l.b16 %v1933
      %v2062 = vunpack.c.l.b16 %v1934
      %v2063 = vunpack.c.l.b16 %v1935
      %v2064 = vunpack.c.l.b16 %v1936
      %v2065 = vunpack.c.l.b16 %v1937
      %v2066 = vunpack.c.l.b16 %v1938
      %v2067 = vunpack.c.l.b16 %v1939
      %v2068 = vunpack.c.l.b16 %v1940
      %v2069 = vunpack.c.l.b16 %v1941
      %v2070 = vunpack.c.l.b16 %v1942
      %v2071 = vunpack.c.l.b16 %v1943
      %v2072 = vunpack.c.l.b16 %v1944
      %v2073 = vunpack.c.l.b16 %v1945
      %v2074 = vpack.c.b16 %v2058, %v2058
      %v2075 = vpack.c.b16 %v2059, %v2059
      %v2076 = vpack.c.b16 %v2060, %v2060
      %v2077 = vpack.c.b16 %v2061, %v2061
      %v2078 = vpack.c.b16 %v2062, %v2062
      %v2079 = vpack.c.b16 %v2063, %v2063
      %v2080 = vpack.c.b16 %v2064, %v2064
      %v2081 = vpack.c.b16 %v2065, %v2065
      %v2082 = vpack.c.b16 %v2066, %v2066
      %v2083 = vpack.c.b16 %v2067, %v2067
      %v2084 = vpack.c.b16 %v2068, %v2068
      %v2085 = vpack.c.b16 %v2069, %v2069
      %v2086 = vpack.c.b16 %v2070, %v2070
      %v2087 = vpack.c.b16 %v2071, %v2071
      %v2088 = vpack.c.b16 %v2072, %v2072
      %v2089 = vpack.c.b16 %v2073, %v2073
      %v2091 = vshrl.u32 %v2026, 16
      %v2093 = vshll.u32 %v2026, 16
      %v2095 = vrot.slane %v2093, 1
      %v2096 = vor.u32 %v2091, %v2095
      %v2098 = vshll.u32 %v2074, 16
      %v2100 = vrot.slane %v2098, 1
      %v2101 = vsel %vm1475, %v2096, %v2100
      %v2103 = vshrl.u32 %v2027, 16
      %v2105 = vshll.u32 %v2027, 16
      %v2107 = vrot.slane %v2105, 1
      %v2108 = vor.u32 %v2103, %v2107
      %v2110 = vshll.u32 %v2075, 16
      %v2112 = vrot.slane %v2110, 1
      %v2113 = vsel %vm1475, %v2108, %v2112
      %v2115 = vshrl.u32 %v2028, 16
      %v2117 = vshll.u32 %v2028, 16
      %v2119 = vrot.slane %v2117, 1
      %v2120 = vor.u32 %v2115, %v2119
      %v2122 = vshll.u32 %v2076, 16
      %v2124 = vrot.slane %v2122, 1
      %v2125 = vsel %vm1475, %v2120, %v2124
      %v2127 = vshrl.u32 %v2029, 16
      %v2129 = vshll.u32 %v2029, 16
      %v2131 = vrot.slane %v2129, 1
      %v2132 = vor.u32 %v2127, %v2131
      %v2134 = vshll.u32 %v2077, 16
      %v2136 = vrot.slane %v2134, 1
      %v2137 = vsel %vm1475, %v2132, %v2136
      %v2139 = vshrl.u32 %v2030, 16
      %v2141 = vshll.u32 %v2030, 16
      %v2143 = vrot.slane %v2141, 1
      %v2144 = vor.u32 %v2139, %v2143
      %v2146 = vshll.u32 %v2078, 16
      %v2148 = vrot.slane %v2146, 1
      %v2149 = vsel %vm1475, %v2144, %v2148
      %v2151 = vshrl.u32 %v2031, 16
      %v2153 = vshll.u32 %v2031, 16
      %v2155 = vrot.slane %v2153, 1
      %v2156 = vor.u32 %v2151, %v2155
      %v2158 = vshll.u32 %v2079, 16
      %v2160 = vrot.slane %v2158, 1
      %v2161 = vsel %vm1475, %v2156, %v2160
      %v2163 = vshrl.u32 %v2032, 16
      %v2165 = vshll.u32 %v2032, 16
      %v2167 = vrot.slane %v2165, 1
      %v2168 = vor.u32 %v2163, %v2167
      %v2170 = vshll.u32 %v2080, 16
      %v2172 = vrot.slane %v2170, 1
      %v2173 = vsel %vm1475, %v2168, %v2172
      %v2175 = vshrl.u32 %v2033, 16
      %v2177 = vshll.u32 %v2033, 16
      %v2179 = vrot.slane %v2177, 1
      %v2180 = vor.u32 %v2175, %v2179
      %v2182 = vshll.u32 %v2081, 16
      %v2184 = vrot.slane %v2182, 1
      %v2185 = vsel %vm1475, %v2180, %v2184
      %v2187 = vshrl.u32 %v2034, 16
      %v2189 = vshll.u32 %v2034, 16
      %v2191 = vrot.slane %v2189, 1
      %v2192 = vor.u32 %v2187, %v2191
      %v2194 = vshll.u32 %v2082, 16
      %v2196 = vrot.slane %v2194, 1
      %v2197 = vsel %vm1475, %v2192, %v2196
      %v2199 = vshrl.u32 %v2035, 16
      %v2201 = vshll.u32 %v2035, 16
      %v2203 = vrot.slane %v2201, 1
      %v2204 = vor.u32 %v2199, %v2203
      %v2206 = vshll.u32 %v2083, 16
      %v2208 = vrot.slane %v2206, 1
      %v2209 = vsel %vm1475, %v2204, %v2208
      %v2211 = vshrl.u32 %v2036, 16
      %v2213 = vshll.u32 %v2036, 16
      %v2215 = vrot.slane %v2213, 1
      %v2216 = vor.u32 %v2211, %v2215
      %v2218 = vshll.u32 %v2084, 16
      %v2220 = vrot.slane %v2218, 1
      %v2221 = vsel %vm1475, %v2216, %v2220
      %v2223 = vshrl.u32 %v2037, 16
      %v2225 = vshll.u32 %v2037, 16
      %v2227 = vrot.slane %v2225, 1
      %v2228 = vor.u32 %v2223, %v2227
      %v2230 = vshll.u32 %v2085, 16
      %v2232 = vrot.slane %v2230, 1
      %v2233 = vsel %vm1475, %v2228, %v2232
      %v2235 = vshrl.u32 %v2038, 16
      %v2237 = vshll.u32 %v2038, 16
      %v2239 = vrot.slane %v2237, 1
      %v2240 = vor.u32 %v2235, %v2239
      %v2242 = vshll.u32 %v2086, 16
      %v2244 = vrot.slane %v2242, 1
      %v2245 = vsel %vm1475, %v2240, %v2244
      %v2247 = vshrl.u32 %v2039, 16
      %v2249 = vshll.u32 %v2039, 16
      %v2251 = vrot.slane %v2249, 1
      %v2252 = vor.u32 %v2247, %v2251
      %v2254 = vshll.u32 %v2087, 16
      %v2256 = vrot.slane %v2254, 1
      %v2257 = vsel %vm1475, %v2252, %v2256
      %v2259 = vshrl.u32 %v2040, 16
      %v2261 = vshll.u32 %v2040, 16
      %v2263 = vrot.slane %v2261, 1
      %v2264 = vor.u32 %v2259, %v2263
      %v2266 = vshll.u32 %v2088, 16
      %v2268 = vrot.slane %v2266, 1
      %v2269 = vsel %vm1475, %v2264, %v2268
      %v2271 = vshrl.u32 %v2041, 16
      %v2273 = vshll.u32 %v2041, 16
      %v2275 = vrot.slane %v2273, 1
      %v2276 = vor.u32 %v2271, %v2275
      %v2278 = vshll.u32 %v2089, 16
      %v2280 = vrot.slane %v2278, 1
      %v2281 = vsel %vm1475, %v2276, %v2280
      %2282 = vrot.lane.b32.xlu0 %v2101, 8
      %v2283 = vpop.permute.xlu0 %2282
      %2284 = vrot.lane.b32.xlu0 %v2113, 8
      %v2285 = vpop.permute.xlu0 %2284
      %2286 = vrot.lane.b32.xlu0 %v2125, 8
      %v2287 = vpop.permute.xlu0 %2286
      %2288 = vrot.lane.b32.xlu0 %v2137, 8
      %v2289 = vpop.permute.xlu0 %2288
      %2290 = vrot.lane.b32.xlu0 %v2149, 8
      %v2291 = vpop.permute.xlu0 %2290
      %2292 = vrot.lane.b32.xlu0 %v2161, 8
      %v2293 = vpop.permute.xlu0 %2292
      %2294 = vrot.lane.b32.xlu0 %v2173, 8
      %v2295 = vpop.permute.xlu0 %2294
      %2296 = vrot.lane.b32.xlu0 %v2185, 8
      %v2297 = vpop.permute.xlu0 %2296
      %2298 = vrot.lane.b32.xlu0 %v2197, 8
      %v2299 = vpop.permute.xlu0 %2298
      %2300 = vrot.lane.b32.xlu0 %v2209, 8
      %v2301 = vpop.permute.xlu0 %2300
      %2302 = vrot.lane.b32.xlu0 %v2221, 8
      %v2303 = vpop.permute.xlu0 %2302
      %2304 = vrot.lane.b32.xlu0 %v2233, 8
      %v2305 = vpop.permute.xlu0 %2304
      %2306 = vrot.lane.b32.xlu0 %v2245, 8
      %v2307 = vpop.permute.xlu0 %2306
      %2308 = vrot.lane.b32.xlu0 %v2257, 8
      %v2309 = vpop.permute.xlu0 %2308
      %2310 = vrot.lane.b32.xlu0 %v2269, 8
      %v2311 = vpop.permute.xlu0 %2310
      %2312 = vrot.lane.b32.xlu0 %v2281, 8
      %v2313 = vpop.permute.xlu0 %2312
      %v2330 = vunpack.c.l.b16 %v1946
      %v2331 = vunpack.c.l.b16 %v1947
      %v2332 = vunpack.c.l.b16 %v1948
      %v2333 = vunpack.c.l.b16 %v1949
      %v2334 = vunpack.c.l.b16 %v1950
      %v2335 = vunpack.c.l.b16 %v1951
      %v2336 = vunpack.c.l.b16 %v1952
      %v2337 = vunpack.c.l.b16 %v1953
      %v2338 = vunpack.c.l.b16 %v1954
      %v2339 = vunpack.c.l.b16 %v1955
      %v2340 = vunpack.c.l.b16 %v1956
      %v2341 = vunpack.c.l.b16 %v1957
      %v2342 = vunpack.c.l.b16 %v1958
      %v2343 = vunpack.c.l.b16 %v1959
      %v2344 = vunpack.c.l.b16 %v1960
      %v2345 = vunpack.c.l.b16 %v1961
      %v2346 = vpack.c.b16 %v1995, %v2330
      %v2347 = vpack.c.b16 %v1997, %v2331
      %v2348 = vpack.c.b16 %v1999, %v2332
      %v2349 = vpack.c.b16 %v2001, %v2333
      %v2350 = vpack.c.b16 %v2003, %v2334
      %v2351 = vpack.c.b16 %v2005, %v2335
      %v2352 = vpack.c.b16 %v2007, %v2336
      %v2353 = vpack.c.b16 %v2009, %v2337
      %v2354 = vpack.c.b16 %v2011, %v2338
      %v2355 = vpack.c.b16 %v2013, %v2339
      %v2356 = vpack.c.b16 %v2015, %v2340
      %v2357 = vpack.c.b16 %v2017, %v2341
      %v2358 = vpack.c.b16 %v2019, %v2342
      %v2359 = vpack.c.b16 %v2021, %v2343
      %v2360 = vpack.c.b16 %v2023, %v2344
      %v2361 = vpack.c.b16 %v2025, %v2345
      %v2362 = vrot.slane %v2346, 1
      %v2363 = vrot.slane %v2074, 1
      %v2364 = vsel %vm1748, %v2362, %v2363
      %v2365 = vrot.slane %v2347, 1
      %v2366 = vrot.slane %v2075, 1
      %v2367 = vsel %vm1748, %v2365, %v2366
      %v2368 = vrot.slane %v2348, 1
      %v2369 = vrot.slane %v2076, 1
      %v2370 = vsel %vm1748, %v2368, %v2369
      %v2371 = vrot.slane %v2349, 1
      %v2372 = vrot.slane %v2077, 1
      %v2373 = vsel %vm1748, %v2371, %v2372
      %v2374 = vrot.slane %v2350, 1
      %v2375 = vrot.slane %v2078, 1
      %v2376 = vsel %vm1748, %v2374, %v2375
      %v2377 = vrot.slane %v2351, 1
      %v2378 = vrot.slane %v2079, 1
      %v2379 = vsel %vm1748, %v2377, %v2378
      %v2380 = vrot.slane %v2352, 1
      %v2381 = vrot.slane %v2080, 1
      %v2382 = vsel %vm1748, %v2380, %v2381
      %v2383 = vrot.slane %v2353, 1
      %v2384 = vrot.slane %v2081, 1
      %v2385 = vsel %vm1748, %v2383, %v2384
      %v2386 = vrot.slane %v2354, 1
      %v2387 = vrot.slane %v2082, 1
      %v2388 = vsel %vm1748, %v2386, %v2387
      %v2389 = vrot.slane %v2355, 1
      %v2390 = vrot.slane %v2083, 1
      %v2391 = vsel %vm1748, %v2389, %v2390
      %v2392 = vrot.slane %v2356, 1
      %v2393 = vrot.slane %v2084, 1
      %v2394 = vsel %vm1748, %v2392, %v2393
      %v2395 = vrot.slane %v2357, 1
      %v2396 = vrot.slane %v2085, 1
      %v2397 = vsel %vm1748, %v2395, %v2396
      %v2398 = vrot.slane %v2358, 1
      %v2399 = vrot.slane %v2086, 1
      %v2400 = vsel %vm1748, %v2398, %v2399
      %v2401 = vrot.slane %v2359, 1
      %v2402 = vrot.slane %v2087, 1
      %v2403 = vsel %vm1748, %v2401, %v2402
      %v2404 = vrot.slane %v2360, 1
      %v2405 = vrot.slane %v2088, 1
      %v2406 = vsel %vm1748, %v2404, %v2405
      %v2407 = vrot.slane %v2361, 1
      %v2408 = vrot.slane %v2089, 1
      %v2409 = vsel %vm1748, %v2407, %v2408
      %2410 = vrot.lane.b32.xlu0 %v2364, 16
      %v2411 = vpop.permute.xlu0 %2410
      %2412 = vrot.lane.b32.xlu0 %v2367, 16
      %v2413 = vpop.permute.xlu0 %2412
      %2414 = vrot.lane.b32.xlu0 %v2370, 16
      %v2415 = vpop.permute.xlu0 %2414
      %2416 = vrot.lane.b32.xlu0 %v2373, 16
      %v2417 = vpop.permute.xlu0 %2416
      %2418 = vrot.lane.b32.xlu0 %v2376, 16
      %v2419 = vpop.permute.xlu0 %2418
      %2420 = vrot.lane.b32.xlu0 %v2379, 16
      %v2421 = vpop.permute.xlu0 %2420
      %2422 = vrot.lane.b32.xlu0 %v2382, 16
      %v2423 = vpop.permute.xlu0 %2422
      %2424 = vrot.lane.b32.xlu0 %v2385, 16
      %v2425 = vpop.permute.xlu0 %2424
      %2426 = vrot.lane.b32.xlu0 %v2388, 16
      %v2427 = vpop.permute.xlu0 %2426
      %2428 = vrot.lane.b32.xlu0 %v2391, 16
      %v2429 = vpop.permute.xlu0 %2428
      %2430 = vrot.lane.b32.xlu0 %v2394, 16
      %v2431 = vpop.permute.xlu0 %2430
      %2432 = vrot.lane.b32.xlu0 %v2397, 16
      %v2433 = vpop.permute.xlu0 %2432
      %2434 = vrot.lane.b32.xlu0 %v2400, 16
      %v2435 = vpop.permute.xlu0 %2434
      %2436 = vrot.lane.b32.xlu0 %v2403, 16
      %v2437 = vpop.permute.xlu0 %2436
      %2438 = vrot.lane.b32.xlu0 %v2406, 16
      %v2439 = vpop.permute.xlu0 %2438
      %2440 = vrot.lane.b32.xlu0 %v2409, 16
      %v2441 = vpop.permute.xlu0 %2440
      %v2443 = vsel %vm1829, %v2026, %v2283
      %v2445 = vsel %vm1829, %v2027, %v2285
      %v2447 = vsel %vm1829, %v2028, %v2287
      %v2449 = vsel %vm1829, %v2029, %v2289
      %v2451 = vsel %vm1829, %v2030, %v2291
      %v2453 = vsel %vm1829, %v2031, %v2293
      %v2455 = vsel %vm1829, %v2032, %v2295
      %v2457 = vsel %vm1829, %v2033, %v2297
      %v2459 = vsel %vm1829, %v2034, %v2299
      %v2461 = vsel %vm1829, %v2035, %v2301
      %v2463 = vsel %vm1829, %v2036, %v2303
      %v2465 = vsel %vm1829, %v2037, %v2305
      %v2467 = vsel %vm1829, %v2038, %v2307
      %v2469 = vsel %vm1829, %v2039, %v2309
      %v2471 = vsel %vm1829, %v2040, %v2311
      %v2473 = vsel %vm1829, %v2041, %v2313
      %v2475 = vsel %vm1862, %v2443, %v2411
      %v2477 = vsel %vm1862, %v2445, %v2413
      %v2479 = vsel %vm1862, %v2447, %v2415
      %v2481 = vsel %vm1862, %v2449, %v2417
      %v2483 = vsel %vm1862, %v2451, %v2419
      %v2485 = vsel %vm1862, %v2453, %v2421
      %v2487 = vsel %vm1862, %v2455, %v2423
      %v2489 = vsel %vm1862, %v2457, %v2425
      %v2491 = vsel %vm1862, %v2459, %v2427
      %v2493 = vsel %vm1862, %v2461, %v2429
      %v2495 = vsel %vm1862, %v2463, %v2431
      %v2497 = vsel %vm1862, %v2465, %v2433
      %v2499 = vsel %vm1862, %v2467, %v2435
      %v2501 = vsel %vm1862, %v2469, %v2437
      %v2503 = vsel %vm1862, %v2471, %v2439
      %v2505 = vsel %vm1862, %v2473, %v2441
      %s2506 = scalar_lea.vmem %s1, 12
      %v2507 = vld [vmem:[%s2506] sm:$0xf]
      %v2508 = vld [vmem:[%s2506 + $0x4] sm:$0xf]
      %v2509 = vld [vmem:[%s2506 + $0x8] sm:$0xf]
      %v2513 = vunpack.c.l.b16 %v2507
      %v2514 = vunpack.c.l.b16 %v2508
      %v2515 = vunpack.c.l.b16 %v2509
      %v2516 = vpack.c.b16 %v2514, %v2513
      %v2517 = vpack.c.b16 %v2515, %v2515
      %vm2519 = vcmask 195584
      %v2520 = vsel %vm2519, %v2475, 0
      %v2522 = vsel %vm2519, %v2477, 0
      %v2524 = vsel %vm2519, %v2479, 0
      %v2526 = vsel %vm2519, %v2481, 0
      %v2528 = vsel %vm2519, %v2483, 0
      %v2530 = vsel %vm2519, %v2485, 0
      %v2532 = vsel %vm2519, %v2487, 0
      %v2534 = vsel %vm2519, %v2489, 0
      %v2536 = vsel %vm2519, %v2491, 0
      %v2538 = vsel %vm2519, %v2493, 0
      %v2540 = vsel %vm2519, %v2495, 0
      %v2542 = vsel %vm2519, %v2497, 0
      %v2544 = vsel %vm2519, %v2499, 0
      %v2546 = vsel %vm2519, %v2501, 0
      %v2548 = vsel %vm2519, %v2503, 0
      %v2550 = vsel %vm2519, %v2505, 0
      %vm2552 = vcmask 1043456
      %v2554 = vsel %vm2552, %v2517, 0
      %2556 = vmatprep.subr.bf16.mxu0 0
      %2557 = vmatpush1.bf16.msra.mxu0 %v2516
      %2558 = vmatprep.subr.bf16.mxu0 0
      %2559 = vmatpush1.bf16.msra.mxu0 %v2554
      %2560 = vmatprep.subr.bf16.mxu0 0
      %2561 = vmatpush1.bf16.msra.mxu0 0
      %2562 = vmatprep.subr.bf16.mxu0 0
      %2563 = vmatpush1.bf16.msra.mxu0 0
      %2564 = vmatprep.subr.bf16.mxu0 0
      %2565 = vmatpush1.bf16.msra.mxu0 0
      %2566 = vmatprep.subr.bf16.mxu0 0
      %2567 = vmatpush1.bf16.msra.mxu0 0
      %2568 = vmatprep.subr.bf16.mxu0 0
      %2569 = vmatpush1.bf16.msra.mxu0 0
      %2570 = vmatprep.subr.bf16.mxu0 0
      %2571 = vmatpush1.bf16.msra.mxu0 0
      %2572 = vmatprep.subr.bf16.mxu0 0
      %2573 = vmatpush1.bf16.msra.mxu0 0
      %2574 = vmatprep.subr.bf16.mxu0 0
      %2575 = vmatpush1.bf16.msra.mxu0 0
      %2576 = vmatprep.subr.bf16.mxu0 0
      %2577 = vmatpush1.bf16.msra.mxu0 0
      %2578 = vmatprep.subr.bf16.mxu0 0
      %2579 = vmatpush1.bf16.msra.mxu0 0
      %2580 = vmatprep.subr.bf16.mxu0 0
      %2581 = vmatpush1.bf16.msra.mxu0 0
      %2582 = vmatprep.subr.bf16.mxu0 0
      %2583 = vmatpush1.bf16.msra.mxu0 0
      %2584 = vmatprep.subr.bf16.mxu0 0
      %2585 = vmatpush1.bf16.msra.mxu0 0
      %2586 = vmatprep.subr.bf16.mxu0 0
      %2587 = vmatpush1.bf16.msra.mxu0 0
      %2588 = vmatprep.mubr.bf16.mxu0 0
      %2589 = vmatmul.mubr.bf16.gmra.mrb[0].mxu0 %v2520
      %v2590 = vpop.f32.mrb[0].mxu0
      %v2591 = vadd.f32 0.0, %v2590
      %v2592 = vpop.f32.mrb[0].mxu0
      %v2593 = vpop.f32.mrb[0].mxu0
      %v2594 = vadd.f32 0.0, %v2593
      %v2595 = vpop.f32.mrb[0].mxu0
      %2596 = vmatprep.mubr.bf16.mxu0 0
      %2597 = vmatmul.mubr.bf16.gmra.mrb[0].mxu0 %v2522
      %v2598 = vpop.f32.mrb[0].mxu0
      %v2599 = vadd.f32 0.0, %v2598
      %v2600 = vpop.f32.mrb[0].mxu0
      %v2601 = vpop.f32.mrb[0].mxu0
      %v2602 = vadd.f32 0.0, %v2601
      %v2603 = vpop.f32.mrb[0].mxu0
      %2604 = vmatprep.mubr.bf16.mxu0 0
      %2605 = vmatmul.mubr.bf16.gmra.mrb[0].mxu0 %v2524
      %v2606 = vpop.f32.mrb[0].mxu0
      %v2607 = vadd.f32 0.0, %v2606
      %v2608 = vpop.f32.mrb[0].mxu0
      %v2609 = vpop.f32.mrb[0].mxu0
      %v2610 = vadd.f32 0.0, %v2609
      %v2611 = vpop.f32.mrb[0].mxu0
      %2612 = vmatprep.mubr.bf16.mxu0 0
      %2613 = vmatmul.mubr.bf16.gmra.mrb[0].mxu0 %v2526
      %v2614 = vpop.f32.mrb[0].mxu0
      %v2615 = vadd.f32 0.0, %v2614
      %v2616 = vpop.f32.mrb[0].mxu0
      %v2617 = vpop.f32.mrb[0].mxu0
      %v2618 = vadd.f32 0.0, %v2617
      %v2619 = vpop.f32.mrb[0].mxu0
      %2620 = vmatprep.mubr.bf16.mxu0 0
      %2621 = vmatmul.mubr.bf16.gmra.mrb[0].mxu0 %v2528
      %v2622 = vpop.f32.mrb[0].mxu0
      %v2623 = vadd.f32 0.0, %v2622
      %v2624 = vpop.f32.mrb[0].mxu0
      %v2625 = vpop.f32.mrb[0].mxu0
      %v2626 = vadd.f32 0.0, %v2625
      %v2627 = vpop.f32.mrb[0].mxu0
      %2628 = vmatprep.mubr.bf16.mxu0 0
      %2629 = vmatmul.mubr.bf16.gmra.mrb[0].mxu0 %v2530
      %v2630 = vpop.f32.mrb[0].mxu0
      %v2631 = vadd.f32 0.0, %v2630
      %v2632 = vpop.f32.mrb[0].mxu0
      %v2633 = vpop.f32.mrb[0].mxu0
      %v2634 = vadd.f32 0.0, %v2633
      %v2635 = vpop.f32.mrb[0].mxu0
      %2636 = vmatprep.mubr.bf16.mxu0 0
      %2637 = vmatmul.mubr.bf16.gmra.mrb[0].mxu0 %v2532
      %v2638 = vpop.f32.mrb[0].mxu0
      %v2639 = vadd.f32 0.0, %v2638
      %v2640 = vpop.f32.mrb[0].mxu0
      %v2641 = vpop.f32.mrb[0].mxu0
      %v2642 = vadd.f32 0.0, %v2641
      %v2643 = vpop.f32.mrb[0].mxu0
      %2644 = vmatprep.mubr.bf16.mxu0 0
      %2645 = vmatmul.mubr.bf16.gmra.mrb[0].mxu0 %v2534
      %v2646 = vpop.f32.mrb[0].mxu0
      %v2647 = vadd.f32 0.0, %v2646
      %v2648 = vpop.f32.mrb[0].mxu0
      %v2649 = vpop.f32.mrb[0].mxu0
      %v2650 = vadd.f32 0.0, %v2649
      %v2651 = vpop.f32.mrb[0].mxu0
      %2652 = vmatprep.mubr.bf16.mxu0 0
      %2653 = vmatmul.mubr.bf16.gmra.mrb[0].mxu0 %v2536
      %v2654 = vpop.f32.mrb[0].mxu0
      %v2655 = vadd.f32 0.0, %v2654
      %v2656 = vpop.f32.mrb[0].mxu0
      %v2657 = vpop.f32.mrb[0].mxu0
      %v2658 = vadd.f32 0.0, %v2657
      %v2659 = vpop.f32.mrb[0].mxu0
      %2660 = vmatprep.mubr.bf16.mxu0 0
      %2661 = vmatmul.mubr.bf16.gmra.mrb[0].mxu0 %v2538
      %v2662 = vpop.f32.mrb[0].mxu0
      %v2663 = vadd.f32 0.0, %v2662
      %v2664 = vpop.f32.mrb[0].mxu0
      %v2665 = vpop.f32.mrb[0].mxu0
      %v2666 = vadd.f32 0.0, %v2665
      %v2667 = vpop.f32.mrb[0].mxu0
      %2668 = vmatprep.mubr.bf16.mxu0 0
      %2669 = vmatmul.mubr.bf16.gmra.mrb[0].mxu0 %v2540
      %v2670 = vpop.f32.mrb[0].mxu0
      %v2671 = vadd.f32 0.0, %v2670
      %v2672 = vpop.f32.mrb[0].mxu0
      %v2673 = vpop.f32.mrb[0].mxu0
      %v2674 = vadd.f32 0.0, %v2673
      %v2675 = vpop.f32.mrb[0].mxu0
      %2676 = vmatprep.mubr.bf16.mxu0 0
      %2677 = vmatmul.mubr.bf16.gmra.mrb[0].mxu0 %v2542
      %v2678 = vpop.f32.mrb[0].mxu0
      %v2679 = vadd.f32 0.0, %v2678
      %v2680 = vpop.f32.mrb[0].mxu0
      %v2681 = vpop.f32.mrb[0].mxu0
      %v2682 = vadd.f32 0.0, %v2681
      %v2683 = vpop.f32.mrb[0].mxu0
      %2684 = vmatprep.mubr.bf16.mxu0 0
      %2685 = vmatmul.mubr.bf16.gmra.mrb[0].mxu0 %v2544
      %v2686 = vpop.f32.mrb[0].mxu0
      %v2687 = vadd.f32 0.0, %v2686
      %v2688 = vpop.f32.mrb[0].mxu0
      %v2689 = vpop.f32.mrb[0].mxu0
      %v2690 = vadd.f32 0.0, %v2689
      %v2691 = vpop.f32.mrb[0].mxu0
      %2692 = vmatprep.mubr.bf16.mxu0 0
      %2693 = vmatmul.mubr.bf16.gmra.mrb[0].mxu0 %v2546
      %v2694 = vpop.f32.mrb[0].mxu0
      %v2695 = vadd.f32 0.0, %v2694
      %v2696 = vpop.f32.mrb[0].mxu0
      %v2697 = vpop.f32.mrb[0].mxu0
      %v2698 = vadd.f32 0.0, %v2697
      %v2699 = vpop.f32.mrb[0].mxu0
      %2700 = vmatprep.mubr.bf16.mxu0 0
      %2701 = vmatmul.mubr.bf16.gmra.mrb[0].mxu0 %v2548
      %v2702 = vpop.f32.mrb[0].mxu0
      %v2703 = vadd.f32 0.0, %v2702
      %v2704 = vpop.f32.mrb[0].mxu0
      %v2705 = vpop.f32.mrb[0].mxu0
      %v2706 = vadd.f32 0.0, %v2705
      %v2707 = vpop.f32.mrb[0].mxu0
      %2708 = vmatprep.mubr.bf16.mxu0 0
      %2709 = vmatmul.mubr.bf16.gmra.mrb[0].mxu0 %v2550
      %v2710 = vpop.f32.mrb[0].mxu0
      %v2711 = vadd.f32 0.0, %v2710
      %v2712 = vpop.f32.mrb[0].mxu0
      %v2713 = vpop.f32.mrb[0].mxu0
      %v2714 = vadd.f32 0.0, %v2713
      %v2715 = vpop.f32.mrb[0].mxu0
      %2716 = vdwg.mxu0
      %v2720 = vunpack.c.l.b16 %v1895
      %v2721 = vunpack.c.l.b16 %v1896
      %v2722 = vunpack.c.l.b16 %v1897
      %v2723 = vpack.c.b16 %v2721, %v2720
      %v2724 = vpack.c.b16 %v2722, %v2722
      %v2726 = vsel %vm2519, %v1864, 0
      %v2728 = vsel %vm2519, %v1866, 0
      %v2730 = vsel %vm2519, %v1868, 0
      %v2732 = vsel %vm2519, %v1870, 0
      %v2734 = vsel %vm2519, %v1872, 0
      %v2736 = vsel %vm2519, %v1874, 0
      %v2738 = vsel %vm2519, %v1876, 0
      %v2740 = vsel %vm2519, %v1878, 0
      %v2742 = vsel %vm2519, %v1880, 0
      %v2744 = vsel %vm2519, %v1882, 0
      %v2746 = vsel %vm2519, %v1884, 0
      %v2748 = vsel %vm2519, %v1886, 0
      %v2750 = vsel %vm2519, %v1888, 0
      %v2752 = vsel %vm2519, %v1890, 0
      %v2754 = vsel %vm2519, %v1892, 0
      %v2756 = vsel %vm2519, %v1894, 0
      %v2759 = vsel %vm2552, %v2724, 0
      %2761 = vmatprep.subr.bf16.mxu0 0
      %2762 = vmatpush1.bf16.msra.mxu0 %v2723
      %2763 = vmatprep.subr.bf16.mxu0 0
      %2764 = vmatpush1.bf16.msra.mxu0 %v2759
      %2765 = vmatprep.subr.bf16.mxu0 0
      %2766 = vmatpush1.bf16.msra.mxu0 0
      %2767 = vmatprep.subr.bf16.mxu0 0
      %2768 = vmatpush1.bf16.msra.mxu0 0
      %2769 = vmatprep.subr.bf16.mxu0 0
      %2770 = vmatpush1.bf16.msra.mxu0 0
      %2771 = vmatprep.subr.bf16.mxu0 0
      %2772 = vmatpush1.bf16.msra.mxu0 0
      %2773 = vmatprep.subr.bf16.mxu0 0
      %2774 = vmatpush1.bf16.msra.mxu0 0
      %2775 = vmatprep.subr.bf16.mxu0 0
      %2776 = vmatpush1.bf16.msra.mxu0 0
      %2777 = vmatprep.subr.bf16.mxu0 0
      %2778 = vmatpush1.bf16.msra.mxu0 0
      %2779 = vmatprep.subr.bf16.mxu0 0
      %2780 = vmatpush1.bf16.msra.mxu0 0
      %2781 = vmatprep.subr.bf16.mxu0 0
      %2782 = vmatpush1.bf16.msra.mxu0 0
      %2783 = vmatprep.subr.bf16.mxu0 0
      %2784 = vmatpush1.bf16.msra.mxu0 0
      %2785 = vmatprep.subr.bf16.mxu0 0
      %2786 = vmatpush1.bf16.msra.mxu0 0
      %2787 = vmatprep.subr.bf16.mxu0 0
      %2788 = vmatpush1.bf16.msra.mxu0 0
      %2789 = vmatprep.subr.bf16.mxu0 0
      %2790 = vmatpush1.bf16.msra.mxu0 0
      %2791 = vmatprep.subr.bf16.mxu0 0
      %2792 = vmatpush1.bf16.msra.mxu0 0
      %2793 = vmatprep.mubr.bf16.mxu0 0
      %2794 = vmatmul.mubr.bf16.gmra.mrb[0].mxu0 %v2726
      %v2795 = vpop.f32.mrb[0].mxu0
      %v2796 = vadd.f32 %v2591, %v2795
      %v2797 = vpop.f32.mrb[0].mxu0
      %v2798 = vpop.f32.mrb[0].mxu0
      %v2799 = vadd.f32 %v2594, %v2798
      %v2800 = vpop.f32.mrb[0].mxu0
      %2801 = vmatprep.mubr.bf16.mxu0 0
      %2802 = vmatmul.mubr.bf16.gmra.mrb[0].mxu0 %v2728
      %v2803 = vpop.f32.mrb[0].mxu0
      %v2804 = vadd.f32 %v2599, %v2803
      %v2805 = vpop.f32.mrb[0].mxu0
      %v2806 = vpop.f32.mrb[0].mxu0
      %v2807 = vadd.f32 %v2602, %v2806
      %v2808 = vpop.f32.mrb[0].mxu0
      %2809 = vmatprep.mubr.bf16.mxu0 0
      %2810 = vmatmul.mubr.bf16.gmra.mrb[0].mxu0 %v2730
      %v2811 = vpop.f32.mrb[0].mxu0
      %v2812 = vadd.f32 %v2607, %v2811
      %v2813 = vpop.f32.mrb[0].mxu0
      %v2814 = vpop.f32.mrb[0].mxu0
      %v2815 = vadd.f32 %v2610, %v2814
      %v2816 = vpop.f32.mrb[0].mxu0
      %2817 = vmatprep.mubr.bf16.mxu0 0
      %2818 = vmatmul.mubr.bf16.gmra.mrb[0].mxu0 %v2732
      %v2819 = vpop.f32.mrb[0].mxu0
      %v2820 = vadd.f32 %v2615, %v2819
      %v2821 = vpop.f32.mrb[0].mxu0
      %v2822 = vpop.f32.mrb[0].mxu0
      %v2823 = vadd.f32 %v2618, %v2822
      %v2824 = vpop.f32.mrb[0].mxu0
      %2825 = vmatprep.mubr.bf16.mxu0 0
      %2826 = vmatmul.mubr.bf16.gmra.mrb[0].mxu0 %v2734
      %v2827 = vpop.f32.mrb[0].mxu0
      %v2828 = vadd.f32 %v2623, %v2827
      %v2829 = vpop.f32.mrb[0].mxu0
      %v2830 = vpop.f32.mrb[0].mxu0
      %v2831 = vadd.f32 %v2626, %v2830
      %v2832 = vpop.f32.mrb[0].mxu0
      %2833 = vmatprep.mubr.bf16.mxu0 0
      %2834 = vmatmul.mubr.bf16.gmra.mrb[0].mxu0 %v2736
      %v2835 = vpop.f32.mrb[0].mxu0
      %v2836 = vadd.f32 %v2631, %v2835
      %v2837 = vpop.f32.mrb[0].mxu0
      %v2838 = vpop.f32.mrb[0].mxu0
      %v2839 = vadd.f32 %v2634, %v2838
      %v2840 = vpop.f32.mrb[0].mxu0
      %2841 = vmatprep.mubr.bf16.mxu0 0
      %2842 = vmatmul.mubr.bf16.gmra.mrb[0].mxu0 %v2738
      %v2843 = vpop.f32.mrb[0].mxu0
      %v2844 = vadd.f32 %v2639, %v2843
      %v2845 = vpop.f32.mrb[0].mxu0
      %v2846 = vpop.f32.mrb[0].mxu0
      %v2847 = vadd.f32 %v2642, %v2846
      %v2848 = vpop.f32.mrb[0].mxu0
      %2849 = vmatprep.mubr.bf16.mxu0 0
      %2850 = vmatmul.mubr.bf16.gmra.mrb[0].mxu0 %v2740
      %v2851 = vpop.f32.mrb[0].mxu0
      %v2852 = vadd.f32 %v2647, %v2851
      %v2853 = vpop.f32.mrb[0].mxu0
      %v2854 = vpop.f32.mrb[0].mxu0
      %v2855 = vadd.f32 %v2650, %v2854
      %v2856 = vpop.f32.mrb[0].mxu0
      %2857 = vmatprep.mubr.bf16.mxu0 0
      %2858 = vmatmul.mubr.bf16.gmra.mrb[0].mxu0 %v2742
      %v2859 = vpop.f32.mrb[0].mxu0
      %v2860 = vadd.f32 %v2655, %v2859
      %v2861 = vpop.f32.mrb[0].mxu0
      %v2862 = vpop.f32.mrb[0].mxu0
      %v2863 = vadd.f32 %v2658, %v2862
      %v2864 = vpop.f32.mrb[0].mxu0
      %2865 = vmatprep.mubr.bf16.mxu0 0
      %2866 = vmatmul.mubr.bf16.gmra.mrb[0].mxu0 %v2744
      %v2867 = vpop.f32.mrb[0].mxu0
      %v2868 = vadd.f32 %v2663, %v2867
      %v2869 = vpop.f32.mrb[0].mxu0
      %v2870 = vpop.f32.mrb[0].mxu0
      %v2871 = vadd.f32 %v2666, %v2870
      %v2872 = vpop.f32.mrb[0].mxu0
      %2873 = vmatprep.mubr.bf16.mxu0 0
      %2874 = vmatmul.mubr.bf16.gmra.mrb[0].mxu0 %v2746
      %v2875 = vpop.f32.mrb[0].mxu0
      %v2876 = vadd.f32 %v2671, %v2875
      %v2877 = vpop.f32.mrb[0].mxu0
      %v2878 = vpop.f32.mrb[0].mxu0
      %v2879 = vadd.f32 %v2674, %v2878
      %v2880 = vpop.f32.mrb[0].mxu0
      %2881 = vmatprep.mubr.bf16.mxu0 0
      %2882 = vmatmul.mubr.bf16.gmra.mrb[0].mxu0 %v2748
      %v2883 = vpop.f32.mrb[0].mxu0
      %v2884 = vadd.f32 %v2679, %v2883
      %v2885 = vpop.f32.mrb[0].mxu0
      %v2886 = vpop.f32.mrb[0].mxu0
      %v2887 = vadd.f32 %v2682, %v2886
      %v2888 = vpop.f32.mrb[0].mxu0
      %2889 = vmatprep.mubr.bf16.mxu0 0
      %2890 = vmatmul.mubr.bf16.gmra.mrb[0].mxu0 %v2750
      %v2891 = vpop.f32.mrb[0].mxu0
      %v2892 = vadd.f32 %v2687, %v2891
      %v2893 = vpop.f32.mrb[0].mxu0
      %v2894 = vpop.f32.mrb[0].mxu0
      %v2895 = vadd.f32 %v2690, %v2894
      %v2896 = vpop.f32.mrb[0].mxu0
      %2897 = vmatprep.mubr.bf16.mxu0 0
      %2898 = vmatmul.mubr.bf16.gmra.mrb[0].mxu0 %v2752
      %v2899 = vpop.f32.mrb[0].mxu0
      %v2900 = vadd.f32 %v2695, %v2899
      %v2901 = vpop.f32.mrb[0].mxu0
      %v2902 = vpop.f32.mrb[0].mxu0
      %v2903 = vadd.f32 %v2698, %v2902
      %v2904 = vpop.f32.mrb[0].mxu0
      %2905 = vmatprep.mubr.bf16.mxu0 0
      %2906 = vmatmul.mubr.bf16.gmra.mrb[0].mxu0 %v2754
      %v2907 = vpop.f32.mrb[0].mxu0
      %v2908 = vadd.f32 %v2703, %v2907
      %v2909 = vpop.f32.mrb[0].mxu0
      %v2910 = vpop.f32.mrb[0].mxu0
      %v2911 = vadd.f32 %v2706, %v2910
      %v2912 = vpop.f32.mrb[0].mxu0
      %2913 = vmatprep.mubr.bf16.mxu0 0
      %2914 = vmatmul.mubr.bf16.gmra.mrb[0].mxu0 %v2756
      %v2915 = vpop.f32.mrb[0].mxu0
      %v2916 = vadd.f32 %v2711, %v2915
      %v2917 = vpop.f32.mrb[0].mxu0
      %v2918 = vpop.f32.mrb[0].mxu0
      %v2919 = vadd.f32 %v2714, %v2918
      %v2920 = vpop.f32.mrb[0].mxu0
      %2921 = vdwg.mxu0
      %s2922 = scalar_lea.vmem [#allocation2], 24
      %v2923 = vld [vmem:[%s2922] sm:$0xf]
      %v2924 = vld [vmem:[%s2922 + $0x4] sm:$0xf]
      %v2925 = vld [vmem:[%s2922 + $0xc] sm:$0xf]
      %v2926 = vld [vmem:[%s2922 + $0x10] sm:$0xf]
      %v2927 = vld [vmem:[%s2922 + $0x18] sm:$0xf]
      %v2928 = vld [vmem:[%s2922 + $0x1c] sm:$0xf]
      %v2929 = vld [vmem:[%s2922 + $0x24] sm:$0xf]
      %v2930 = vld [vmem:[%s2922 + $0x28] sm:$0xf]
      %v2931 = vld [vmem:[%s2922 + $0x30] sm:$0xf]
      %v2932 = vld [vmem:[%s2922 + $0x34] sm:$0xf]
      %v2933 = vld [vmem:[%s2922 + $0x3c] sm:$0xf]
      %v2934 = vld [vmem:[%s2922 + $0x40] sm:$0xf]
      %v2935 = vld [vmem:[%s2922 + $0x48] sm:$0xf]
      %v2936 = vld [vmem:[%s2922 + $0x4c] sm:$0xf]
      %v2937 = vld [vmem:[%s2922 + $0x54] sm:$0xf]
      %v2938 = vld [vmem:[%s2922 + $0x58] sm:$0xf]
      %v2939 = vld [vmem:[%s2922 + $0x60] sm:$0xf]
      %v2940 = vld [vmem:[%s2922 + $0x64] sm:$0xf]
      %v2941 = vld [vmem:[%s2922 + $0x6c] sm:$0xf]
      %v2942 = vld [vmem:[%s2922 + $0x70] sm:$0xf]
      %v2943 = vld [vmem:[%s2922 + $0x78] sm:$0xf]
      %v2944 = vld [vmem:[%s2922 + $0x7c] sm:$0xf]
      %v2945 = vld [vmem:[%s2922 + $0x84] sm:$0xf]
      %v2946 = vld [vmem:[%s2922 + $0x88] sm:$0xf]
      %v2947 = vld [vmem:[%s2922 + $0x90] sm:$0xf]
      %v2948 = vld [vmem:[%s2922 + $0x94] sm:$0xf]
      %v2949 = vld [vmem:[%s2922 + $0x9c] sm:$0xf]
      %v2950 = vld [vmem:[%s2922 + $0xa0] sm:$0xf]
      %v2951 = vld [vmem:[%s2922 + $0xa8] sm:$0xf]
      %v2952 = vld [vmem:[%s2922 + $0xac] sm:$0xf]
      %v2953 = vld [vmem:[%s2922 + $0xb4] sm:$0xf]
      %v2954 = vld [vmem:[%s2922 + $0xb8] sm:$0xf]
      %v2955 = vld [vmem:[%s2922 + $0x8] sm:$0x1]
      %v2956 = vld [vmem:[%s2922 + $0x14] sm:$0x1]
      %v2957 = vld [vmem:[%s2922 + $0x20] sm:$0x1]
      %v2958 = vld [vmem:[%s2922 + $0x2c] sm:$0x1]
      %v2959 = vld [vmem:[%s2922 + $0x38] sm:$0x1]
      %v2960 = vld [vmem:[%s2922 + $0x44] sm:$0x1]
      %v2961 = vld [vmem:[%s2922 + $0x50] sm:$0x1]
      %v2962 = vld [vmem:[%s2922 + $0x5c] sm:$0x1]
      %v2963 = vld [vmem:[%s2922 + $0x68] sm:$0x1]
      %v2964 = vld [vmem:[%s2922 + $0x74] sm:$0x1]
      %v2965 = vld [vmem:[%s2922 + $0x80] sm:$0x1]
      %v2966 = vld [vmem:[%s2922 + $0x8c] sm:$0x1]
      %v2967 = vld [vmem:[%s2922 + $0x98] sm:$0x1]
      %v2968 = vld [vmem:[%s2922 + $0xa4] sm:$0x1]
      %v2969 = vld [vmem:[%s2922 + $0xb0] sm:$0x1]
      %v2970 = vld [vmem:[%s2922 + $0xbc] sm:$0x1]
      %v2971 = vld [vmem:[%s2922] sm:$0xe]
      %v2972 = vld [vmem:[%s2922 + $0xc] sm:$0xe]
      %v2973 = vld [vmem:[%s2922 + $0x18] sm:$0xe]
      %v2974 = vld [vmem:[%s2922 + $0x24] sm:$0xe]
      %v2975 = vld [vmem:[%s2922 + $0x30] sm:$0xe]
      %v2976 = vld [vmem:[%s2922 + $0x3c] sm:$0xe]
      %v2977 = vld [vmem:[%s2922 + $0x48] sm:$0xe]
      %v2978 = vld [vmem:[%s2922 + $0x54] sm:$0xe]
      %v2979 = vld [vmem:[%s2922 + $0x60] sm:$0xe]
      %v2980 = vld [vmem:[%s2922 + $0x6c] sm:$0xe]
      %v2981 = vld [vmem:[%s2922 + $0x78] sm:$0xe]
      %v2982 = vld [vmem:[%s2922 + $0x84] sm:$0xe]
      %v2983 = vld [vmem:[%s2922 + $0x90] sm:$0xe]
      %v2984 = vld [vmem:[%s2922 + $0x9c] sm:$0xe]
      %v2985 = vld [vmem:[%s2922 + $0xa8] sm:$0xe]
      %v2986 = vld [vmem:[%s2922 + $0xb4] sm:$0xe]
      %v3019 = vunpack.c.l.b16 %v2923
      %v3020 = vunpack.c.l.b16 %v2924
      %v3021 = vunpack.c.l.b16 %v2925
      %v3022 = vunpack.c.l.b16 %v2926
      %v3023 = vunpack.c.l.b16 %v2927
      %v3024 = vunpack.c.l.b16 %v2928
      %v3025 = vunpack.c.l.b16 %v2929
      %v3026 = vunpack.c.l.b16 %v2930
      %v3027 = vunpack.c.l.b16 %v2931
      %v3028 = vunpack.c.l.b16 %v2932
      %v3029 = vunpack.c.l.b16 %v2933
      %v3030 = vunpack.c.l.b16 %v2934
      %v3031 = vunpack.c.l.b16 %v2935
      %v3032 = vunpack.c.l.b16 %v2936
      %v3033 = vunpack.c.l.b16 %v2937
      %v3034 = vunpack.c.l.b16 %v2938
      %v3035 = vunpack.c.l.b16 %v2939
      %v3036 = vunpack.c.l.b16 %v2940
      %v3037 = vunpack.c.l.b16 %v2941
      %v3038 = vunpack.c.l.b16 %v2942
      %v3039 = vunpack.c.l.b16 %v2943
      %v3040 = vunpack.c.l.b16 %v2944
      %v3041 = vunpack.c.l.b16 %v2945
      %v3042 = vunpack.c.l.b16 %v2946
      %v3043 = vunpack.c.l.b16 %v2947
      %v3044 = vunpack.c.l.b16 %v2948
      %v3045 = vunpack.c.l.b16 %v2949
      %v3046 = vunpack.c.l.b16 %v2950
      %v3047 = vunpack.c.l.b16 %v2951
      %v3048 = vunpack.c.l.b16 %v2952
      %v3049 = vunpack.c.l.b16 %v2953
      %v3050 = vunpack.c.l.b16 %v2954
      %v3051 = vpack.c.b16 %v3020, %v3019
      %v3052 = vpack.c.b16 %v3022, %v3021
      %v3053 = vpack.c.b16 %v3024, %v3023
      %v3054 = vpack.c.b16 %v3026, %v3025
      %v3055 = vpack.c.b16 %v3028, %v3027
      %v3056 = vpack.c.b16 %v3030, %v3029
      %v3057 = vpack.c.b16 %v3032, %v3031
      %v3058 = vpack.c.b16 %v3034, %v3033
      %v3059 = vpack.c.b16 %v3036, %v3035
      %v3060 = vpack.c.b16 %v3038, %v3037
      %v3061 = vpack.c.b16 %v3040, %v3039
      %v3062 = vpack.c.b16 %v3042, %v3041
      %v3063 = vpack.c.b16 %v3044, %v3043
      %v3064 = vpack.c.b16 %v3046, %v3045
      %v3065 = vpack.c.b16 %v3048, %v3047
      %v3066 = vpack.c.b16 %v3050, %v3049
      %v3083 = vunpack.c.l.b16 %v2955
      %v3084 = vunpack.c.l.b16 %v2956
      %v3085 = vunpack.c.l.b16 %v2957
      %v3086 = vunpack.c.l.b16 %v2958
      %v3087 = vunpack.c.l.b16 %v2959
      %v3088 = vunpack.c.l.b16 %v2960
      %v3089 = vunpack.c.l.b16 %v2961
      %v3090 = vunpack.c.l.b16 %v2962
      %v3091 = vunpack.c.l.b16 %v2963
      %v3092 = vunpack.c.l.b16 %v2964
      %v3093 = vunpack.c.l.b16 %v2965
      %v3094 = vunpack.c.l.b16 %v2966
      %v3095 = vunpack.c.l.b16 %v2967
      %v3096 = vunpack.c.l.b16 %v2968
      %v3097 = vunpack.c.l.b16 %v2969
      %v3098 = vunpack.c.l.b16 %v2970
      %v3099 = vpack.c.b16 %v3083, %v3083
      %v3100 = vpack.c.b16 %v3084, %v3084
      %v3101 = vpack.c.b16 %v3085, %v3085
      %v3102 = vpack.c.b16 %v3086, %v3086
      %v3103 = vpack.c.b16 %v3087, %v3087
      %v3104 = vpack.c.b16 %v3088, %v3088
      %v3105 = vpack.c.b16 %v3089, %v3089
      %v3106 = vpack.c.b16 %v3090, %v3090
      %v3107 = vpack.c.b16 %v3091, %v3091
      %v3108 = vpack.c.b16 %v3092, %v3092
      %v3109 = vpack.c.b16 %v3093, %v3093
      %v3110 = vpack.c.b16 %v3094, %v3094
      %v3111 = vpack.c.b16 %v3095, %v3095
      %v3112 = vpack.c.b16 %v3096, %v3096
      %v3113 = vpack.c.b16 %v3097, %v3097
      %v3114 = vpack.c.b16 %v3098, %v3098
      %v3116 = vshrl.u32 %v3051, 16
      %v3118 = vshll.u32 %v3051, 16
      %v3120 = vrot.slane %v3118, 1
      %v3121 = vor.u32 %v3116, %v3120
      %v3123 = vshll.u32 %v3099, 16
      %v3125 = vrot.slane %v3123, 1
      %v3126 = vsel %vm1475, %v3121, %v3125
      %v3128 = vshrl.u32 %v3052, 16
      %v3130 = vshll.u32 %v3052, 16
      %v3132 = vrot.slane %v3130, 1
      %v3133 = vor.u32 %v3128, %v3132
      %v3135 = vshll.u32 %v3100, 16
      %v3137 = vrot.slane %v3135, 1
      %v3138 = vsel %vm1475, %v3133, %v3137
      %v3140 = vshrl.u32 %v3053, 16
      %v3142 = vshll.u32 %v3053, 16
      %v3144 = vrot.slane %v3142, 1
      %v3145 = vor.u32 %v3140, %v3144
      %v3147 = vshll.u32 %v3101, 16
      %v3149 = vrot.slane %v3147, 1
      %v3150 = vsel %vm1475, %v3145, %v3149
      %v3152 = vshrl.u32 %v3054, 16
      %v3154 = vshll.u32 %v3054, 16
      %v3156 = vrot.slane %v3154, 1
      %v3157 = vor.u32 %v3152, %v3156
      %v3159 = vshll.u32 %v3102, 16
      %v3161 = vrot.slane %v3159, 1
      %v3162 = vsel %vm1475, %v3157, %v3161
      %v3164 = vshrl.u32 %v3055, 16
      %v3166 = vshll.u32 %v3055, 16
      %v3168 = vrot.slane %v3166, 1
      %v3169 = vor.u32 %v3164, %v3168
      %v3171 = vshll.u32 %v3103, 16
      %v3173 = vrot.slane %v3171, 1
      %v3174 = vsel %vm1475, %v3169, %v3173
      %v3176 = vshrl.u32 %v3056, 16
      %v3178 = vshll.u32 %v3056, 16
      %v3180 = vrot.slane %v3178, 1
      %v3181 = vor.u32 %v3176, %v3180
      %v3183 = vshll.u32 %v3104, 16
      %v3185 = vrot.slane %v3183, 1
      %v3186 = vsel %vm1475, %v3181, %v3185
      %v3188 = vshrl.u32 %v3057, 16
      %v3190 = vshll.u32 %v3057, 16
      %v3192 = vrot.slane %v3190, 1
      %v3193 = vor.u32 %v3188, %v3192
      %v3195 = vshll.u32 %v3105, 16
      %v3197 = vrot.slane %v3195, 1
      %v3198 = vsel %vm1475, %v3193, %v3197
      %v3200 = vshrl.u32 %v3058, 16
      %v3202 = vshll.u32 %v3058, 16
      %v3204 = vrot.slane %v3202, 1
      %v3205 = vor.u32 %v3200, %v3204
      %v3207 = vshll.u32 %v3106, 16
      %v3209 = vrot.slane %v3207, 1
      %v3210 = vsel %vm1475, %v3205, %v3209
      %v3212 = vshrl.u32 %v3059, 16
      %v3214 = vshll.u32 %v3059, 16
      %v3216 = vrot.slane %v3214, 1
      %v3217 = vor.u32 %v3212, %v3216
      %v3219 = vshll.u32 %v3107, 16
      %v3221 = vrot.slane %v3219, 1
      %v3222 = vsel %vm1475, %v3217, %v3221
      %v3224 = vshrl.u32 %v3060, 16
      %v3226 = vshll.u32 %v3060, 16
      %v3228 = vrot.slane %v3226, 1
      %v3229 = vor.u32 %v3224, %v3228
      %v3231 = vshll.u32 %v3108, 16
      %v3233 = vrot.slane %v3231, 1
      %v3234 = vsel %vm1475, %v3229, %v3233
      %v3236 = vshrl.u32 %v3061, 16
      %v3238 = vshll.u32 %v3061, 16
      %v3240 = vrot.slane %v3238, 1
      %v3241 = vor.u32 %v3236, %v3240
      %v3243 = vshll.u32 %v3109, 16
      %v3245 = vrot.slane %v3243, 1
      %v3246 = vsel %vm1475, %v3241, %v3245
      %v3248 = vshrl.u32 %v3062, 16
      %v3250 = vshll.u32 %v3062, 16
      %v3252 = vrot.slane %v3250, 1
      %v3253 = vor.u32 %v3248, %v3252
      %v3255 = vshll.u32 %v3110, 16
      %v3257 = vrot.slane %v3255, 1
      %v3258 = vsel %vm1475, %v3253, %v3257
      %v3260 = vshrl.u32 %v3063, 16
      %v3262 = vshll.u32 %v3063, 16
      %v3264 = vrot.slane %v3262, 1
      %v3265 = vor.u32 %v3260, %v3264
      %v3267 = vshll.u32 %v3111, 16
      %v3269 = vrot.slane %v3267, 1
      %v3270 = vsel %vm1475, %v3265, %v3269
      %v3272 = vshrl.u32 %v3064, 16
      %v3274 = vshll.u32 %v3064, 16
      %v3276 = vrot.slane %v3274, 1
      %v3277 = vor.u32 %v3272, %v3276
      %v3279 = vshll.u32 %v3112, 16
      %v3281 = vrot.slane %v3279, 1
      %v3282 = vsel %vm1475, %v3277, %v3281
      %v3284 = vshrl.u32 %v3065, 16
      %v3286 = vshll.u32 %v3065, 16
      %v3288 = vrot.slane %v3286, 1
      %v3289 = vor.u32 %v3284, %v3288
      %v3291 = vshll.u32 %v3113, 16
      %v3293 = vrot.slane %v3291, 1
      %v3294 = vsel %vm1475, %v3289, %v3293
      %v3296 = vshrl.u32 %v3066, 16
      %v3298 = vshll.u32 %v3066, 16
      %v3300 = vrot.slane %v3298, 1
      %v3301 = vor.u32 %v3296, %v3300
      %v3303 = vshll.u32 %v3114, 16
      %v3305 = vrot.slane %v3303, 1
      %v3306 = vsel %vm1475, %v3301, %v3305
      %3307 = vrot.lane.b32.xlu0 %v3126, 8
      %v3308 = vpop.permute.xlu0 %3307
      %3309 = vrot.lane.b32.xlu0 %v3138, 8
      %v3310 = vpop.permute.xlu0 %3309
      %3311 = vrot.lane.b32.xlu0 %v3150, 8
      %v3312 = vpop.permute.xlu0 %3311
      %3313 = vrot.lane.b32.xlu0 %v3162, 8
      %v3314 = vpop.permute.xlu0 %3313
      %3315 = vrot.lane.b32.xlu0 %v3174, 8
      %v3316 = vpop.permute.xlu0 %3315
      %3317 = vrot.lane.b32.xlu0 %v3186, 8
      %v3318 = vpop.permute.xlu0 %3317
      %3319 = vrot.lane.b32.xlu0 %v3198, 8
      %v3320 = vpop.permute.xlu0 %3319
      %3321 = vrot.lane.b32.xlu0 %v3210, 8
      %v3322 = vpop.permute.xlu0 %3321
      %3323 = vrot.lane.b32.xlu0 %v3222, 8
      %v3324 = vpop.permute.xlu0 %3323
      %3325 = vrot.lane.b32.xlu0 %v3234, 8
      %v3326 = vpop.permute.xlu0 %3325
      %3327 = vrot.lane.b32.xlu0 %v3246, 8
      %v3328 = vpop.permute.xlu0 %3327
      %3329 = vrot.lane.b32.xlu0 %v3258, 8
      %v3330 = vpop.permute.xlu0 %3329
      %3331 = vrot.lane.b32.xlu0 %v3270, 8
      %v3332 = vpop.permute.xlu0 %3331
      %3333 = vrot.lane.b32.xlu0 %v3282, 8
      %v3334 = vpop.permute.xlu0 %3333
      %3335 = vrot.lane.b32.xlu0 %v3294, 8
      %v3336 = vpop.permute.xlu0 %3335
      %3337 = vrot.lane.b32.xlu0 %v3306, 8
      %v3338 = vpop.permute.xlu0 %3337
      %v3355 = vunpack.c.l.b16 %v2971
      %v3356 = vunpack.c.l.b16 %v2972
      %v3357 = vunpack.c.l.b16 %v2973
      %v3358 = vunpack.c.l.b16 %v2974
      %v3359 = vunpack.c.l.b16 %v2975
      %v3360 = vunpack.c.l.b16 %v2976
      %v3361 = vunpack.c.l.b16 %v2977
      %v3362 = vunpack.c.l.b16 %v2978
      %v3363 = vunpack.c.l.b16 %v2979
      %v3364 = vunpack.c.l.b16 %v2980
      %v3365 = vunpack.c.l.b16 %v2981
      %v3366 = vunpack.c.l.b16 %v2982
      %v3367 = vunpack.c.l.b16 %v2983
      %v3368 = vunpack.c.l.b16 %v2984
      %v3369 = vunpack.c.l.b16 %v2985
      %v3370 = vunpack.c.l.b16 %v2986
      %v3371 = vpack.c.b16 %v3020, %v3355
      %v3372 = vpack.c.b16 %v3022, %v3356
      %v3373 = vpack.c.b16 %v3024, %v3357
      %v3374 = vpack.c.b16 %v3026, %v3358
      %v3375 = vpack.c.b16 %v3028, %v3359
      %v3376 = vpack.c.b16 %v3030, %v3360
      %v3377 = vpack.c.b16 %v3032, %v3361
      %v3378 = vpack.c.b16 %v3034, %v3362
      %v3379 = vpack.c.b16 %v3036, %v3363
      %v3380 = vpack.c.b16 %v3038, %v3364
      %v3381 = vpack.c.b16 %v3040, %v3365
      %v3382 = vpack.c.b16 %v3042, %v3366
      %v3383 = vpack.c.b16 %v3044, %v3367
      %v3384 = vpack.c.b16 %v3046, %v3368
      %v3385 = vpack.c.b16 %v3048, %v3369
      %v3386 = vpack.c.b16 %v3050, %v3370
      %v3387 = vrot.slane %v3371, 1
      %v3388 = vrot.slane %v3099, 1
      %v3389 = vsel %vm1748, %v3387, %v3388
      %v3390 = vrot.slane %v3372, 1
      %v3391 = vrot.slane %v3100, 1
      %v3392 = vsel %vm1748, %v3390, %v3391
      %v3393 = vrot.slane %v3373, 1
      %v3394 = vrot.slane %v3101, 1
      %v3395 = vsel %vm1748, %v3393, %v3394
      %v3396 = vrot.slane %v3374, 1
      %v3397 = vrot.slane %v3102, 1
      %v3398 = vsel %vm1748, %v3396, %v3397
      %v3399 = vrot.slane %v3375, 1
      %v3400 = vrot.slane %v3103, 1
      %v3401 = vsel %vm1748, %v3399, %v3400
      %v3402 = vrot.slane %v3376, 1
      %v3403 = vrot.slane %v3104, 1
      %v3404 = vsel %vm1748, %v3402, %v3403
      %v3405 = vrot.slane %v3377, 1
      %v3406 = vrot.slane %v3105, 1
      %v3407 = vsel %vm1748, %v3405, %v3406
      %v3408 = vrot.slane %v3378, 1
      %v3409 = vrot.slane %v3106, 1
      %v3410 = vsel %vm1748, %v3408, %v3409
      %v3411 = vrot.slane %v3379, 1
      %v3412 = vrot.slane %v3107, 1
      %v3413 = vsel %vm1748, %v3411, %v3412
      %v3414 = vrot.slane %v3380, 1
      %v3415 = vrot.slane %v3108, 1
      %v3416 = vsel %vm1748, %v3414, %v3415
      %v3417 = vrot.slane %v3381, 1
      %v3418 = vrot.slane %v3109, 1
      %v3419 = vsel %vm1748, %v3417, %v3418
      %v3420 = vrot.slane %v3382, 1
      %v3421 = vrot.slane %v3110, 1
      %v3422 = vsel %vm1748, %v3420, %v3421
      %v3423 = vrot.slane %v3383, 1
      %v3424 = vrot.slane %v3111, 1
      %v3425 = vsel %vm1748, %v3423, %v3424
      %v3426 = vrot.slane %v3384, 1
      %v3427 = vrot.slane %v3112, 1
      %v3428 = vsel %vm1748, %v3426, %v3427
      %v3429 = vrot.slane %v3385, 1
      %v3430 = vrot.slane %v3113, 1
      %v3431 = vsel %vm1748, %v3429, %v3430
      %v3432 = vrot.slane %v3386, 1
      %v3433 = vrot.slane %v3114, 1
      %v3434 = vsel %vm1748, %v3432, %v3433
      %3435 = vrot.lane.b32.xlu0 %v3389, 16
      %v3436 = vpop.permute.xlu0 %3435
      %3437 = vrot.lane.b32.xlu0 %v3392, 16
      %v3438 = vpop.permute.xlu0 %3437
      %3439 = vrot.lane.b32.xlu0 %v3395, 16
      %v3440 = vpop.permute.xlu0 %3439
      %3441 = vrot.lane.b32.xlu0 %v3398, 16
      %v3442 = vpop.permute.xlu0 %3441
      %3443 = vrot.lane.b32.xlu0 %v3401, 16
      %v3444 = vpop.permute.xlu0 %3443
      %3445 = vrot.lane.b32.xlu0 %v3404, 16
      %v3446 = vpop.permute.xlu0 %3445
      %3447 = vrot.lane.b32.xlu0 %v3407, 16
      %v3448 = vpop.permute.xlu0 %3447
      %3449 = vrot.lane.b32.xlu0 %v3410, 16
      %v3450 = vpop.permute.xlu0 %3449
      %3451 = vrot.lane.b32.xlu0 %v3413, 16
      %v3452 = vpop.permute.xlu0 %3451
      %3453 = vrot.lane.b32.xlu0 %v3416, 16
      %v3454 = vpop.permute.xlu0 %3453
      %3455 = vrot.lane.b32.xlu0 %v3419, 16
      %v3456 = vpop.permute.xlu0 %3455
      %3457 = vrot.lane.b32.xlu0 %v3422, 16
      %v3458 = vpop.permute.xlu0 %3457
      %3459 = vrot.lane.b32.xlu0 %v3425, 16
      %v3460 = vpop.permute.xlu0 %3459
      %3461 = vrot.lane.b32.xlu0 %v3428, 16
      %v3462 = vpop.permute.xlu0 %3461
      %3463 = vrot.lane.b32.xlu0 %v3431, 16
      %v3464 = vpop.permute.xlu0 %3463
      %3465 = vrot.lane.b32.xlu0 %v3434, 16
      %v3466 = vpop.permute.xlu0 %3465
      %v3468 = vsel %vm1829, %v3051, %v3308
      %v3470 = vsel %vm1829, %v3052, %v3310
      %v3472 = vsel %vm1829, %v3053, %v3312
      %v3474 = vsel %vm1829, %v3054, %v3314
      %v3476 = vsel %vm1829, %v3055, %v3316
      %v3478 = vsel %vm1829, %v3056, %v3318
      %v3480 = vsel %vm1829, %v3057, %v3320
      %v3482 = vsel %vm1829, %v3058, %v3322
      %v3484 = vsel %vm1829, %v3059, %v3324
      %v3486 = vsel %vm1829, %v3060, %v3326
      %v3488 = vsel %vm1829, %v3061, %v3328
      %v3490 = vsel %vm1829, %v3062, %v3330
      %v3492 = vsel %vm1829, %v3063, %v3332
      %v3494 = vsel %vm1829, %v3064, %v3334
      %v3496 = vsel %vm1829, %v3065, %v3336
      %v3498 = vsel %vm1829, %v3066, %v3338
      %v3500 = vsel %vm1862, %v3468, %v3436
      %v3502 = vsel %vm1862, %v3470, %v3438
      %v3504 = vsel %vm1862, %v3472, %v3440
      %v3506 = vsel %vm1862, %v3474, %v3442
      %v3508 = vsel %vm1862, %v3476, %v3444
      %v3510 = vsel %vm1862, %v3478, %v3446
      %v3512 = vsel %vm1862, %v3480, %v3448
      %v3514 = vsel %vm1862, %v3482, %v3450
      %v3516 = vsel %vm1862, %v3484, %v3452
      %v3518 = vsel %vm1862, %v3486, %v3454
      %v3520 = vsel %vm1862, %v3488, %v3456
      %v3522 = vsel %vm1862, %v3490, %v3458
      %v3524 = vsel %vm1862, %v3492, %v3460
      %v3526 = vsel %vm1862, %v3494, %v3462
      %v3528 = vsel %vm1862, %v3496, %v3464
      %v3530 = vsel %vm1862, %v3498, %v3466
      %s3531 = scalar_lea.vmem %s1, 24
      %v3532 = vld [vmem:[%s3531] sm:$0xf]
      %v3533 = vld [vmem:[%s3531 + $0x4] sm:$0xf]
      %v3534 = vld [vmem:[%s3531 + $0x8] sm:$0xf]
      %v3538 = vunpack.c.l.b16 %v3532
      %v3539 = vunpack.c.l.b16 %v3533
      %v3540 = vunpack.c.l.b16 %v3534
      %v3541 = vpack.c.b16 %v3539, %v3538
      %v3542 = vpack.c.b16 %v3540, %v3540
      %v3544 = vsel %vm2519, %v3500, 0
      %v3546 = vsel %vm2519, %v3502, 0
      %v3548 = vsel %vm2519, %v3504, 0
      %v3550 = vsel %vm2519, %v3506, 0
      %v3552 = vsel %vm2519, %v3508, 0
      %v3554 = vsel %vm2519, %v3510, 0
      %v3556 = vsel %vm2519, %v3512, 0
      %v3558 = vsel %vm2519, %v3514, 0
      %v3560 = vsel %vm2519, %v3516, 0
      %v3562 = vsel %vm2519, %v3518, 0
      %v3564 = vsel %vm2519, %v3520, 0
      %v3566 = vsel %vm2519, %v3522, 0
      %v3568 = vsel %vm2519, %v3524, 0
      %v3570 = vsel %vm2519, %v3526, 0
      %v3572 = vsel %vm2519, %v3528, 0
      %v3574 = vsel %vm2519, %v3530, 0
      %v3577 = vsel %vm2552, %v3542, 0
      %3579 = vmatprep.subr.bf16.mxu0 0
      %3580 = vmatpush1.bf16.msra.mxu0 %v3541
      %3581 = vmatprep.subr.bf16.mxu0 0
      %3582 = vmatpush1.bf16.msra.mxu0 %v3577
      %3583 = vmatprep.subr.bf16.mxu0 0
      %3584 = vmatpush1.bf16.msra.mxu0 0
      %3585 = vmatprep.subr.bf16.mxu0 0
      %3586 = vmatpush1.bf16.msra.mxu0 0
      %3587 = vmatprep.subr.bf16.mxu0 0
      %3588 = vmatpush1.bf16.msra.mxu0 0
      %3589 = vmatprep.subr.bf16.mxu0 0
      %3590 = vmatpush1.bf16.msra.mxu0 0
      %3591 = vmatprep.subr.bf16.mxu0 0
      %3592 = vmatpush1.bf16.msra.mxu0 0
      %3593 = vmatprep.subr.bf16.mxu0 0
      %3594 = vmatpush1.bf16.msra.mxu0 0
      %3595 = vmatprep.subr.bf16.mxu0 0
      %3596 = vmatpush1.bf16.msra.mxu0 0
      %3597 = vmatprep.subr.bf16.mxu0 0
      %3598 = vmatpush1.bf16.msra.mxu0 0
      %3599 = vmatprep.subr.bf16.mxu0 0
      %3600 = vmatpush1.bf16.msra.mxu0 0
      %3601 = vmatprep.subr.bf16.mxu0 0
      %3602 = vmatpush1.bf16.msra.mxu0 0
      %3603 = vmatprep.subr.bf16.mxu0 0
      %3604 = vmatpush1.bf16.msra.mxu0 0
      %3605 = vmatprep.subr.bf16.mxu0 0
      %3606 = vmatpush1.bf16.msra.mxu0 0
      %3607 = vmatprep.subr.bf16.mxu0 0
      %3608 = vmatpush1.bf16.msra.mxu0 0
      %3609 = vmatprep.subr.bf16.mxu0 0
      %3610 = vmatpush1.bf16.msra.mxu0 0
      %3611 = vmatprep.mubr.bf16.mxu0 0
      %3612 = vmatmul.mubr.bf16.gmra.mrb[0].mxu0 %v3544
      %v3613 = vpop.f32.mrb[0].mxu0
      %v3614 = vadd.f32 0.0, %v3613
      %v3615 = vpop.f32.mrb[0].mxu0
      %v3616 = vpop.f32.mrb[0].mxu0
      %v3617 = vadd.f32 0.0, %v3616
      %v3618 = vpop.f32.mrb[0].mxu0
      %3619 = vmatprep.mubr.bf16.mxu0 0
      %3620 = vmatmul.mubr.bf16.gmra.mrb[0].mxu0 %v3546
      %v3621 = vpop.f32.mrb[0].mxu0
      %v3622 = vadd.f32 0.0, %v3621
      %v3623 = vpop.f32.mrb[0].mxu0
      %v3624 = vpop.f32.mrb[0].mxu0
      %v3625 = vadd.f32 0.0, %v3624
      %v3626 = vpop.f32.mrb[0].mxu0
      %3627 = vmatprep.mubr.bf16.mxu0 0
      %3628 = vmatmul.mubr.bf16.gmra.mrb[0].mxu0 %v3548
      %v3629 = vpop.f32.mrb[0].mxu0
      %v3630 = vadd.f32 0.0, %v3629
      %v3631 = vpop.f32.mrb[0].mxu0
      %v3632 = vpop.f32.mrb[0].mxu0
      %v3633 = vadd.f32 0.0, %v3632
      %v3634 = vpop.f32.mrb[0].mxu0
      %3635 = vmatprep.mubr.bf16.mxu0 0
      %3636 = vmatmul.mubr.bf16.gmra.mrb[0].mxu0 %v3550
      %v3637 = vpop.f32.mrb[0].mxu0
      %v3638 = vadd.f32 0.0, %v3637
      %v3639 = vpop.f32.mrb[0].mxu0
      %v3640 = vpop.f32.mrb[0].mxu0
      %v3641 = vadd.f32 0.0, %v3640
      %v3642 = vpop.f32.mrb[0].mxu0
      %3643 = vmatprep.mubr.bf16.mxu0 0
      %3644 = vmatmul.mubr.bf16.gmra.mrb[0].mxu0 %v3552
      %v3645 = vpop.f32.mrb[0].mxu0
      %v3646 = vadd.f32 0.0, %v3645
      %v3647 = vpop.f32.mrb[0].mxu0
      %v3648 = vpop.f32.mrb[0].mxu0
      %v3649 = vadd.f32 0.0, %v3648
      %v3650 = vpop.f32.mrb[0].mxu0
      %3651 = vmatprep.mubr.bf16.mxu0 0
      %3652 = vmatmul.mubr.bf16.gmra.mrb[0].mxu0 %v3554
      %v3653 = vpop.f32.mrb[0].mxu0
      %v3654 = vadd.f32 0.0, %v3653
      %v3655 = vpop.f32.mrb[0].mxu0
      %v3656 = vpop.f32.mrb[0].mxu0
      %v3657 = vadd.f32 0.0, %v3656
      %v3658 = vpop.f32.mrb[0].mxu0
      %3659 = vmatprep.mubr.bf16.mxu0 0
      %3660 = vmatmul.mubr.bf16.gmra.mrb[0].mxu0 %v3556
      %v3661 = vpop.f32.mrb[0].mxu0
      %v3662 = vadd.f32 0.0, %v3661
      %v3663 = vpop.f32.mrb[0].mxu0
      %v3664 = vpop.f32.mrb[0].mxu0
      %v3665 = vadd.f32 0.0, %v3664
      %v3666 = vpop.f32.mrb[0].mxu0
      %3667 = vmatprep.mubr.bf16.mxu0 0
      %3668 = vmatmul.mubr.bf16.gmra.mrb[0].mxu0 %v3558
      %v3669 = vpop.f32.mrb[0].mxu0
      %v3670 = vadd.f32 0.0, %v3669
      %v3671 = vpop.f32.mrb[0].mxu0
      %v3672 = vpop.f32.mrb[0].mxu0
      %v3673 = vadd.f32 0.0, %v3672
      %v3674 = vpop.f32.mrb[0].mxu0
      %3675 = vmatprep.mubr.bf16.mxu0 0
      %3676 = vmatmul.mubr.bf16.gmra.mrb[0].mxu0 %v3560
      %v3677 = vpop.f32.mrb[0].mxu0
      %v3678 = vadd.f32 0.0, %v3677
      %v3679 = vpop.f32.mrb[0].mxu0
      %v3680 = vpop.f32.mrb[0].mxu0
      %v3681 = vadd.f32 0.0, %v3680
      %v3682 = vpop.f32.mrb[0].mxu0
      %3683 = vmatprep.mubr.bf16.mxu0 0
      %3684 = vmatmul.mubr.bf16.gmra.mrb[0].mxu0 %v3562
      %v3685 = vpop.f32.mrb[0].mxu0
      %v3686 = vadd.f32 0.0, %v3685
      %v3687 = vpop.f32.mrb[0].mxu0
      %v3688 = vpop.f32.mrb[0].mxu0
      %v3689 = vadd.f32 0.0, %v3688
      %v3690 = vpop.f32.mrb[0].mxu0
      %3691 = vmatprep.mubr.bf16.mxu0 0
      %3692 = vmatmul.mubr.bf16.gmra.mrb[0].mxu0 %v3564
      %v3693 = vpop.f32.mrb[0].mxu0
      %v3694 = vadd.f32 0.0, %v3693
      %v3695 = vpop.f32.mrb[0].mxu0
      %v3696 = vpop.f32.mrb[0].mxu0
      %v3697 = vadd.f32 0.0, %v3696
      %v3698 = vpop.f32.mrb[0].mxu0
      %3699 = vmatprep.mubr.bf16.mxu0 0
      %3700 = vmatmul.mubr.bf16.gmra.mrb[0].mxu0 %v3566
      %v3701 = vpop.f32.mrb[0].mxu0
      %v3702 = vadd.f32 0.0, %v3701
      %v3703 = vpop.f32.mrb[0].mxu0
      %v3704 = vpop.f32.mrb[0].mxu0
      %v3705 = vadd.f32 0.0, %v3704
      %v3706 = vpop.f32.mrb[0].mxu0
      %3707 = vmatprep.mubr.bf16.mxu0 0
      %3708 = vmatmul.mubr.bf16.gmra.mrb[0].mxu0 %v3568
      %v3709 = vpop.f32.mrb[0].mxu0
      %v3710 = vadd.f32 0.0, %v3709
      %v3711 = vpop.f32.mrb[0].mxu0
      %v3712 = vpop.f32.mrb[0].mxu0
      %v3713 = vadd.f32 0.0, %v3712
      %v3714 = vpop.f32.mrb[0].mxu0
      %3715 = vmatprep.mubr.bf16.mxu0 0
      %3716 = vmatmul.mubr.bf16.gmra.mrb[0].mxu0 %v3570
      %v3717 = vpop.f32.mrb[0].mxu0
      %v3718 = vadd.f32 0.0, %v3717
      %v3719 = vpop.f32.mrb[0].mxu0
      %v3720 = vpop.f32.mrb[0].mxu0
      %v3721 = vadd.f32 0.0, %v3720
      %v3722 = vpop.f32.mrb[0].mxu0
      %3723 = vmatprep.mubr.bf16.mxu0 0
      %3724 = vmatmul.mubr.bf16.gmra.mrb[0].mxu0 %v3572
      %v3725 = vpop.f32.mrb[0].mxu0
      %v3726 = vadd.f32 0.0, %v3725
      %v3727 = vpop.f32.mrb[0].mxu0
      %v3728 = vpop.f32.mrb[0].mxu0
      %v3729 = vadd.f32 0.0, %v3728
      %v3730 = vpop.f32.mrb[0].mxu0
      %3731 = vmatprep.mubr.bf16.mxu0 0
      %3732 = vmatmul.mubr.bf16.gmra.mrb[0].mxu0 %v3574
      %v3733 = vpop.f32.mrb[0].mxu0
      %v3734 = vadd.f32 0.0, %v3733
      %v3735 = vpop.f32.mrb[0].mxu0
      %v3736 = vpop.f32.mrb[0].mxu0
      %v3737 = vadd.f32 0.0, %v3736
      %v3738 = vpop.f32.mrb[0].mxu0
      %3739 = vdwg.mxu0
      %v3740 = vadd.f32 %v2796, %v3614
      %v3741 = vadd.f32 %v2799, %v3617
      %v3742 = vadd.f32 %v2804, %v3622
      %v3743 = vadd.f32 %v2807, %v3625
      %v3744 = vadd.f32 %v2812, %v3630
      %v3745 = vadd.f32 %v2815, %v3633
      %v3746 = vadd.f32 %v2820, %v3638
      %v3747 = vadd.f32 %v2823, %v3641
      %v3748 = vadd.f32 %v2828, %v3646
      %v3749 = vadd.f32 %v2831, %v3649
      %v3750 = vadd.f32 %v2836, %v3654
      %v3751 = vadd.f32 %v2839, %v3657
      %v3752 = vadd.f32 %v2844, %v3662
      %v3753 = vadd.f32 %v2847, %v3665
      %v3754 = vadd.f32 %v2852, %v3670
      %v3755 = vadd.f32 %v2855, %v3673
      %v3756 = vadd.f32 %v2860, %v3678
      %v3757 = vadd.f32 %v2863, %v3681
      %v3758 = vadd.f32 %v2868, %v3686
      %v3759 = vadd.f32 %v2871, %v3689
      %v3760 = vadd.f32 %v2876, %v3694
      %v3761 = vadd.f32 %v2879, %v3697
      %v3762 = vadd.f32 %v2884, %v3702
      %v3763 = vadd.f32 %v2887, %v3705
      %v3764 = vadd.f32 %v2892, %v3710
      %v3765 = vadd.f32 %v2895, %v3713
      %v3766 = vadd.f32 %v2900, %v3718
      %v3767 = vadd.f32 %v2903, %v3721
      %v3768 = vadd.f32 %v2908, %v3726
      %v3769 = vadd.f32 %v2911, %v3729
      %v3770 = vadd.f32 %v2916, %v3734
      %v3771 = vadd.f32 %v2919, %v3737
      %v3772 = vld [vmem:[%s2] sm:$0x1]
      %v3774 = vlaneseq
      %v3775 = vshrl.u32 %v3774, 7
      %v3776 = vsub.s32 0, %v3775
      %v3777 = vrot.slane %v3772, %v3776
      %v3779 = vmul.f32 %v3740, %v3777
      %v3780 = vmul.f32 %v3741, %v3777
      %v3781 = vmul.f32 %v3742, %v3777
      %v3782 = vmul.f32 %v3743, %v3777
      %v3783 = vmul.f32 %v3744, %v3777
      %v3784 = vmul.f32 %v3745, %v3777
      %v3785 = vmul.f32 %v3746, %v3777
      %v3786 = vmul.f32 %v3747, %v3777
      %v3787 = vmul.f32 %v3748, %v3777
      %v3788 = vmul.f32 %v3749, %v3777
      %v3789 = vmul.f32 %v3750, %v3777
      %v3790 = vmul.f32 %v3751, %v3777
      %v3791 = vmul.f32 %v3752, %v3777
      %v3792 = vmul.f32 %v3753, %v3777
      %v3793 = vmul.f32 %v3754, %v3777
      %v3794 = vmul.f32 %v3755, %v3777
      %v3795 = vmul.f32 %v3756, %v3777
      %v3796 = vmul.f32 %v3757, %v3777
      %v3797 = vmul.f32 %v3758, %v3777
      %v3798 = vmul.f32 %v3759, %v3777
      %v3799 = vmul.f32 %v3760, %v3777
      %v3800 = vmul.f32 %v3761, %v3777
      %v3801 = vmul.f32 %v3762, %v3777
      %v3802 = vmul.f32 %v3763, %v3777
      %v3803 = vmul.f32 %v3764, %v3777
      %v3804 = vmul.f32 %v3765, %v3777
      %v3805 = vmul.f32 %v3766, %v3777
      %v3806 = vmul.f32 %v3767, %v3777
      %v3807 = vmul.f32 %v3768, %v3777
      %v3808 = vmul.f32 %v3769, %v3777
      %v3809 = vmul.f32 %v3770, %v3777
      %v3810 = vmul.f32 %v3771, %v3777
      %v3811 = vld [vmem:[%s3] sm:$0x1]
      %v3813 = vlaneseq
      %v3814 = vshrl.u32 %v3813, 7
      %v3815 = vsub.s32 0, %v3814
      %v3816 = vrot.slane %v3811, %v3815
      %v3818 = vadd.f32 %v3779, %v3816
      %v3819 = vadd.f32 %v3780, %v3816
      %v3820 = vadd.f32 %v3781, %v3816
      %v3821 = vadd.f32 %v3782, %v3816
      %v3822 = vadd.f32 %v3783, %v3816
      %v3823 = vadd.f32 %v3784, %v3816
      %v3824 = vadd.f32 %v3785, %v3816
      %v3825 = vadd.f32 %v3786, %v3816
      %v3826 = vadd.f32 %v3787, %v3816
      %v3827 = vadd.f32 %v3788, %v3816
      %v3828 = vadd.f32 %v3789, %v3816
      %v3829 = vadd.f32 %v3790, %v3816
      %v3830 = vadd.f32 %v3791, %v3816
      %v3831 = vadd.f32 %v3792, %v3816
      %v3832 = vadd.f32 %v3793, %v3816
      %v3833 = vadd.f32 %v3794, %v3816
      %v3834 = vadd.f32 %v3795, %v3816
      %v3835 = vadd.f32 %v3796, %v3816
      %v3836 = vadd.f32 %v3797, %v3816
      %v3837 = vadd.f32 %v3798, %v3816
      %v3838 = vadd.f32 %v3799, %v3816
      %v3839 = vadd.f32 %v3800, %v3816
      %v3840 = vadd.f32 %v3801, %v3816
      %v3841 = vadd.f32 %v3802, %v3816
      %v3842 = vadd.f32 %v3803, %v3816
      %v3843 = vadd.f32 %v3804, %v3816
      %v3844 = vadd.f32 %v3805, %v3816
      %v3845 = vadd.f32 %v3806, %v3816
      %v3846 = vadd.f32 %v3807, %v3816
      %v3847 = vadd.f32 %v3808, %v3816
      %v3848 = vadd.f32 %v3809, %v3816
      %v3849 = vadd.f32 %v3810, %v3816
      %v3850 = vmax.f32 %v3818, 0.0
      %v3851 = vmax.f32 %v3819, 0.0
      %v3852 = vmax.f32 %v3820, 0.0
      %v3853 = vmax.f32 %v3821, 0.0
      %v3854 = vmax.f32 %v3822, 0.0
      %v3855 = vmax.f32 %v3823, 0.0
      %v3856 = vmax.f32 %v3824, 0.0
      %v3857 = vmax.f32 %v3825, 0.0
      %v3858 = vmax.f32 %v3826, 0.0
      %v3859 = vmax.f32 %v3827, 0.0
      %v3860 = vmax.f32 %v3828, 0.0
      %v3861 = vmax.f32 %v3829, 0.0
      %v3862 = vmax.f32 %v3830, 0.0
      %v3863 = vmax.f32 %v3831, 0.0
      %v3864 = vmax.f32 %v3832, 0.0
      %v3865 = vmax.f32 %v3833, 0.0
      %v3866 = vmax.f32 %v3834, 0.0
      %v3867 = vmax.f32 %v3835, 0.0
      %v3868 = vmax.f32 %v3836, 0.0
      %v3869 = vmax.f32 %v3837, 0.0
      %v3870 = vmax.f32 %v3838, 0.0
      %v3871 = vmax.f32 %v3839, 0.0
      %v3872 = vmax.f32 %v3840, 0.0
      %v3873 = vmax.f32 %v3841, 0.0
      %v3874 = vmax.f32 %v3842, 0.0
      %v3875 = vmax.f32 %v3843, 0.0
      %v3876 = vmax.f32 %v3844, 0.0
      %v3877 = vmax.f32 %v3845, 0.0
      %v3878 = vmax.f32 %v3846, 0.0
      %v3879 = vmax.f32 %v3847, 0.0
      %v3880 = vmax.f32 %v3848, 0.0
      %v3881 = vmax.f32 %v3849, 0.0
      %v3882 = vpack.c.bf16 %v3851, %v3850
      %v3883 = vpack.c.bf16 %v3853, %v3852
      %v3884 = vpack.c.bf16 %v3855, %v3854
      %v3885 = vpack.c.bf16 %v3857, %v3856
      %v3886 = vpack.c.bf16 %v3859, %v3858
      %v3887 = vpack.c.bf16 %v3861, %v3860
      %v3888 = vpack.c.bf16 %v3863, %v3862
      %v3889 = vpack.c.bf16 %v3865, %v3864
      %v3890 = vpack.c.bf16 %v3867, %v3866
      %v3891 = vpack.c.bf16 %v3869, %v3868
      %v3892 = vpack.c.bf16 %v3871, %v3870
      %v3893 = vpack.c.bf16 %v3873, %v3872
      %v3894 = vpack.c.bf16 %v3875, %v3874
      %v3895 = vpack.c.bf16 %v3877, %v3876
      %v3896 = vpack.c.bf16 %v3879, %v3878
      %v3897 = vpack.c.bf16 %v3881, %v3880
      %v3914 = vunpack.c.l.b16 %v3882
      %v3915 = vunpack.c.h.b16 %v3882
      %v3916 = vunpack.c.l.b16 %v3883
      %v3917 = vunpack.c.h.b16 %v3883
      %v3918 = vunpack.c.l.b16 %v3884
      %v3919 = vunpack.c.h.b16 %v3884
      %v3920 = vunpack.c.l.b16 %v3885
      %v3921 = vunpack.c.h.b16 %v3885
      %v3922 = vunpack.c.l.b16 %v3886
      %v3923 = vunpack.c.h.b16 %v3886
      %v3924 = vunpack.c.l.b16 %v3887
      %v3925 = vunpack.c.h.b16 %v3887
      %v3926 = vunpack.c.l.b16 %v3888
      %v3927 = vunpack.c.h.b16 %v3888
      %v3928 = vunpack.c.l.b16 %v3889
      %v3929 = vunpack.c.h.b16 %v3889
      %v3930 = vunpack.c.l.b16 %v3890
      %v3931 = vunpack.c.h.b16 %v3890
      %v3932 = vunpack.c.l.b16 %v3891
      %v3933 = vunpack.c.h.b16 %v3891
      %v3934 = vunpack.c.l.b16 %v3892
      %v3935 = vunpack.c.h.b16 %v3892
      %v3936 = vunpack.c.l.b16 %v3893
      %v3937 = vunpack.c.h.b16 %v3893
      %v3938 = vunpack.c.l.b16 %v3894
      %v3939 = vunpack.c.h.b16 %v3894
      %v3940 = vunpack.c.l.b16 %v3895
      %v3941 = vunpack.c.h.b16 %v3895
      %v3942 = vunpack.c.l.b16 %v3896
      %v3943 = vunpack.c.h.b16 %v3896
      %v3944 = vunpack.c.l.b16 %v3897
      %v3945 = vunpack.c.h.b16 %v3897
      %v3946 = vpack.c.b16 %v3914, %v3914
      %v3947 = vpack.c.b16 %v3915, %v3915
      %v3948 = vpack.c.b16 %v3916, %v3916
      %v3949 = vpack.c.b16 %v3917, %v3917
      %v3950 = vpack.c.b16 %v3918, %v3918
      %v3951 = vpack.c.b16 %v3919, %v3919
      %v3952 = vpack.c.b16 %v3920, %v3920
      %v3953 = vpack.c.b16 %v3921, %v3921
      %v3954 = vpack.c.b16 %v3922, %v3922
      %v3955 = vpack.c.b16 %v3923, %v3923
      %v3956 = vpack.c.b16 %v3924, %v3924
      %v3957 = vpack.c.b16 %v3925, %v3925
      %v3958 = vpack.c.b16 %v3926, %v3926
      %v3959 = vpack.c.b16 %v3927, %v3927
      %v3960 = vpack.c.b16 %v3928, %v3928
      %v3961 = vpack.c.b16 %v3929, %v3929
      %v3962 = vpack.c.b16 %v3930, %v3930
      %v3963 = vpack.c.b16 %v3931, %v3931
      %v3964 = vpack.c.b16 %v3932, %v3932
      %v3965 = vpack.c.b16 %v3933, %v3933
      %v3966 = vpack.c.b16 %v3934, %v3934
      %v3967 = vpack.c.b16 %v3935, %v3935
      %v3968 = vpack.c.b16 %v3936, %v3936
      %v3969 = vpack.c.b16 %v3937, %v3937
      %v3970 = vpack.c.b16 %v3938, %v3938
      %v3971 = vpack.c.b16 %v3939, %v3939
      %v3972 = vpack.c.b16 %v3940, %v3940
      %v3973 = vpack.c.b16 %v3941, %v3941
      %v3974 = vpack.c.b16 %v3942, %v3942
      %v3975 = vpack.c.b16 %v3943, %v3943
      %v3976 = vpack.c.b16 %v3944, %v3944
      %v3977 = vpack.c.b16 %v3945, %v3945
      %v3979 = vshrl.u32 %v3946, 16
      %v3981 = vrot.slane %v3979, 7
      %v3982 = vshll.u32 %v3946, 16
      %v3984 = vor.u32 %v3981, %v3982
      %v3985 = vrot.slane %v3981, 4
      %v3987 = vshrl.u32 %v3947, 16
      %v3989 = vrot.slane %v3987, 7
      %v3990 = vshll.u32 %v3947, 16
      %v3992 = vor.u32 %v3989, %v3990
      %v3993 = vsel %vm847, %v3985, %v3992
      %v3994 = vrot.slane %v3989, 4
      %v3996 = vshrl.u32 %v3948, 16
      %v3998 = vrot.slane %v3996, 7
      %v3999 = vshll.u32 %v3948, 16
      %v4001 = vor.u32 %v3998, %v3999
      %v4002 = vrot.slane %v3998, 4
      %v4004 = vshrl.u32 %v3949, 16
      %v4006 = vrot.slane %v4004, 7
      %v4007 = vshll.u32 %v3949, 16
      %v4009 = vor.u32 %v4006, %v4007
      %v4010 = vsel %vm847, %v4002, %v4009
      %v4011 = vrot.slane %v4006, 4
      %v4013 = vshrl.u32 %v3950, 16
      %v4015 = vrot.slane %v4013, 7
      %v4016 = vshll.u32 %v3950, 16
      %v4018 = vor.u32 %v4015, %v4016
      %v4019 = vrot.slane %v4015, 4
      %v4021 = vshrl.u32 %v3951, 16
      %v4023 = vrot.slane %v4021, 7
      %v4024 = vshll.u32 %v3951, 16
      %v4026 = vor.u32 %v4023, %v4024
      %v4027 = vsel %vm847, %v4019, %v4026
      %v4028 = vrot.slane %v4023, 4
      %v4030 = vshrl.u32 %v3952, 16
      %v4032 = vrot.slane %v4030, 7
      %v4033 = vshll.u32 %v3952, 16
      %v4035 = vor.u32 %v4032, %v4033
      %v4036 = vrot.slane %v4032, 4
      %v4038 = vshrl.u32 %v3953, 16
      %v4040 = vrot.slane %v4038, 7
      %v4041 = vshll.u32 %v3953, 16
      %v4043 = vor.u32 %v4040, %v4041
      %v4044 = vsel %vm847, %v4036, %v4043
      %v4045 = vrot.slane %v4040, 4
      %v4047 = vshrl.u32 %v3954, 16
      %v4049 = vrot.slane %v4047, 7
      %v4050 = vshll.u32 %v3954, 16
      %v4052 = vor.u32 %v4049, %v4050
      %v4053 = vrot.slane %v4049, 4
      %v4055 = vshrl.u32 %v3955, 16
      %v4057 = vrot.slane %v4055, 7
      %v4058 = vshll.u32 %v3955, 16
      %v4060 = vor.u32 %v4057, %v4058
      %v4061 = vsel %vm847, %v4053, %v4060
      %v4062 = vrot.slane %v4057, 4
      %v4064 = vshrl.u32 %v3956, 16
      %v4066 = vrot.slane %v4064, 7
      %v4067 = vshll.u32 %v3956, 16
      %v4069 = vor.u32 %v4066, %v4067
      %v4070 = vrot.slane %v4066, 4
      %v4072 = vshrl.u32 %v3957, 16
      %v4074 = vrot.slane %v4072, 7
      %v4075 = vshll.u32 %v3957, 16
      %v4077 = vor.u32 %v4074, %v4075
      %v4078 = vsel %vm847, %v4070, %v4077
      %v4079 = vrot.slane %v4074, 4
      %v4081 = vshrl.u32 %v3958, 16
      %v4083 = vrot.slane %v4081, 7
      %v4084 = vshll.u32 %v3958, 16
      %v4086 = vor.u32 %v4083, %v4084
      %v4087 = vrot.slane %v4083, 4
      %v4089 = vshrl.u32 %v3959, 16
      %v4091 = vrot.slane %v4089, 7
      %v4092 = vshll.u32 %v3959, 16
      %v4094 = vor.u32 %v4091, %v4092
      %v4095 = vsel %vm847, %v4087, %v4094
      %v4096 = vrot.slane %v4091, 4
      %v4098 = vshrl.u32 %v3960, 16
      %v4100 = vrot.slane %v4098, 7
      %v4101 = vshll.u32 %v3960, 16
      %v4103 = vor.u32 %v4100, %v4101
      %v4104 = vrot.slane %v4100, 4
      %v4106 = vshrl.u32 %v3961, 16
      %v4108 = vrot.slane %v4106, 7
      %v4109 = vshll.u32 %v3961, 16
      %v4111 = vor.u32 %v4108, %v4109
      %v4112 = vsel %vm847, %v4104, %v4111
      %v4113 = vrot.slane %v4108, 4
      %v4115 = vshrl.u32 %v3962, 16
      %v4117 = vrot.slane %v4115, 7
      %v4118 = vshll.u32 %v3962, 16
      %v4120 = vor.u32 %v4117, %v4118
      %v4121 = vrot.slane %v4117, 4
      %v4123 = vshrl.u32 %v3963, 16
      %v4125 = vrot.slane %v4123, 7
      %v4126 = vshll.u32 %v3963, 16
      %v4128 = vor.u32 %v4125, %v4126
      %v4129 = vsel %vm847, %v4121, %v4128
      %v4130 = vrot.slane %v4125, 4
      %v4132 = vshrl.u32 %v3964, 16
      %v4134 = vrot.slane %v4132, 7
      %v4135 = vshll.u32 %v3964, 16
      %v4137 = vor.u32 %v4134, %v4135
      %v4138 = vrot.slane %v4134, 4
      %v4140 = vshrl.u32 %v3965, 16
      %v4142 = vrot.slane %v4140, 7
      %v4143 = vshll.u32 %v3965, 16
      %v4145 = vor.u32 %v4142, %v4143
      %v4146 = vsel %vm847, %v4138, %v4145
      %v4147 = vrot.slane %v4142, 4
      %v4149 = vshrl.u32 %v3966, 16
      %v4151 = vrot.slane %v4149, 7
      %v4152 = vshll.u32 %v3966, 16
      %v4154 = vor.u32 %v4151, %v4152
      %v4155 = vrot.slane %v4151, 4
      %v4157 = vshrl.u32 %v3967, 16
      %v4159 = vrot.slane %v4157, 7
      %v4160 = vshll.u32 %v3967, 16
      %v4162 = vor.u32 %v4159, %v4160
      %v4163 = vsel %vm847, %v4155, %v4162
      %v4164 = vrot.slane %v4159, 4
      %v4166 = vshrl.u32 %v3968, 16
      %v4168 = vrot.slane %v4166, 7
      %v4169 = vshll.u32 %v3968, 16
      %v4171 = vor.u32 %v4168, %v4169
      %v4172 = vrot.slane %v4168, 4
      %v4174 = vshrl.u32 %v3969, 16
      %v4176 = vrot.slane %v4174, 7
      %v4177 = vshll.u32 %v3969, 16
      %v4179 = vor.u32 %v4176, %v4177
      %v4180 = vsel %vm847, %v4172, %v4179
      %v4181 = vrot.slane %v4176, 4
      %v4183 = vshrl.u32 %v3970, 16
      %v4185 = vrot.slane %v4183, 7
      %v4186 = vshll.u32 %v3970, 16
      %v4188 = vor.u32 %v4185, %v4186
      %v4189 = vrot.slane %v4185, 4
      %v4191 = vshrl.u32 %v3971, 16
      %v4193 = vrot.slane %v4191, 7
      %v4194 = vshll.u32 %v3971, 16
      %v4196 = vor.u32 %v4193, %v4194
      %v4197 = vsel %vm847, %v4189, %v4196
      %v4198 = vrot.slane %v4193, 4
      %v4200 = vshrl.u32 %v3972, 16
      %v4202 = vrot.slane %v4200, 7
      %v4203 = vshll.u32 %v3972, 16
      %v4205 = vor.u32 %v4202, %v4203
      %v4206 = vrot.slane %v4202, 4
      %v4208 = vshrl.u32 %v3973, 16
      %v4210 = vrot.slane %v4208, 7
      %v4211 = vshll.u32 %v3973, 16
      %v4213 = vor.u32 %v4210, %v4211
      %v4214 = vsel %vm847, %v4206, %v4213
      %v4215 = vrot.slane %v4210, 4
      %v4217 = vshrl.u32 %v3974, 16
      %v4219 = vrot.slane %v4217, 7
      %v4220 = vshll.u32 %v3974, 16
      %v4222 = vor.u32 %v4219, %v4220
      %v4223 = vrot.slane %v4219, 4
      %v4225 = vshrl.u32 %v3975, 16
      %v4227 = vrot.slane %v4225, 7
      %v4228 = vshll.u32 %v3975, 16
      %v4230 = vor.u32 %v4227, %v4228
      %v4231 = vsel %vm847, %v4223, %v4230
      %v4232 = vrot.slane %v4227, 4
      %v4234 = vshrl.u32 %v3976, 16
      %v4236 = vrot.slane %v4234, 7
      %v4237 = vshll.u32 %v3976, 16
      %v4239 = vor.u32 %v4236, %v4237
      %v4240 = vrot.slane %v4236, 4
      %v4242 = vshrl.u32 %v3977, 16
      %v4244 = vrot.slane %v4242, 7
      %v4245 = vshll.u32 %v3977, 16
      %v4247 = vor.u32 %v4244, %v4245
      %v4248 = vsel %vm847, %v4240, %v4247
      %v4249 = vrot.slane %v4244, 4
      %s4298 = scalar_lea.vmem [#allocation3], 12
      %vm4299 = vcmask 125952
      %vm4300 = vmand %vm4299, %vm427
      %v4301 = vld [vmem:[%s4298] sm:$0xf]
      %v4302 = vsel %vm4300, %v3984, %v4301
      %4303 = vst [vmem:[%s4298] sm:$0xf] %v4302
      %4304 = vst.msk [vmem:[%s4298 + $0x4] sm:$0xf] %vm361, %v3993
      %v4305 = vld [vmem:[%s4298 + $0x8] sm:$0x1]
      %v4306 = vsel %vm372, %v3994, %v4305
      %4307 = vst [vmem:[%s4298 + $0x8] sm:$0x1] %v4306
      %v4308 = vld [vmem:[%s4298 + $0xc] sm:$0xf]
      %v4309 = vsel %vm4300, %v4001, %v4308
      %4310 = vst [vmem:[%s4298 + $0xc] sm:$0xf] %v4309
      %4311 = vst.msk [vmem:[%s4298 + $0x10] sm:$0xf] %vm361, %v4010
      %v4312 = vld [vmem:[%s4298 + $0x14] sm:$0x1]
      %v4313 = vsel %vm372, %v4011, %v4312
      %4314 = vst [vmem:[%s4298 + $0x14] sm:$0x1] %v4313
      %v4315 = vld [vmem:[%s4298 + $0x18] sm:$0xf]
      %v4316 = vsel %vm4300, %v4018, %v4315
      %4317 = vst [vmem:[%s4298 + $0x18] sm:$0xf] %v4316
      %4318 = vst.msk [vmem:[%s4298 + $0x1c] sm:$0xf] %vm361, %v4027
      %v4319 = vld [vmem:[%s4298 + $0x20] sm:$0x1]
      %v4320 = vsel %vm372, %v4028, %v4319
      %4321 = vst [vmem:[%s4298 + $0x20] sm:$0x1] %v4320
      %v4322 = vld [vmem:[%s4298 + $0x24] sm:$0xf]
      %v4323 = vsel %vm4300, %v4035, %v4322
      %4324 = vst [vmem:[%s4298 + $0x24] sm:$0xf] %v4323
      %4325 = vst.msk [vmem:[%s4298 + $0x28] sm:$0xf] %vm361, %v4044
      %v4326 = vld [vmem:[%s4298 + $0x2c] sm:$0x1]
      %v4327 = vsel %vm372, %v4045, %v4326
      %4328 = vst [vmem:[%s4298 + $0x2c] sm:$0x1] %v4327
      %v4329 = vld [vmem:[%s4298 + $0x30] sm:$0xf]
      %v4330 = vsel %vm4300, %v4052, %v4329
      %4331 = vst [vmem:[%s4298 + $0x30] sm:$0xf] %v4330
      %4332 = vst.msk [vmem:[%s4298 + $0x34] sm:$0xf] %vm361, %v4061
      %v4333 = vld [vmem:[%s4298 + $0x38] sm:$0x1]
      %v4334 = vsel %vm372, %v4062, %v4333
      %4335 = vst [vmem:[%s4298 + $0x38] sm:$0x1] %v4334
      %v4336 = vld [vmem:[%s4298 + $0x3c] sm:$0xf]
      %v4337 = vsel %vm4300, %v4069, %v4336
      %4338 = vst [vmem:[%s4298 + $0x3c] sm:$0xf] %v4337
      %4339 = vst.msk [vmem:[%s4298 + $0x40] sm:$0xf] %vm361, %v4078
      %v4340 = vld [vmem:[%s4298 + $0x44] sm:$0x1]
      %v4341 = vsel %vm372, %v4079, %v4340
      %4342 = vst [vmem:[%s4298 + $0x44] sm:$0x1] %v4341
      %v4343 = vld [vmem:[%s4298 + $0x48] sm:$0xf]
      %v4344 = vsel %vm4300, %v4086, %v4343
      %4345 = vst [vmem:[%s4298 + $0x48] sm:$0xf] %v4344
      %4346 = vst.msk [vmem:[%s4298 + $0x4c] sm:$0xf] %vm361, %v4095
      %v4347 = vld [vmem:[%s4298 + $0x50] sm:$0x1]
      %v4348 = vsel %vm372, %v4096, %v4347
      %4349 = vst [vmem:[%s4298 + $0x50] sm:$0x1] %v4348
      %v4350 = vld [vmem:[%s4298 + $0x54] sm:$0xf]
      %v4351 = vsel %vm4300, %v4103, %v4350
      %4352 = vst [vmem:[%s4298 + $0x54] sm:$0xf] %v4351
      %4353 = vst.msk [vmem:[%s4298 + $0x58] sm:$0xf] %vm361, %v4112
      %v4354 = vld [vmem:[%s4298 + $0x5c] sm:$0x1]
      %v4355 = vsel %vm372, %v4113, %v4354
      %4356 = vst [vmem:[%s4298 + $0x5c] sm:$0x1] %v4355
      %v4357 = vld [vmem:[%s4298 + $0x60] sm:$0xf]
      %v4358 = vsel %vm4300, %v4120, %v4357
      %4359 = vst [vmem:[%s4298 + $0x60] sm:$0xf] %v4358
      %4360 = vst.msk [vmem:[%s4298 + $0x64] sm:$0xf] %vm361, %v4129
      %v4361 = vld [vmem:[%s4298 + $0x68] sm:$0x1]
      %v4362 = vsel %vm372, %v4130, %v4361
      %4363 = vst [vmem:[%s4298 + $0x68] sm:$0x1] %v4362
      %v4364 = vld [vmem:[%s4298 + $0x6c] sm:$0xf]
      %v4365 = vsel %vm4300, %v4137, %v4364
      %4366 = vst [vmem:[%s4298 + $0x6c] sm:$0xf] %v4365
      %4367 = vst.msk [vmem:[%s4298 + $0x70] sm:$0xf] %vm361, %v4146
      %v4368 = vld [vmem:[%s4298 + $0x74] sm:$0x1]
      %v4369 = vsel %vm372, %v4147, %v4368
      %4370 = vst [vmem:[%s4298 + $0x74] sm:$0x1] %v4369
      %v4371 = vld [vmem:[%s4298 + $0x78] sm:$0xf]
      %v4372 = vsel %vm4300, %v4154, %v4371
      %4373 = vst [vmem:[%s4298 + $0x78] sm:$0xf] %v4372
      %4374 = vst.msk [vmem:[%s4298 + $0x7c] sm:$0xf] %vm361, %v4163
      %v4375 = vld [vmem:[%s4298 + $0x80] sm:$0x1]
      %v4376 = vsel %vm372, %v4164, %v4375
      %4377 = vst [vmem:[%s4298 + $0x80] sm:$0x1] %v4376
      %v4378 = vld [vmem:[%s4298 + $0x84] sm:$0xf]
      %v4379 = vsel %vm4300, %v4171, %v4378
      %4380 = vst [vmem:[%s4298 + $0x84] sm:$0xf] %v4379
      %4381 = vst.msk [vmem:[%s4298 + $0x88] sm:$0xf] %vm361, %v4180
      %v4382 = vld [vmem:[%s4298 + $0x8c] sm:$0x1]
      %v4383 = vsel %vm372, %v4181, %v4382
      %4384 = vst [vmem:[%s4298 + $0x8c] sm:$0x1] %v4383
      %v4385 = vld [vmem:[%s4298 + $0x90] sm:$0xf]
      %v4386 = vsel %vm4300, %v4188, %v4385
      %4387 = vst [vmem:[%s4298 + $0x90] sm:$0xf] %v4386
      %4388 = vst.msk [vmem:[%s4298 + $0x94] sm:$0xf] %vm361, %v4197
      %v4389 = vld [vmem:[%s4298 + $0x98] sm:$0x1]
      %v4390 = vsel %vm372, %v4198, %v4389
      %4391 = vst [vmem:[%s4298 + $0x98] sm:$0x1] %v4390
      %v4392 = vld [vmem:[%s4298 + $0x9c] sm:$0xf]
      %v4393 = vsel %vm4300, %v4205, %v4392
      %4394 = vst [vmem:[%s4298 + $0x9c] sm:$0xf] %v4393
      %4395 = vst.msk [vmem:[%s4298 + $0xa0] sm:$0xf] %vm361, %v4214
      %v4396 = vld [vmem:[%s4298 + $0xa4] sm:$0x1]
      %v4397 = vsel %vm372, %v4215, %v4396
      %4398 = vst [vmem:[%s4298 + $0xa4] sm:$0x1] %v4397
      %v4399 = vld [vmem:[%s4298 + $0xa8] sm:$0xf]
      %v4400 = vsel %vm4300, %v4222, %v4399
      %4401 = vst [vmem:[%s4298 + $0xa8] sm:$0xf] %v4400
      %4402 = vst.msk [vmem:[%s4298 + $0xac] sm:$0xf] %vm361, %v4231
      %v4403 = vld [vmem:[%s4298 + $0xb0] sm:$0x1]
      %v4404 = vsel %vm372, %v4232, %v4403
      %4405 = vst [vmem:[%s4298 + $0xb0] sm:$0x1] %v4404
      %v4406 = vld [vmem:[%s4298 + $0xb4] sm:$0xf]
      %v4407 = vsel %vm4300, %v4239, %v4406
      %4408 = vst [vmem:[%s4298 + $0xb4] sm:$0xf] %v4407
      %4409 = vst.msk [vmem:[%s4298 + $0xb8] sm:$0xf] %vm361, %v4248
      %v4410 = vld [vmem:[%s4298 + $0xbc] sm:$0x1]
      %v4411 = vsel %vm372, %v4249, %v4410
      %4412 = vst [vmem:[%s4298 + $0xbc] sm:$0x1] %v4411
      %v4413 = vld [vmem:[#allocation3] sm:$0xf]
      %v4414 = vld [vmem:[#allocation3 + $0x4] sm:$0xf]
      %v4415 = vld [vmem:[#allocation3 + $0xc] sm:$0xf]
      %v4416 = vld [vmem:[#allocation3 + $0x10] sm:$0xf]
      %v4417 = vld [vmem:[#allocation3 + $0x18] sm:$0xf]
      %v4418 = vld [vmem:[#allocation3 + $0x1c] sm:$0xf]
      %v4419 = vld [vmem:[#allocation3 + $0x24] sm:$0xf]
      %v4420 = vld [vmem:[#allocation3 + $0x28] sm:$0xf]
      %v4421 = vld [vmem:[#allocation3 + $0x30] sm:$0xf]
      %v4422 = vld [vmem:[#allocation3 + $0x34] sm:$0xf]
      %v4423 = vld [vmem:[#allocation3 + $0x3c] sm:$0xf]
      %v4424 = vld [vmem:[#allocation3 + $0x40] sm:$0xf]
      %v4425 = vld [vmem:[#allocation3 + $0x48] sm:$0xf]
      %v4426 = vld [vmem:[#allocation3 + $0x4c] sm:$0xf]
      %v4427 = vld [vmem:[#allocation3 + $0x54] sm:$0xf]
      %v4428 = vld [vmem:[#allocation3 + $0x58] sm:$0xf]
      %v4429 = vld [vmem:[#allocation3 + $0x60] sm:$0xf]
      %v4430 = vld [vmem:[#allocation3 + $0x64] sm:$0xf]
      %v4431 = vld [vmem:[#allocation3 + $0x6c] sm:$0xf]
      %v4432 = vld [vmem:[#allocation3 + $0x70] sm:$0xf]
      %v4433 = vld [vmem:[#allocation3 + $0x78] sm:$0xf]
      %v4434 = vld [vmem:[#allocation3 + $0x7c] sm:$0xf]
      %v4435 = vld [vmem:[#allocation3 + $0x84] sm:$0xf]
      %v4436 = vld [vmem:[#allocation3 + $0x88] sm:$0xf]
      %v4437 = vld [vmem:[#allocation3 + $0x90] sm:$0xf]
      %v4438 = vld [vmem:[#allocation3 + $0x94] sm:$0xf]
      %v4439 = vld [vmem:[#allocation3 + $0x9c] sm:$0xf]
      %v4440 = vld [vmem:[#allocation3 + $0xa0] sm:$0xf]
      %v4441 = vld [vmem:[#allocation3 + $0xa8] sm:$0xf]
      %v4442 = vld [vmem:[#allocation3 + $0xac] sm:$0xf]
      %v4443 = vld [vmem:[#allocation3 + $0xb4] sm:$0xf]
      %v4444 = vld [vmem:[#allocation3 + $0xb8] sm:$0xf]
      %v4445 = vld [vmem:[#allocation3 + $0x8] sm:$0x1]
      %v4446 = vld [vmem:[#allocation3 + $0x14] sm:$0x1]
      %v4447 = vld [vmem:[#allocation3 + $0x20] sm:$0x1]
      %v4448 = vld [vmem:[#allocation3 + $0x2c] sm:$0x1]
      %v4449 = vld [vmem:[#allocation3 + $0x38] sm:$0x1]
      %v4450 = vld [vmem:[#allocation3 + $0x44] sm:$0x1]
      %v4451 = vld [vmem:[#allocation3 + $0x50] sm:$0x1]
      %v4452 = vld [vmem:[#allocation3 + $0x5c] sm:$0x1]
      %v4453 = vld [vmem:[#allocation3 + $0x68] sm:$0x1]
      %v4454 = vld [vmem:[#allocation3 + $0x74] sm:$0x1]
      %v4455 = vld [vmem:[#allocation3 + $0x80] sm:$0x1]
      %v4456 = vld [vmem:[#allocation3 + $0x8c] sm:$0x1]
      %v4457 = vld [vmem:[#allocation3 + $0x98] sm:$0x1]
      %v4458 = vld [vmem:[#allocation3 + $0xa4] sm:$0x1]
      %v4459 = vld [vmem:[#allocation3 + $0xb0] sm:$0x1]
      %v4460 = vld [vmem:[#allocation3 + $0xbc] sm:$0x1]
      %v4461 = vld [vmem:[#allocation3] sm:$0xe]
      %v4462 = vld [vmem:[#allocation3 + $0xc] sm:$0xe]
      %v4463 = vld [vmem:[#allocation3 + $0x18] sm:$0xe]
      %v4464 = vld [vmem:[#allocation3 + $0x24] sm:$0xe]
      %v4465 = vld [vmem:[#allocation3 + $0x30] sm:$0xe]
      %v4466 = vld [vmem:[#allocation3 + $0x3c] sm:$0xe]
      %v4467 = vld [vmem:[#allocation3 + $0x48] sm:$0xe]
      %v4468 = vld [vmem:[#allocation3 + $0x54] sm:$0xe]
      %v4469 = vld [vmem:[#allocation3 + $0x60] sm:$0xe]
      %v4470 = vld [vmem:[#allocation3 + $0x6c] sm:$0xe]
      %v4471 = vld [vmem:[#allocation3 + $0x78] sm:$0xe]
      %v4472 = vld [vmem:[#allocation3 + $0x84] sm:$0xe]
      %v4473 = vld [vmem:[#allocation3 + $0x90] sm:$0xe]
      %v4474 = vld [vmem:[#allocation3 + $0x9c] sm:$0xe]
      %v4475 = vld [vmem:[#allocation3 + $0xa8] sm:$0xe]
      %v4476 = vld [vmem:[#allocation3 + $0xb4] sm:$0xe]
      %v4509 = vunpack.c.l.b16 %v4413
      %v4510 = vunpack.c.l.b16 %v4414
      %v4511 = vunpack.c.l.b16 %v4415
      %v4512 = vunpack.c.l.b16 %v4416
      %v4513 = vunpack.c.l.b16 %v4417
      %v4514 = vunpack.c.l.b16 %v4418
      %v4515 = vunpack.c.l.b16 %v4419
      %v4516 = vunpack.c.l.b16 %v4420
      %v4517 = vunpack.c.l.b16 %v4421
      %v4518 = vunpack.c.l.b16 %v4422
      %v4519 = vunpack.c.l.b16 %v4423
      %v4520 = vunpack.c.l.b16 %v4424
      %v4521 = vunpack.c.l.b16 %v4425
      %v4522 = vunpack.c.l.b16 %v4426
      %v4523 = vunpack.c.l.b16 %v4427
      %v4524 = vunpack.c.l.b16 %v4428
      %v4525 = vunpack.c.l.b16 %v4429
      %v4526 = vunpack.c.l.b16 %v4430
      %v4527 = vunpack.c.l.b16 %v4431
      %v4528 = vunpack.c.l.b16 %v4432
      %v4529 = vunpack.c.l.b16 %v4433
      %v4530 = vunpack.c.l.b16 %v4434
      %v4531 = vunpack.c.l.b16 %v4435
      %v4532 = vunpack.c.l.b16 %v4436
      %v4533 = vunpack.c.l.b16 %v4437
      %v4534 = vunpack.c.l.b16 %v4438
      %v4535 = vunpack.c.l.b16 %v4439
      %v4536 = vunpack.c.l.b16 %v4440
      %v4537 = vunpack.c.l.b16 %v4441
      %v4538 = vunpack.c.l.b16 %v4442
      %v4539 = vunpack.c.l.b16 %v4443
      %v4540 = vunpack.c.l.b16 %v4444
      %v4541 = vpack.c.b16 %v4510, %v4509
      %v4542 = vpack.c.b16 %v4512, %v4511
      %v4543 = vpack.c.b16 %v4514, %v4513
      %v4544 = vpack.c.b16 %v4516, %v4515
      %v4545 = vpack.c.b16 %v4518, %v4517
      %v4546 = vpack.c.b16 %v4520, %v4519
      %v4547 = vpack.c.b16 %v4522, %v4521
      %v4548 = vpack.c.b16 %v4524, %v4523
      %v4549 = vpack.c.b16 %v4526, %v4525
      %v4550 = vpack.c.b16 %v4528, %v4527
      %v4551 = vpack.c.b16 %v4530, %v4529
      %v4552 = vpack.c.b16 %v4532, %v4531
      %v4553 = vpack.c.b16 %v4534, %v4533
      %v4554 = vpack.c.b16 %v4536, %v4535
      %v4555 = vpack.c.b16 %v4538, %v4537
      %v4556 = vpack.c.b16 %v4540, %v4539
      %v4573 = vunpack.c.l.b16 %v4445
      %v4574 = vunpack.c.l.b16 %v4446
      %v4575 = vunpack.c.l.b16 %v4447
      %v4576 = vunpack.c.l.b16 %v4448
      %v4577 = vunpack.c.l.b16 %v4449
      %v4578 = vunpack.c.l.b16 %v4450
      %v4579 = vunpack.c.l.b16 %v4451
      %v4580 = vunpack.c.l.b16 %v4452
      %v4581 = vunpack.c.l.b16 %v4453
      %v4582 = vunpack.c.l.b16 %v4454
      %v4583 = vunpack.c.l.b16 %v4455
      %v4584 = vunpack.c.l.b16 %v4456
      %v4585 = vunpack.c.l.b16 %v4457
      %v4586 = vunpack.c.l.b16 %v4458
      %v4587 = vunpack.c.l.b16 %v4459
      %v4588 = vunpack.c.l.b16 %v4460
      %v4589 = vpack.c.b16 %v4573, %v4573
      %v4590 = vpack.c.b16 %v4574, %v4574
      %v4591 = vpack.c.b16 %v4575, %v4575
      %v4592 = vpack.c.b16 %v4576, %v4576
      %v4593 = vpack.c.b16 %v4577, %v4577
      %v4594 = vpack.c.b16 %v4578, %v4578
      %v4595 = vpack.c.b16 %v4579, %v4579
      %v4596 = vpack.c.b16 %v4580, %v4580
      %v4597 = vpack.c.b16 %v4581, %v4581
      %v4598 = vpack.c.b16 %v4582, %v4582
      %v4599 = vpack.c.b16 %v4583, %v4583
      %v4600 = vpack.c.b16 %v4584, %v4584
      %v4601 = vpack.c.b16 %v4585, %v4585
      %v4602 = vpack.c.b16 %v4586, %v4586
      %v4603 = vpack.c.b16 %v4587, %v4587
      %v4604 = vpack.c.b16 %v4588, %v4588
      %v4606 = vshrl.u32 %v4541, 16
      %v4608 = vshll.u32 %v4541, 16
      %v4610 = vrot.slane %v4608, 1
      %v4611 = vor.u32 %v4606, %v4610
      %v4613 = vshll.u32 %v4589, 16
      %v4615 = vrot.slane %v4613, 1
      %v4616 = vsel %vm1475, %v4611, %v4615
      %v4618 = vshrl.u32 %v4542, 16
      %v4620 = vshll.u32 %v4542, 16
      %v4622 = vrot.slane %v4620, 1
      %v4623 = vor.u32 %v4618, %v4622
      %v4625 = vshll.u32 %v4590, 16
      %v4627 = vrot.slane %v4625, 1
      %v4628 = vsel %vm1475, %v4623, %v4627
      %v4630 = vshrl.u32 %v4543, 16
      %v4632 = vshll.u32 %v4543, 16
      %v4634 = vrot.slane %v4632, 1
      %v4635 = vor.u32 %v4630, %v4634
      %v4637 = vshll.u32 %v4591, 16
      %v4639 = vrot.slane %v4637, 1
      %v4640 = vsel %vm1475, %v4635, %v4639
      %v4642 = vshrl.u32 %v4544, 16
      %v4644 = vshll.u32 %v4544, 16
      %v4646 = vrot.slane %v4644, 1
      %v4647 = vor.u32 %v4642, %v4646
      %v4649 = vshll.u32 %v4592, 16
      %v4651 = vrot.slane %v4649, 1
      %v4652 = vsel %vm1475, %v4647, %v4651
      %v4654 = vshrl.u32 %v4545, 16
      %v4656 = vshll.u32 %v4545, 16
      %v4658 = vrot.slane %v4656, 1
      %v4659 = vor.u32 %v4654, %v4658
      %v4661 = vshll.u32 %v4593, 16
      %v4663 = vrot.slane %v4661, 1
      %v4664 = vsel %vm1475, %v4659, %v4663
      %v4666 = vshrl.u32 %v4546, 16
      %v4668 = vshll.u32 %v4546, 16
      %v4670 = vrot.slane %v4668, 1
      %v4671 = vor.u32 %v4666, %v4670
      %v4673 = vshll.u32 %v4594, 16
      %v4675 = vrot.slane %v4673, 1
      %v4676 = vsel %vm1475, %v4671, %v4675
      %v4678 = vshrl.u32 %v4547, 16
      %v4680 = vshll.u32 %v4547, 16
      %v4682 = vrot.slane %v4680, 1
      %v4683 = vor.u32 %v4678, %v4682
      %v4685 = vshll.u32 %v4595, 16
      %v4687 = vrot.slane %v4685, 1
      %v4688 = vsel %vm1475, %v4683, %v4687
      %v4690 = vshrl.u32 %v4548, 16
      %v4692 = vshll.u32 %v4548, 16
      %v4694 = vrot.slane %v4692, 1
      %v4695 = vor.u32 %v4690, %v4694
      %v4697 = vshll.u32 %v4596, 16
      %v4699 = vrot.slane %v4697, 1
      %v4700 = vsel %vm1475, %v4695, %v4699
      %v4702 = vshrl.u32 %v4549, 16
      %v4704 = vshll.u32 %v4549, 16
      %v4706 = vrot.slane %v4704, 1
      %v4707 = vor.u32 %v4702, %v4706
      %v4709 = vshll.u32 %v4597, 16
      %v4711 = vrot.slane %v4709, 1
      %v4712 = vsel %vm1475, %v4707, %v4711
      %v4714 = vshrl.u32 %v4550, 16
      %v4716 = vshll.u32 %v4550, 16
      %v4718 = vrot.slane %v4716, 1
      %v4719 = vor.u32 %v4714, %v4718
      %v4721 = vshll.u32 %v4598, 16
      %v4723 = vrot.slane %v4721, 1
      %v4724 = vsel %vm1475, %v4719, %v4723
      %v4726 = vshrl.u32 %v4551, 16
      %v4728 = vshll.u32 %v4551, 16
      %v4730 = vrot.slane %v4728, 1
      %v4731 = vor.u32 %v4726, %v4730
      %v4733 = vshll.u32 %v4599, 16
      %v4735 = vrot.slane %v4733, 1
      %v4736 = vsel %vm1475, %v4731, %v4735
      %v4738 = vshrl.u32 %v4552, 16
      %v4740 = vshll.u32 %v4552, 16
      %v4742 = vrot.slane %v4740, 1
      %v4743 = vor.u32 %v4738, %v4742
      %v4745 = vshll.u32 %v4600, 16
      %v4747 = vrot.slane %v4745, 1
      %v4748 = vsel %vm1475, %v4743, %v4747
      %v4750 = vshrl.u32 %v4553, 16
      %v4752 = vshll.u32 %v4553, 16
      %v4754 = vrot.slane %v4752, 1
      %v4755 = vor.u32 %v4750, %v4754
      %v4757 = vshll.u32 %v4601, 16
      %v4759 = vrot.slane %v4757, 1
      %v4760 = vsel %vm1475, %v4755, %v4759
      %v4762 = vshrl.u32 %v4554, 16
      %v4764 = vshll.u32 %v4554, 16
      %v4766 = vrot.slane %v4764, 1
      %v4767 = vor.u32 %v4762, %v4766
      %v4769 = vshll.u32 %v4602, 16
      %v4771 = vrot.slane %v4769, 1
      %v4772 = vsel %vm1475, %v4767, %v4771
      %v4774 = vshrl.u32 %v4555, 16
      %v4776 = vshll.u32 %v4555, 16
      %v4778 = vrot.slane %v4776, 1
      %v4779 = vor.u32 %v4774, %v4778
      %v4781 = vshll.u32 %v4603, 16
      %v4783 = vrot.slane %v4781, 1
      %v4784 = vsel %vm1475, %v4779, %v4783
      %v4786 = vshrl.u32 %v4556, 16
      %v4788 = vshll.u32 %v4556, 16
      %v4790 = vrot.slane %v4788, 1
      %v4791 = vor.u32 %v4786, %v4790
      %v4793 = vshll.u32 %v4604, 16
      %v4795 = vrot.slane %v4793, 1
      %v4796 = vsel %vm1475, %v4791, %v4795
      %4797 = vrot.lane.b32.xlu0 %v4616, 16
      %v4798 = vpop.permute.xlu0 %4797
      %4799 = vrot.lane.b32.xlu0 %v4628, 16
      %v4800 = vpop.permute.xlu0 %4799
      %4801 = vrot.lane.b32.xlu0 %v4640, 16
      %v4802 = vpop.permute.xlu0 %4801
      %4803 = vrot.lane.b32.xlu0 %v4652, 16
      %v4804 = vpop.permute.xlu0 %4803
      %4805 = vrot.lane.b32.xlu0 %v4664, 16
      %v4806 = vpop.permute.xlu0 %4805
      %4807 = vrot.lane.b32.xlu0 %v4676, 16
      %v4808 = vpop.permute.xlu0 %4807
      %4809 = vrot.lane.b32.xlu0 %v4688, 16
      %v4810 = vpop.permute.xlu0 %4809
      %4811 = vrot.lane.b32.xlu0 %v4700, 16
      %v4812 = vpop.permute.xlu0 %4811
      %4813 = vrot.lane.b32.xlu0 %v4712, 16
      %v4814 = vpop.permute.xlu0 %4813
      %4815 = vrot.lane.b32.xlu0 %v4724, 16
      %v4816 = vpop.permute.xlu0 %4815
      %4817 = vrot.lane.b32.xlu0 %v4736, 16
      %v4818 = vpop.permute.xlu0 %4817
      %4819 = vrot.lane.b32.xlu0 %v4748, 16
      %v4820 = vpop.permute.xlu0 %4819
      %4821 = vrot.lane.b32.xlu0 %v4760, 16
      %v4822 = vpop.permute.xlu0 %4821
      %4823 = vrot.lane.b32.xlu0 %v4772, 16
      %v4824 = vpop.permute.xlu0 %4823
      %4825 = vrot.lane.b32.xlu0 %v4784, 16
      %v4826 = vpop.permute.xlu0 %4825
      %4827 = vrot.lane.b32.xlu0 %v4796, 16
      %v4828 = vpop.permute.xlu0 %4827
      %v4845 = vunpack.c.l.b16 %v4461
      %v4846 = vunpack.c.l.b16 %v4462
      %v4847 = vunpack.c.l.b16 %v4463
      %v4848 = vunpack.c.l.b16 %v4464
      %v4849 = vunpack.c.l.b16 %v4465
      %v4850 = vunpack.c.l.b16 %v4466
      %v4851 = vunpack.c.l.b16 %v4467
      %v4852 = vunpack.c.l.b16 %v4468
      %v4853 = vunpack.c.l.b16 %v4469
      %v4854 = vunpack.c.l.b16 %v4470
      %v4855 = vunpack.c.l.b16 %v4471
      %v4856 = vunpack.c.l.b16 %v4472
      %v4857 = vunpack.c.l.b16 %v4473
      %v4858 = vunpack.c.l.b16 %v4474
      %v4859 = vunpack.c.l.b16 %v4475
      %v4860 = vunpack.c.l.b16 %v4476
      %v4861 = vpack.c.b16 %v4510, %v4845
      %v4862 = vpack.c.b16 %v4512, %v4846
      %v4863 = vpack.c.b16 %v4514, %v4847
      %v4864 = vpack.c.b16 %v4516, %v4848
      %v4865 = vpack.c.b16 %v4518, %v4849
      %v4866 = vpack.c.b16 %v4520, %v4850
      %v4867 = vpack.c.b16 %v4522, %v4851
      %v4868 = vpack.c.b16 %v4524, %v4852
      %v4869 = vpack.c.b16 %v4526, %v4853
      %v4870 = vpack.c.b16 %v4528, %v4854
      %v4871 = vpack.c.b16 %v4530, %v4855
      %v4872 = vpack.c.b16 %v4532, %v4856
      %v4873 = vpack.c.b16 %v4534, %v4857
      %v4874 = vpack.c.b16 %v4536, %v4858
      %v4875 = vpack.c.b16 %v4538, %v4859
      %v4876 = vpack.c.b16 %v4540, %v4860
      %v4877 = vrot.slane %v4861, 1
      %v4878 = vrot.slane %v4589, 1
      %v4879 = vsel %vm1748, %v4877, %v4878
      %v4880 = vrot.slane %v4862, 1
      %v4881 = vrot.slane %v4590, 1
      %v4882 = vsel %vm1748, %v4880, %v4881
      %v4883 = vrot.slane %v4863, 1
      %v4884 = vrot.slane %v4591, 1
      %v4885 = vsel %vm1748, %v4883, %v4884
      %v4886 = vrot.slane %v4864, 1
      %v4887 = vrot.slane %v4592, 1
      %v4888 = vsel %vm1748, %v4886, %v4887
      %v4889 = vrot.slane %v4865, 1
      %v4890 = vrot.slane %v4593, 1
      %v4891 = vsel %vm1748, %v4889, %v4890
      %v4892 = vrot.slane %v4866, 1
      %v4893 = vrot.slane %v4594, 1
      %v4894 = vsel %vm1748, %v4892, %v4893
      %v4895 = vrot.slane %v4867, 1
      %v4896 = vrot.slane %v4595, 1
      %v4897 = vsel %vm1748, %v4895, %v4896
      %v4898 = vrot.slane %v4868, 1
      %v4899 = vrot.slane %v4596, 1
      %v4900 = vsel %vm1748, %v4898, %v4899
      %v4901 = vrot.slane %v4869, 1
      %v4902 = vrot.slane %v4597, 1
      %v4903 = vsel %vm1748, %v4901, %v4902
      %v4904 = vrot.slane %v4870, 1
      %v4905 = vrot.slane %v4598, 1
      %v4906 = vsel %vm1748, %v4904, %v4905
      %v4907 = vrot.slane %v4871, 1
      %v4908 = vrot.slane %v4599, 1
      %v4909 = vsel %vm1748, %v4907, %v4908
      %v4910 = vrot.slane %v4872, 1
      %v4911 = vrot.slane %v4600, 1
      %v4912 = vsel %vm1748, %v4910, %v4911
      %v4913 = vrot.slane %v4873, 1
      %v4914 = vrot.slane %v4601, 1
      %v4915 = vsel %vm1748, %v4913, %v4914
      %v4916 = vrot.slane %v4874, 1
      %v4917 = vrot.slane %v4602, 1
      %v4918 = vsel %vm1748, %v4916, %v4917
      %v4919 = vrot.slane %v4875, 1
      %v4920 = vrot.slane %v4603, 1
      %v4921 = vsel %vm1748, %v4919, %v4920
      %v4922 = vrot.slane %v4876, 1
      %v4923 = vrot.slane %v4604, 1
      %v4924 = vsel %vm1748, %v4922, %v4923
      %4925 = vrot.lane.b32.xlu0 %v4879, 32
      %v4926 = vpop.permute.xlu0 %4925
      %4927 = vrot.lane.b32.xlu0 %v4882, 32
      %v4928 = vpop.permute.xlu0 %4927
      %4929 = vrot.lane.b32.xlu0 %v4885, 32
      %v4930 = vpop.permute.xlu0 %4929
      %4931 = vrot.lane.b32.xlu0 %v4888, 32
      %v4932 = vpop.permute.xlu0 %4931
      %4933 = vrot.lane.b32.xlu0 %v4891, 32
      %v4934 = vpop.permute.xlu0 %4933
      %4935 = vrot.lane.b32.xlu0 %v4894, 32
      %v4936 = vpop.permute.xlu0 %4935
      %4937 = vrot.lane.b32.xlu0 %v4897, 32
      %v4938 = vpop.permute.xlu0 %4937
      %4939 = vrot.lane.b32.xlu0 %v4900, 32
      %v4940 = vpop.permute.xlu0 %4939
      %4941 = vrot.lane.b32.xlu0 %v4903, 32
      %v4942 = vpop.permute.xlu0 %4941
      %4943 = vrot.lane.b32.xlu0 %v4906, 32
      %v4944 = vpop.permute.xlu0 %4943
      %4945 = vrot.lane.b32.xlu0 %v4909, 32
      %v4946 = vpop.permute.xlu0 %4945
      %4947 = vrot.lane.b32.xlu0 %v4912, 32
      %v4948 = vpop.permute.xlu0 %4947
      %4949 = vrot.lane.b32.xlu0 %v4915, 32
      %v4950 = vpop.permute.xlu0 %4949
      %4951 = vrot.lane.b32.xlu0 %v4918, 32
      %v4952 = vpop.permute.xlu0 %4951
      %4953 = vrot.lane.b32.xlu0 %v4921, 32
      %v4954 = vpop.permute.xlu0 %4953
      %4955 = vrot.lane.b32.xlu0 %v4924, 32
      %v4956 = vpop.permute.xlu0 %4955
      %v4958 = vsel %vm1862, %v4541, %v4798
      %v4960 = vsel %vm1862, %v4542, %v4800
      %v4962 = vsel %vm1862, %v4543, %v4802
      %v4964 = vsel %vm1862, %v4544, %v4804
      %v4966 = vsel %vm1862, %v4545, %v4806
      %v4968 = vsel %vm1862, %v4546, %v4808
      %v4970 = vsel %vm1862, %v4547, %v4810
      %v4972 = vsel %vm1862, %v4548, %v4812
      %v4974 = vsel %vm1862, %v4549, %v4814
      %v4976 = vsel %vm1862, %v4550, %v4816
      %v4978 = vsel %vm1862, %v4551, %v4818
      %v4980 = vsel %vm1862, %v4552, %v4820
      %v4982 = vsel %vm1862, %v4553, %v4822
      %v4984 = vsel %vm1862, %v4554, %v4824
      %v4986 = vsel %vm1862, %v4555, %v4826
      %v4988 = vsel %vm1862, %v4556, %v4828
      %vm4989 = vcmask 261120
      %v4991 = vsel %vm4989, %v4958, %v4926
      %v4993 = vsel %vm4989, %v4960, %v4928
      %v4995 = vsel %vm4989, %v4962, %v4930
      %v4997 = vsel %vm4989, %v4964, %v4932
      %v4999 = vsel %vm4989, %v4966, %v4934
      %v5001 = vsel %vm4989, %v4968, %v4936
      %v5003 = vsel %vm4989, %v4970, %v4938
      %v5005 = vsel %vm4989, %v4972, %v4940
      %v5007 = vsel %vm4989, %v4974, %v4942
      %v5009 = vsel %vm4989, %v4976, %v4944
      %v5011 = vsel %vm4989, %v4978, %v4946
      %v5013 = vsel %vm4989, %v4980, %v4948
      %v5015 = vsel %vm4989, %v4982, %v4950
      %v5017 = vsel %vm4989, %v4984, %v4952
      %v5019 = vsel %vm4989, %v4986, %v4954
      %v5021 = vsel %vm4989, %v4988, %v4956
      %v5022 = vld [vmem:[%s4] sm:$0xf]
      %v5023 = vld [vmem:[%s4 + $0x4] sm:$0xf]
      %v5024 = vld [vmem:[%s4 + $0x8] sm:$0xf]
      %v5025 = vld [vmem:[%s4 + $0xc] sm:$0xf]
      %v5026 = vld [vmem:[%s4 + $0x10] sm:$0xf]
      %v5027 = vld [vmem:[%s4 + $0x14] sm:$0xf]
      %v5028 = vld [vmem:[%s4298] sm:$0xf]
      %v5029 = vld [vmem:[%s4298 + $0x4] sm:$0xf]
      %v5030 = vld [vmem:[%s4298 + $0xc] sm:$0xf]
      %v5031 = vld [vmem:[%s4298 + $0x10] sm:$0xf]
      %v5032 = vld [vmem:[%s4298 + $0x18] sm:$0xf]
      %v5033 = vld [vmem:[%s4298 + $0x1c] sm:$0xf]
      %v5034 = vld [vmem:[%s4298 + $0x24] sm:$0xf]
      %v5035 = vld [vmem:[%s4298 + $0x28] sm:$0xf]
      %v5036 = vld [vmem:[%s4298 + $0x30] sm:$0xf]
      %v5037 = vld [vmem:[%s4298 + $0x34] sm:$0xf]
      %v5038 = vld [vmem:[%s4298 + $0x3c] sm:$0xf]
      %v5039 = vld [vmem:[%s4298 + $0x40] sm:$0xf]
      %v5040 = vld [vmem:[%s4298 + $0x48] sm:$0xf]
      %v5041 = vld [vmem:[%s4298 + $0x4c] sm:$0xf]
      %v5042 = vld [vmem:[%s4298 + $0x54] sm:$0xf]
      %v5043 = vld [vmem:[%s4298 + $0x58] sm:$0xf]
      %v5044 = vld [vmem:[%s4298 + $0x60] sm:$0xf]
      %v5045 = vld [vmem:[%s4298 + $0x64] sm:$0xf]
      %v5046 = vld [vmem:[%s4298 + $0x6c] sm:$0xf]
      %v5047 = vld [vmem:[%s4298 + $0x70] sm:$0xf]
      %v5048 = vld [vmem:[%s4298 + $0x78] sm:$0xf]
      %v5049 = vld [vmem:[%s4298 + $0x7c] sm:$0xf]
      %v5050 = vld [vmem:[%s4298 + $0x84] sm:$0xf]
      %v5051 = vld [vmem:[%s4298 + $0x88] sm:$0xf]
      %v5052 = vld [vmem:[%s4298 + $0x90] sm:$0xf]
      %v5053 = vld [vmem:[%s4298 + $0x94] sm:$0xf]
      %v5054 = vld [vmem:[%s4298 + $0x9c] sm:$0xf]
      %v5055 = vld [vmem:[%s4298 + $0xa0] sm:$0xf]
      %v5056 = vld [vmem:[%s4298 + $0xa8] sm:$0xf]
      %v5057 = vld [vmem:[%s4298 + $0xac] sm:$0xf]
      %v5058 = vld [vmem:[%s4298 + $0xb4] sm:$0xf]
      %v5059 = vld [vmem:[%s4298 + $0xb8] sm:$0xf]
      %v5060 = vld [vmem:[%s4298 + $0x8] sm:$0x1]
      %v5061 = vld [vmem:[%s4298 + $0x14] sm:$0x1]
      %v5062 = vld [vmem:[%s4298 + $0x20] sm:$0x1]
      %v5063 = vld [vmem:[%s4298 + $0x2c] sm:$0x1]
      %v5064 = vld [vmem:[%s4298 + $0x38] sm:$0x1]
      %v5065 = vld [vmem:[%s4298 + $0x44] sm:$0x1]
      %v5066 = vld [vmem:[%s4298 + $0x50] sm:$0x1]
      %v5067 = vld [vmem:[%s4298 + $0x5c] sm:$0x1]
      %v5068 = vld [vmem:[%s4298 + $0x68] sm:$0x1]
      %v5069 = vld [vmem:[%s4298 + $0x74] sm:$0x1]
      %v5070 = vld [vmem:[%s4298 + $0x80] sm:$0x1]
      %v5071 = vld [vmem:[%s4298 + $0x8c] sm:$0x1]
      %v5072 = vld [vmem:[%s4298 + $0x98] sm:$0x1]
      %v5073 = vld [vmem:[%s4298 + $0xa4] sm:$0x1]
      %v5074 = vld [vmem:[%s4298 + $0xb0] sm:$0x1]
      %v5075 = vld [vmem:[%s4298 + $0xbc] sm:$0x1]
      %v5076 = vld [vmem:[%s4298] sm:$0xe]
      %v5077 = vld [vmem:[%s4298 + $0xc] sm:$0xe]
      %v5078 = vld [vmem:[%s4298 + $0x18] sm:$0xe]
      %v5079 = vld [vmem:[%s4298 + $0x24] sm:$0xe]
      %v5080 = vld [vmem:[%s4298 + $0x30] sm:$0xe]
      %v5081 = vld [vmem:[%s4298 + $0x3c] sm:$0xe]
      %v5082 = vld [vmem:[%s4298 + $0x48] sm:$0xe]
      %v5083 = vld [vmem:[%s4298 + $0x54] sm:$0xe]
      %v5084 = vld [vmem:[%s4298 + $0x60] sm:$0xe]
      %v5085 = vld [vmem:[%s4298 + $0x6c] sm:$0xe]
      %v5086 = vld [vmem:[%s4298 + $0x78] sm:$0xe]
      %v5087 = vld [vmem:[%s4298 + $0x84] sm:$0xe]
      %v5088 = vld [vmem:[%s4298 + $0x90] sm:$0xe]
      %v5089 = vld [vmem:[%s4298 + $0x9c] sm:$0xe]
      %v5090 = vld [vmem:[%s4298 + $0xa8] sm:$0xe]
      %v5091 = vld [vmem:[%s4298 + $0xb4] sm:$0xe]
      %v5124 = vunpack.c.l.b16 %v5028
      %v5125 = vunpack.c.l.b16 %v5029
      %v5126 = vunpack.c.l.b16 %v5030
      %v5127 = vunpack.c.l.b16 %v5031
      %v5128 = vunpack.c.l.b16 %v5032
      %v5129 = vunpack.c.l.b16 %v5033
      %v5130 = vunpack.c.l.b16 %v5034
      %v5131 = vunpack.c.l.b16 %v5035
      %v5132 = vunpack.c.l.b16 %v5036
      %v5133 = vunpack.c.l.b16 %v5037
      %v5134 = vunpack.c.l.b16 %v5038
      %v5135 = vunpack.c.l.b16 %v5039
      %v5136 = vunpack.c.l.b16 %v5040
      %v5137 = vunpack.c.l.b16 %v5041
      %v5138 = vunpack.c.l.b16 %v5042
      %v5139 = vunpack.c.l.b16 %v5043
      %v5140 = vunpack.c.l.b16 %v5044
      %v5141 = vunpack.c.l.b16 %v5045
      %v5142 = vunpack.c.l.b16 %v5046
      %v5143 = vunpack.c.l.b16 %v5047
      %v5144 = vunpack.c.l.b16 %v5048
      %v5145 = vunpack.c.l.b16 %v5049
      %v5146 = vunpack.c.l.b16 %v5050
      %v5147 = vunpack.c.l.b16 %v5051
      %v5148 = vunpack.c.l.b16 %v5052
      %v5149 = vunpack.c.l.b16 %v5053
      %v5150 = vunpack.c.l.b16 %v5054
      %v5151 = vunpack.c.l.b16 %v5055
      %v5152 = vunpack.c.l.b16 %v5056
      %v5153 = vunpack.c.l.b16 %v5057
      %v5154 = vunpack.c.l.b16 %v5058
      %v5155 = vunpack.c.l.b16 %v5059
      %v5156 = vpack.c.b16 %v5125, %v5124
      %v5157 = vpack.c.b16 %v5127, %v5126
      %v5158 = vpack.c.b16 %v5129, %v5128
      %v5159 = vpack.c.b16 %v5131, %v5130
      %v5160 = vpack.c.b16 %v5133, %v5132
      %v5161 = vpack.c.b16 %v5135, %v5134
      %v5162 = vpack.c.b16 %v5137, %v5136
      %v5163 = vpack.c.b16 %v5139, %v5138
      %v5164 = vpack.c.b16 %v5141, %v5140
      %v5165 = vpack.c.b16 %v5143, %v5142
      %v5166 = vpack.c.b16 %v5145, %v5144
      %v5167 = vpack.c.b16 %v5147, %v5146
      %v5168 = vpack.c.b16 %v5149, %v5148
      %v5169 = vpack.c.b16 %v5151, %v5150
      %v5170 = vpack.c.b16 %v5153, %v5152
      %v5171 = vpack.c.b16 %v5155, %v5154
      %v5188 = vunpack.c.l.b16 %v5060
      %v5189 = vunpack.c.l.b16 %v5061
      %v5190 = vunpack.c.l.b16 %v5062
      %v5191 = vunpack.c.l.b16 %v5063
      %v5192 = vunpack.c.l.b16 %v5064
      %v5193 = vunpack.c.l.b16 %v5065
      %v5194 = vunpack.c.l.b16 %v5066
      %v5195 = vunpack.c.l.b16 %v5067
      %v5196 = vunpack.c.l.b16 %v5068
      %v5197 = vunpack.c.l.b16 %v5069
      %v5198 = vunpack.c.l.b16 %v5070
      %v5199 = vunpack.c.l.b16 %v5071
      %v5200 = vunpack.c.l.b16 %v5072
      %v5201 = vunpack.c.l.b16 %v5073
      %v5202 = vunpack.c.l.b16 %v5074
      %v5203 = vunpack.c.l.b16 %v5075
      %v5204 = vpack.c.b16 %v5188, %v5188
      %v5205 = vpack.c.b16 %v5189, %v5189
      %v5206 = vpack.c.b16 %v5190, %v5190
      %v5207 = vpack.c.b16 %v5191, %v5191
      %v5208 = vpack.c.b16 %v5192, %v5192
      %v5209 = vpack.c.b16 %v5193, %v5193
      %v5210 = vpack.c.b16 %v5194, %v5194
      %v5211 = vpack.c.b16 %v5195, %v5195
      %v5212 = vpack.c.b16 %v5196, %v5196
      %v5213 = vpack.c.b16 %v5197, %v5197
      %v5214 = vpack.c.b16 %v5198, %v5198
      %v5215 = vpack.c.b16 %v5199, %v5199
      %v5216 = vpack.c.b16 %v5200, %v5200
      %v5217 = vpack.c.b16 %v5201, %v5201
      %v5218 = vpack.c.b16 %v5202, %v5202
      %v5219 = vpack.c.b16 %v5203, %v5203
      %v5221 = vshrl.u32 %v5156, 16
      %v5223 = vshll.u32 %v5156, 16
      %v5225 = vrot.slane %v5223, 1
      %v5226 = vor.u32 %v5221, %v5225
      %v5228 = vshll.u32 %v5204, 16
      %v5230 = vrot.slane %v5228, 1
      %v5231 = vsel %vm1475, %v5226, %v5230
      %v5233 = vshrl.u32 %v5157, 16
      %v5235 = vshll.u32 %v5157, 16
      %v5237 = vrot.slane %v5235, 1
      %v5238 = vor.u32 %v5233, %v5237
      %v5240 = vshll.u32 %v5205, 16
      %v5242 = vrot.slane %v5240, 1
      %v5243 = vsel %vm1475, %v5238, %v5242
      %v5245 = vshrl.u32 %v5158, 16
      %v5247 = vshll.u32 %v5158, 16
      %v5249 = vrot.slane %v5247, 1
      %v5250 = vor.u32 %v5245, %v5249
      %v5252 = vshll.u32 %v5206, 16
      %v5254 = vrot.slane %v5252, 1
      %v5255 = vsel %vm1475, %v5250, %v5254
      %v5257 = vshrl.u32 %v5159, 16
      %v5259 = vshll.u32 %v5159, 16
      %v5261 = vrot.slane %v5259, 1
      %v5262 = vor.u32 %v5257, %v5261
      %v5264 = vshll.u32 %v5207, 16
      %v5266 = vrot.slane %v5264, 1
      %v5267 = vsel %vm1475, %v5262, %v5266
      %v5269 = vshrl.u32 %v5160, 16
      %v5271 = vshll.u32 %v5160, 16
      %v5273 = vrot.slane %v5271, 1
      %v5274 = vor.u32 %v5269, %v5273
      %v5276 = vshll.u32 %v5208, 16
      %v5278 = vrot.slane %v5276, 1
      %v5279 = vsel %vm1475, %v5274, %v5278
      %v5281 = vshrl.u32 %v5161, 16
      %v5283 = vshll.u32 %v5161, 16
      %v5285 = vrot.slane %v5283, 1
      %v5286 = vor.u32 %v5281, %v5285
      %v5288 = vshll.u32 %v5209, 16
      %v5290 = vrot.slane %v5288, 1
      %v5291 = vsel %vm1475, %v5286, %v5290
      %v5293 = vshrl.u32 %v5162, 16
      %v5295 = vshll.u32 %v5162, 16
      %v5297 = vrot.slane %v5295, 1
      %v5298 = vor.u32 %v5293, %v5297
      %v5300 = vshll.u32 %v5210, 16
      %v5302 = vrot.slane %v5300, 1
      %v5303 = vsel %vm1475, %v5298, %v5302
      %v5305 = vshrl.u32 %v5163, 16
      %v5307 = vshll.u32 %v5163, 16
      %v5309 = vrot.slane %v5307, 1
      %v5310 = vor.u32 %v5305, %v5309
      %v5312 = vshll.u32 %v5211, 16
      %v5314 = vrot.slane %v5312, 1
      %v5315 = vsel %vm1475, %v5310, %v5314
      %v5317 = vshrl.u32 %v5164, 16
      %v5319 = vshll.u32 %v5164, 16
      %v5321 = vrot.slane %v5319, 1
      %v5322 = vor.u32 %v5317, %v5321
      %v5324 = vshll.u32 %v5212, 16
      %v5326 = vrot.slane %v5324, 1
      %v5327 = vsel %vm1475, %v5322, %v5326
      %v5329 = vshrl.u32 %v5165, 16
      %v5331 = vshll.u32 %v5165, 16
      %v5333 = vrot.slane %v5331, 1
      %v5334 = vor.u32 %v5329, %v5333
      %v5336 = vshll.u32 %v5213, 16
      %v5338 = vrot.slane %v5336, 1
      %v5339 = vsel %vm1475, %v5334, %v5338
      %v5341 = vshrl.u32 %v5166, 16
      %v5343 = vshll.u32 %v5166, 16
      %v5345 = vrot.slane %v5343, 1
      %v5346 = vor.u32 %v5341, %v5345
      %v5348 = vshll.u32 %v5214, 16
      %v5350 = vrot.slane %v5348, 1
      %v5351 = vsel %vm1475, %v5346, %v5350
      %v5353 = vshrl.u32 %v5167, 16
      %v5355 = vshll.u32 %v5167, 16
      %v5357 = vrot.slane %v5355, 1
      %v5358 = vor.u32 %v5353, %v5357
      %v5360 = vshll.u32 %v5215, 16
      %v5362 = vrot.slane %v5360, 1
      %v5363 = vsel %vm1475, %v5358, %v5362
      %v5365 = vshrl.u32 %v5168, 16
      %v5367 = vshll.u32 %v5168, 16
      %v5369 = vrot.slane %v5367, 1
      %v5370 = vor.u32 %v5365, %v5369
      %v5372 = vshll.u32 %v5216, 16
      %v5374 = vrot.slane %v5372, 1
      %v5375 = vsel %vm1475, %v5370, %v5374
      %v5377 = vshrl.u32 %v5169, 16
      %v5379 = vshll.u32 %v5169, 16
      %v5381 = vrot.slane %v5379, 1
      %v5382 = vor.u32 %v5377, %v5381
      %v5384 = vshll.u32 %v5217, 16
      %v5386 = vrot.slane %v5384, 1
      %v5387 = vsel %vm1475, %v5382, %v5386
      %v5389 = vshrl.u32 %v5170, 16
      %v5391 = vshll.u32 %v5170, 16
      %v5393 = vrot.slane %v5391, 1
      %v5394 = vor.u32 %v5389, %v5393
      %v5396 = vshll.u32 %v5218, 16
      %v5398 = vrot.slane %v5396, 1
      %v5399 = vsel %vm1475, %v5394, %v5398
      %v5401 = vshrl.u32 %v5171, 16
      %v5403 = vshll.u32 %v5171, 16
      %v5405 = vrot.slane %v5403, 1
      %v5406 = vor.u32 %v5401, %v5405
      %v5408 = vshll.u32 %v5219, 16
      %v5410 = vrot.slane %v5408, 1
      %v5411 = vsel %vm1475, %v5406, %v5410
      %5412 = vrot.lane.b32.xlu0 %v5231, 16
      %v5413 = vpop.permute.xlu0 %5412
      %5414 = vrot.lane.b32.xlu0 %v5243, 16
      %v5415 = vpop.permute.xlu0 %5414
      %5416 = vrot.lane.b32.xlu0 %v5255, 16
      %v5417 = vpop.permute.xlu0 %5416
      %5418 = vrot.lane.b32.xlu0 %v5267, 16
      %v5419 = vpop.permute.xlu0 %5418
      %5420 = vrot.lane.b32.xlu0 %v5279, 16
      %v5421 = vpop.permute.xlu0 %5420
      %5422 = vrot.lane.b32.xlu0 %v5291, 16
      %v5423 = vpop.permute.xlu0 %5422
      %5424 = vrot.lane.b32.xlu0 %v5303, 16
      %v5425 = vpop.permute.xlu0 %5424
      %5426 = vrot.lane.b32.xlu0 %v5315, 16
      %v5427 = vpop.permute.xlu0 %5426
      %5428 = vrot.lane.b32.xlu0 %v5327, 16
      %v5429 = vpop.permute.xlu0 %5428
      %5430 = vrot.lane.b32.xlu0 %v5339, 16
      %v5431 = vpop.permute.xlu0 %5430
      %5432 = vrot.lane.b32.xlu0 %v5351, 16
      %v5433 = vpop.permute.xlu0 %5432
      %5434 = vrot.lane.b32.xlu0 %v5363, 16
      %v5435 = vpop.permute.xlu0 %5434
      %5436 = vrot.lane.b32.xlu0 %v5375, 16
      %v5437 = vpop.permute.xlu0 %5436
      %5438 = vrot.lane.b32.xlu0 %v5387, 16
      %v5439 = vpop.permute.xlu0 %5438
      %5440 = vrot.lane.b32.xlu0 %v5399, 16
      %v5441 = vpop.permute.xlu0 %5440
      %5442 = vrot.lane.b32.xlu0 %v5411, 16
      %v5443 = vpop.permute.xlu0 %5442
      %v5460 = vunpack.c.l.b16 %v5076
      %v5461 = vunpack.c.l.b16 %v5077
      %v5462 = vunpack.c.l.b16 %v5078
      %v5463 = vunpack.c.l.b16 %v5079
      %v5464 = vunpack.c.l.b16 %v5080
      %v5465 = vunpack.c.l.b16 %v5081
      %v5466 = vunpack.c.l.b16 %v5082
      %v5467 = vunpack.c.l.b16 %v5083
      %v5468 = vunpack.c.l.b16 %v5084
      %v5469 = vunpack.c.l.b16 %v5085
      %v5470 = vunpack.c.l.b16 %v5086
      %v5471 = vunpack.c.l.b16 %v5087
      %v5472 = vunpack.c.l.b16 %v5088
      %v5473 = vunpack.c.l.b16 %v5089
      %v5474 = vunpack.c.l.b16 %v5090
      %v5475 = vunpack.c.l.b16 %v5091
      %v5476 = vpack.c.b16 %v5125, %v5460
      %v5477 = vpack.c.b16 %v5127, %v5461
      %v5478 = vpack.c.b16 %v5129, %v5462
      %v5479 = vpack.c.b16 %v5131, %v5463
      %v5480 = vpack.c.b16 %v5133, %v5464
      %v5481 = vpack.c.b16 %v5135, %v5465
      %v5482 = vpack.c.b16 %v5137, %v5466
      %v5483 = vpack.c.b16 %v5139, %v5467
      %v5484 = vpack.c.b16 %v5141, %v5468
      %v5485 = vpack.c.b16 %v5143, %v5469
      %v5486 = vpack.c.b16 %v5145, %v5470
      %v5487 = vpack.c.b16 %v5147, %v5471
      %v5488 = vpack.c.b16 %v5149, %v5472
      %v5489 = vpack.c.b16 %v5151, %v5473
      %v5490 = vpack.c.b16 %v5153, %v5474
      %v5491 = vpack.c.b16 %v5155, %v5475
      %v5492 = vrot.slane %v5476, 1
      %v5493 = vrot.slane %v5204, 1
      %v5494 = vsel %vm1748, %v5492, %v5493
      %v5495 = vrot.slane %v5477, 1
      %v5496 = vrot.slane %v5205, 1
      %v5497 = vsel %vm1748, %v5495, %v5496
      %v5498 = vrot.slane %v5478, 1
      %v5499 = vrot.slane %v5206, 1
      %v5500 = vsel %vm1748, %v5498, %v5499
      %v5501 = vrot.slane %v5479, 1
      %v5502 = vrot.slane %v5207, 1
      %v5503 = vsel %vm1748, %v5501, %v5502
      %v5504 = vrot.slane %v5480, 1
      %v5505 = vrot.slane %v5208, 1
      %v5506 = vsel %vm1748, %v5504, %v5505
      %v5507 = vrot.slane %v5481, 1
      %v5508 = vrot.slane %v5209, 1
      %v5509 = vsel %vm1748, %v5507, %v5508
      %v5510 = vrot.slane %v5482, 1
      %v5511 = vrot.slane %v5210, 1
      %v5512 = vsel %vm1748, %v5510, %v5511
      %v5513 = vrot.slane %v5483, 1
      %v5514 = vrot.slane %v5211, 1
      %v5515 = vsel %vm1748, %v5513, %v5514
      %v5516 = vrot.slane %v5484, 1
      %v5517 = vrot.slane %v5212, 1
      %v5518 = vsel %vm1748, %v5516, %v5517
      %v5519 = vrot.slane %v5485, 1
      %v5520 = vrot.slane %v5213, 1
      %v5521 = vsel %vm1748, %v5519, %v5520
      %v5522 = vrot.slane %v5486, 1
      %v5523 = vrot.slane %v5214, 1
      %v5524 = vsel %vm1748, %v5522, %v5523
      %v5525 = vrot.slane %v5487, 1
      %v5526 = vrot.slane %v5215, 1
      %v5527 = vsel %vm1748, %v5525, %v5526
      %v5528 = vrot.slane %v5488, 1
      %v5529 = vrot.slane %v5216, 1
      %v5530 = vsel %vm1748, %v5528, %v5529
      %v5531 = vrot.slane %v5489, 1
      %v5532 = vrot.slane %v5217, 1
      %v5533 = vsel %vm1748, %v5531, %v5532
      %v5534 = vrot.slane %v5490, 1
      %v5535 = vrot.slane %v5218, 1
      %v5536 = vsel %vm1748, %v5534, %v5535
      %v5537 = vrot.slane %v5491, 1
      %v5538 = vrot.slane %v5219, 1
      %v5539 = vsel %vm1748, %v5537, %v5538
      %5540 = vrot.lane.b32.xlu0 %v5494, 32
      %v5541 = vpop.permute.xlu0 %5540
      %5542 = vrot.lane.b32.xlu0 %v5497, 32
      %v5543 = vpop.permute.xlu0 %5542
      %5544 = vrot.lane.b32.xlu0 %v5500, 32
      %v5545 = vpop.permute.xlu0 %5544
      %5546 = vrot.lane.b32.xlu0 %v5503, 32
      %v5547 = vpop.permute.xlu0 %5546
      %5548 = vrot.lane.b32.xlu0 %v5506, 32
      %v5549 = vpop.permute.xlu0 %5548
      %5550 = vrot.lane.b32.xlu0 %v5509, 32
      %v5551 = vpop.permute.xlu0 %5550
      %5552 = vrot.lane.b32.xlu0 %v5512, 32
      %v5553 = vpop.permute.xlu0 %5552
      %5554 = vrot.lane.b32.xlu0 %v5515, 32
      %v5555 = vpop.permute.xlu0 %5554
      %5556 = vrot.lane.b32.xlu0 %v5518, 32
      %v5557 = vpop.permute.xlu0 %5556
      %5558 = vrot.lane.b32.xlu0 %v5521, 32
      %v5559 = vpop.permute.xlu0 %5558
      %5560 = vrot.lane.b32.xlu0 %v5524, 32
      %v5561 = vpop.permute.xlu0 %5560
      %5562 = vrot.lane.b32.xlu0 %v5527, 32
      %v5563 = vpop.permute.xlu0 %5562
      %5564 = vrot.lane.b32.xlu0 %v5530, 32
      %v5565 = vpop.permute.xlu0 %5564
      %5566 = vrot.lane.b32.xlu0 %v5533, 32
      %v5567 = vpop.permute.xlu0 %5566
      %5568 = vrot.lane.b32.xlu0 %v5536, 32
      %v5569 = vpop.permute.xlu0 %5568
      %5570 = vrot.lane.b32.xlu0 %v5539, 32
      %v5571 = vpop.permute.xlu0 %5570
      %v5573 = vsel %vm1862, %v5156, %v5413
      %v5575 = vsel %vm1862, %v5157, %v5415
      %v5577 = vsel %vm1862, %v5158, %v5417
      %v5579 = vsel %vm1862, %v5159, %v5419
      %v5581 = vsel %vm1862, %v5160, %v5421
      %v5583 = vsel %vm1862, %v5161, %v5423
      %v5585 = vsel %vm1862, %v5162, %v5425
      %v5587 = vsel %vm1862, %v5163, %v5427
      %v5589 = vsel %vm1862, %v5164, %v5429
      %v5591 = vsel %vm1862, %v5165, %v5431
      %v5593 = vsel %vm1862, %v5166, %v5433
      %v5595 = vsel %vm1862, %v5167, %v5435
      %v5597 = vsel %vm1862, %v5168, %v5437
      %v5599 = vsel %vm1862, %v5169, %v5439
      %v5601 = vsel %vm1862, %v5170, %v5441
      %v5603 = vsel %vm1862, %v5171, %v5443
      %v5605 = vsel %vm4989, %v5573, %v5541
      %v5607 = vsel %vm4989, %v5575, %v5543
      %v5609 = vsel %vm4989, %v5577, %v5545
      %v5611 = vsel %vm4989, %v5579, %v5547
      %v5613 = vsel %vm4989, %v5581, %v5549
      %v5615 = vsel %vm4989, %v5583, %v5551
      %v5617 = vsel %vm4989, %v5585, %v5553
      %v5619 = vsel %vm4989, %v5587, %v5555
      %v5621 = vsel %vm4989, %v5589, %v5557
      %v5623 = vsel %vm4989, %v5591, %v5559
      %v5625 = vsel %vm4989, %v5593, %v5561
      %v5627 = vsel %vm4989, %v5595, %v5563
      %v5629 = vsel %vm4989, %v5597, %v5565
      %v5631 = vsel %vm4989, %v5599, %v5567
      %v5633 = vsel %vm4989, %v5601, %v5569
      %v5635 = vsel %vm4989, %v5603, %v5571
      %s5636 = scalar_lea.vmem %s4, 24
      %v5637 = vld [vmem:[%s5636] sm:$0xf]
      %v5638 = vld [vmem:[%s5636 + $0x4] sm:$0xf]
      %v5639 = vld [vmem:[%s5636 + $0x8] sm:$0xf]
      %v5640 = vld [vmem:[%s5636 + $0xc] sm:$0xf]
      %v5641 = vld [vmem:[%s5636 + $0x10] sm:$0xf]
      %v5642 = vld [vmem:[%s5636 + $0x14] sm:$0xf]
      %v5649 = vunpack.c.l.b16 %v5637
      %v5650 = vunpack.c.l.b16 %v5638
      %v5651 = vunpack.c.l.b16 %v5639
      %v5652 = vunpack.c.l.b16 %v5640
      %v5653 = vunpack.c.l.b16 %v5641
      %v5654 = vunpack.c.l.b16 %v5642
      %v5655 = vpack.c.b16 %v5650, %v5649
      %v5656 = vpack.c.b16 %v5652, %v5651
      %v5657 = vpack.c.b16 %v5654, %v5653
      %vm5661 = vcmask 392192
      %v5662 = vsel %vm5661, %v5605, 0
      %v5664 = vsel %vm5661, %v5607, 0
      %v5666 = vsel %vm5661, %v5609, 0
      %v5668 = vsel %vm5661, %v5611, 0
      %v5670 = vsel %vm5661, %v5613, 0
      %v5672 = vsel %vm5661, %v5615, 0
      %v5674 = vsel %vm5661, %v5617, 0
      %v5676 = vsel %vm5661, %v5619, 0
      %v5678 = vsel %vm5661, %v5621, 0
      %v5680 = vsel %vm5661, %v5623, 0
      %v5682 = vsel %vm5661, %v5625, 0
      %v5684 = vsel %vm5661, %v5627, 0
      %v5686 = vsel %vm5661, %v5629, 0
      %v5688 = vsel %vm5661, %v5631, 0
      %v5690 = vsel %vm5661, %v5633, 0
      %v5692 = vsel %vm5661, %v5635, 0
      %5694 = vmatprep.subr.bf16.mxu0 0
      %5695 = vmatpush1.bf16.msra.mxu0 %v5655
      %5696 = vmatprep.subr.bf16.mxu0 0
      %5697 = vmatpush1.bf16.msra.mxu0 %v5656
      %5698 = vmatprep.subr.bf16.mxu0 0
      %5699 = vmatpush1.bf16.msra.mxu0 %v5657
      %5700 = vmatprep.subr.bf16.mxu0 0
      %5701 = vmatpush1.bf16.msra.mxu0 0
      %5702 = vmatprep.subr.bf16.mxu0 0
      %5703 = vmatpush1.bf16.msra.mxu0 0
      %5704 = vmatprep.subr.bf16.mxu0 0
      %5705 = vmatpush1.bf16.msra.mxu0 0
      %5706 = vmatprep.subr.bf16.mxu0 0
      %5707 = vmatpush1.bf16.msra.mxu0 0
      %5708 = vmatprep.subr.bf16.mxu0 0
      %5709 = vmatpush1.bf16.msra.mxu0 0
      %5710 = vmatprep.subr.bf16.mxu0 0
      %5711 = vmatpush1.bf16.msra.mxu0 0
      %5712 = vmatprep.subr.bf16.mxu0 0
      %5713 = vmatpush1.bf16.msra.mxu0 0
      %5714 = vmatprep.subr.bf16.mxu0 0
      %5715 = vmatpush1.bf16.msra.mxu0 0
      %5716 = vmatprep.subr.bf16.mxu0 0
      %5717 = vmatpush1.bf16.msra.mxu0 0
      %5718 = vmatprep.subr.bf16.mxu0 0
      %5719 = vmatpush1.bf16.msra.mxu0 0
      %5720 = vmatprep.subr.bf16.mxu0 0
      %5721 = vmatpush1.bf16.msra.mxu0 0
      %5722 = vmatprep.subr.bf16.mxu0 0
      %5723 = vmatpush1.bf16.msra.mxu0 0
      %5724 = vmatprep.subr.bf16.mxu0 0
      %5725 = vmatpush1.bf16.msra.mxu0 0
      %5726 = vmatprep.mubr.bf16.mxu0 0
      %5727 = vmatmul.mubr.bf16.gmra.mrb[0].mxu0 %v5662
      %v5728 = vpop.f32.mrb[0].mxu0
      %v5729 = vadd.f32 0.0, %v5728
      %v5730 = vpop.f32.mrb[0].mxu0
      %v5731 = vpop.f32.mrb[0].mxu0
      %v5732 = vadd.f32 0.0, %v5731
      %v5733 = vpop.f32.mrb[0].mxu0
      %5734 = vmatprep.mubr.bf16.mxu0 0
      %5735 = vmatmul.mubr.bf16.gmra.mrb[0].mxu0 %v5664
      %v5736 = vpop.f32.mrb[0].mxu0
      %v5737 = vadd.f32 0.0, %v5736
      %v5738 = vpop.f32.mrb[0].mxu0
      %v5739 = vpop.f32.mrb[0].mxu0
      %v5740 = vadd.f32 0.0, %v5739
      %v5741 = vpop.f32.mrb[0].mxu0
      %5742 = vmatprep.mubr.bf16.mxu0 0
      %5743 = vmatmul.mubr.bf16.gmra.mrb[0].mxu0 %v5666
      %v5744 = vpop.f32.mrb[0].mxu0
      %v5745 = vadd.f32 0.0, %v5744
      %v5746 = vpop.f32.mrb[0].mxu0
      %v5747 = vpop.f32.mrb[0].mxu0
      %v5748 = vadd.f32 0.0, %v5747
      %v5749 = vpop.f32.mrb[0].mxu0
      %5750 = vmatprep.mubr.bf16.mxu0 0
      %5751 = vmatmul.mubr.bf16.gmra.mrb[0].mxu0 %v5668
      %v5752 = vpop.f32.mrb[0].mxu0
      %v5753 = vadd.f32 0.0, %v5752
      %v5754 = vpop.f32.mrb[0].mxu0
      %v5755 = vpop.f32.mrb[0].mxu0
      %v5756 = vadd.f32 0.0, %v5755
      %v5757 = vpop.f32.mrb[0].mxu0
      %5758 = vmatprep.mubr.bf16.mxu0 0
      %5759 = vmatmul.mubr.bf16.gmra.mrb[0].mxu0 %v5670
      %v5760 = vpop.f32.mrb[0].mxu0
      %v5761 = vadd.f32 0.0, %v5760
      %v5762 = vpop.f32.mrb[0].mxu0
      %v5763 = vpop.f32.mrb[0].mxu0
      %v5764 = vadd.f32 0.0, %v5763
      %v5765 = vpop.f32.mrb[0].mxu0
      %5766 = vmatprep.mubr.bf16.mxu0 0
      %5767 = vmatmul.mubr.bf16.gmra.mrb[0].mxu0 %v5672
      %v5768 = vpop.f32.mrb[0].mxu0
      %v5769 = vadd.f32 0.0, %v5768
      %v5770 = vpop.f32.mrb[0].mxu0
      %v5771 = vpop.f32.mrb[0].mxu0
      %v5772 = vadd.f32 0.0, %v5771
      %v5773 = vpop.f32.mrb[0].mxu0
      %5774 = vmatprep.mubr.bf16.mxu0 0
      %5775 = vmatmul.mubr.bf16.gmra.mrb[0].mxu0 %v5674
      %v5776 = vpop.f32.mrb[0].mxu0
      %v5777 = vadd.f32 0.0, %v5776
      %v5778 = vpop.f32.mrb[0].mxu0
      %v5779 = vpop.f32.mrb[0].mxu0
      %v5780 = vadd.f32 0.0, %v5779
      %v5781 = vpop.f32.mrb[0].mxu0
      %5782 = vmatprep.mubr.bf16.mxu0 0
      %5783 = vmatmul.mubr.bf16.gmra.mrb[0].mxu0 %v5676
      %v5784 = vpop.f32.mrb[0].mxu0
      %v5785 = vadd.f32 0.0, %v5784
      %v5786 = vpop.f32.mrb[0].mxu0
      %v5787 = vpop.f32.mrb[0].mxu0
      %v5788 = vadd.f32 0.0, %v5787
      %v5789 = vpop.f32.mrb[0].mxu0
      %5790 = vmatprep.mubr.bf16.mxu0 0
      %5791 = vmatmul.mubr.bf16.gmra.mrb[0].mxu0 %v5678
      %v5792 = vpop.f32.mrb[0].mxu0
      %v5793 = vadd.f32 0.0, %v5792
      %v5794 = vpop.f32.mrb[0].mxu0
      %v5795 = vpop.f32.mrb[0].mxu0
      %v5796 = vadd.f32 0.0, %v5795
      %v5797 = vpop.f32.mrb[0].mxu0
      %5798 = vmatprep.mubr.bf16.mxu0 0
      %5799 = vmatmul.mubr.bf16.gmra.mrb[0].mxu0 %v5680
      %v5800 = vpop.f32.mrb[0].mxu0
      %v5801 = vadd.f32 0.0, %v5800
      %v5802 = vpop.f32.mrb[0].mxu0
      %v5803 = vpop.f32.mrb[0].mxu0
      %v5804 = vadd.f32 0.0, %v5803
      %v5805 = vpop.f32.mrb[0].mxu0
      %5806 = vmatprep.mubr.bf16.mxu0 0
      %5807 = vmatmul.mubr.bf16.gmra.mrb[0].mxu0 %v5682
      %v5808 = vpop.f32.mrb[0].mxu0
      %v5809 = vadd.f32 0.0, %v5808
      %v5810 = vpop.f32.mrb[0].mxu0
      %v5811 = vpop.f32.mrb[0].mxu0
      %v5812 = vadd.f32 0.0, %v5811
      %v5813 = vpop.f32.mrb[0].mxu0
      %5814 = vmatprep.mubr.bf16.mxu0 0
      %5815 = vmatmul.mubr.bf16.gmra.mrb[0].mxu0 %v5684
      %v5816 = vpop.f32.mrb[0].mxu0
      %v5817 = vadd.f32 0.0, %v5816
      %v5818 = vpop.f32.mrb[0].mxu0
      %v5819 = vpop.f32.mrb[0].mxu0
      %v5820 = vadd.f32 0.0, %v5819
      %v5821 = vpop.f32.mrb[0].mxu0
      %5822 = vmatprep.mubr.bf16.mxu0 0
      %5823 = vmatmul.mubr.bf16.gmra.mrb[0].mxu0 %v5686
      %v5824 = vpop.f32.mrb[0].mxu0
      %v5825 = vadd.f32 0.0, %v5824
      %v5826 = vpop.f32.mrb[0].mxu0
      %v5827 = vpop.f32.mrb[0].mxu0
      %v5828 = vadd.f32 0.0, %v5827
      %v5829 = vpop.f32.mrb[0].mxu0
      %5830 = vmatprep.mubr.bf16.mxu0 0
      %5831 = vmatmul.mubr.bf16.gmra.mrb[0].mxu0 %v5688
      %v5832 = vpop.f32.mrb[0].mxu0
      %v5833 = vadd.f32 0.0, %v5832
      %v5834 = vpop.f32.mrb[0].mxu0
      %v5835 = vpop.f32.mrb[0].mxu0
      %v5836 = vadd.f32 0.0, %v5835
      %v5837 = vpop.f32.mrb[0].mxu0
      %5838 = vmatprep.mubr.bf16.mxu0 0
      %5839 = vmatmul.mubr.bf16.gmra.mrb[0].mxu0 %v5690
      %v5840 = vpop.f32.mrb[0].mxu0
      %v5841 = vadd.f32 0.0, %v5840
      %v5842 = vpop.f32.mrb[0].mxu0
      %v5843 = vpop.f32.mrb[0].mxu0
      %v5844 = vadd.f32 0.0, %v5843
      %v5845 = vpop.f32.mrb[0].mxu0
      %5846 = vmatprep.mubr.bf16.mxu0 0
      %5847 = vmatmul.mubr.bf16.gmra.mrb[0].mxu0 %v5692
      %v5848 = vpop.f32.mrb[0].mxu0
      %v5849 = vadd.f32 0.0, %v5848
      %v5850 = vpop.f32.mrb[0].mxu0
      %v5851 = vpop.f32.mrb[0].mxu0
      %v5852 = vadd.f32 0.0, %v5851
      %v5853 = vpop.f32.mrb[0].mxu0
      %5854 = vdwg.mxu0
      %v5861 = vunpack.c.l.b16 %v5022
      %v5862 = vunpack.c.l.b16 %v5023
      %v5863 = vunpack.c.l.b16 %v5024
      %v5864 = vunpack.c.l.b16 %v5025
      %v5865 = vunpack.c.l.b16 %v5026
      %v5866 = vunpack.c.l.b16 %v5027
      %v5867 = vpack.c.b16 %v5862, %v5861
      %v5868 = vpack.c.b16 %v5864, %v5863
      %v5869 = vpack.c.b16 %v5866, %v5865
      %v5873 = vsel %vm5661, %v4991, 0
      %v5875 = vsel %vm5661, %v4993, 0
      %v5877 = vsel %vm5661, %v4995, 0
      %v5879 = vsel %vm5661, %v4997, 0
      %v5881 = vsel %vm5661, %v4999, 0
      %v5883 = vsel %vm5661, %v5001, 0
      %v5885 = vsel %vm5661, %v5003, 0
      %v5887 = vsel %vm5661, %v5005, 0
      %v5889 = vsel %vm5661, %v5007, 0
      %v5891 = vsel %vm5661, %v5009, 0
      %v5893 = vsel %vm5661, %v5011, 0
      %v5895 = vsel %vm5661, %v5013, 0
      %v5897 = vsel %vm5661, %v5015, 0
      %v5899 = vsel %vm5661, %v5017, 0
      %v5901 = vsel %vm5661, %v5019, 0
      %v5903 = vsel %vm5661, %v5021, 0
      %5905 = vmatprep.subr.bf16.mxu0 0
      %5906 = vmatpush1.bf16.msra.mxu0 %v5867
      %5907 = vmatprep.subr.bf16.mxu0 0
      %5908 = vmatpush1.bf16.msra.mxu0 %v5868
      %5909 = vmatprep.subr.bf16.mxu0 0
      %5910 = vmatpush1.bf16.msra.mxu0 %v5869
      %5911 = vmatprep.subr.bf16.mxu0 0
      %5912 = vmatpush1.bf16.msra.mxu0 0
      %5913 = vmatprep.subr.bf16.mxu0 0
      %5914 = vmatpush1.bf16.msra.mxu0 0
      %5915 = vmatprep.subr.bf16.mxu0 0
      %5916 = vmatpush1.bf16.msra.mxu0 0
      %5917 = vmatprep.subr.bf16.mxu0 0
      %5918 = vmatpush1.bf16.msra.mxu0 0
      %5919 = vmatprep.subr.bf16.mxu0 0
      %5920 = vmatpush1.bf16.msra.mxu0 0
      %5921 = vmatprep.subr.bf16.mxu0 0
      %5922 = vmatpush1.bf16.msra.mxu0 0
      %5923 = vmatprep.subr.bf16.mxu0 0
      %5924 = vmatpush1.bf16.msra.mxu0 0
      %5925 = vmatprep.subr.bf16.mxu0 0
      %5926 = vmatpush1.bf16.msra.mxu0 0
      %5927 = vmatprep.subr.bf16.mxu0 0
      %5928 = vmatpush1.bf16.msra.mxu0 0
      %5929 = vmatprep.subr.bf16.mxu0 0
      %5930 = vmatpush1.bf16.msra.mxu0 0
      %5931 = vmatprep.subr.bf16.mxu0 0
      %5932 = vmatpush1.bf16.msra.mxu0 0
      %5933 = vmatprep.subr.bf16.mxu0 0
      %5934 = vmatpush1.bf16.msra.mxu0 0
      %5935 = vmatprep.subr.bf16.mxu0 0
      %5936 = vmatpush1.bf16.msra.mxu0 0
      %5937 = vmatprep.mubr.bf16.mxu0 0
      %5938 = vmatmul.mubr.bf16.gmra.mrb[0].mxu0 %v5873
      %v5939 = vpop.f32.mrb[0].mxu0
      %v5940 = vadd.f32 %v5729, %v5939
      %v5941 = vpop.f32.mrb[0].mxu0
      %v5942 = vpop.f32.mrb[0].mxu0
      %v5943 = vadd.f32 %v5732, %v5942
      %v5944 = vpop.f32.mrb[0].mxu0
      %5945 = vmatprep.mubr.bf16.mxu0 0
      %5946 = vmatmul.mubr.bf16.gmra.mrb[0].mxu0 %v5875
      %v5947 = vpop.f32.mrb[0].mxu0
      %v5948 = vadd.f32 %v5737, %v5947
      %v5949 = vpop.f32.mrb[0].mxu0
      %v5950 = vpop.f32.mrb[0].mxu0
      %v5951 = vadd.f32 %v5740, %v5950
      %v5952 = vpop.f32.mrb[0].mxu0
      %5953 = vmatprep.mubr.bf16.mxu0 0
      %5954 = vmatmul.mubr.bf16.gmra.mrb[0].mxu0 %v5877
      %v5955 = vpop.f32.mrb[0].mxu0
      %v5956 = vadd.f32 %v5745, %v5955
      %v5957 = vpop.f32.mrb[0].mxu0
      %v5958 = vpop.f32.mrb[0].mxu0
      %v5959 = vadd.f32 %v5748, %v5958
      %v5960 = vpop.f32.mrb[0].mxu0
      %5961 = vmatprep.mubr.bf16.mxu0 0
      %5962 = vmatmul.mubr.bf16.gmra.mrb[0].mxu0 %v5879
      %v5963 = vpop.f32.mrb[0].mxu0
      %v5964 = vadd.f32 %v5753, %v5963
      %v5965 = vpop.f32.mrb[0].mxu0
      %v5966 = vpop.f32.mrb[0].mxu0
      %v5967 = vadd.f32 %v5756, %v5966
      %v5968 = vpop.f32.mrb[0].mxu0
      %5969 = vmatprep.mubr.bf16.mxu0 0
      %5970 = vmatmul.mubr.bf16.gmra.mrb[0].mxu0 %v5881
      %v5971 = vpop.f32.mrb[0].mxu0
      %v5972 = vadd.f32 %v5761, %v5971
      %v5973 = vpop.f32.mrb[0].mxu0
      %v5974 = vpop.f32.mrb[0].mxu0
      %v5975 = vadd.f32 %v5764, %v5974
      %v5976 = vpop.f32.mrb[0].mxu0
      %5977 = vmatprep.mubr.bf16.mxu0 0
      %5978 = vmatmul.mubr.bf16.gmra.mrb[0].mxu0 %v5883
      %v5979 = vpop.f32.mrb[0].mxu0
      %v5980 = vadd.f32 %v5769, %v5979
      %v5981 = vpop.f32.mrb[0].mxu0
      %v5982 = vpop.f32.mrb[0].mxu0
      %v5983 = vadd.f32 %v5772, %v5982
      %v5984 = vpop.f32.mrb[0].mxu0
      %5985 = vmatprep.mubr.bf16.mxu0 0
      %5986 = vmatmul.mubr.bf16.gmra.mrb[0].mxu0 %v5885
      %v5987 = vpop.f32.mrb[0].mxu0
      %v5988 = vadd.f32 %v5777, %v5987
      %v5989 = vpop.f32.mrb[0].mxu0
      %v5990 = vpop.f32.mrb[0].mxu0
      %v5991 = vadd.f32 %v5780, %v5990
      %v5992 = vpop.f32.mrb[0].mxu0
      %5993 = vmatprep.mubr.bf16.mxu0 0
      %5994 = vmatmul.mubr.bf16.gmra.mrb[0].mxu0 %v5887
      %v5995 = vpop.f32.mrb[0].mxu0
      %v5996 = vadd.f32 %v5785, %v5995
      %v5997 = vpop.f32.mrb[0].mxu0
      %v5998 = vpop.f32.mrb[0].mxu0
      %v5999 = vadd.f32 %v5788, %v5998
      %v6000 = vpop.f32.mrb[0].mxu0
      %6001 = vmatprep.mubr.bf16.mxu0 0
      %6002 = vmatmul.mubr.bf16.gmra.mrb[0].mxu0 %v5889
      %v6003 = vpop.f32.mrb[0].mxu0
      %v6004 = vadd.f32 %v5793, %v6003
      %v6005 = vpop.f32.mrb[0].mxu0
      %v6006 = vpop.f32.mrb[0].mxu0
      %v6007 = vadd.f32 %v5796, %v6006
      %v6008 = vpop.f32.mrb[0].mxu0
      %6009 = vmatprep.mubr.bf16.mxu0 0
      %6010 = vmatmul.mubr.bf16.gmra.mrb[0].mxu0 %v5891
      %v6011 = vpop.f32.mrb[0].mxu0
      %v6012 = vadd.f32 %v5801, %v6011
      %v6013 = vpop.f32.mrb[0].mxu0
      %v6014 = vpop.f32.mrb[0].mxu0
      %v6015 = vadd.f32 %v5804, %v6014
      %v6016 = vpop.f32.mrb[0].mxu0
      %6017 = vmatprep.mubr.bf16.mxu0 0
      %6018 = vmatmul.mubr.bf16.gmra.mrb[0].mxu0 %v5893
      %v6019 = vpop.f32.mrb[0].mxu0
      %v6020 = vadd.f32 %v5809, %v6019
      %v6021 = vpop.f32.mrb[0].mxu0
      %v6022 = vpop.f32.mrb[0].mxu0
      %v6023 = vadd.f32 %v5812, %v6022
      %v6024 = vpop.f32.mrb[0].mxu0
      %6025 = vmatprep.mubr.bf16.mxu0 0
      %6026 = vmatmul.mubr.bf16.gmra.mrb[0].mxu0 %v5895
      %v6027 = vpop.f32.mrb[0].mxu0
      %v6028 = vadd.f32 %v5817, %v6027
      %v6029 = vpop.f32.mrb[0].mxu0
      %v6030 = vpop.f32.mrb[0].mxu0
      %v6031 = vadd.f32 %v5820, %v6030
      %v6032 = vpop.f32.mrb[0].mxu0
      %6033 = vmatprep.mubr.bf16.mxu0 0
      %6034 = vmatmul.mubr.bf16.gmra.mrb[0].mxu0 %v5897
      %v6035 = vpop.f32.mrb[0].mxu0
      %v6036 = vadd.f32 %v5825, %v6035
      %v6037 = vpop.f32.mrb[0].mxu0
      %v6038 = vpop.f32.mrb[0].mxu0
      %v6039 = vadd.f32 %v5828, %v6038
      %v6040 = vpop.f32.mrb[0].mxu0
      %6041 = vmatprep.mubr.bf16.mxu0 0
      %6042 = vmatmul.mubr.bf16.gmra.mrb[0].mxu0 %v5899
      %v6043 = vpop.f32.mrb[0].mxu0
      %v6044 = vadd.f32 %v5833, %v6043
      %v6045 = vpop.f32.mrb[0].mxu0
      %v6046 = vpop.f32.mrb[0].mxu0
      %v6047 = vadd.f32 %v5836, %v6046
      %v6048 = vpop.f32.mrb[0].mxu0
      %6049 = vmatprep.mubr.bf16.mxu0 0
      %6050 = vmatmul.mubr.bf16.gmra.mrb[0].mxu0 %v5901
      %v6051 = vpop.f32.mrb[0].mxu0
      %v6052 = vadd.f32 %v5841, %v6051
      %v6053 = vpop.f32.mrb[0].mxu0
      %v6054 = vpop.f32.mrb[0].mxu0
      %v6055 = vadd.f32 %v5844, %v6054
      %v6056 = vpop.f32.mrb[0].mxu0
      %6057 = vmatprep.mubr.bf16.mxu0 0
      %6058 = vmatmul.mubr.bf16.gmra.mrb[0].mxu0 %v5903
      %v6059 = vpop.f32.mrb[0].mxu0
      %v6060 = vadd.f32 %v5849, %v6059
      %v6061 = vpop.f32.mrb[0].mxu0
      %v6062 = vpop.f32.mrb[0].mxu0
      %v6063 = vadd.f32 %v5852, %v6062
      %v6064 = vpop.f32.mrb[0].mxu0
      %6065 = vdwg.mxu0
      %s6066 = scalar_lea.vmem [#allocation3], 24
      %v6067 = vld [vmem:[%s6066] sm:$0xf]
      %v6068 = vld [vmem:[%s6066 + $0x4] sm:$0xf]
      %v6069 = vld [vmem:[%s6066 + $0xc] sm:$0xf]
      %v6070 = vld [vmem:[%s6066 + $0x10] sm:$0xf]
      %v6071 = vld [vmem:[%s6066 + $0x18] sm:$0xf]
      %v6072 = vld [vmem:[%s6066 + $0x1c] sm:$0xf]
      %v6073 = vld [vmem:[%s6066 + $0x24] sm:$0xf]
      %v6074 = vld [vmem:[%s6066 + $0x28] sm:$0xf]
      %v6075 = vld [vmem:[%s6066 + $0x30] sm:$0xf]
      %v6076 = vld [vmem:[%s6066 + $0x34] sm:$0xf]
      %v6077 = vld [vmem:[%s6066 + $0x3c] sm:$0xf]
      %v6078 = vld [vmem:[%s6066 + $0x40] sm:$0xf]
      %v6079 = vld [vmem:[%s6066 + $0x48] sm:$0xf]
      %v6080 = vld [vmem:[%s6066 + $0x4c] sm:$0xf]
      %v6081 = vld [vmem:[%s6066 + $0x54] sm:$0xf]
      %v6082 = vld [vmem:[%s6066 + $0x58] sm:$0xf]
      %v6083 = vld [vmem:[%s6066 + $0x60] sm:$0xf]
      %v6084 = vld [vmem:[%s6066 + $0x64] sm:$0xf]
      %v6085 = vld [vmem:[%s6066 + $0x6c] sm:$0xf]
      %v6086 = vld [vmem:[%s6066 + $0x70] sm:$0xf]
      %v6087 = vld [vmem:[%s6066 + $0x78] sm:$0xf]
      %v6088 = vld [vmem:[%s6066 + $0x7c] sm:$0xf]
      %v6089 = vld [vmem:[%s6066 + $0x84] sm:$0xf]
      %v6090 = vld [vmem:[%s6066 + $0x88] sm:$0xf]
      %v6091 = vld [vmem:[%s6066 + $0x90] sm:$0xf]
      %v6092 = vld [vmem:[%s6066 + $0x94] sm:$0xf]
      %v6093 = vld [vmem:[%s6066 + $0x9c] sm:$0xf]
      %v6094 = vld [vmem:[%s6066 + $0xa0] sm:$0xf]
      %v6095 = vld [vmem:[%s6066 + $0xa8] sm:$0xf]
      %v6096 = vld [vmem:[%s6066 + $0xac] sm:$0xf]
      %v6097 = vld [vmem:[%s6066 + $0xb4] sm:$0xf]
      %v6098 = vld [vmem:[%s6066 + $0xb8] sm:$0xf]
      %v6099 = vld [vmem:[%s6066 + $0x8] sm:$0x1]
      %v6100 = vld [vmem:[%s6066 + $0x14] sm:$0x1]
      %v6101 = vld [vmem:[%s6066 + $0x20] sm:$0x1]
      %v6102 = vld [vmem:[%s6066 + $0x2c] sm:$0x1]
      %v6103 = vld [vmem:[%s6066 + $0x38] sm:$0x1]
      %v6104 = vld [vmem:[%s6066 + $0x44] sm:$0x1]
      %v6105 = vld [vmem:[%s6066 + $0x50] sm:$0x1]
      %v6106 = vld [vmem:[%s6066 + $0x5c] sm:$0x1]
      %v6107 = vld [vmem:[%s6066 + $0x68] sm:$0x1]
      %v6108 = vld [vmem:[%s6066 + $0x74] sm:$0x1]
      %v6109 = vld [vmem:[%s6066 + $0x80] sm:$0x1]
      %v6110 = vld [vmem:[%s6066 + $0x8c] sm:$0x1]
      %v6111 = vld [vmem:[%s6066 + $0x98] sm:$0x1]
      %v6112 = vld [vmem:[%s6066 + $0xa4] sm:$0x1]
      %v6113 = vld [vmem:[%s6066 + $0xb0] sm:$0x1]
      %v6114 = vld [vmem:[%s6066 + $0xbc] sm:$0x1]
      %v6115 = vld [vmem:[%s6066] sm:$0xe]
      %v6116 = vld [vmem:[%s6066 + $0xc] sm:$0xe]
      %v6117 = vld [vmem:[%s6066 + $0x18] sm:$0xe]
      %v6118 = vld [vmem:[%s6066 + $0x24] sm:$0xe]
      %v6119 = vld [vmem:[%s6066 + $0x30] sm:$0xe]
      %v6120 = vld [vmem:[%s6066 + $0x3c] sm:$0xe]
      %v6121 = vld [vmem:[%s6066 + $0x48] sm:$0xe]
      %v6122 = vld [vmem:[%s6066 + $0x54] sm:$0xe]
      %v6123 = vld [vmem:[%s6066 + $0x60] sm:$0xe]
      %v6124 = vld [vmem:[%s6066 + $0x6c] sm:$0xe]
      %v6125 = vld [vmem:[%s6066 + $0x78] sm:$0xe]
      %v6126 = vld [vmem:[%s6066 + $0x84] sm:$0xe]
      %v6127 = vld [vmem:[%s6066 + $0x90] sm:$0xe]
      %v6128 = vld [vmem:[%s6066 + $0x9c] sm:$0xe]
      %v6129 = vld [vmem:[%s6066 + $0xa8] sm:$0xe]
      %v6130 = vld [vmem:[%s6066 + $0xb4] sm:$0xe]
      %v6163 = vunpack.c.l.b16 %v6067
      %v6164 = vunpack.c.l.b16 %v6068
      %v6165 = vunpack.c.l.b16 %v6069
      %v6166 = vunpack.c.l.b16 %v6070
      %v6167 = vunpack.c.l.b16 %v6071
      %v6168 = vunpack.c.l.b16 %v6072
      %v6169 = vunpack.c.l.b16 %v6073
      %v6170 = vunpack.c.l.b16 %v6074
      %v6171 = vunpack.c.l.b16 %v6075
      %v6172 = vunpack.c.l.b16 %v6076
      %v6173 = vunpack.c.l.b16 %v6077
      %v6174 = vunpack.c.l.b16 %v6078
      %v6175 = vunpack.c.l.b16 %v6079
      %v6176 = vunpack.c.l.b16 %v6080
      %v6177 = vunpack.c.l.b16 %v6081
      %v6178 = vunpack.c.l.b16 %v6082
      %v6179 = vunpack.c.l.b16 %v6083
      %v6180 = vunpack.c.l.b16 %v6084
      %v6181 = vunpack.c.l.b16 %v6085
      %v6182 = vunpack.c.l.b16 %v6086
      %v6183 = vunpack.c.l.b16 %v6087
      %v6184 = vunpack.c.l.b16 %v6088
      %v6185 = vunpack.c.l.b16 %v6089
      %v6186 = vunpack.c.l.b16 %v6090
      %v6187 = vunpack.c.l.b16 %v6091
      %v6188 = vunpack.c.l.b16 %v6092
      %v6189 = vunpack.c.l.b16 %v6093
      %v6190 = vunpack.c.l.b16 %v6094
      %v6191 = vunpack.c.l.b16 %v6095
      %v6192 = vunpack.c.l.b16 %v6096
      %v6193 = vunpack.c.l.b16 %v6097
      %v6194 = vunpack.c.l.b16 %v6098
      %v6195 = vpack.c.b16 %v6164, %v6163
      %v6196 = vpack.c.b16 %v6166, %v6165
      %v6197 = vpack.c.b16 %v6168, %v6167
      %v6198 = vpack.c.b16 %v6170, %v6169
      %v6199 = vpack.c.b16 %v6172, %v6171
      %v6200 = vpack.c.b16 %v6174, %v6173
      %v6201 = vpack.c.b16 %v6176, %v6175
      %v6202 = vpack.c.b16 %v6178, %v6177
      %v6203 = vpack.c.b16 %v6180, %v6179
      %v6204 = vpack.c.b16 %v6182, %v6181
      %v6205 = vpack.c.b16 %v6184, %v6183
      %v6206 = vpack.c.b16 %v6186, %v6185
      %v6207 = vpack.c.b16 %v6188, %v6187
      %v6208 = vpack.c.b16 %v6190, %v6189
      %v6209 = vpack.c.b16 %v6192, %v6191
      %v6210 = vpack.c.b16 %v6194, %v6193
      %v6227 = vunpack.c.l.b16 %v6099
      %v6228 = vunpack.c.l.b16 %v6100
      %v6229 = vunpack.c.l.b16 %v6101
      %v6230 = vunpack.c.l.b16 %v6102
      %v6231 = vunpack.c.l.b16 %v6103
      %v6232 = vunpack.c.l.b16 %v6104
      %v6233 = vunpack.c.l.b16 %v6105
      %v6234 = vunpack.c.l.b16 %v6106
      %v6235 = vunpack.c.l.b16 %v6107
      %v6236 = vunpack.c.l.b16 %v6108
      %v6237 = vunpack.c.l.b16 %v6109
      %v6238 = vunpack.c.l.b16 %v6110
      %v6239 = vunpack.c.l.b16 %v6111
      %v6240 = vunpack.c.l.b16 %v6112
      %v6241 = vunpack.c.l.b16 %v6113
      %v6242 = vunpack.c.l.b16 %v6114
      %v6243 = vpack.c.b16 %v6227, %v6227
      %v6244 = vpack.c.b16 %v6228, %v6228
      %v6245 = vpack.c.b16 %v6229, %v6229
      %v6246 = vpack.c.b16 %v6230, %v6230
      %v6247 = vpack.c.b16 %v6231, %v6231
      %v6248 = vpack.c.b16 %v6232, %v6232
      %v6249 = vpack.c.b16 %v6233, %v6233
      %v6250 = vpack.c.b16 %v6234, %v6234
      %v6251 = vpack.c.b16 %v6235, %v6235
      %v6252 = vpack.c.b16 %v6236, %v6236
      %v6253 = vpack.c.b16 %v6237, %v6237
      %v6254 = vpack.c.b16 %v6238, %v6238
      %v6255 = vpack.c.b16 %v6239, %v6239
      %v6256 = vpack.c.b16 %v6240, %v6240
      %v6257 = vpack.c.b16 %v6241, %v6241
      %v6258 = vpack.c.b16 %v6242, %v6242
      %v6260 = vshrl.u32 %v6195, 16
      %v6262 = vshll.u32 %v6195, 16
      %v6264 = vrot.slane %v6262, 1
      %v6265 = vor.u32 %v6260, %v6264
      %v6267 = vshll.u32 %v6243, 16
      %v6269 = vrot.slane %v6267, 1
      %v6270 = vsel %vm1475, %v6265, %v6269
      %v6272 = vshrl.u32 %v6196, 16
      %v6274 = vshll.u32 %v6196, 16
      %v6276 = vrot.slane %v6274, 1
      %v6277 = vor.u32 %v6272, %v6276
      %v6279 = vshll.u32 %v6244, 16
      %v6281 = vrot.slane %v6279, 1
      %v6282 = vsel %vm1475, %v6277, %v6281
      %v6284 = vshrl.u32 %v6197, 16
      %v6286 = vshll.u32 %v6197, 16
      %v6288 = vrot.slane %v6286, 1
      %v6289 = vor.u32 %v6284, %v6288
      %v6291 = vshll.u32 %v6245, 16
      %v6293 = vrot.slane %v6291, 1
      %v6294 = vsel %vm1475, %v6289, %v6293
      %v6296 = vshrl.u32 %v6198, 16
      %v6298 = vshll.u32 %v6198, 16
      %v6300 = vrot.slane %v6298, 1
      %v6301 = vor.u32 %v6296, %v6300
      %v6303 = vshll.u32 %v6246, 16
      %v6305 = vrot.slane %v6303, 1
      %v6306 = vsel %vm1475, %v6301, %v6305
      %v6308 = vshrl.u32 %v6199, 16
      %v6310 = vshll.u32 %v6199, 16
      %v6312 = vrot.slane %v6310, 1
      %v6313 = vor.u32 %v6308, %v6312
      %v6315 = vshll.u32 %v6247, 16
      %v6317 = vrot.slane %v6315, 1
      %v6318 = vsel %vm1475, %v6313, %v6317
      %v6320 = vshrl.u32 %v6200, 16
      %v6322 = vshll.u32 %v6200, 16
      %v6324 = vrot.slane %v6322, 1
      %v6325 = vor.u32 %v6320, %v6324
      %v6327 = vshll.u32 %v6248, 16
      %v6329 = vrot.slane %v6327, 1
      %v6330 = vsel %vm1475, %v6325, %v6329
      %v6332 = vshrl.u32 %v6201, 16
      %v6334 = vshll.u32 %v6201, 16
      %v6336 = vrot.slane %v6334, 1
      %v6337 = vor.u32 %v6332, %v6336
      %v6339 = vshll.u32 %v6249, 16
      %v6341 = vrot.slane %v6339, 1
      %v6342 = vsel %vm1475, %v6337, %v6341
      %v6344 = vshrl.u32 %v6202, 16
      %v6346 = vshll.u32 %v6202, 16
      %v6348 = vrot.slane %v6346, 1
      %v6349 = vor.u32 %v6344, %v6348
      %v6351 = vshll.u32 %v6250, 16
      %v6353 = vrot.slane %v6351, 1
      %v6354 = vsel %vm1475, %v6349, %v6353
      %v6356 = vshrl.u32 %v6203, 16
      %v6358 = vshll.u32 %v6203, 16
      %v6360 = vrot.slane %v6358, 1
      %v6361 = vor.u32 %v6356, %v6360
      %v6363 = vshll.u32 %v6251, 16
      %v6365 = vrot.slane %v6363, 1
      %v6366 = vsel %vm1475, %v6361, %v6365
      %v6368 = vshrl.u32 %v6204, 16
      %v6370 = vshll.u32 %v6204, 16
      %v6372 = vrot.slane %v6370, 1
      %v6373 = vor.u32 %v6368, %v6372
      %v6375 = vshll.u32 %v6252, 16
      %v6377 = vrot.slane %v6375, 1
      %v6378 = vsel %vm1475, %v6373, %v6377
      %v6380 = vshrl.u32 %v6205, 16
      %v6382 = vshll.u32 %v6205, 16
      %v6384 = vrot.slane %v6382, 1
      %v6385 = vor.u32 %v6380, %v6384
      %v6387 = vshll.u32 %v6253, 16
      %v6389 = vrot.slane %v6387, 1
      %v6390 = vsel %vm1475, %v6385, %v6389
      %v6392 = vshrl.u32 %v6206, 16
      %v6394 = vshll.u32 %v6206, 16
      %v6396 = vrot.slane %v6394, 1
      %v6397 = vor.u32 %v6392, %v6396
      %v6399 = vshll.u32 %v6254, 16
      %v6401 = vrot.slane %v6399, 1
      %v6402 = vsel %vm1475, %v6397, %v6401
      %v6404 = vshrl.u32 %v6207, 16
      %v6406 = vshll.u32 %v6207, 16
      %v6408 = vrot.slane %v6406, 1
      %v6409 = vor.u32 %v6404, %v6408
      %v6411 = vshll.u32 %v6255, 16
      %v6413 = vrot.slane %v6411, 1
      %v6414 = vsel %vm1475, %v6409, %v6413
      %v6416 = vshrl.u32 %v6208, 16
      %v6418 = vshll.u32 %v6208, 16
      %v6420 = vrot.slane %v6418, 1
      %v6421 = vor.u32 %v6416, %v6420
      %v6423 = vshll.u32 %v6256, 16
      %v6425 = vrot.slane %v6423, 1
      %v6426 = vsel %vm1475, %v6421, %v6425
      %v6428 = vshrl.u32 %v6209, 16
      %v6430 = vshll.u32 %v6209, 16
      %v6432 = vrot.slane %v6430, 1
      %v6433 = vor.u32 %v6428, %v6432
      %v6435 = vshll.u32 %v6257, 16
      %v6437 = vrot.slane %v6435, 1
      %v6438 = vsel %vm1475, %v6433, %v6437
      %v6440 = vshrl.u32 %v6210, 16
      %v6442 = vshll.u32 %v6210, 16
      %v6444 = vrot.slane %v6442, 1
      %v6445 = vor.u32 %v6440, %v6444
      %v6447 = vshll.u32 %v6258, 16
      %v6449 = vrot.slane %v6447, 1
      %v6450 = vsel %vm1475, %v6445, %v6449
      %6451 = vrot.lane.b32.xlu0 %v6270, 16
      %v6452 = vpop.permute.xlu0 %6451
      %6453 = vrot.lane.b32.xlu0 %v6282, 16
      %v6454 = vpop.permute.xlu0 %6453
      %6455 = vrot.lane.b32.xlu0 %v6294, 16
      %v6456 = vpop.permute.xlu0 %6455
      %6457 = vrot.lane.b32.xlu0 %v6306, 16
      %v6458 = vpop.permute.xlu0 %6457
      %6459 = vrot.lane.b32.xlu0 %v6318, 16
      %v6460 = vpop.permute.xlu0 %6459
      %6461 = vrot.lane.b32.xlu0 %v6330, 16
      %v6462 = vpop.permute.xlu0 %6461
      %6463 = vrot.lane.b32.xlu0 %v6342, 16
      %v6464 = vpop.permute.xlu0 %6463
      %6465 = vrot.lane.b32.xlu0 %v6354, 16
      %v6466 = vpop.permute.xlu0 %6465
      %6467 = vrot.lane.b32.xlu0 %v6366, 16
      %v6468 = vpop.permute.xlu0 %6467
      %6469 = vrot.lane.b32.xlu0 %v6378, 16
      %v6470 = vpop.permute.xlu0 %6469
      %6471 = vrot.lane.b32.xlu0 %v6390, 16
      %v6472 = vpop.permute.xlu0 %6471
      %6473 = vrot.lane.b32.xlu0 %v6402, 16
      %v6474 = vpop.permute.xlu0 %6473
      %6475 = vrot.lane.b32.xlu0 %v6414, 16
      %v6476 = vpop.permute.xlu0 %6475
      %6477 = vrot.lane.b32.xlu0 %v6426, 16
      %v6478 = vpop.permute.xlu0 %6477
      %6479 = vrot.lane.b32.xlu0 %v6438, 16
      %v6480 = vpop.permute.xlu0 %6479
      %6481 = vrot.lane.b32.xlu0 %v6450, 16
      %v6482 = vpop.permute.xlu0 %6481
      %v6499 = vunpack.c.l.b16 %v6115
      %v6500 = vunpack.c.l.b16 %v6116
      %v6501 = vunpack.c.l.b16 %v6117
      %v6502 = vunpack.c.l.b16 %v6118
      %v6503 = vunpack.c.l.b16 %v6119
      %v6504 = vunpack.c.l.b16 %v6120
      %v6505 = vunpack.c.l.b16 %v6121
      %v6506 = vunpack.c.l.b16 %v6122
      %v6507 = vunpack.c.l.b16 %v6123
      %v6508 = vunpack.c.l.b16 %v6124
      %v6509 = vunpack.c.l.b16 %v6125
      %v6510 = vunpack.c.l.b16 %v6126
      %v6511 = vunpack.c.l.b16 %v6127
      %v6512 = vunpack.c.l.b16 %v6128
      %v6513 = vunpack.c.l.b16 %v6129
      %v6514 = vunpack.c.l.b16 %v6130
      %v6515 = vpack.c.b16 %v6164, %v6499
      %v6516 = vpack.c.b16 %v6166, %v6500
      %v6517 = vpack.c.b16 %v6168, %v6501
      %v6518 = vpack.c.b16 %v6170, %v6502
      %v6519 = vpack.c.b16 %v6172, %v6503
      %v6520 = vpack.c.b16 %v6174, %v6504
      %v6521 = vpack.c.b16 %v6176, %v6505
      %v6522 = vpack.c.b16 %v6178, %v6506
      %v6523 = vpack.c.b16 %v6180, %v6507
      %v6524 = vpack.c.b16 %v6182, %v6508
      %v6525 = vpack.c.b16 %v6184, %v6509
      %v6526 = vpack.c.b16 %v6186, %v6510
      %v6527 = vpack.c.b16 %v6188, %v6511
      %v6528 = vpack.c.b16 %v6190, %v6512
      %v6529 = vpack.c.b16 %v6192, %v6513
      %v6530 = vpack.c.b16 %v6194, %v6514
      %v6531 = vrot.slane %v6515, 1
      %v6532 = vrot.slane %v6243, 1
      %v6533 = vsel %vm1748, %v6531, %v6532
      %v6534 = vrot.slane %v6516, 1
      %v6535 = vrot.slane %v6244, 1
      %v6536 = vsel %vm1748, %v6534, %v6535
      %v6537 = vrot.slane %v6517, 1
      %v6538 = vrot.slane %v6245, 1
      %v6539 = vsel %vm1748, %v6537, %v6538
      %v6540 = vrot.slane %v6518, 1
      %v6541 = vrot.slane %v6246, 1
      %v6542 = vsel %vm1748, %v6540, %v6541
      %v6543 = vrot.slane %v6519, 1
      %v6544 = vrot.slane %v6247, 1
      %v6545 = vsel %vm1748, %v6543, %v6544
      %v6546 = vrot.slane %v6520, 1
      %v6547 = vrot.slane %v6248, 1
      %v6548 = vsel %vm1748, %v6546, %v6547
      %v6549 = vrot.slane %v6521, 1
      %v6550 = vrot.slane %v6249, 1
      %v6551 = vsel %vm1748, %v6549, %v6550
      %v6552 = vrot.slane %v6522, 1
      %v6553 = vrot.slane %v6250, 1
      %v6554 = vsel %vm1748, %v6552, %v6553
      %v6555 = vrot.slane %v6523, 1
      %v6556 = vrot.slane %v6251, 1
      %v6557 = vsel %vm1748, %v6555, %v6556
      %v6558 = vrot.slane %v6524, 1
      %v6559 = vrot.slane %v6252, 1
      %v6560 = vsel %vm1748, %v6558, %v6559
      %v6561 = vrot.slane %v6525, 1
      %v6562 = vrot.slane %v6253, 1
      %v6563 = vsel %vm1748, %v6561, %v6562
      %v6564 = vrot.slane %v6526, 1
      %v6565 = vrot.slane %v6254, 1
      %v6566 = vsel %vm1748, %v6564, %v6565
      %v6567 = vrot.slane %v6527, 1
      %v6568 = vrot.slane %v6255, 1
      %v6569 = vsel %vm1748, %v6567, %v6568
      %v6570 = vrot.slane %v6528, 1
      %v6571 = vrot.slane %v6256, 1
      %v6572 = vsel %vm1748, %v6570, %v6571
      %v6573 = vrot.slane %v6529, 1
      %v6574 = vrot.slane %v6257, 1
      %v6575 = vsel %vm1748, %v6573, %v6574
      %v6576 = vrot.slane %v6530, 1
      %v6577 = vrot.slane %v6258, 1
      %v6578 = vsel %vm1748, %v6576, %v6577
      %6579 = vrot.lane.b32.xlu0 %v6533, 32
      %v6580 = vpop.permute.xlu0 %6579
      %6581 = vrot.lane.b32.xlu0 %v6536, 32
      %v6582 = vpop.permute.xlu0 %6581
      %6583 = vrot.lane.b32.xlu0 %v6539, 32
      %v6584 = vpop.permute.xlu0 %6583
      %6585 = vrot.lane.b32.xlu0 %v6542, 32
      %v6586 = vpop.permute.xlu0 %6585
      %6587 = vrot.lane.b32.xlu0 %v6545, 32
      %v6588 = vpop.permute.xlu0 %6587
      %6589 = vrot.lane.b32.xlu0 %v6548, 32
      %v6590 = vpop.permute.xlu0 %6589
      %6591 = vrot.lane.b32.xlu0 %v6551, 32
      %v6592 = vpop.permute.xlu0 %6591
      %6593 = vrot.lane.b32.xlu0 %v6554, 32
      %v6594 = vpop.permute.xlu0 %6593
      %6595 = vrot.lane.b32.xlu0 %v6557, 32
      %v6596 = vpop.permute.xlu0 %6595
      %6597 = vrot.lane.b32.xlu0 %v6560, 32
      %v6598 = vpop.permute.xlu0 %6597
      %6599 = vrot.lane.b32.xlu0 %v6563, 32
      %v6600 = vpop.permute.xlu0 %6599
      %6601 = vrot.lane.b32.xlu0 %v6566, 32
      %v6602 = vpop.permute.xlu0 %6601
      %6603 = vrot.lane.b32.xlu0 %v6569, 32
      %v6604 = vpop.permute.xlu0 %6603
      %6605 = vrot.lane.b32.xlu0 %v6572, 32
      %v6606 = vpop.permute.xlu0 %6605
      %6607 = vrot.lane.b32.xlu0 %v6575, 32
      %v6608 = vpop.permute.xlu0 %6607
      %6609 = vrot.lane.b32.xlu0 %v6578, 32
      %v6610 = vpop.permute.xlu0 %6609
      %v6612 = vsel %vm1862, %v6195, %v6452
      %v6614 = vsel %vm1862, %v6196, %v6454
      %v6616 = vsel %vm1862, %v6197, %v6456
      %v6618 = vsel %vm1862, %v6198, %v6458
      %v6620 = vsel %vm1862, %v6199, %v6460
      %v6622 = vsel %vm1862, %v6200, %v6462
      %v6624 = vsel %vm1862, %v6201, %v6464
      %v6626 = vsel %vm1862, %v6202, %v6466
      %v6628 = vsel %vm1862, %v6203, %v6468
      %v6630 = vsel %vm1862, %v6204, %v6470
      %v6632 = vsel %vm1862, %v6205, %v6472
      %v6634 = vsel %vm1862, %v6206, %v6474
      %v6636 = vsel %vm1862, %v6207, %v6476
      %v6638 = vsel %vm1862, %v6208, %v6478
      %v6640 = vsel %vm1862, %v6209, %v6480
      %v6642 = vsel %vm1862, %v6210, %v6482
      %v6644 = vsel %vm4989, %v6612, %v6580
      %v6646 = vsel %vm4989, %v6614, %v6582
      %v6648 = vsel %vm4989, %v6616, %v6584
      %v6650 = vsel %vm4989, %v6618, %v6586
      %v6652 = vsel %vm4989, %v6620, %v6588
      %v6654 = vsel %vm4989, %v6622, %v6590
      %v6656 = vsel %vm4989, %v6624, %v6592
      %v6658 = vsel %vm4989, %v6626, %v6594
      %v6660 = vsel %vm4989, %v6628, %v6596
      %v6662 = vsel %vm4989, %v6630, %v6598
      %v6664 = vsel %vm4989, %v6632, %v6600
      %v6666 = vsel %vm4989, %v6634, %v6602
      %v6668 = vsel %vm4989, %v6636, %v6604
      %v6670 = vsel %vm4989, %v6638, %v6606
      %v6672 = vsel %vm4989, %v6640, %v6608
      %v6674 = vsel %vm4989, %v6642, %v6610
      %s6675 = scalar_lea.vmem %s4, 48
      %v6676 = vld [vmem:[%s6675] sm:$0xf]
      %v6677 = vld [vmem:[%s6675 + $0x4] sm:$0xf]
      %v6678 = vld [vmem:[%s6675 + $0x8] sm:$0xf]
      %v6679 = vld [vmem:[%s6675 + $0xc] sm:$0xf]
      %v6680 = vld [vmem:[%s6675 + $0x10] sm:$0xf]
      %v6681 = vld [vmem:[%s6675 + $0x14] sm:$0xf]
      %v6688 = vunpack.c.l.b16 %v6676
      %v6689 = vunpack.c.l.b16 %v6677
      %v6690 = vunpack.c.l.b16 %v6678
      %v6691 = vunpack.c.l.b16 %v6679
      %v6692 = vunpack.c.l.b16 %v6680
      %v6693 = vunpack.c.l.b16 %v6681
      %v6694 = vpack.c.b16 %v6689, %v6688
      %v6695 = vpack.c.b16 %v6691, %v6690
      %v6696 = vpack.c.b16 %v6693, %v6692
      %v6700 = vsel %vm5661, %v6644, 0
      %v6702 = vsel %vm5661, %v6646, 0
      %v6704 = vsel %vm5661, %v6648, 0
      %v6706 = vsel %vm5661, %v6650, 0
      %v6708 = vsel %vm5661, %v6652, 0
      %v6710 = vsel %vm5661, %v6654, 0
      %v6712 = vsel %vm5661, %v6656, 0
      %v6714 = vsel %vm5661, %v6658, 0
      %v6716 = vsel %vm5661, %v6660, 0
      %v6718 = vsel %vm5661, %v6662, 0
      %v6720 = vsel %vm5661, %v6664, 0
      %v6722 = vsel %vm5661, %v6666, 0
      %v6724 = vsel %vm5661, %v6668, 0
      %v6726 = vsel %vm5661, %v6670, 0
      %v6728 = vsel %vm5661, %v6672, 0
      %v6730 = vsel %vm5661, %v6674, 0
      %6732 = vmatprep.subr.bf16.mxu0 0
      %6733 = vmatpush1.bf16.msra.mxu0 %v6694
      %6734 = vmatprep.subr.bf16.mxu0 0
      %6735 = vmatpush1.bf16.msra.mxu0 %v6695
      %6736 = vmatprep.subr.bf16.mxu0 0
      %6737 = vmatpush1.bf16.msra.mxu0 %v6696
      %6738 = vmatprep.subr.bf16.mxu0 0
      %6739 = vmatpush1.bf16.msra.mxu0 0
      %6740 = vmatprep.subr.bf16.mxu0 0
      %6741 = vmatpush1.bf16.msra.mxu0 0
      %6742 = vmatprep.subr.bf16.mxu0 0
      %6743 = vmatpush1.bf16.msra.mxu0 0
      %6744 = vmatprep.subr.bf16.mxu0 0
      %6745 = vmatpush1.bf16.msra.mxu0 0
      %6746 = vmatprep.subr.bf16.mxu0 0
      %6747 = vmatpush1.bf16.msra.mxu0 0
      %6748 = vmatprep.subr.bf16.mxu0 0
      %6749 = vmatpush1.bf16.msra.mxu0 0
      %6750 = vmatprep.subr.bf16.mxu0 0
      %6751 = vmatpush1.bf16.msra.mxu0 0
      %6752 = vmatprep.subr.bf16.mxu0 0
      %6753 = vmatpush1.bf16.msra.mxu0 0
      %6754 = vmatprep.subr.bf16.mxu0 0
      %6755 = vmatpush1.bf16.msra.mxu0 0
      %6756 = vmatprep.subr.bf16.mxu0 0
      %6757 = vmatpush1.bf16.msra.mxu0 0
      %6758 = vmatprep.subr.bf16.mxu0 0
      %6759 = vmatpush1.bf16.msra.mxu0 0
      %6760 = vmatprep.subr.bf16.mxu0 0
      %6761 = vmatpush1.bf16.msra.mxu0 0
      %6762 = vmatprep.subr.bf16.mxu0 0
      %6763 = vmatpush1.bf16.msra.mxu0 0
      %6764 = vmatprep.mubr.bf16.mxu0 0
      %6765 = vmatmul.mubr.bf16.gmra.mrb[0].mxu0 %v6700
      %v6766 = vpop.f32.mrb[0].mxu0
      %v6767 = vadd.f32 0.0, %v6766
      %v6768 = vpop.f32.mrb[0].mxu0
      %v6769 = vpop.f32.mrb[0].mxu0
      %v6770 = vadd.f32 0.0, %v6769
      %v6771 = vpop.f32.mrb[0].mxu0
      %6772 = vmatprep.mubr.bf16.mxu0 0
      %6773 = vmatmul.mubr.bf16.gmra.mrb[0].mxu0 %v6702
      %v6774 = vpop.f32.mrb[0].mxu0
      %v6775 = vadd.f32 0.0, %v6774
      %v6776 = vpop.f32.mrb[0].mxu0
      %v6777 = vpop.f32.mrb[0].mxu0
      %v6778 = vadd.f32 0.0, %v6777
      %v6779 = vpop.f32.mrb[0].mxu0
      %6780 = vmatprep.mubr.bf16.mxu0 0
      %6781 = vmatmul.mubr.bf16.gmra.mrb[0].mxu0 %v6704
      %v6782 = vpop.f32.mrb[0].mxu0
      %v6783 = vadd.f32 0.0, %v6782
      %v6784 = vpop.f32.mrb[0].mxu0
      %v6785 = vpop.f32.mrb[0].mxu0
      %v6786 = vadd.f32 0.0, %v6785
      %v6787 = vpop.f32.mrb[0].mxu0
      %6788 = vmatprep.mubr.bf16.mxu0 0
      %6789 = vmatmul.mubr.bf16.gmra.mrb[0].mxu0 %v6706
      %v6790 = vpop.f32.mrb[0].mxu0
      %v6791 = vadd.f32 0.0, %v6790
      %v6792 = vpop.f32.mrb[0].mxu0
      %v6793 = vpop.f32.mrb[0].mxu0
      %v6794 = vadd.f32 0.0, %v6793
      %v6795 = vpop.f32.mrb[0].mxu0
      %6796 = vmatprep.mubr.bf16.mxu0 0
      %6797 = vmatmul.mubr.bf16.gmra.mrb[0].mxu0 %v6708
      %v6798 = vpop.f32.mrb[0].mxu0
      %v6799 = vadd.f32 0.0, %v6798
      %v6800 = vpop.f32.mrb[0].mxu0
      %v6801 = vpop.f32.mrb[0].mxu0
      %v6802 = vadd.f32 0.0, %v6801
      %v6803 = vpop.f32.mrb[0].mxu0
      %6804 = vmatprep.mubr.bf16.mxu0 0
      %6805 = vmatmul.mubr.bf16.gmra.mrb[0].mxu0 %v6710
      %v6806 = vpop.f32.mrb[0].mxu0
      %v6807 = vadd.f32 0.0, %v6806
      %v6808 = vpop.f32.mrb[0].mxu0
      %v6809 = vpop.f32.mrb[0].mxu0
      %v6810 = vadd.f32 0.0, %v6809
      %v6811 = vpop.f32.mrb[0].mxu0
      %6812 = vmatprep.mubr.bf16.mxu0 0
      %6813 = vmatmul.mubr.bf16.gmra.mrb[0].mxu0 %v6712
      %v6814 = vpop.f32.mrb[0].mxu0
      %v6815 = vadd.f32 0.0, %v6814
      %v6816 = vpop.f32.mrb[0].mxu0
      %v6817 = vpop.f32.mrb[0].mxu0
      %v6818 = vadd.f32 0.0, %v6817
      %v6819 = vpop.f32.mrb[0].mxu0
      %6820 = vmatprep.mubr.bf16.mxu0 0
      %6821 = vmatmul.mubr.bf16.gmra.mrb[0].mxu0 %v6714
      %v6822 = vpop.f32.mrb[0].mxu0
      %v6823 = vadd.f32 0.0, %v6822
      %v6824 = vpop.f32.mrb[0].mxu0
      %v6825 = vpop.f32.mrb[0].mxu0
      %v6826 = vadd.f32 0.0, %v6825
      %v6827 = vpop.f32.mrb[0].mxu0
      %6828 = vmatprep.mubr.bf16.mxu0 0
      %6829 = vmatmul.mubr.bf16.gmra.mrb[0].mxu0 %v6716
      %v6830 = vpop.f32.mrb[0].mxu0
      %v6831 = vadd.f32 0.0, %v6830
      %v6832 = vpop.f32.mrb[0].mxu0
      %v6833 = vpop.f32.mrb[0].mxu0
      %v6834 = vadd.f32 0.0, %v6833
      %v6835 = vpop.f32.mrb[0].mxu0
      %6836 = vmatprep.mubr.bf16.mxu0 0
      %6837 = vmatmul.mubr.bf16.gmra.mrb[0].mxu0 %v6718
      %v6838 = vpop.f32.mrb[0].mxu0
      %v6839 = vadd.f32 0.0, %v6838
      %v6840 = vpop.f32.mrb[0].mxu0
      %v6841 = vpop.f32.mrb[0].mxu0
      %v6842 = vadd.f32 0.0, %v6841
      %v6843 = vpop.f32.mrb[0].mxu0
      %6844 = vmatprep.mubr.bf16.mxu0 0
      %6845 = vmatmul.mubr.bf16.gmra.mrb[0].mxu0 %v6720
      %v6846 = vpop.f32.mrb[0].mxu0
      %v6847 = vadd.f32 0.0, %v6846
      %v6848 = vpop.f32.mrb[0].mxu0
      %v6849 = vpop.f32.mrb[0].mxu0
      %v6850 = vadd.f32 0.0, %v6849
      %v6851 = vpop.f32.mrb[0].mxu0
      %6852 = vmatprep.mubr.bf16.mxu0 0
      %6853 = vmatmul.mubr.bf16.gmra.mrb[0].mxu0 %v6722
      %v6854 = vpop.f32.mrb[0].mxu0
      %v6855 = vadd.f32 0.0, %v6854
      %v6856 = vpop.f32.mrb[0].mxu0
      %v6857 = vpop.f32.mrb[0].mxu0
      %v6858 = vadd.f32 0.0, %v6857
      %v6859 = vpop.f32.mrb[0].mxu0
      %6860 = vmatprep.mubr.bf16.mxu0 0
      %6861 = vmatmul.mubr.bf16.gmra.mrb[0].mxu0 %v6724
      %v6862 = vpop.f32.mrb[0].mxu0
      %v6863 = vadd.f32 0.0, %v6862
      %v6864 = vpop.f32.mrb[0].mxu0
      %v6865 = vpop.f32.mrb[0].mxu0
      %v6866 = vadd.f32 0.0, %v6865
      %v6867 = vpop.f32.mrb[0].mxu0
      %6868 = vmatprep.mubr.bf16.mxu0 0
      %6869 = vmatmul.mubr.bf16.gmra.mrb[0].mxu0 %v6726
      %v6870 = vpop.f32.mrb[0].mxu0
      %v6871 = vadd.f32 0.0, %v6870
      %v6872 = vpop.f32.mrb[0].mxu0
      %v6873 = vpop.f32.mrb[0].mxu0
      %v6874 = vadd.f32 0.0, %v6873
      %v6875 = vpop.f32.mrb[0].mxu0
      %6876 = vmatprep.mubr.bf16.mxu0 0
      %6877 = vmatmul.mubr.bf16.gmra.mrb[0].mxu0 %v6728
      %v6878 = vpop.f32.mrb[0].mxu0
      %v6879 = vadd.f32 0.0, %v6878
      %v6880 = vpop.f32.mrb[0].mxu0
      %v6881 = vpop.f32.mrb[0].mxu0
      %v6882 = vadd.f32 0.0, %v6881
      %v6883 = vpop.f32.mrb[0].mxu0
      %6884 = vmatprep.mubr.bf16.mxu0 0
      %6885 = vmatmul.mubr.bf16.gmra.mrb[0].mxu0 %v6730
      %v6886 = vpop.f32.mrb[0].mxu0
      %v6887 = vadd.f32 0.0, %v6886
      %v6888 = vpop.f32.mrb[0].mxu0
      %v6889 = vpop.f32.mrb[0].mxu0
      %v6890 = vadd.f32 0.0, %v6889
      %v6891 = vpop.f32.mrb[0].mxu0
      %6892 = vdwg.mxu0
      %v6893 = vadd.f32 %v5940, %v6767
      %v6894 = vadd.f32 %v5943, %v6770
      %v6895 = vadd.f32 %v5948, %v6775
      %v6896 = vadd.f32 %v5951, %v6778
      %v6897 = vadd.f32 %v5956, %v6783
      %v6898 = vadd.f32 %v5959, %v6786
      %v6899 = vadd.f32 %v5964, %v6791
      %v6900 = vadd.f32 %v5967, %v6794
      %v6901 = vadd.f32 %v5972, %v6799
      %v6902 = vadd.f32 %v5975, %v6802
      %v6903 = vadd.f32 %v5980, %v6807
      %v6904 = vadd.f32 %v5983, %v6810
      %v6905 = vadd.f32 %v5988, %v6815
      %v6906 = vadd.f32 %v5991, %v6818
      %v6907 = vadd.f32 %v5996, %v6823
      %v6908 = vadd.f32 %v5999, %v6826
      %v6909 = vadd.f32 %v6004, %v6831
      %v6910 = vadd.f32 %v6007, %v6834
      %v6911 = vadd.f32 %v6012, %v6839
      %v6912 = vadd.f32 %v6015, %v6842
      %v6913 = vadd.f32 %v6020, %v6847
      %v6914 = vadd.f32 %v6023, %v6850
      %v6915 = vadd.f32 %v6028, %v6855
      %v6916 = vadd.f32 %v6031, %v6858
      %v6917 = vadd.f32 %v6036, %v6863
      %v6918 = vadd.f32 %v6039, %v6866
      %v6919 = vadd.f32 %v6044, %v6871
      %v6920 = vadd.f32 %v6047, %v6874
      %v6921 = vadd.f32 %v6052, %v6879
      %v6922 = vadd.f32 %v6055, %v6882
      %v6923 = vadd.f32 %v6060, %v6887
      %v6924 = vadd.f32 %v6063, %v6890
      %v6925 = vld [vmem:[%s5] sm:$0x1]
      %v6927 = vlaneseq
      %v6928 = vshrl.u32 %v6927, 7
      %v6929 = vsub.s32 0, %v6928
      %v6930 = vrot.slane %v6925, %v6929
      %v6932 = vmul.f32 %v6893, %v6930
      %v6933 = vmul.f32 %v6894, %v6930
      %v6934 = vmul.f32 %v6895, %v6930
      %v6935 = vmul.f32 %v6896, %v6930
      %v6936 = vmul.f32 %v6897, %v6930
      %v6937 = vmul.f32 %v6898, %v6930
      %v6938 = vmul.f32 %v6899, %v6930
      %v6939 = vmul.f32 %v6900, %v6930
      %v6940 = vmul.f32 %v6901, %v6930
      %v6941 = vmul.f32 %v6902, %v6930
      %v6942 = vmul.f32 %v6903, %v6930
      %v6943 = vmul.f32 %v6904, %v6930
      %v6944 = vmul.f32 %v6905, %v6930
      %v6945 = vmul.f32 %v6906, %v6930
      %v6946 = vmul.f32 %v6907, %v6930
      %v6947 = vmul.f32 %v6908, %v6930
      %v6948 = vmul.f32 %v6909, %v6930
      %v6949 = vmul.f32 %v6910, %v6930
      %v6950 = vmul.f32 %v6911, %v6930
      %v6951 = vmul.f32 %v6912, %v6930
      %v6952 = vmul.f32 %v6913, %v6930
      %v6953 = vmul.f32 %v6914, %v6930
      %v6954 = vmul.f32 %v6915, %v6930
      %v6955 = vmul.f32 %v6916, %v6930
      %v6956 = vmul.f32 %v6917, %v6930
      %v6957 = vmul.f32 %v6918, %v6930
      %v6958 = vmul.f32 %v6919, %v6930
      %v6959 = vmul.f32 %v6920, %v6930
      %v6960 = vmul.f32 %v6921, %v6930
      %v6961 = vmul.f32 %v6922, %v6930
      %v6962 = vmul.f32 %v6923, %v6930
      %v6963 = vmul.f32 %v6924, %v6930
      %v6964 = vld [vmem:[%s6] sm:$0x1]
      %v6966 = vlaneseq
      %v6967 = vshrl.u32 %v6966, 7
      %v6968 = vsub.s32 0, %v6967
      %v6969 = vrot.slane %v6964, %v6968
      %v6971 = vadd.f32 %v6932, %v6969
      %v6972 = vadd.f32 %v6933, %v6969
      %v6973 = vadd.f32 %v6934, %v6969
      %v6974 = vadd.f32 %v6935, %v6969
      %v6975 = vadd.f32 %v6936, %v6969
      %v6976 = vadd.f32 %v6937, %v6969
      %v6977 = vadd.f32 %v6938, %v6969
      %v6978 = vadd.f32 %v6939, %v6969
      %v6979 = vadd.f32 %v6940, %v6969
      %v6980 = vadd.f32 %v6941, %v6969
      %v6981 = vadd.f32 %v6942, %v6969
      %v6982 = vadd.f32 %v6943, %v6969
      %v6983 = vadd.f32 %v6944, %v6969
      %v6984 = vadd.f32 %v6945, %v6969
      %v6985 = vadd.f32 %v6946, %v6969
      %v6986 = vadd.f32 %v6947, %v6969
      %v6987 = vadd.f32 %v6948, %v6969
      %v6988 = vadd.f32 %v6949, %v6969
      %v6989 = vadd.f32 %v6950, %v6969
      %v6990 = vadd.f32 %v6951, %v6969
      %v6991 = vadd.f32 %v6952, %v6969
      %v6992 = vadd.f32 %v6953, %v6969
      %v6993 = vadd.f32 %v6954, %v6969
      %v6994 = vadd.f32 %v6955, %v6969
      %v6995 = vadd.f32 %v6956, %v6969
      %v6996 = vadd.f32 %v6957, %v6969
      %v6997 = vadd.f32 %v6958, %v6969
      %v6998 = vadd.f32 %v6959, %v6969
      %v6999 = vadd.f32 %v6960, %v6969
      %v7000 = vadd.f32 %v6961, %v6969
      %v7001 = vadd.f32 %v6962, %v6969
      %v7002 = vadd.f32 %v6963, %v6969
      %v7003 = vmax.f32 %v6971, 0.0
      %v7004 = vmax.f32 %v6972, 0.0
      %v7005 = vmax.f32 %v6973, 0.0
      %v7006 = vmax.f32 %v6974, 0.0
      %v7007 = vmax.f32 %v6975, 0.0
      %v7008 = vmax.f32 %v6976, 0.0
      %v7009 = vmax.f32 %v6977, 0.0
      %v7010 = vmax.f32 %v6978, 0.0
      %v7011 = vmax.f32 %v6979, 0.0
      %v7012 = vmax.f32 %v6980, 0.0
      %v7013 = vmax.f32 %v6981, 0.0
      %v7014 = vmax.f32 %v6982, 0.0
      %v7015 = vmax.f32 %v6983, 0.0
      %v7016 = vmax.f32 %v6984, 0.0
      %v7017 = vmax.f32 %v6985, 0.0
      %v7018 = vmax.f32 %v6986, 0.0
      %v7019 = vmax.f32 %v6987, 0.0
      %v7020 = vmax.f32 %v6988, 0.0
      %v7021 = vmax.f32 %v6989, 0.0
      %v7022 = vmax.f32 %v6990, 0.0
      %v7023 = vmax.f32 %v6991, 0.0
      %v7024 = vmax.f32 %v6992, 0.0
      %v7025 = vmax.f32 %v6993, 0.0
      %v7026 = vmax.f32 %v6994, 0.0
      %v7027 = vmax.f32 %v6995, 0.0
      %v7028 = vmax.f32 %v6996, 0.0
      %v7029 = vmax.f32 %v6997, 0.0
      %v7030 = vmax.f32 %v6998, 0.0
      %v7031 = vmax.f32 %v6999, 0.0
      %v7032 = vmax.f32 %v7000, 0.0
      %v7033 = vmax.f32 %v7001, 0.0
      %v7034 = vmax.f32 %v7002, 0.0
      %v7035 = vpack.c.bf16 %v7004, %v7003
      %v7036 = vpack.c.bf16 %v7006, %v7005
      %v7037 = vpack.c.bf16 %v7008, %v7007
      %v7038 = vpack.c.bf16 %v7010, %v7009
      %v7039 = vpack.c.bf16 %v7012, %v7011
      %v7040 = vpack.c.bf16 %v7014, %v7013
      %v7041 = vpack.c.bf16 %v7016, %v7015
      %v7042 = vpack.c.bf16 %v7018, %v7017
      %v7043 = vpack.c.bf16 %v7020, %v7019
      %v7044 = vpack.c.bf16 %v7022, %v7021
      %v7045 = vpack.c.bf16 %v7024, %v7023
      %v7046 = vpack.c.bf16 %v7026, %v7025
      %v7047 = vpack.c.bf16 %v7028, %v7027
      %v7048 = vpack.c.bf16 %v7030, %v7029
      %v7049 = vpack.c.bf16 %v7032, %v7031
      %v7050 = vpack.c.bf16 %v7034, %v7033
      %v7067 = vunpack.c.l.b16 %v7035
      %v7068 = vunpack.c.h.b16 %v7035
      %v7069 = vunpack.c.l.b16 %v7036
      %v7070 = vunpack.c.h.b16 %v7036
      %v7071 = vunpack.c.l.b16 %v7037
      %v7072 = vunpack.c.h.b16 %v7037
      %v7073 = vunpack.c.l.b16 %v7038
      %v7074 = vunpack.c.h.b16 %v7038
      %v7075 = vunpack.c.l.b16 %v7039
      %v7076 = vunpack.c.h.b16 %v7039
      %v7077 = vunpack.c.l.b16 %v7040
      %v7078 = vunpack.c.h.b16 %v7040
      %v7079 = vunpack.c.l.b16 %v7041
      %v7080 = vunpack.c.h.b16 %v7041
      %v7081 = vunpack.c.l.b16 %v7042
      %v7082 = vunpack.c.h.b16 %v7042
      %v7083 = vunpack.c.l.b16 %v7043
      %v7084 = vunpack.c.h.b16 %v7043
      %v7085 = vunpack.c.l.b16 %v7044
      %v7086 = vunpack.c.h.b16 %v7044
      %v7087 = vunpack.c.l.b16 %v7045
      %v7088 = vunpack.c.h.b16 %v7045
      %v7089 = vunpack.c.l.b16 %v7046
      %v7090 = vunpack.c.h.b16 %v7046
      %v7091 = vunpack.c.l.b16 %v7047
      %v7092 = vunpack.c.h.b16 %v7047
      %v7093 = vunpack.c.l.b16 %v7048
      %v7094 = vunpack.c.h.b16 %v7048
      %v7095 = vunpack.c.l.b16 %v7049
      %v7096 = vunpack.c.h.b16 %v7049
      %v7097 = vunpack.c.l.b16 %v7050
      %v7098 = vunpack.c.h.b16 %v7050
      %v7099 = vpack.c.b16 %v7067, %v7067
      %v7100 = vpack.c.b16 %v7068, %v7068
      %v7101 = vpack.c.b16 %v7069, %v7069
      %v7102 = vpack.c.b16 %v7070, %v7070
      %v7103 = vpack.c.b16 %v7071, %v7071
      %v7104 = vpack.c.b16 %v7072, %v7072
      %v7105 = vpack.c.b16 %v7073, %v7073
      %v7106 = vpack.c.b16 %v7074, %v7074
      %v7107 = vpack.c.b16 %v7075, %v7075
      %v7108 = vpack.c.b16 %v7076, %v7076
      %v7109 = vpack.c.b16 %v7077, %v7077
      %v7110 = vpack.c.b16 %v7078, %v7078
      %v7111 = vpack.c.b16 %v7079, %v7079
      %v7112 = vpack.c.b16 %v7080, %v7080
      %v7113 = vpack.c.b16 %v7081, %v7081
      %v7114 = vpack.c.b16 %v7082, %v7082
      %v7115 = vpack.c.b16 %v7083, %v7083
      %v7116 = vpack.c.b16 %v7084, %v7084
      %v7117 = vpack.c.b16 %v7085, %v7085
      %v7118 = vpack.c.b16 %v7086, %v7086
      %v7119 = vpack.c.b16 %v7087, %v7087
      %v7120 = vpack.c.b16 %v7088, %v7088
      %v7121 = vpack.c.b16 %v7089, %v7089
      %v7122 = vpack.c.b16 %v7090, %v7090
      %v7123 = vpack.c.b16 %v7091, %v7091
      %v7124 = vpack.c.b16 %v7092, %v7092
      %v7125 = vpack.c.b16 %v7093, %v7093
      %v7126 = vpack.c.b16 %v7094, %v7094
      %v7127 = vpack.c.b16 %v7095, %v7095
      %v7128 = vpack.c.b16 %v7096, %v7096
      %v7129 = vpack.c.b16 %v7097, %v7097
      %v7130 = vpack.c.b16 %v7098, %v7098
      %v7132 = vshrl.u32 %v7099, 16
      %v7134 = vrot.slane %v7132, 7
      %v7135 = vshll.u32 %v7099, 16
      %v7137 = vor.u32 %v7134, %v7135
      %v7138 = vrot.slane %v7134, 4
      %v7140 = vshrl.u32 %v7100, 16
      %v7142 = vrot.slane %v7140, 7
      %v7143 = vshll.u32 %v7100, 16
      %v7145 = vor.u32 %v7142, %v7143
      %v7146 = vsel %vm847, %v7138, %v7145
      %v7147 = vrot.slane %v7142, 4
      %v7149 = vshrl.u32 %v7101, 16
      %v7151 = vrot.slane %v7149, 7
      %v7152 = vshll.u32 %v7101, 16
      %v7154 = vor.u32 %v7151, %v7152
      %v7155 = vrot.slane %v7151, 4
      %v7157 = vshrl.u32 %v7102, 16
      %v7159 = vrot.slane %v7157, 7
      %v7160 = vshll.u32 %v7102, 16
      %v7162 = vor.u32 %v7159, %v7160
      %v7163 = vsel %vm847, %v7155, %v7162
      %v7164 = vrot.slane %v7159, 4
      %v7166 = vshrl.u32 %v7103, 16
      %v7168 = vrot.slane %v7166, 7
      %v7169 = vshll.u32 %v7103, 16
      %v7171 = vor.u32 %v7168, %v7169
      %v7172 = vrot.slane %v7168, 4
      %v7174 = vshrl.u32 %v7104, 16
      %v7176 = vrot.slane %v7174, 7
      %v7177 = vshll.u32 %v7104, 16
      %v7179 = vor.u32 %v7176, %v7177
      %v7180 = vsel %vm847, %v7172, %v7179
      %v7181 = vrot.slane %v7176, 4
      %v7183 = vshrl.u32 %v7105, 16
      %v7185 = vrot.slane %v7183, 7
      %v7186 = vshll.u32 %v7105, 16
      %v7188 = vor.u32 %v7185, %v7186
      %v7189 = vrot.slane %v7185, 4
      %v7191 = vshrl.u32 %v7106, 16
      %v7193 = vrot.slane %v7191, 7
      %v7194 = vshll.u32 %v7106, 16
      %v7196 = vor.u32 %v7193, %v7194
      %v7197 = vsel %vm847, %v7189, %v7196
      %v7198 = vrot.slane %v7193, 4
      %v7200 = vshrl.u32 %v7107, 16
      %v7202 = vrot.slane %v7200, 7
      %v7203 = vshll.u32 %v7107, 16
      %v7205 = vor.u32 %v7202, %v7203
      %v7206 = vrot.slane %v7202, 4
      %v7208 = vshrl.u32 %v7108, 16
      %v7210 = vrot.slane %v7208, 7
      %v7211 = vshll.u32 %v7108, 16
      %v7213 = vor.u32 %v7210, %v7211
      %v7214 = vsel %vm847, %v7206, %v7213
      %v7215 = vrot.slane %v7210, 4
      %v7217 = vshrl.u32 %v7109, 16
      %v7219 = vrot.slane %v7217, 7
      %v7220 = vshll.u32 %v7109, 16
      %v7222 = vor.u32 %v7219, %v7220
      %v7223 = vrot.slane %v7219, 4
      %v7225 = vshrl.u32 %v7110, 16
      %v7227 = vrot.slane %v7225, 7
      %v7228 = vshll.u32 %v7110, 16
      %v7230 = vor.u32 %v7227, %v7228
      %v7231 = vsel %vm847, %v7223, %v7230
      %v7232 = vrot.slane %v7227, 4
      %v7234 = vshrl.u32 %v7111, 16
      %v7236 = vrot.slane %v7234, 7
      %v7237 = vshll.u32 %v7111, 16
      %v7239 = vor.u32 %v7236, %v7237
      %v7240 = vrot.slane %v7236, 4
      %v7242 = vshrl.u32 %v7112, 16
      %v7244 = vrot.slane %v7242, 7
      %v7245 = vshll.u32 %v7112, 16
      %v7247 = vor.u32 %v7244, %v7245
      %v7248 = vsel %vm847, %v7240, %v7247
      %v7249 = vrot.slane %v7244, 4
      %v7251 = vshrl.u32 %v7113, 16
      %v7253 = vrot.slane %v7251, 7
      %v7254 = vshll.u32 %v7113, 16
      %v7256 = vor.u32 %v7253, %v7254
      %v7257 = vrot.slane %v7253, 4
      %v7259 = vshrl.u32 %v7114, 16
      %v7261 = vrot.slane %v7259, 7
      %v7262 = vshll.u32 %v7114, 16
      %v7264 = vor.u32 %v7261, %v7262
      %v7265 = vsel %vm847, %v7257, %v7264
      %v7266 = vrot.slane %v7261, 4
      %v7268 = vshrl.u32 %v7115, 16
      %v7270 = vrot.slane %v7268, 7
      %v7271 = vshll.u32 %v7115, 16
      %v7273 = vor.u32 %v7270, %v7271
      %v7274 = vrot.slane %v7270, 4
      %v7276 = vshrl.u32 %v7116, 16
      %v7278 = vrot.slane %v7276, 7
      %v7279 = vshll.u32 %v7116, 16
      %v7281 = vor.u32 %v7278, %v7279
      %v7282 = vsel %vm847, %v7274, %v7281
      %v7283 = vrot.slane %v7278, 4
      %v7285 = vshrl.u32 %v7117, 16
      %v7287 = vrot.slane %v7285, 7
      %v7288 = vshll.u32 %v7117, 16
      %v7290 = vor.u32 %v7287, %v7288
      %v7291 = vrot.slane %v7287, 4
      %v7293 = vshrl.u32 %v7118, 16
      %v7295 = vrot.slane %v7293, 7
      %v7296 = vshll.u32 %v7118, 16
      %v7298 = vor.u32 %v7295, %v7296
      %v7299 = vsel %vm847, %v7291, %v7298
      %v7300 = vrot.slane %v7295, 4
      %v7302 = vshrl.u32 %v7119, 16
      %v7304 = vrot.slane %v7302, 7
      %v7305 = vshll.u32 %v7119, 16
      %v7307 = vor.u32 %v7304, %v7305
      %v7308 = vrot.slane %v7304, 4
      %v7310 = vshrl.u32 %v7120, 16
      %v7312 = vrot.slane %v7310, 7
      %v7313 = vshll.u32 %v7120, 16
      %v7315 = vor.u32 %v7312, %v7313
      %v7316 = vsel %vm847, %v7308, %v7315
      %v7317 = vrot.slane %v7312, 4
      %v7319 = vshrl.u32 %v7121, 16
      %v7321 = vrot.slane %v7319, 7
      %v7322 = vshll.u32 %v7121, 16
      %v7324 = vor.u32 %v7321, %v7322
      %v7325 = vrot.slane %v7321, 4
      %v7327 = vshrl.u32 %v7122, 16
      %v7329 = vrot.slane %v7327, 7
      %v7330 = vshll.u32 %v7122, 16
      %v7332 = vor.u32 %v7329, %v7330
      %v7333 = vsel %vm847, %v7325, %v7332
      %v7334 = vrot.slane %v7329, 4
      %v7336 = vshrl.u32 %v7123, 16
      %v7338 = vrot.slane %v7336, 7
      %v7339 = vshll.u32 %v7123, 16
      %v7341 = vor.u32 %v7338, %v7339
      %v7342 = vrot.slane %v7338, 4
      %v7344 = vshrl.u32 %v7124, 16
      %v7346 = vrot.slane %v7344, 7
      %v7347 = vshll.u32 %v7124, 16
      %v7349 = vor.u32 %v7346, %v7347
      %v7350 = vsel %vm847, %v7342, %v7349
      %v7351 = vrot.slane %v7346, 4
      %v7353 = vshrl.u32 %v7125, 16
      %v7355 = vrot.slane %v7353, 7
      %v7356 = vshll.u32 %v7125, 16
      %v7358 = vor.u32 %v7355, %v7356
      %v7359 = vrot.slane %v7355, 4
      %v7361 = vshrl.u32 %v7126, 16
      %v7363 = vrot.slane %v7361, 7
      %v7364 = vshll.u32 %v7126, 16
      %v7366 = vor.u32 %v7363, %v7364
      %v7367 = vsel %vm847, %v7359, %v7366
      %v7368 = vrot.slane %v7363, 4
      %v7370 = vshrl.u32 %v7127, 16
      %v7372 = vrot.slane %v7370, 7
      %v7373 = vshll.u32 %v7127, 16
      %v7375 = vor.u32 %v7372, %v7373
      %v7376 = vrot.slane %v7372, 4
      %v7378 = vshrl.u32 %v7128, 16
      %v7380 = vrot.slane %v7378, 7
      %v7381 = vshll.u32 %v7128, 16
      %v7383 = vor.u32 %v7380, %v7381
      %v7384 = vsel %vm847, %v7376, %v7383
      %v7385 = vrot.slane %v7380, 4
      %v7387 = vshrl.u32 %v7129, 16
      %v7389 = vrot.slane %v7387, 7
      %v7390 = vshll.u32 %v7129, 16
      %v7392 = vor.u32 %v7389, %v7390
      %v7393 = vrot.slane %v7389, 4
      %v7395 = vshrl.u32 %v7130, 16
      %v7397 = vrot.slane %v7395, 7
      %v7398 = vshll.u32 %v7130, 16
      %v7400 = vor.u32 %v7397, %v7398
      %v7401 = vsel %vm847, %v7393, %v7400
      %v7402 = vrot.slane %v7397, 4
      %s7451 = scalar_lea.vmem [#allocation4], 12
      %v7452 = vld [vmem:[%s7451] sm:$0xf]
      %v7453 = vsel %vm4300, %v7137, %v7452
      %7454 = vst [vmem:[%s7451] sm:$0xf] %v7453
      %7455 = vst.msk [vmem:[%s7451 + $0x4] sm:$0xf] %vm361, %v7146
      %v7456 = vld [vmem:[%s7451 + $0x8] sm:$0x1]
      %v7457 = vsel %vm372, %v7147, %v7456
      %7458 = vst [vmem:[%s7451 + $0x8] sm:$0x1] %v7457
      %v7459 = vld [vmem:[%s7451 + $0xc] sm:$0xf]
      %v7460 = vsel %vm4300, %v7154, %v7459
      %7461 = vst [vmem:[%s7451 + $0xc] sm:$0xf] %v7460
      %7462 = vst.msk [vmem:[%s7451 + $0x10] sm:$0xf] %vm361, %v7163
      %v7463 = vld [vmem:[%s7451 + $0x14] sm:$0x1]
      %v7464 = vsel %vm372, %v7164, %v7463
      %7465 = vst [vmem:[%s7451 + $0x14] sm:$0x1] %v7464
      %v7466 = vld [vmem:[%s7451 + $0x18] sm:$0xf]
      %v7467 = vsel %vm4300, %v7171, %v7466
      %7468 = vst [vmem:[%s7451 + $0x18] sm:$0xf] %v7467
      %7469 = vst.msk [vmem:[%s7451 + $0x1c] sm:$0xf] %vm361, %v7180
      %v7470 = vld [vmem:[%s7451 + $0x20] sm:$0x1]
      %v7471 = vsel %vm372, %v7181, %v7470
      %7472 = vst [vmem:[%s7451 + $0x20] sm:$0x1] %v7471
      %v7473 = vld [vmem:[%s7451 + $0x24] sm:$0xf]
      %v7474 = vsel %vm4300, %v7188, %v7473
      %7475 = vst [vmem:[%s7451 + $0x24] sm:$0xf] %v7474
      %7476 = vst.msk [vmem:[%s7451 + $0x28] sm:$0xf] %vm361, %v7197
      %v7477 = vld [vmem:[%s7451 + $0x2c] sm:$0x1]
      %v7478 = vsel %vm372, %v7198, %v7477
      %7479 = vst [vmem:[%s7451 + $0x2c] sm:$0x1] %v7478
      %v7480 = vld [vmem:[%s7451 + $0x30] sm:$0xf]
      %v7481 = vsel %vm4300, %v7205, %v7480
      %7482 = vst [vmem:[%s7451 + $0x30] sm:$0xf] %v7481
      %7483 = vst.msk [vmem:[%s7451 + $0x34] sm:$0xf] %vm361, %v7214
      %v7484 = vld [vmem:[%s7451 + $0x38] sm:$0x1]
      %v7485 = vsel %vm372, %v7215, %v7484
      %7486 = vst [vmem:[%s7451 + $0x38] sm:$0x1] %v7485
      %v7487 = vld [vmem:[%s7451 + $0x3c] sm:$0xf]
      %v7488 = vsel %vm4300, %v7222, %v7487
      %7489 = vst [vmem:[%s7451 + $0x3c] sm:$0xf] %v7488
      %7490 = vst.msk [vmem:[%s7451 + $0x40] sm:$0xf] %vm361, %v7231
      %v7491 = vld [vmem:[%s7451 + $0x44] sm:$0x1]
      %v7492 = vsel %vm372, %v7232, %v7491
      %7493 = vst [vmem:[%s7451 + $0x44] sm:$0x1] %v7492
      %v7494 = vld [vmem:[%s7451 + $0x48] sm:$0xf]
      %v7495 = vsel %vm4300, %v7239, %v7494
      %7496 = vst [vmem:[%s7451 + $0x48] sm:$0xf] %v7495
      %7497 = vst.msk [vmem:[%s7451 + $0x4c] sm:$0xf] %vm361, %v7248
      %v7498 = vld [vmem:[%s7451 + $0x50] sm:$0x1]
      %v7499 = vsel %vm372, %v7249, %v7498
      %7500 = vst [vmem:[%s7451 + $0x50] sm:$0x1] %v7499
      %v7501 = vld [vmem:[%s7451 + $0x54] sm:$0xf]
      %v7502 = vsel %vm4300, %v7256, %v7501
      %7503 = vst [vmem:[%s7451 + $0x54] sm:$0xf] %v7502
      %7504 = vst.msk [vmem:[%s7451 + $0x58] sm:$0xf] %vm361, %v7265
      %v7505 = vld [vmem:[%s7451 + $0x5c] sm:$0x1]
      %v7506 = vsel %vm372, %v7266, %v7505
      %7507 = vst [vmem:[%s7451 + $0x5c] sm:$0x1] %v7506
      %v7508 = vld [vmem:[%s7451 + $0x60] sm:$0xf]
      %v7509 = vsel %vm4300, %v7273, %v7508
      %7510 = vst [vmem:[%s7451 + $0x60] sm:$0xf] %v7509
      %7511 = vst.msk [vmem:[%s7451 + $0x64] sm:$0xf] %vm361, %v7282
      %v7512 = vld [vmem:[%s7451 + $0x68] sm:$0x1]
      %v7513 = vsel %vm372, %v7283, %v7512
      %7514 = vst [vmem:[%s7451 + $0x68] sm:$0x1] %v7513
      %v7515 = vld [vmem:[%s7451 + $0x6c] sm:$0xf]
      %v7516 = vsel %vm4300, %v7290, %v7515
      %7517 = vst [vmem:[%s7451 + $0x6c] sm:$0xf] %v7516
      %7518 = vst.msk [vmem:[%s7451 + $0x70] sm:$0xf] %vm361, %v7299
      %v7519 = vld [vmem:[%s7451 + $0x74] sm:$0x1]
      %v7520 = vsel %vm372, %v7300, %v7519
      %7521 = vst [vmem:[%s7451 + $0x74] sm:$0x1] %v7520
      %v7522 = vld [vmem:[%s7451 + $0x78] sm:$0xf]
      %v7523 = vsel %vm4300, %v7307, %v7522
      %7524 = vst [vmem:[%s7451 + $0x78] sm:$0xf] %v7523
      %7525 = vst.msk [vmem:[%s7451 + $0x7c] sm:$0xf] %vm361, %v7316
      %v7526 = vld [vmem:[%s7451 + $0x80] sm:$0x1]
      %v7527 = vsel %vm372, %v7317, %v7526
      %7528 = vst [vmem:[%s7451 + $0x80] sm:$0x1] %v7527
      %v7529 = vld [vmem:[%s7451 + $0x84] sm:$0xf]
      %v7530 = vsel %vm4300, %v7324, %v7529
      %7531 = vst [vmem:[%s7451 + $0x84] sm:$0xf] %v7530
      %7532 = vst.msk [vmem:[%s7451 + $0x88] sm:$0xf] %vm361, %v7333
      %v7533 = vld [vmem:[%s7451 + $0x8c] sm:$0x1]
      %v7534 = vsel %vm372, %v7334, %v7533
      %7535 = vst [vmem:[%s7451 + $0x8c] sm:$0x1] %v7534
      %v7536 = vld [vmem:[%s7451 + $0x90] sm:$0xf]
      %v7537 = vsel %vm4300, %v7341, %v7536
      %7538 = vst [vmem:[%s7451 + $0x90] sm:$0xf] %v7537
      %7539 = vst.msk [vmem:[%s7451 + $0x94] sm:$0xf] %vm361, %v7350
      %v7540 = vld [vmem:[%s7451 + $0x98] sm:$0x1]
      %v7541 = vsel %vm372, %v7351, %v7540
      %7542 = vst [vmem:[%s7451 + $0x98] sm:$0x1] %v7541
      %v7543 = vld [vmem:[%s7451 + $0x9c] sm:$0xf]
      %v7544 = vsel %vm4300, %v7358, %v7543
      %7545 = vst [vmem:[%s7451 + $0x9c] sm:$0xf] %v7544
      %7546 = vst.msk [vmem:[%s7451 + $0xa0] sm:$0xf] %vm361, %v7367
      %v7547 = vld [vmem:[%s7451 + $0xa4] sm:$0x1]
      %v7548 = vsel %vm372, %v7368, %v7547
      %7549 = vst [vmem:[%s7451 + $0xa4] sm:$0x1] %v7548
      %v7550 = vld [vmem:[%s7451 + $0xa8] sm:$0xf]
      %v7551 = vsel %vm4300, %v7375, %v7550
      %7552 = vst [vmem:[%s7451 + $0xa8] sm:$0xf] %v7551
      %7553 = vst.msk [vmem:[%s7451 + $0xac] sm:$0xf] %vm361, %v7384
      %v7554 = vld [vmem:[%s7451 + $0xb0] sm:$0x1]
      %v7555 = vsel %vm372, %v7385, %v7554
      %7556 = vst [vmem:[%s7451 + $0xb0] sm:$0x1] %v7555
      %v7557 = vld [vmem:[%s7451 + $0xb4] sm:$0xf]
      %v7558 = vsel %vm4300, %v7392, %v7557
      %7559 = vst [vmem:[%s7451 + $0xb4] sm:$0xf] %v7558
      %7560 = vst.msk [vmem:[%s7451 + $0xb8] sm:$0xf] %vm361, %v7401
      %v7561 = vld [vmem:[%s7451 + $0xbc] sm:$0x1]
      %v7562 = vsel %vm372, %v7402, %v7561
      %7563 = vst [vmem:[%s7451 + $0xbc] sm:$0x1] %v7562
      %v7564 = vld [vmem:[#allocation4] sm:$0xf]
      %v7565 = vld [vmem:[#allocation4 + $0x4] sm:$0xf]
      %v7566 = vld [vmem:[#allocation4 + $0xc] sm:$0xf]
      %v7567 = vld [vmem:[#allocation4 + $0x10] sm:$0xf]
      %v7568 = vld [vmem:[#allocation4 + $0x18] sm:$0xf]
      %v7569 = vld [vmem:[#allocation4 + $0x1c] sm:$0xf]
      %v7570 = vld [vmem:[#allocation4 + $0x24] sm:$0xf]
      %v7571 = vld [vmem:[#allocation4 + $0x28] sm:$0xf]
      %v7572 = vld [vmem:[#allocation4 + $0x30] sm:$0xf]
      %v7573 = vld [vmem:[#allocation4 + $0x34] sm:$0xf]
      %v7574 = vld [vmem:[#allocation4 + $0x3c] sm:$0xf]
      %v7575 = vld [vmem:[#allocation4 + $0x40] sm:$0xf]
      %v7576 = vld [vmem:[#allocation4 + $0x48] sm:$0xf]
      %v7577 = vld [vmem:[#allocation4 + $0x4c] sm:$0xf]
      %v7578 = vld [vmem:[#allocation4 + $0x54] sm:$0xf]
      %v7579 = vld [vmem:[#allocation4 + $0x58] sm:$0xf]
      %v7580 = vld [vmem:[#allocation4 + $0x60] sm:$0xf]
      %v7581 = vld [vmem:[#allocation4 + $0x64] sm:$0xf]
      %v7582 = vld [vmem:[#allocation4 + $0x6c] sm:$0xf]
      %v7583 = vld [vmem:[#allocation4 + $0x70] sm:$0xf]
      %v7584 = vld [vmem:[#allocation4 + $0x78] sm:$0xf]
      %v7585 = vld [vmem:[#allocation4 + $0x7c] sm:$0xf]
      %v7586 = vld [vmem:[#allocation4 + $0x84] sm:$0xf]
      %v7587 = vld [vmem:[#allocation4 + $0x88] sm:$0xf]
      %v7588 = vld [vmem:[#allocation4 + $0x90] sm:$0xf]
      %v7589 = vld [vmem:[#allocation4 + $0x94] sm:$0xf]
      %v7590 = vld [vmem:[#allocation4 + $0x9c] sm:$0xf]
      %v7591 = vld [vmem:[#allocation4 + $0xa0] sm:$0xf]
      %v7592 = vld [vmem:[#allocation4 + $0xa8] sm:$0xf]
      %v7593 = vld [vmem:[#allocation4 + $0xac] sm:$0xf]
      %v7594 = vld [vmem:[#allocation4 + $0xb4] sm:$0xf]
      %v7595 = vld [vmem:[#allocation4 + $0xb8] sm:$0xf]
      %v7596 = vld [vmem:[#allocation4 + $0x8] sm:$0x1]
      %v7597 = vld [vmem:[#allocation4 + $0x14] sm:$0x1]
      %v7598 = vld [vmem:[#allocation4 + $0x20] sm:$0x1]
      %v7599 = vld [vmem:[#allocation4 + $0x2c] sm:$0x1]
      %v7600 = vld [vmem:[#allocation4 + $0x38] sm:$0x1]
      %v7601 = vld [vmem:[#allocation4 + $0x44] sm:$0x1]
      %v7602 = vld [vmem:[#allocation4 + $0x50] sm:$0x1]
      %v7603 = vld [vmem:[#allocation4 + $0x5c] sm:$0x1]
      %v7604 = vld [vmem:[#allocation4 + $0x68] sm:$0x1]
      %v7605 = vld [vmem:[#allocation4 + $0x74] sm:$0x1]
      %v7606 = vld [vmem:[#allocation4 + $0x80] sm:$0x1]
      %v7607 = vld [vmem:[#allocation4 + $0x8c] sm:$0x1]
      %v7608 = vld [vmem:[#allocation4 + $0x98] sm:$0x1]
      %v7609 = vld [vmem:[#allocation4 + $0xa4] sm:$0x1]
      %v7610 = vld [vmem:[#allocation4 + $0xb0] sm:$0x1]
      %v7611 = vld [vmem:[#allocation4 + $0xbc] sm:$0x1]
      %v7612 = vld [vmem:[#allocation4] sm:$0xe]
      %v7613 = vld [vmem:[#allocation4 + $0xc] sm:$0xe]
      %v7614 = vld [vmem:[#allocation4 + $0x18] sm:$0xe]
      %v7615 = vld [vmem:[#allocation4 + $0x24] sm:$0xe]
      %v7616 = vld [vmem:[#allocation4 + $0x30] sm:$0xe]
      %v7617 = vld [vmem:[#allocation4 + $0x3c] sm:$0xe]
      %v7618 = vld [vmem:[#allocation4 + $0x48] sm:$0xe]
      %v7619 = vld [vmem:[#allocation4 + $0x54] sm:$0xe]
      %v7620 = vld [vmem:[#allocation4 + $0x60] sm:$0xe]
      %v7621 = vld [vmem:[#allocation4 + $0x6c] sm:$0xe]
      %v7622 = vld [vmem:[#allocation4 + $0x78] sm:$0xe]
      %v7623 = vld [vmem:[#allocation4 + $0x84] sm:$0xe]
      %v7624 = vld [vmem:[#allocation4 + $0x90] sm:$0xe]
      %v7625 = vld [vmem:[#allocation4 + $0x9c] sm:$0xe]
      %v7626 = vld [vmem:[#allocation4 + $0xa8] sm:$0xe]
      %v7627 = vld [vmem:[#allocation4 + $0xb4] sm:$0xe]
      %v7660 = vunpack.c.l.b16 %v7564
      %v7661 = vunpack.c.l.b16 %v7565
      %v7662 = vunpack.c.l.b16 %v7566
      %v7663 = vunpack.c.l.b16 %v7567
      %v7664 = vunpack.c.l.b16 %v7568
      %v7665 = vunpack.c.l.b16 %v7569
      %v7666 = vunpack.c.l.b16 %v7570
      %v7667 = vunpack.c.l.b16 %v7571
      %v7668 = vunpack.c.l.b16 %v7572
      %v7669 = vunpack.c.l.b16 %v7573
      %v7670 = vunpack.c.l.b16 %v7574
      %v7671 = vunpack.c.l.b16 %v7575
      %v7672 = vunpack.c.l.b16 %v7576
      %v7673 = vunpack.c.l.b16 %v7577
      %v7674 = vunpack.c.l.b16 %v7578
      %v7675 = vunpack.c.l.b16 %v7579
      %v7676 = vunpack.c.l.b16 %v7580
      %v7677 = vunpack.c.l.b16 %v7581
      %v7678 = vunpack.c.l.b16 %v7582
      %v7679 = vunpack.c.l.b16 %v7583
      %v7680 = vunpack.c.l.b16 %v7584
      %v7681 = vunpack.c.l.b16 %v7585
      %v7682 = vunpack.c.l.b16 %v7586
      %v7683 = vunpack.c.l.b16 %v7587
      %v7684 = vunpack.c.l.b16 %v7588
      %v7685 = vunpack.c.l.b16 %v7589
      %v7686 = vunpack.c.l.b16 %v7590
      %v7687 = vunpack.c.l.b16 %v7591
      %v7688 = vunpack.c.l.b16 %v7592
      %v7689 = vunpack.c.l.b16 %v7593
      %v7690 = vunpack.c.l.b16 %v7594
      %v7691 = vunpack.c.l.b16 %v7595
      %v7692 = vpack.c.b16 %v7661, %v7660
      %v7693 = vpack.c.b16 %v7663, %v7662
      %v7694 = vpack.c.b16 %v7665, %v7664
      %v7695 = vpack.c.b16 %v7667, %v7666
      %v7696 = vpack.c.b16 %v7669, %v7668
      %v7697 = vpack.c.b16 %v7671, %v7670
      %v7698 = vpack.c.b16 %v7673, %v7672
      %v7699 = vpack.c.b16 %v7675, %v7674
      %v7700 = vpack.c.b16 %v7677, %v7676
      %v7701 = vpack.c.b16 %v7679, %v7678
      %v7702 = vpack.c.b16 %v7681, %v7680
      %v7703 = vpack.c.b16 %v7683, %v7682
      %v7704 = vpack.c.b16 %v7685, %v7684
      %v7705 = vpack.c.b16 %v7687, %v7686
      %v7706 = vpack.c.b16 %v7689, %v7688
      %v7707 = vpack.c.b16 %v7691, %v7690
      %v7724 = vunpack.c.l.b16 %v7596
      %v7725 = vunpack.c.l.b16 %v7597
      %v7726 = vunpack.c.l.b16 %v7598
      %v7727 = vunpack.c.l.b16 %v7599
      %v7728 = vunpack.c.l.b16 %v7600
      %v7729 = vunpack.c.l.b16 %v7601
      %v7730 = vunpack.c.l.b16 %v7602
      %v7731 = vunpack.c.l.b16 %v7603
      %v7732 = vunpack.c.l.b16 %v7604
      %v7733 = vunpack.c.l.b16 %v7605
      %v7734 = vunpack.c.l.b16 %v7606
      %v7735 = vunpack.c.l.b16 %v7607
      %v7736 = vunpack.c.l.b16 %v7608
      %v7737 = vunpack.c.l.b16 %v7609
      %v7738 = vunpack.c.l.b16 %v7610
      %v7739 = vunpack.c.l.b16 %v7611
      %v7740 = vpack.c.b16 %v7724, %v7724
      %v7741 = vpack.c.b16 %v7725, %v7725
      %v7742 = vpack.c.b16 %v7726, %v7726
      %v7743 = vpack.c.b16 %v7727, %v7727
      %v7744 = vpack.c.b16 %v7728, %v7728
      %v7745 = vpack.c.b16 %v7729, %v7729
      %v7746 = vpack.c.b16 %v7730, %v7730
      %v7747 = vpack.c.b16 %v7731, %v7731
      %v7748 = vpack.c.b16 %v7732, %v7732
      %v7749 = vpack.c.b16 %v7733, %v7733
      %v7750 = vpack.c.b16 %v7734, %v7734
      %v7751 = vpack.c.b16 %v7735, %v7735
      %v7752 = vpack.c.b16 %v7736, %v7736
      %v7753 = vpack.c.b16 %v7737, %v7737
      %v7754 = vpack.c.b16 %v7738, %v7738
      %v7755 = vpack.c.b16 %v7739, %v7739
      %v7757 = vshrl.u32 %v7692, 16
      %v7759 = vshll.u32 %v7692, 16
      %v7761 = vrot.slane %v7759, 1
      %v7762 = vor.u32 %v7757, %v7761
      %v7764 = vshll.u32 %v7740, 16
      %v7766 = vrot.slane %v7764, 1
      %v7767 = vsel %vm1475, %v7762, %v7766
      %v7769 = vshrl.u32 %v7693, 16
      %v7771 = vshll.u32 %v7693, 16
      %v7773 = vrot.slane %v7771, 1
      %v7774 = vor.u32 %v7769, %v7773
      %v7776 = vshll.u32 %v7741, 16
      %v7778 = vrot.slane %v7776, 1
      %v7779 = vsel %vm1475, %v7774, %v7778
      %v7781 = vshrl.u32 %v7694, 16
      %v7783 = vshll.u32 %v7694, 16
      %v7785 = vrot.slane %v7783, 1
      %v7786 = vor.u32 %v7781, %v7785
      %v7788 = vshll.u32 %v7742, 16
      %v7790 = vrot.slane %v7788, 1
      %v7791 = vsel %vm1475, %v7786, %v7790
      %v7793 = vshrl.u32 %v7695, 16
      %v7795 = vshll.u32 %v7695, 16
      %v7797 = vrot.slane %v7795, 1
      %v7798 = vor.u32 %v7793, %v7797
      %v7800 = vshll.u32 %v7743, 16
      %v7802 = vrot.slane %v7800, 1
      %v7803 = vsel %vm1475, %v7798, %v7802
      %v7805 = vshrl.u32 %v7696, 16
      %v7807 = vshll.u32 %v7696, 16
      %v7809 = vrot.slane %v7807, 1
      %v7810 = vor.u32 %v7805, %v7809
      %v7812 = vshll.u32 %v7744, 16
      %v7814 = vrot.slane %v7812, 1
      %v7815 = vsel %vm1475, %v7810, %v7814
      %v7817 = vshrl.u32 %v7697, 16
      %v7819 = vshll.u32 %v7697, 16
      %v7821 = vrot.slane %v7819, 1
      %v7822 = vor.u32 %v7817, %v7821
      %v7824 = vshll.u32 %v7745, 16
      %v7826 = vrot.slane %v7824, 1
      %v7827 = vsel %vm1475, %v7822, %v7826
      %v7829 = vshrl.u32 %v7698, 16
      %v7831 = vshll.u32 %v7698, 16
      %v7833 = vrot.slane %v7831, 1
      %v7834 = vor.u32 %v7829, %v7833
      %v7836 = vshll.u32 %v7746, 16
      %v7838 = vrot.slane %v7836, 1
      %v7839 = vsel %vm1475, %v7834, %v7838
      %v7841 = vshrl.u32 %v7699, 16
      %v7843 = vshll.u32 %v7699, 16
      %v7845 = vrot.slane %v7843, 1
      %v7846 = vor.u32 %v7841, %v7845
      %v7848 = vshll.u32 %v7747, 16
      %v7850 = vrot.slane %v7848, 1
      %v7851 = vsel %vm1475, %v7846, %v7850
      %v7853 = vshrl.u32 %v7700, 16
      %v7855 = vshll.u32 %v7700, 16
      %v7857 = vrot.slane %v7855, 1
      %v7858 = vor.u32 %v7853, %v7857
      %v7860 = vshll.u32 %v7748, 16
      %v7862 = vrot.slane %v7860, 1
      %v7863 = vsel %vm1475, %v7858, %v7862
      %v7865 = vshrl.u32 %v7701, 16
      %v7867 = vshll.u32 %v7701, 16
      %v7869 = vrot.slane %v7867, 1
      %v7870 = vor.u32 %v7865, %v7869
      %v7872 = vshll.u32 %v7749, 16
      %v7874 = vrot.slane %v7872, 1
      %v7875 = vsel %vm1475, %v7870, %v7874
      %v7877 = vshrl.u32 %v7702, 16
      %v7879 = vshll.u32 %v7702, 16
      %v7881 = vrot.slane %v7879, 1
      %v7882 = vor.u32 %v7877, %v7881
      %v7884 = vshll.u32 %v7750, 16
      %v7886 = vrot.slane %v7884, 1
      %v7887 = vsel %vm1475, %v7882, %v7886
      %v7889 = vshrl.u32 %v7703, 16
      %v7891 = vshll.u32 %v7703, 16
      %v7893 = vrot.slane %v7891, 1
      %v7894 = vor.u32 %v7889, %v7893
      %v7896 = vshll.u32 %v7751, 16
      %v7898 = vrot.slane %v7896, 1
      %v7899 = vsel %vm1475, %v7894, %v7898
      %v7901 = vshrl.u32 %v7704, 16
      %v7903 = vshll.u32 %v7704, 16
      %v7905 = vrot.slane %v7903, 1
      %v7906 = vor.u32 %v7901, %v7905
      %v7908 = vshll.u32 %v7752, 16
      %v7910 = vrot.slane %v7908, 1
      %v7911 = vsel %vm1475, %v7906, %v7910
      %v7913 = vshrl.u32 %v7705, 16
      %v7915 = vshll.u32 %v7705, 16
      %v7917 = vrot.slane %v7915, 1
      %v7918 = vor.u32 %v7913, %v7917
      %v7920 = vshll.u32 %v7753, 16
      %v7922 = vrot.slane %v7920, 1
      %v7923 = vsel %vm1475, %v7918, %v7922
      %v7925 = vshrl.u32 %v7706, 16
      %v7927 = vshll.u32 %v7706, 16
      %v7929 = vrot.slane %v7927, 1
      %v7930 = vor.u32 %v7925, %v7929
      %v7932 = vshll.u32 %v7754, 16
      %v7934 = vrot.slane %v7932, 1
      %v7935 = vsel %vm1475, %v7930, %v7934
      %v7937 = vshrl.u32 %v7707, 16
      %v7939 = vshll.u32 %v7707, 16
      %v7941 = vrot.slane %v7939, 1
      %v7942 = vor.u32 %v7937, %v7941
      %v7944 = vshll.u32 %v7755, 16
      %v7946 = vrot.slane %v7944, 1
      %v7947 = vsel %vm1475, %v7942, %v7946
      %7948 = vrot.lane.b32.xlu0 %v7767, 16
      %v7949 = vpop.permute.xlu0 %7948
      %7950 = vrot.lane.b32.xlu0 %v7779, 16
      %v7951 = vpop.permute.xlu0 %7950
      %7952 = vrot.lane.b32.xlu0 %v7791, 16
      %v7953 = vpop.permute.xlu0 %7952
      %7954 = vrot.lane.b32.xlu0 %v7803, 16
      %v7955 = vpop.permute.xlu0 %7954
      %7956 = vrot.lane.b32.xlu0 %v7815, 16
      %v7957 = vpop.permute.xlu0 %7956
      %7958 = vrot.lane.b32.xlu0 %v7827, 16
      %v7959 = vpop.permute.xlu0 %7958
      %7960 = vrot.lane.b32.xlu0 %v7839, 16
      %v7961 = vpop.permute.xlu0 %7960
      %7962 = vrot.lane.b32.xlu0 %v7851, 16
      %v7963 = vpop.permute.xlu0 %7962
      %7964 = vrot.lane.b32.xlu0 %v7863, 16
      %v7965 = vpop.permute.xlu0 %7964
      %7966 = vrot.lane.b32.xlu0 %v7875, 16
      %v7967 = vpop.permute.xlu0 %7966
      %7968 = vrot.lane.b32.xlu0 %v7887, 16
      %v7969 = vpop.permute.xlu0 %7968
      %7970 = vrot.lane.b32.xlu0 %v7899, 16
      %v7971 = vpop.permute.xlu0 %7970
      %7972 = vrot.lane.b32.xlu0 %v7911, 16
      %v7973 = vpop.permute.xlu0 %7972
      %7974 = vrot.lane.b32.xlu0 %v7923, 16
      %v7975 = vpop.permute.xlu0 %7974
      %7976 = vrot.lane.b32.xlu0 %v7935, 16
      %v7977 = vpop.permute.xlu0 %7976
      %7978 = vrot.lane.b32.xlu0 %v7947, 16
      %v7979 = vpop.permute.xlu0 %7978
      %v7996 = vunpack.c.l.b16 %v7612
      %v7997 = vunpack.c.l.b16 %v7613
      %v7998 = vunpack.c.l.b16 %v7614
      %v7999 = vunpack.c.l.b16 %v7615
      %v8000 = vunpack.c.l.b16 %v7616
      %v8001 = vunpack.c.l.b16 %v7617
      %v8002 = vunpack.c.l.b16 %v7618
      %v8003 = vunpack.c.l.b16 %v7619
      %v8004 = vunpack.c.l.b16 %v7620
      %v8005 = vunpack.c.l.b16 %v7621
      %v8006 = vunpack.c.l.b16 %v7622
      %v8007 = vunpack.c.l.b16 %v7623
      %v8008 = vunpack.c.l.b16 %v7624
      %v8009 = vunpack.c.l.b16 %v7625
      %v8010 = vunpack.c.l.b16 %v7626
      %v8011 = vunpack.c.l.b16 %v7627
      %v8012 = vpack.c.b16 %v7661, %v7996
      %v8013 = vpack.c.b16 %v7663, %v7997
      %v8014 = vpack.c.b16 %v7665, %v7998
      %v8015 = vpack.c.b16 %v7667, %v7999
      %v8016 = vpack.c.b16 %v7669, %v8000
      %v8017 = vpack.c.b16 %v7671, %v8001
      %v8018 = vpack.c.b16 %v7673, %v8002
      %v8019 = vpack.c.b16 %v7675, %v8003
      %v8020 = vpack.c.b16 %v7677, %v8004
      %v8021 = vpack.c.b16 %v7679, %v8005
      %v8022 = vpack.c.b16 %v7681, %v8006
      %v8023 = vpack.c.b16 %v7683, %v8007
      %v8024 = vpack.c.b16 %v7685, %v8008
      %v8025 = vpack.c.b16 %v7687, %v8009
      %v8026 = vpack.c.b16 %v7689, %v8010
      %v8027 = vpack.c.b16 %v7691, %v8011
      %v8028 = vrot.slane %v8012, 1
      %v8029 = vrot.slane %v7740, 1
      %v8030 = vsel %vm1748, %v8028, %v8029
      %v8031 = vrot.slane %v8013, 1
      %v8032 = vrot.slane %v7741, 1
      %v8033 = vsel %vm1748, %v8031, %v8032
      %v8034 = vrot.slane %v8014, 1
      %v8035 = vrot.slane %v7742, 1
      %v8036 = vsel %vm1748, %v8034, %v8035
      %v8037 = vrot.slane %v8015, 1
      %v8038 = vrot.slane %v7743, 1
      %v8039 = vsel %vm1748, %v8037, %v8038
      %v8040 = vrot.slane %v8016, 1
      %v8041 = vrot.slane %v7744, 1
      %v8042 = vsel %vm1748, %v8040, %v8041
      %v8043 = vrot.slane %v8017, 1
      %v8044 = vrot.slane %v7745, 1
      %v8045 = vsel %vm1748, %v8043, %v8044
      %v8046 = vrot.slane %v8018, 1
      %v8047 = vrot.slane %v7746, 1
      %v8048 = vsel %vm1748, %v8046, %v8047
      %v8049 = vrot.slane %v8019, 1
      %v8050 = vrot.slane %v7747, 1
      %v8051 = vsel %vm1748, %v8049, %v8050
      %v8052 = vrot.slane %v8020, 1
      %v8053 = vrot.slane %v7748, 1
      %v8054 = vsel %vm1748, %v8052, %v8053
      %v8055 = vrot.slane %v8021, 1
      %v8056 = vrot.slane %v7749, 1
      %v8057 = vsel %vm1748, %v8055, %v8056
      %v8058 = vrot.slane %v8022, 1
      %v8059 = vrot.slane %v7750, 1
      %v8060 = vsel %vm1748, %v8058, %v8059
      %v8061 = vrot.slane %v8023, 1
      %v8062 = vrot.slane %v7751, 1
      %v8063 = vsel %vm1748, %v8061, %v8062
      %v8064 = vrot.slane %v8024, 1
      %v8065 = vrot.slane %v7752, 1
      %v8066 = vsel %vm1748, %v8064, %v8065
      %v8067 = vrot.slane %v8025, 1
      %v8068 = vrot.slane %v7753, 1
      %v8069 = vsel %vm1748, %v8067, %v8068
      %v8070 = vrot.slane %v8026, 1
      %v8071 = vrot.slane %v7754, 1
      %v8072 = vsel %vm1748, %v8070, %v8071
      %v8073 = vrot.slane %v8027, 1
      %v8074 = vrot.slane %v7755, 1
      %v8075 = vsel %vm1748, %v8073, %v8074
      %8076 = vrot.lane.b32.xlu0 %v8030, 32
      %v8077 = vpop.permute.xlu0 %8076
      %8078 = vrot.lane.b32.xlu0 %v8033, 32
      %v8079 = vpop.permute.xlu0 %8078
      %8080 = vrot.lane.b32.xlu0 %v8036, 32
      %v8081 = vpop.permute.xlu0 %8080
      %8082 = vrot.lane.b32.xlu0 %v8039, 32
      %v8083 = vpop.permute.xlu0 %8082
      %8084 = vrot.lane.b32.xlu0 %v8042, 32
      %v8085 = vpop.permute.xlu0 %8084
      %8086 = vrot.lane.b32.xlu0 %v8045, 32
      %v8087 = vpop.permute.xlu0 %8086
      %8088 = vrot.lane.b32.xlu0 %v8048, 32
      %v8089 = vpop.permute.xlu0 %8088
      %8090 = vrot.lane.b32.xlu0 %v8051, 32
      %v8091 = vpop.permute.xlu0 %8090
      %8092 = vrot.lane.b32.xlu0 %v8054, 32
      %v8093 = vpop.permute.xlu0 %8092
      %8094 = vrot.lane.b32.xlu0 %v8057, 32
      %v8095 = vpop.permute.xlu0 %8094
      %8096 = vrot.lane.b32.xlu0 %v8060, 32
      %v8097 = vpop.permute.xlu0 %8096
      %8098 = vrot.lane.b32.xlu0 %v8063, 32
      %v8099 = vpop.permute.xlu0 %8098
      %8100 = vrot.lane.b32.xlu0 %v8066, 32
      %v8101 = vpop.permute.xlu0 %8100
      %8102 = vrot.lane.b32.xlu0 %v8069, 32
      %v8103 = vpop.permute.xlu0 %8102
      %8104 = vrot.lane.b32.xlu0 %v8072, 32
      %v8105 = vpop.permute.xlu0 %8104
      %8106 = vrot.lane.b32.xlu0 %v8075, 32
      %v8107 = vpop.permute.xlu0 %8106
      %v8109 = vsel %vm1862, %v7692, %v7949
      %v8111 = vsel %vm1862, %v7693, %v7951
      %v8113 = vsel %vm1862, %v7694, %v7953
      %v8115 = vsel %vm1862, %v7695, %v7955
      %v8117 = vsel %vm1862, %v7696, %v7957
      %v8119 = vsel %vm1862, %v7697, %v7959
      %v8121 = vsel %vm1862, %v7698, %v7961
      %v8123 = vsel %vm1862, %v7699, %v7963
      %v8125 = vsel %vm1862, %v7700, %v7965
      %v8127 = vsel %vm1862, %v7701, %v7967
      %v8129 = vsel %vm1862, %v7702, %v7969
      %v8131 = vsel %vm1862, %v7703, %v7971
      %v8133 = vsel %vm1862, %v7704, %v7973
      %v8135 = vsel %vm1862, %v7705, %v7975
      %v8137 = vsel %vm1862, %v7706, %v7977
      %v8139 = vsel %vm1862, %v7707, %v7979
      %v8141 = vsel %vm4989, %v8109, %v8077
      %v8143 = vsel %vm4989, %v8111, %v8079
      %v8145 = vsel %vm4989, %v8113, %v8081
      %v8147 = vsel %vm4989, %v8115, %v8083
      %v8149 = vsel %vm4989, %v8117, %v8085
      %v8151 = vsel %vm4989, %v8119, %v8087
      %v8153 = vsel %vm4989, %v8121, %v8089
      %v8155 = vsel %vm4989, %v8123, %v8091
      %v8157 = vsel %vm4989, %v8125, %v8093
      %v8159 = vsel %vm4989, %v8127, %v8095
      %v8161 = vsel %vm4989, %v8129, %v8097
      %v8163 = vsel %vm4989, %v8131, %v8099
      %v8165 = vsel %vm4989, %v8133, %v8101
      %v8167 = vsel %vm4989, %v8135, %v8103
      %v8169 = vsel %vm4989, %v8137, %v8105
      %v8171 = vsel %vm4989, %v8139, %v8107
      %v8172 = vld [vmem:[%s7] sm:$0xf]
      %v8173 = vld [vmem:[%s7 + $0x4] sm:$0xf]
      %v8174 = vld [vmem:[%s7 + $0x8] sm:$0xf]
      %v8175 = vld [vmem:[%s7 + $0xc] sm:$0xf]
      %v8176 = vld [vmem:[%s7 + $0x10] sm:$0xf]
      %v8177 = vld [vmem:[%s7 + $0x14] sm:$0xf]
      %v8178 = vld [vmem:[%s7451] sm:$0xf]
      %v8179 = vld [vmem:[%s7451 + $0x4] sm:$0xf]
      %v8180 = vld [vmem:[%s7451 + $0xc] sm:$0xf]
      %v8181 = vld [vmem:[%s7451 + $0x10] sm:$0xf]
      %v8182 = vld [vmem:[%s7451 + $0x18] sm:$0xf]
      %v8183 = vld [vmem:[%s7451 + $0x1c] sm:$0xf]
      %v8184 = vld [vmem:[%s7451 + $0x24] sm:$0xf]
      %v8185 = vld [vmem:[%s7451 + $0x28] sm:$0xf]
      %v8186 = vld [vmem:[%s7451 + $0x30] sm:$0xf]
      %v8187 = vld [vmem:[%s7451 + $0x34] sm:$0xf]
      %v8188 = vld [vmem:[%s7451 + $0x3c] sm:$0xf]
      %v8189 = vld [vmem:[%s7451 + $0x40] sm:$0xf]
      %v8190 = vld [vmem:[%s7451 + $0x48] sm:$0xf]
      %v8191 = vld [vmem:[%s7451 + $0x4c] sm:$0xf]
      %v8192 = vld [vmem:[%s7451 + $0x54] sm:$0xf]
      %v8193 = vld [vmem:[%s7451 + $0x58] sm:$0xf]
      %v8194 = vld [vmem:[%s7451 + $0x60] sm:$0xf]
      %v8195 = vld [vmem:[%s7451 + $0x64] sm:$0xf]
      %v8196 = vld [vmem:[%s7451 + $0x6c] sm:$0xf]
      %v8197 = vld [vmem:[%s7451 + $0x70] sm:$0xf]
      %v8198 = vld [vmem:[%s7451 + $0x78] sm:$0xf]
      %v8199 = vld [vmem:[%s7451 + $0x7c] sm:$0xf]
      %v8200 = vld [vmem:[%s7451 + $0x84] sm:$0xf]
      %v8201 = vld [vmem:[%s7451 + $0x88] sm:$0xf]
      %v8202 = vld [vmem:[%s7451 + $0x90] sm:$0xf]
      %v8203 = vld [vmem:[%s7451 + $0x94] sm:$0xf]
      %v8204 = vld [vmem:[%s7451 + $0x9c] sm:$0xf]
      %v8205 = vld [vmem:[%s7451 + $0xa0] sm:$0xf]
      %v8206 = vld [vmem:[%s7451 + $0xa8] sm:$0xf]
      %v8207 = vld [vmem:[%s7451 + $0xac] sm:$0xf]
      %v8208 = vld [vmem:[%s7451 + $0xb4] sm:$0xf]
      %v8209 = vld [vmem:[%s7451 + $0xb8] sm:$0xf]
      %v8210 = vld [vmem:[%s7451 + $0x8] sm:$0x1]
      %v8211 = vld [vmem:[%s7451 + $0x14] sm:$0x1]
      %v8212 = vld [vmem:[%s7451 + $0x20] sm:$0x1]
      %v8213 = vld [vmem:[%s7451 + $0x2c] sm:$0x1]
      %v8214 = vld [vmem:[%s7451 + $0x38] sm:$0x1]
      %v8215 = vld [vmem:[%s7451 + $0x44] sm:$0x1]
      %v8216 = vld [vmem:[%s7451 + $0x50] sm:$0x1]
      %v8217 = vld [vmem:[%s7451 + $0x5c] sm:$0x1]
      %v8218 = vld [vmem:[%s7451 + $0x68] sm:$0x1]
      %v8219 = vld [vmem:[%s7451 + $0x74] sm:$0x1]
      %v8220 = vld [vmem:[%s7451 + $0x80] sm:$0x1]
      %v8221 = vld [vmem:[%s7451 + $0x8c] sm:$0x1]
      %v8222 = vld [vmem:[%s7451 + $0x98] sm:$0x1]
      %v8223 = vld [vmem:[%s7451 + $0xa4] sm:$0x1]
      %v8224 = vld [vmem:[%s7451 + $0xb0] sm:$0x1]
      %v8225 = vld [vmem:[%s7451 + $0xbc] sm:$0x1]
      %v8226 = vld [vmem:[%s7451] sm:$0xe]
      %v8227 = vld [vmem:[%s7451 + $0xc] sm:$0xe]
      %v8228 = vld [vmem:[%s7451 + $0x18] sm:$0xe]
      %v8229 = vld [vmem:[%s7451 + $0x24] sm:$0xe]
      %v8230 = vld [vmem:[%s7451 + $0x30] sm:$0xe]
      %v8231 = vld [vmem:[%s7451 + $0x3c] sm:$0xe]
      %v8232 = vld [vmem:[%s7451 + $0x48] sm:$0xe]
      %v8233 = vld [vmem:[%s7451 + $0x54] sm:$0xe]
      %v8234 = vld [vmem:[%s7451 + $0x60] sm:$0xe]
      %v8235 = vld [vmem:[%s7451 + $0x6c] sm:$0xe]
      %v8236 = vld [vmem:[%s7451 + $0x78] sm:$0xe]
      %v8237 = vld [vmem:[%s7451 + $0x84] sm:$0xe]
      %v8238 = vld [vmem:[%s7451 + $0x90] sm:$0xe]
      %v8239 = vld [vmem:[%s7451 + $0x9c] sm:$0xe]
      %v8240 = vld [vmem:[%s7451 + $0xa8] sm:$0xe]
      %v8241 = vld [vmem:[%s7451 + $0xb4] sm:$0xe]
      %v8274 = vunpack.c.l.b16 %v8178
      %v8275 = vunpack.c.l.b16 %v8179
      %v8276 = vunpack.c.l.b16 %v8180
      %v8277 = vunpack.c.l.b16 %v8181
      %v8278 = vunpack.c.l.b16 %v8182
      %v8279 = vunpack.c.l.b16 %v8183
      %v8280 = vunpack.c.l.b16 %v8184
      %v8281 = vunpack.c.l.b16 %v8185
      %v8282 = vunpack.c.l.b16 %v8186
      %v8283 = vunpack.c.l.b16 %v8187
      %v8284 = vunpack.c.l.b16 %v8188
      %v8285 = vunpack.c.l.b16 %v8189
      %v8286 = vunpack.c.l.b16 %v8190
      %v8287 = vunpack.c.l.b16 %v8191
      %v8288 = vunpack.c.l.b16 %v8192
      %v8289 = vunpack.c.l.b16 %v8193
      %v8290 = vunpack.c.l.b16 %v8194
      %v8291 = vunpack.c.l.b16 %v8195
      %v8292 = vunpack.c.l.b16 %v8196
      %v8293 = vunpack.c.l.b16 %v8197
      %v8294 = vunpack.c.l.b16 %v8198
      %v8295 = vunpack.c.l.b16 %v8199
      %v8296 = vunpack.c.l.b16 %v8200
      %v8297 = vunpack.c.l.b16 %v8201
      %v8298 = vunpack.c.l.b16 %v8202
      %v8299 = vunpack.c.l.b16 %v8203
      %v8300 = vunpack.c.l.b16 %v8204
      %v8301 = vunpack.c.l.b16 %v8205
      %v8302 = vunpack.c.l.b16 %v8206
      %v8303 = vunpack.c.l.b16 %v8207
      %v8304 = vunpack.c.l.b16 %v8208
      %v8305 = vunpack.c.l.b16 %v8209
      %v8306 = vpack.c.b16 %v8275, %v8274
      %v8307 = vpack.c.b16 %v8277, %v8276
      %v8308 = vpack.c.b16 %v8279, %v8278
      %v8309 = vpack.c.b16 %v8281, %v8280
      %v8310 = vpack.c.b16 %v8283, %v8282
      %v8311 = vpack.c.b16 %v8285, %v8284
      %v8312 = vpack.c.b16 %v8287, %v8286
      %v8313 = vpack.c.b16 %v8289, %v8288
      %v8314 = vpack.c.b16 %v8291, %v8290
      %v8315 = vpack.c.b16 %v8293, %v8292
      %v8316 = vpack.c.b16 %v8295, %v8294
      %v8317 = vpack.c.b16 %v8297, %v8296
      %v8318 = vpack.c.b16 %v8299, %v8298
      %v8319 = vpack.c.b16 %v8301, %v8300
      %v8320 = vpack.c.b16 %v8303, %v8302
      %v8321 = vpack.c.b16 %v8305, %v8304
      %v8338 = vunpack.c.l.b16 %v8210
      %v8339 = vunpack.c.l.b16 %v8211
      %v8340 = vunpack.c.l.b16 %v8212
      %v8341 = vunpack.c.l.b16 %v8213
      %v8342 = vunpack.c.l.b16 %v8214
      %v8343 = vunpack.c.l.b16 %v8215
      %v8344 = vunpack.c.l.b16 %v8216
      %v8345 = vunpack.c.l.b16 %v8217
      %v8346 = vunpack.c.l.b16 %v8218
      %v8347 = vunpack.c.l.b16 %v8219
      %v8348 = vunpack.c.l.b16 %v8220
      %v8349 = vunpack.c.l.b16 %v8221
      %v8350 = vunpack.c.l.b16 %v8222
      %v8351 = vunpack.c.l.b16 %v8223
      %v8352 = vunpack.c.l.b16 %v8224
      %v8353 = vunpack.c.l.b16 %v8225
      %v8354 = vpack.c.b16 %v8338, %v8338
      %v8355 = vpack.c.b16 %v8339, %v8339
      %v8356 = vpack.c.b16 %v8340, %v8340
      %v8357 = vpack.c.b16 %v8341, %v8341
      %v8358 = vpack.c.b16 %v8342, %v8342
      %v8359 = vpack.c.b16 %v8343, %v8343
      %v8360 = vpack.c.b16 %v8344, %v8344
      %v8361 = vpack.c.b16 %v8345, %v8345
      %v8362 = vpack.c.b16 %v8346, %v8346
      %v8363 = vpack.c.b16 %v8347, %v8347
      %v8364 = vpack.c.b16 %v8348, %v8348
      %v8365 = vpack.c.b16 %v8349, %v8349
      %v8366 = vpack.c.b16 %v8350, %v8350
      %v8367 = vpack.c.b16 %v8351, %v8351
      %v8368 = vpack.c.b16 %v8352, %v8352
      %v8369 = vpack.c.b16 %v8353, %v8353
      %v8371 = vshrl.u32 %v8306, 16
      %v8373 = vshll.u32 %v8306, 16
      %v8375 = vrot.slane %v8373, 1
      %v8376 = vor.u32 %v8371, %v8375
      %v8378 = vshll.u32 %v8354, 16
      %v8380 = vrot.slane %v8378, 1
      %v8381 = vsel %vm1475, %v8376, %v8380
      %v8383 = vshrl.u32 %v8307, 16
      %v8385 = vshll.u32 %v8307, 16
      %v8387 = vrot.slane %v8385, 1
      %v8388 = vor.u32 %v8383, %v8387
      %v8390 = vshll.u32 %v8355, 16
      %v8392 = vrot.slane %v8390, 1
      %v8393 = vsel %vm1475, %v8388, %v8392
      %v8395 = vshrl.u32 %v8308, 16
      %v8397 = vshll.u32 %v8308, 16
      %v8399 = vrot.slane %v8397, 1
      %v8400 = vor.u32 %v8395, %v8399
      %v8402 = vshll.u32 %v8356, 16
      %v8404 = vrot.slane %v8402, 1
      %v8405 = vsel %vm1475, %v8400, %v8404
      %v8407 = vshrl.u32 %v8309, 16
      %v8409 = vshll.u32 %v8309, 16
      %v8411 = vrot.slane %v8409, 1
      %v8412 = vor.u32 %v8407, %v8411
      %v8414 = vshll.u32 %v8357, 16
      %v8416 = vrot.slane %v8414, 1
      %v8417 = vsel %vm1475, %v8412, %v8416
      %v8419 = vshrl.u32 %v8310, 16
      %v8421 = vshll.u32 %v8310, 16
      %v8423 = vrot.slane %v8421, 1
      %v8424 = vor.u32 %v8419, %v8423
      %v8426 = vshll.u32 %v8358, 16
      %v8428 = vrot.slane %v8426, 1
      %v8429 = vsel %vm1475, %v8424, %v8428
      %v8431 = vshrl.u32 %v8311, 16
      %v8433 = vshll.u32 %v8311, 16
      %v8435 = vrot.slane %v8433, 1
      %v8436 = vor.u32 %v8431, %v8435
      %v8438 = vshll.u32 %v8359, 16
      %v8440 = vrot.slane %v8438, 1
      %v8441 = vsel %vm1475, %v8436, %v8440
      %v8443 = vshrl.u32 %v8312, 16
      %v8445 = vshll.u32 %v8312, 16
      %v8447 = vrot.slane %v8445, 1
      %v8448 = vor.u32 %v8443, %v8447
      %v8450 = vshll.u32 %v8360, 16
      %v8452 = vrot.slane %v8450, 1
      %v8453 = vsel %vm1475, %v8448, %v8452
      %v8455 = vshrl.u32 %v8313, 16
      %v8457 = vshll.u32 %v8313, 16
      %v8459 = vrot.slane %v8457, 1
      %v8460 = vor.u32 %v8455, %v8459
      %v8462 = vshll.u32 %v8361, 16
      %v8464 = vrot.slane %v8462, 1
      %v8465 = vsel %vm1475, %v8460, %v8464
      %v8467 = vshrl.u32 %v8314, 16
      %v8469 = vshll.u32 %v8314, 16
      %v8471 = vrot.slane %v8469, 1
      %v8472 = vor.u32 %v8467, %v8471
      %v8474 = vshll.u32 %v8362, 16
      %v8476 = vrot.slane %v8474, 1
      %v8477 = vsel %vm1475, %v8472, %v8476
      %v8479 = vshrl.u32 %v8315, 16
      %v8481 = vshll.u32 %v8315, 16
      %v8483 = vrot.slane %v8481, 1
      %v8484 = vor.u32 %v8479, %v8483
      %v8486 = vshll.u32 %v8363, 16
      %v8488 = vrot.slane %v8486, 1
      %v8489 = vsel %vm1475, %v8484, %v8488
      %v8491 = vshrl.u32 %v8316, 16
      %v8493 = vshll.u32 %v8316, 16
      %v8495 = vrot.slane %v8493, 1
      %v8496 = vor.u32 %v8491, %v8495
      %v8498 = vshll.u32 %v8364, 16
      %v8500 = vrot.slane %v8498, 1
      %v8501 = vsel %vm1475, %v8496, %v8500
      %v8503 = vshrl.u32 %v8317, 16
      %v8505 = vshll.u32 %v8317, 16
      %v8507 = vrot.slane %v8505, 1
      %v8508 = vor.u32 %v8503, %v8507
      %v8510 = vshll.u32 %v8365, 16
      %v8512 = vrot.slane %v8510, 1
      %v8513 = vsel %vm1475, %v8508, %v8512
      %v8515 = vshrl.u32 %v8318, 16
      %v8517 = vshll.u32 %v8318, 16
      %v8519 = vrot.slane %v8517, 1
      %v8520 = vor.u32 %v8515, %v8519
      %v8522 = vshll.u32 %v8366, 16
      %v8524 = vrot.slane %v8522, 1
      %v8525 = vsel %vm1475, %v8520, %v8524
      %v8527 = vshrl.u32 %v8319, 16
      %v8529 = vshll.u32 %v8319, 16
      %v8531 = vrot.slane %v8529, 1
      %v8532 = vor.u32 %v8527, %v8531
      %v8534 = vshll.u32 %v8367, 16
      %v8536 = vrot.slane %v8534, 1
      %v8537 = vsel %vm1475, %v8532, %v8536
      %v8539 = vshrl.u32 %v8320, 16
      %v8541 = vshll.u32 %v8320, 16
      %v8543 = vrot.slane %v8541, 1
      %v8544 = vor.u32 %v8539, %v8543
      %v8546 = vshll.u32 %v8368, 16
      %v8548 = vrot.slane %v8546, 1
      %v8549 = vsel %vm1475, %v8544, %v8548
      %v8551 = vshrl.u32 %v8321, 16
      %v8553 = vshll.u32 %v8321, 16
      %v8555 = vrot.slane %v8553, 1
      %v8556 = vor.u32 %v8551, %v8555
      %v8558 = vshll.u32 %v8369, 16
      %v8560 = vrot.slane %v8558, 1
      %v8561 = vsel %vm1475, %v8556, %v8560
      %8562 = vrot.lane.b32.xlu0 %v8381, 16
      %v8563 = vpop.permute.xlu0 %8562
      %8564 = vrot.lane.b32.xlu0 %v8393, 16
      %v8565 = vpop.permute.xlu0 %8564
      %8566 = vrot.lane.b32.xlu0 %v8405, 16
      %v8567 = vpop.permute.xlu0 %8566
      %8568 = vrot.lane.b32.xlu0 %v8417, 16
      %v8569 = vpop.permute.xlu0 %8568
      %8570 = vrot.lane.b32.xlu0 %v8429, 16
      %v8571 = vpop.permute.xlu0 %8570
      %8572 = vrot.lane.b32.xlu0 %v8441, 16
      %v8573 = vpop.permute.xlu0 %8572
      %8574 = vrot.lane.b32.xlu0 %v8453, 16
      %v8575 = vpop.permute.xlu0 %8574
      %8576 = vrot.lane.b32.xlu0 %v8465, 16
      %v8577 = vpop.permute.xlu0 %8576
      %8578 = vrot.lane.b32.xlu0 %v8477, 16
      %v8579 = vpop.permute.xlu0 %8578
      %8580 = vrot.lane.b32.xlu0 %v8489, 16
      %v8581 = vpop.permute.xlu0 %8580
      %8582 = vrot.lane.b32.xlu0 %v8501, 16
      %v8583 = vpop.permute.xlu0 %8582
      %8584 = vrot.lane.b32.xlu0 %v8513, 16
      %v8585 = vpop.permute.xlu0 %8584
      %8586 = vrot.lane.b32.xlu0 %v8525, 16
      %v8587 = vpop.permute.xlu0 %8586
      %8588 = vrot.lane.b32.xlu0 %v8537, 16
      %v8589 = vpop.permute.xlu0 %8588
      %8590 = vrot.lane.b32.xlu0 %v8549, 16
      %v8591 = vpop.permute.xlu0 %8590
      %8592 = vrot.lane.b32.xlu0 %v8561, 16
      %v8593 = vpop.permute.xlu0 %8592
      %v8610 = vunpack.c.l.b16 %v8226
      %v8611 = vunpack.c.l.b16 %v8227
      %v8612 = vunpack.c.l.b16 %v8228
      %v8613 = vunpack.c.l.b16 %v8229
      %v8614 = vunpack.c.l.b16 %v8230
      %v8615 = vunpack.c.l.b16 %v8231
      %v8616 = vunpack.c.l.b16 %v8232
      %v8617 = vunpack.c.l.b16 %v8233
      %v8618 = vunpack.c.l.b16 %v8234
      %v8619 = vunpack.c.l.b16 %v8235
      %v8620 = vunpack.c.l.b16 %v8236
      %v8621 = vunpack.c.l.b16 %v8237
      %v8622 = vunpack.c.l.b16 %v8238
      %v8623 = vunpack.c.l.b16 %v8239
      %v8624 = vunpack.c.l.b16 %v8240
      %v8625 = vunpack.c.l.b16 %v8241
      %v8626 = vpack.c.b16 %v8275, %v8610
      %v8627 = vpack.c.b16 %v8277, %v8611
      %v8628 = vpack.c.b16 %v8279, %v8612
      %v8629 = vpack.c.b16 %v8281, %v8613
      %v8630 = vpack.c.b16 %v8283, %v8614
      %v8631 = vpack.c.b16 %v8285, %v8615
      %v8632 = vpack.c.b16 %v8287, %v8616
      %v8633 = vpack.c.b16 %v8289, %v8617
      %v8634 = vpack.c.b16 %v8291, %v8618
      %v8635 = vpack.c.b16 %v8293, %v8619
      %v8636 = vpack.c.b16 %v8295, %v8620
      %v8637 = vpack.c.b16 %v8297, %v8621
      %v8638 = vpack.c.b16 %v8299, %v8622
      %v8639 = vpack.c.b16 %v8301, %v8623
      %v8640 = vpack.c.b16 %v8303, %v8624
      %v8641 = vpack.c.b16 %v8305, %v8625
      %v8642 = vrot.slane %v8626, 1
      %v8643 = vrot.slane %v8354, 1
      %v8644 = vsel %vm1748, %v8642, %v8643
      %v8645 = vrot.slane %v8627, 1
      %v8646 = vrot.slane %v8355, 1
      %v8647 = vsel %vm1748, %v8645, %v8646
      %v8648 = vrot.slane %v8628, 1
      %v8649 = vrot.slane %v8356, 1
      %v8650 = vsel %vm1748, %v8648, %v8649
      %v8651 = vrot.slane %v8629, 1
      %v8652 = vrot.slane %v8357, 1
      %v8653 = vsel %vm1748, %v8651, %v8652
      %v8654 = vrot.slane %v8630, 1
      %v8655 = vrot.slane %v8358, 1
      %v8656 = vsel %vm1748, %v8654, %v8655
      %v8657 = vrot.slane %v8631, 1
      %v8658 = vrot.slane %v8359, 1
      %v8659 = vsel %vm1748, %v8657, %v8658
      %v8660 = vrot.slane %v8632, 1
      %v8661 = vrot.slane %v8360, 1
      %v8662 = vsel %vm1748, %v8660, %v8661
      %v8663 = vrot.slane %v8633, 1
      %v8664 = vrot.slane %v8361, 1
      %v8665 = vsel %vm1748, %v8663, %v8664
      %v8666 = vrot.slane %v8634, 1
      %v8667 = vrot.slane %v8362, 1
      %v8668 = vsel %vm1748, %v8666, %v8667
      %v8669 = vrot.slane %v8635, 1
      %v8670 = vrot.slane %v8363, 1
      %v8671 = vsel %vm1748, %v8669, %v8670
      %v8672 = vrot.slane %v8636, 1
      %v8673 = vrot.slane %v8364, 1
      %v8674 = vsel %vm1748, %v8672, %v8673
      %v8675 = vrot.slane %v8637, 1
      %v8676 = vrot.slane %v8365, 1
      %v8677 = vsel %vm1748, %v8675, %v8676
      %v8678 = vrot.slane %v8638, 1
      %v8679 = vrot.slane %v8366, 1
      %v8680 = vsel %vm1748, %v8678, %v8679
      %v8681 = vrot.slane %v8639, 1
      %v8682 = vrot.slane %v8367, 1
      %v8683 = vsel %vm1748, %v8681, %v8682
      %v8684 = vrot.slane %v8640, 1
      %v8685 = vrot.slane %v8368, 1
      %v8686 = vsel %vm1748, %v8684, %v8685
      %v8687 = vrot.slane %v8641, 1
      %v8688 = vrot.slane %v8369, 1
      %v8689 = vsel %vm1748, %v8687, %v8688
      %8690 = vrot.lane.b32.xlu0 %v8644, 32
      %v8691 = vpop.permute.xlu0 %8690
      %8692 = vrot.lane.b32.xlu0 %v8647, 32
      %v8693 = vpop.permute.xlu0 %8692
      %8694 = vrot.lane.b32.xlu0 %v8650, 32
      %v8695 = vpop.permute.xlu0 %8694
      %8696 = vrot.lane.b32.xlu0 %v8653, 32
      %v8697 = vpop.permute.xlu0 %8696
      %8698 = vrot.lane.b32.xlu0 %v8656, 32
      %v8699 = vpop.permute.xlu0 %8698
      %8700 = vrot.lane.b32.xlu0 %v8659, 32
      %v8701 = vpop.permute.xlu0 %8700
      %8702 = vrot.lane.b32.xlu0 %v8662, 32
      %v8703 = vpop.permute.xlu0 %8702
      %8704 = vrot.lane.b32.xlu0 %v8665, 32
      %v8705 = vpop.permute.xlu0 %8704
      %8706 = vrot.lane.b32.xlu0 %v8668, 32
      %v8707 = vpop.permute.xlu0 %8706
      %8708 = vrot.lane.b32.xlu0 %v8671, 32
      %v8709 = vpop.permute.xlu0 %8708
      %8710 = vrot.lane.b32.xlu0 %v8674, 32
      %v8711 = vpop.permute.xlu0 %8710
      %8712 = vrot.lane.b32.xlu0 %v8677, 32
      %v8713 = vpop.permute.xlu0 %8712
      %8714 = vrot.lane.b32.xlu0 %v8680, 32
      %v8715 = vpop.permute.xlu0 %8714
      %8716 = vrot.lane.b32.xlu0 %v8683, 32
      %v8717 = vpop.permute.xlu0 %8716
      %8718 = vrot.lane.b32.xlu0 %v8686, 32
      %v8719 = vpop.permute.xlu0 %8718
      %8720 = vrot.lane.b32.xlu0 %v8689, 32
      %v8721 = vpop.permute.xlu0 %8720
      %v8723 = vsel %vm1862, %v8306, %v8563
      %v8725 = vsel %vm1862, %v8307, %v8565
      %v8727 = vsel %vm1862, %v8308, %v8567
      %v8729 = vsel %vm1862, %v8309, %v8569
      %v8731 = vsel %vm1862, %v8310, %v8571
      %v8733 = vsel %vm1862, %v8311, %v8573
      %v8735 = vsel %vm1862, %v8312, %v8575
      %v8737 = vsel %vm1862, %v8313, %v8577
      %v8739 = vsel %vm1862, %v8314, %v8579
      %v8741 = vsel %vm1862, %v8315, %v8581
      %v8743 = vsel %vm1862, %v8316, %v8583
      %v8745 = vsel %vm1862, %v8317, %v8585
      %v8747 = vsel %vm1862, %v8318, %v8587
      %v8749 = vsel %vm1862, %v8319, %v8589
      %v8751 = vsel %vm1862, %v8320, %v8591
      %v8753 = vsel %vm1862, %v8321, %v8593
      %v8755 = vsel %vm4989, %v8723, %v8691
      %v8757 = vsel %vm4989, %v8725, %v8693
      %v8759 = vsel %vm4989, %v8727, %v8695
      %v8761 = vsel %vm4989, %v8729, %v8697
      %v8763 = vsel %vm4989, %v8731, %v8699
      %v8765 = vsel %vm4989, %v8733, %v8701
      %v8767 = vsel %vm4989, %v8735, %v8703
      %v8769 = vsel %vm4989, %v8737, %v8705
      %v8771 = vsel %vm4989, %v8739, %v8707
      %v8773 = vsel %vm4989, %v8741, %v8709
      %v8775 = vsel %vm4989, %v8743, %v8711
      %v8777 = vsel %vm4989, %v8745, %v8713
      %v8779 = vsel %vm4989, %v8747, %v8715
      %v8781 = vsel %vm4989, %v8749, %v8717
      %v8783 = vsel %vm4989, %v8751, %v8719
      %v8785 = vsel %vm4989, %v8753, %v8721
      %s8786 = scalar_lea.vmem %s7, 24
      %v8787 = vld [vmem:[%s8786] sm:$0xf]
      %v8788 = vld [vmem:[%s8786 + $0x4] sm:$0xf]
      %v8789 = vld [vmem:[%s8786 + $0x8] sm:$0xf]
      %v8790 = vld [vmem:[%s8786 + $0xc] sm:$0xf]
      %v8791 = vld [vmem:[%s8786 + $0x10] sm:$0xf]
      %v8792 = vld [vmem:[%s8786 + $0x14] sm:$0xf]
      %v8799 = vunpack.c.l.b16 %v8787
      %v8800 = vunpack.c.l.b16 %v8788
      %v8801 = vunpack.c.l.b16 %v8789
      %v8802 = vunpack.c.l.b16 %v8790
      %v8803 = vunpack.c.l.b16 %v8791
      %v8804 = vunpack.c.l.b16 %v8792
      %v8805 = vpack.c.b16 %v8800, %v8799
      %v8806 = vpack.c.b16 %v8802, %v8801
      %v8807 = vpack.c.b16 %v8804, %v8803
      %v8811 = vsel %vm5661, %v8755, 0
      %v8813 = vsel %vm5661, %v8757, 0
      %v8815 = vsel %vm5661, %v8759, 0
      %v8817 = vsel %vm5661, %v8761, 0
      %v8819 = vsel %vm5661, %v8763, 0
      %v8821 = vsel %vm5661, %v8765, 0
      %v8823 = vsel %vm5661, %v8767, 0
      %v8825 = vsel %vm5661, %v8769, 0
      %v8827 = vsel %vm5661, %v8771, 0
      %v8829 = vsel %vm5661, %v8773, 0
      %v8831 = vsel %vm5661, %v8775, 0
      %v8833 = vsel %vm5661, %v8777, 0
      %v8835 = vsel %vm5661, %v8779, 0
      %v8837 = vsel %vm5661, %v8781, 0
      %v8839 = vsel %vm5661, %v8783, 0
      %v8841 = vsel %vm5661, %v8785, 0
      %8843 = vmatprep.subr.bf16.mxu0 0
      %8844 = vmatpush1.bf16.msra.mxu0 %v8805
      %8845 = vmatprep.subr.bf16.mxu0 0
      %8846 = vmatpush1.bf16.msra.mxu0 %v8806
      %8847 = vmatprep.subr.bf16.mxu0 0
      %8848 = vmatpush1.bf16.msra.mxu0 %v8807
      %8849 = vmatprep.subr.bf16.mxu0 0
      %8850 = vmatpush1.bf16.msra.mxu0 0
      %8851 = vmatprep.subr.bf16.mxu0 0
      %8852 = vmatpush1.bf16.msra.mxu0 0
      %8853 = vmatprep.subr.bf16.mxu0 0
      %8854 = vmatpush1.bf16.msra.mxu0 0
      %8855 = vmatprep.subr.bf16.mxu0 0
      %8856 = vmatpush1.bf16.msra.mxu0 0
      %8857 = vmatprep.subr.bf16.mxu0 0
      %8858 = vmatpush1.bf16.msra.mxu0 0
      %8859 = vmatprep.subr.bf16.mxu0 0
      %8860 = vmatpush1.bf16.msra.mxu0 0
      %8861 = vmatprep.subr.bf16.mxu0 0
      %8862 = vmatpush1.bf16.msra.mxu0 0
      %8863 = vmatprep.subr.bf16.mxu0 0
      %8864 = vmatpush1.bf16.msra.mxu0 0
      %8865 = vmatprep.subr.bf16.mxu0 0
      %8866 = vmatpush1.bf16.msra.mxu0 0
      %8867 = vmatprep.subr.bf16.mxu0 0
      %8868 = vmatpush1.bf16.msra.mxu0 0
      %8869 = vmatprep.subr.bf16.mxu0 0
      %8870 = vmatpush1.bf16.msra.mxu0 0
      %8871 = vmatprep.subr.bf16.mxu0 0
      %8872 = vmatpush1.bf16.msra.mxu0 0
      %8873 = vmatprep.subr.bf16.mxu0 0
      %8874 = vmatpush1.bf16.msra.mxu0 0
      %8875 = vmatprep.mubr.bf16.mxu0 0
      %8876 = vmatmul.mubr.bf16.gmra.mrb[0].mxu0 %v8811
      %v8877 = vpop.f32.mrb[0].mxu0
      %v8878 = vadd.f32 0.0, %v8877
      %v8879 = vpop.f32.mrb[0].mxu0
      %v8880 = vpop.f32.mrb[0].mxu0
      %v8881 = vadd.f32 0.0, %v8880
      %v8882 = vpop.f32.mrb[0].mxu0
      %8883 = vmatprep.mubr.bf16.mxu0 0
      %8884 = vmatmul.mubr.bf16.gmra.mrb[0].mxu0 %v8813
      %v8885 = vpop.f32.mrb[0].mxu0
      %v8886 = vadd.f32 0.0, %v8885
      %v8887 = vpop.f32.mrb[0].mxu0
      %v8888 = vpop.f32.mrb[0].mxu0
      %v8889 = vadd.f32 0.0, %v8888
      %v8890 = vpop.f32.mrb[0].mxu0
      %8891 = vmatprep.mubr.bf16.mxu0 0
      %8892 = vmatmul.mubr.bf16.gmra.mrb[0].mxu0 %v8815
      %v8893 = vpop.f32.mrb[0].mxu0
      %v8894 = vadd.f32 0.0, %v8893
      %v8895 = vpop.f32.mrb[0].mxu0
      %v8896 = vpop.f32.mrb[0].mxu0
      %v8897 = vadd.f32 0.0, %v8896
      %v8898 = vpop.f32.mrb[0].mxu0
      %8899 = vmatprep.mubr.bf16.mxu0 0
      %8900 = vmatmul.mubr.bf16.gmra.mrb[0].mxu0 %v8817
      %v8901 = vpop.f32.mrb[0].mxu0
      %v8902 = vadd.f32 0.0, %v8901
      %v8903 = vpop.f32.mrb[0].mxu0
      %v8904 = vpop.f32.mrb[0].mxu0
      %v8905 = vadd.f32 0.0, %v8904
      %v8906 = vpop.f32.mrb[0].mxu0
      %8907 = vmatprep.mubr.bf16.mxu0 0
      %8908 = vmatmul.mubr.bf16.gmra.mrb[0].mxu0 %v8819
      %v8909 = vpop.f32.mrb[0].mxu0
      %v8910 = vadd.f32 0.0, %v8909
      %v8911 = vpop.f32.mrb[0].mxu0
      %v8912 = vpop.f32.mrb[0].mxu0
      %v8913 = vadd.f32 0.0, %v8912
      %v8914 = vpop.f32.mrb[0].mxu0
      %8915 = vmatprep.mubr.bf16.mxu0 0
      %8916 = vmatmul.mubr.bf16.gmra.mrb[0].mxu0 %v8821
      %v8917 = vpop.f32.mrb[0].mxu0
      %v8918 = vadd.f32 0.0, %v8917
      %v8919 = vpop.f32.mrb[0].mxu0
      %v8920 = vpop.f32.mrb[0].mxu0
      %v8921 = vadd.f32 0.0, %v8920
      %v8922 = vpop.f32.mrb[0].mxu0
      %8923 = vmatprep.mubr.bf16.mxu0 0
      %8924 = vmatmul.mubr.bf16.gmra.mrb[0].mxu0 %v8823
      %v8925 = vpop.f32.mrb[0].mxu0
      %v8926 = vadd.f32 0.0, %v8925
      %v8927 = vpop.f32.mrb[0].mxu0
      %v8928 = vpop.f32.mrb[0].mxu0
      %v8929 = vadd.f32 0.0, %v8928
      %v8930 = vpop.f32.mrb[0].mxu0
      %8931 = vmatprep.mubr.bf16.mxu0 0
      %8932 = vmatmul.mubr.bf16.gmra.mrb[0].mxu0 %v8825
      %v8933 = vpop.f32.mrb[0].mxu0
      %v8934 = vadd.f32 0.0, %v8933
      %v8935 = vpop.f32.mrb[0].mxu0
      %v8936 = vpop.f32.mrb[0].mxu0
      %v8937 = vadd.f32 0.0, %v8936
      %v8938 = vpop.f32.mrb[0].mxu0
      %8939 = vmatprep.mubr.bf16.mxu0 0
      %8940 = vmatmul.mubr.bf16.gmra.mrb[0].mxu0 %v8827
      %v8941 = vpop.f32.mrb[0].mxu0
      %v8942 = vadd.f32 0.0, %v8941
      %v8943 = vpop.f32.mrb[0].mxu0
      %v8944 = vpop.f32.mrb[0].mxu0
      %v8945 = vadd.f32 0.0, %v8944
      %v8946 = vpop.f32.mrb[0].mxu0
      %8947 = vmatprep.mubr.bf16.mxu0 0
      %8948 = vmatmul.mubr.bf16.gmra.mrb[0].mxu0 %v8829
      %v8949 = vpop.f32.mrb[0].mxu0
      %v8950 = vadd.f32 0.0, %v8949
      %v8951 = vpop.f32.mrb[0].mxu0
      %v8952 = vpop.f32.mrb[0].mxu0
      %v8953 = vadd.f32 0.0, %v8952
      %v8954 = vpop.f32.mrb[0].mxu0
      %8955 = vmatprep.mubr.bf16.mxu0 0
      %8956 = vmatmul.mubr.bf16.gmra.mrb[0].mxu0 %v8831
      %v8957 = vpop.f32.mrb[0].mxu0
      %v8958 = vadd.f32 0.0, %v8957
      %v8959 = vpop.f32.mrb[0].mxu0
      %v8960 = vpop.f32.mrb[0].mxu0
      %v8961 = vadd.f32 0.0, %v8960
      %v8962 = vpop.f32.mrb[0].mxu0
      %8963 = vmatprep.mubr.bf16.mxu0 0
      %8964 = vmatmul.mubr.bf16.gmra.mrb[0].mxu0 %v8833
      %v8965 = vpop.f32.mrb[0].mxu0
      %v8966 = vadd.f32 0.0, %v8965
      %v8967 = vpop.f32.mrb[0].mxu0
      %v8968 = vpop.f32.mrb[0].mxu0
      %v8969 = vadd.f32 0.0, %v8968
      %v8970 = vpop.f32.mrb[0].mxu0
      %8971 = vmatprep.mubr.bf16.mxu0 0
      %8972 = vmatmul.mubr.bf16.gmra.mrb[0].mxu0 %v8835
      %v8973 = vpop.f32.mrb[0].mxu0
      %v8974 = vadd.f32 0.0, %v8973
      %v8975 = vpop.f32.mrb[0].mxu0
      %v8976 = vpop.f32.mrb[0].mxu0
      %v8977 = vadd.f32 0.0, %v8976
      %v8978 = vpop.f32.mrb[0].mxu0
      %8979 = vmatprep.mubr.bf16.mxu0 0
      %8980 = vmatmul.mubr.bf16.gmra.mrb[0].mxu0 %v8837
      %v8981 = vpop.f32.mrb[0].mxu0
      %v8982 = vadd.f32 0.0, %v8981
      %v8983 = vpop.f32.mrb[0].mxu0
      %v8984 = vpop.f32.mrb[0].mxu0
      %v8985 = vadd.f32 0.0, %v8984
      %v8986 = vpop.f32.mrb[0].mxu0
      %8987 = vmatprep.mubr.bf16.mxu0 0
      %8988 = vmatmul.mubr.bf16.gmra.mrb[0].mxu0 %v8839
      %v8989 = vpop.f32.mrb[0].mxu0
      %v8990 = vadd.f32 0.0, %v8989
      %v8991 = vpop.f32.mrb[0].mxu0
      %v8992 = vpop.f32.mrb[0].mxu0
      %v8993 = vadd.f32 0.0, %v8992
      %v8994 = vpop.f32.mrb[0].mxu0
      %8995 = vmatprep.mubr.bf16.mxu0 0
      %8996 = vmatmul.mubr.bf16.gmra.mrb[0].mxu0 %v8841
      %v8997 = vpop.f32.mrb[0].mxu0
      %v8998 = vadd.f32 0.0, %v8997
      %v8999 = vpop.f32.mrb[0].mxu0
      %v9000 = vpop.f32.mrb[0].mxu0
      %v9001 = vadd.f32 0.0, %v9000
      %v9002 = vpop.f32.mrb[0].mxu0
      %9003 = vdwg.mxu0
      %v9010 = vunpack.c.l.b16 %v8172
      %v9011 = vunpack.c.l.b16 %v8173
      %v9012 = vunpack.c.l.b16 %v8174
      %v9013 = vunpack.c.l.b16 %v8175
      %v9014 = vunpack.c.l.b16 %v8176
      %v9015 = vunpack.c.l.b16 %v8177
      %v9016 = vpack.c.b16 %v9011, %v9010
      %v9017 = vpack.c.b16 %v9013, %v9012
      %v9018 = vpack.c.b16 %v9015, %v9014
      %v9022 = vsel %vm5661, %v8141, 0
      %v9024 = vsel %vm5661, %v8143, 0
      %v9026 = vsel %vm5661, %v8145, 0
      %v9028 = vsel %vm5661, %v8147, 0
      %v9030 = vsel %vm5661, %v8149, 0
      %v9032 = vsel %vm5661, %v8151, 0
      %v9034 = vsel %vm5661, %v8153, 0
      %v9036 = vsel %vm5661, %v8155, 0
      %v9038 = vsel %vm5661, %v8157, 0
      %v9040 = vsel %vm5661, %v8159, 0
      %v9042 = vsel %vm5661, %v8161, 0
      %v9044 = vsel %vm5661, %v8163, 0
      %v9046 = vsel %vm5661, %v8165, 0
      %v9048 = vsel %vm5661, %v8167, 0
      %v9050 = vsel %vm5661, %v8169, 0
      %v9052 = vsel %vm5661, %v8171, 0
      %9054 = vmatprep.subr.bf16.mxu0 0
      %9055 = vmatpush1.bf16.msra.mxu0 %v9016
      %9056 = vmatprep.subr.bf16.mxu0 0
      %9057 = vmatpush1.bf16.msra.mxu0 %v9017
      %9058 = vmatprep.subr.bf16.mxu0 0
      %9059 = vmatpush1.bf16.msra.mxu0 %v9018
      %9060 = vmatprep.subr.bf16.mxu0 0
      %9061 = vmatpush1.bf16.msra.mxu0 0
      %9062 = vmatprep.subr.bf16.mxu0 0
      %9063 = vmatpush1.bf16.msra.mxu0 0
      %9064 = vmatprep.subr.bf16.mxu0 0
      %9065 = vmatpush1.bf16.msra.mxu0 0
      %9066 = vmatprep.subr.bf16.mxu0 0
      %9067 = vmatpush1.bf16.msra.mxu0 0
      %9068 = vmatprep.subr.bf16.mxu0 0
      %9069 = vmatpush1.bf16.msra.mxu0 0
      %9070 = vmatprep.subr.bf16.mxu0 0
      %9071 = vmatpush1.bf16.msra.mxu0 0
      %9072 = vmatprep.subr.bf16.mxu0 0
      %9073 = vmatpush1.bf16.msra.mxu0 0
      %9074 = vmatprep.subr.bf16.mxu0 0
      %9075 = vmatpush1.bf16.msra.mxu0 0
      %9076 = vmatprep.subr.bf16.mxu0 0
      %9077 = vmatpush1.bf16.msra.mxu0 0
      %9078 = vmatprep.subr.bf16.mxu0 0
      %9079 = vmatpush1.bf16.msra.mxu0 0
      %9080 = vmatprep.subr.bf16.mxu0 0
      %9081 = vmatpush1.bf16.msra.mxu0 0
      %9082 = vmatprep.subr.bf16.mxu0 0
      %9083 = vmatpush1.bf16.msra.mxu0 0
      %9084 = vmatprep.subr.bf16.mxu0 0
      %9085 = vmatpush1.bf16.msra.mxu0 0
      %9086 = vmatprep.mubr.bf16.mxu0 0
      %9087 = vmatmul.mubr.bf16.gmra.mrb[0].mxu0 %v9022
      %v9088 = vpop.f32.mrb[0].mxu0
      %v9089 = vadd.f32 %v8878, %v9088
      %v9090 = vpop.f32.mrb[0].mxu0
      %v9091 = vpop.f32.mrb[0].mxu0
      %v9092 = vadd.f32 %v8881, %v9091
      %v9093 = vpop.f32.mrb[0].mxu0
      %9094 = vmatprep.mubr.bf16.mxu0 0
      %9095 = vmatmul.mubr.bf16.gmra.mrb[0].mxu0 %v9024
      %v9096 = vpop.f32.mrb[0].mxu0
      %v9097 = vadd.f32 %v8886, %v9096
      %v9098 = vpop.f32.mrb[0].mxu0
      %v9099 = vpop.f32.mrb[0].mxu0
      %v9100 = vadd.f32 %v8889, %v9099
      %v9101 = vpop.f32.mrb[0].mxu0
      %9102 = vmatprep.mubr.bf16.mxu0 0
      %9103 = vmatmul.mubr.bf16.gmra.mrb[0].mxu0 %v9026
      %v9104 = vpop.f32.mrb[0].mxu0
      %v9105 = vadd.f32 %v8894, %v9104
      %v9106 = vpop.f32.mrb[0].mxu0
      %v9107 = vpop.f32.mrb[0].mxu0
      %v9108 = vadd.f32 %v8897, %v9107
      %v9109 = vpop.f32.mrb[0].mxu0
      %9110 = vmatprep.mubr.bf16.mxu0 0
      %9111 = vmatmul.mubr.bf16.gmra.mrb[0].mxu0 %v9028
      %v9112 = vpop.f32.mrb[0].mxu0
      %v9113 = vadd.f32 %v8902, %v9112
      %v9114 = vpop.f32.mrb[0].mxu0
      %v9115 = vpop.f32.mrb[0].mxu0
      %v9116 = vadd.f32 %v8905, %v9115
      %v9117 = vpop.f32.mrb[0].mxu0
      %9118 = vmatprep.mubr.bf16.mxu0 0
      %9119 = vmatmul.mubr.bf16.gmra.mrb[0].mxu0 %v9030
      %v9120 = vpop.f32.mrb[0].mxu0
      %v9121 = vadd.f32 %v8910, %v9120
      %v9122 = vpop.f32.mrb[0].mxu0
      %v9123 = vpop.f32.mrb[0].mxu0
      %v9124 = vadd.f32 %v8913, %v9123
      %v9125 = vpop.f32.mrb[0].mxu0
      %9126 = vmatprep.mubr.bf16.mxu0 0
      %9127 = vmatmul.mubr.bf16.gmra.mrb[0].mxu0 %v9032
      %v9128 = vpop.f32.mrb[0].mxu0
      %v9129 = vadd.f32 %v8918, %v9128
      %v9130 = vpop.f32.mrb[0].mxu0
      %v9131 = vpop.f32.mrb[0].mxu0
      %v9132 = vadd.f32 %v8921, %v9131
      %v9133 = vpop.f32.mrb[0].mxu0
      %9134 = vmatprep.mubr.bf16.mxu0 0
      %9135 = vmatmul.mubr.bf16.gmra.mrb[0].mxu0 %v9034
      %v9136 = vpop.f32.mrb[0].mxu0
      %v9137 = vadd.f32 %v8926, %v9136
      %v9138 = vpop.f32.mrb[0].mxu0
      %v9139 = vpop.f32.mrb[0].mxu0
      %v9140 = vadd.f32 %v8929, %v9139
      %v9141 = vpop.f32.mrb[0].mxu0
      %9142 = vmatprep.mubr.bf16.mxu0 0
      %9143 = vmatmul.mubr.bf16.gmra.mrb[0].mxu0 %v9036
      %v9144 = vpop.f32.mrb[0].mxu0
      %v9145 = vadd.f32 %v8934, %v9144
      %v9146 = vpop.f32.mrb[0].mxu0
      %v9147 = vpop.f32.mrb[0].mxu0
      %v9148 = vadd.f32 %v8937, %v9147
      %v9149 = vpop.f32.mrb[0].mxu0
      %9150 = vmatprep.mubr.bf16.mxu0 0
      %9151 = vmatmul.mubr.bf16.gmra.mrb[0].mxu0 %v9038
      %v9152 = vpop.f32.mrb[0].mxu0
      %v9153 = vadd.f32 %v8942, %v9152
      %v9154 = vpop.f32.mrb[0].mxu0
      %v9155 = vpop.f32.mrb[0].mxu0
      %v9156 = vadd.f32 %v8945, %v9155
      %v9157 = vpop.f32.mrb[0].mxu0
      %9158 = vmatprep.mubr.bf16.mxu0 0
      %9159 = vmatmul.mubr.bf16.gmra.mrb[0].mxu0 %v9040
      %v9160 = vpop.f32.mrb[0].mxu0
      %v9161 = vadd.f32 %v8950, %v9160
      %v9162 = vpop.f32.mrb[0].mxu0
      %v9163 = vpop.f32.mrb[0].mxu0
      %v9164 = vadd.f32 %v8953, %v9163
      %v9165 = vpop.f32.mrb[0].mxu0
      %9166 = vmatprep.mubr.bf16.mxu0 0
      %9167 = vmatmul.mubr.bf16.gmra.mrb[0].mxu0 %v9042
      %v9168 = vpop.f32.mrb[0].mxu0
      %v9169 = vadd.f32 %v8958, %v9168
      %v9170 = vpop.f32.mrb[0].mxu0
      %v9171 = vpop.f32.mrb[0].mxu0
      %v9172 = vadd.f32 %v8961, %v9171
      %v9173 = vpop.f32.mrb[0].mxu0
      %9174 = vmatprep.mubr.bf16.mxu0 0
      %9175 = vmatmul.mubr.bf16.gmra.mrb[0].mxu0 %v9044
      %v9176 = vpop.f32.mrb[0].mxu0
      %v9177 = vadd.f32 %v8966, %v9176
      %v9178 = vpop.f32.mrb[0].mxu0
      %v9179 = vpop.f32.mrb[0].mxu0
      %v9180 = vadd.f32 %v8969, %v9179
      %v9181 = vpop.f32.mrb[0].mxu0
      %9182 = vmatprep.mubr.bf16.mxu0 0
      %9183 = vmatmul.mubr.bf16.gmra.mrb[0].mxu0 %v9046
      %v9184 = vpop.f32.mrb[0].mxu0
      %v9185 = vadd.f32 %v8974, %v9184
      %v9186 = vpop.f32.mrb[0].mxu0
      %v9187 = vpop.f32.mrb[0].mxu0
      %v9188 = vadd.f32 %v8977, %v9187
      %v9189 = vpop.f32.mrb[0].mxu0
      %9190 = vmatprep.mubr.bf16.mxu0 0
      %9191 = vmatmul.mubr.bf16.gmra.mrb[0].mxu0 %v9048
      %v9192 = vpop.f32.mrb[0].mxu0
      %v9193 = vadd.f32 %v8982, %v9192
      %v9194 = vpop.f32.mrb[0].mxu0
      %v9195 = vpop.f32.mrb[0].mxu0
      %v9196 = vadd.f32 %v8985, %v9195
      %v9197 = vpop.f32.mrb[0].mxu0
      %9198 = vmatprep.mubr.bf16.mxu0 0
      %9199 = vmatmul.mubr.bf16.gmra.mrb[0].mxu0 %v9050
      %v9200 = vpop.f32.mrb[0].mxu0
      %v9201 = vadd.f32 %v8990, %v9200
      %v9202 = vpop.f32.mrb[0].mxu0
      %v9203 = vpop.f32.mrb[0].mxu0
      %v9204 = vadd.f32 %v8993, %v9203
      %v9205 = vpop.f32.mrb[0].mxu0
      %9206 = vmatprep.mubr.bf16.mxu0 0
      %9207 = vmatmul.mubr.bf16.gmra.mrb[0].mxu0 %v9052
      %v9208 = vpop.f32.mrb[0].mxu0
      %v9209 = vadd.f32 %v8998, %v9208
      %v9210 = vpop.f32.mrb[0].mxu0
      %v9211 = vpop.f32.mrb[0].mxu0
      %v9212 = vadd.f32 %v9001, %v9211
      %v9213 = vpop.f32.mrb[0].mxu0
      %9214 = vdwg.mxu0
      %s9215 = scalar_lea.vmem [#allocation4], 24
      %v9216 = vld [vmem:[%s9215] sm:$0xf]
      %v9217 = vld [vmem:[%s9215 + $0x4] sm:$0xf]
      %v9218 = vld [vmem:[%s9215 + $0xc] sm:$0xf]
      %v9219 = vld [vmem:[%s9215 + $0x10] sm:$0xf]
      %v9220 = vld [vmem:[%s9215 + $0x18] sm:$0xf]
      %v9221 = vld [vmem:[%s9215 + $0x1c] sm:$0xf]
      %v9222 = vld [vmem:[%s9215 + $0x24] sm:$0xf]
      %v9223 = vld [vmem:[%s9215 + $0x28] sm:$0xf]
      %v9224 = vld [vmem:[%s9215 + $0x30] sm:$0xf]
      %v9225 = vld [vmem:[%s9215 + $0x34] sm:$0xf]
      %v9226 = vld [vmem:[%s9215 + $0x3c] sm:$0xf]
      %v9227 = vld [vmem:[%s9215 + $0x40] sm:$0xf]
      %v9228 = vld [vmem:[%s9215 + $0x48] sm:$0xf]
      %v9229 = vld [vmem:[%s9215 + $0x4c] sm:$0xf]
      %v9230 = vld [vmem:[%s9215 + $0x54] sm:$0xf]
      %v9231 = vld [vmem:[%s9215 + $0x58] sm:$0xf]
      %v9232 = vld [vmem:[%s9215 + $0x60] sm:$0xf]
      %v9233 = vld [vmem:[%s9215 + $0x64] sm:$0xf]
      %v9234 = vld [vmem:[%s9215 + $0x6c] sm:$0xf]
      %v9235 = vld [vmem:[%s9215 + $0x70] sm:$0xf]
      %v9236 = vld [vmem:[%s9215 + $0x78] sm:$0xf]
      %v9237 = vld [vmem:[%s9215 + $0x7c] sm:$0xf]
      %v9238 = vld [vmem:[%s9215 + $0x84] sm:$0xf]
      %v9239 = vld [vmem:[%s9215 + $0x88] sm:$0xf]
      %v9240 = vld [vmem:[%s9215 + $0x90] sm:$0xf]
      %v9241 = vld [vmem:[%s9215 + $0x94] sm:$0xf]
      %v9242 = vld [vmem:[%s9215 + $0x9c] sm:$0xf]
      %v9243 = vld [vmem:[%s9215 + $0xa0] sm:$0xf]
      %v9244 = vld [vmem:[%s9215 + $0xa8] sm:$0xf]
      %v9245 = vld [vmem:[%s9215 + $0xac] sm:$0xf]
      %v9246 = vld [vmem:[%s9215 + $0xb4] sm:$0xf]
      %v9247 = vld [vmem:[%s9215 + $0xb8] sm:$0xf]
      %v9248 = vld [vmem:[%s9215 + $0x8] sm:$0x1]
      %v9249 = vld [vmem:[%s9215 + $0x14] sm:$0x1]
      %v9250 = vld [vmem:[%s9215 + $0x20] sm:$0x1]
      %v9251 = vld [vmem:[%s9215 + $0x2c] sm:$0x1]
      %v9252 = vld [vmem:[%s9215 + $0x38] sm:$0x1]
      %v9253 = vld [vmem:[%s9215 + $0x44] sm:$0x1]
      %v9254 = vld [vmem:[%s9215 + $0x50] sm:$0x1]
      %v9255 = vld [vmem:[%s9215 + $0x5c] sm:$0x1]
      %v9256 = vld [vmem:[%s9215 + $0x68] sm:$0x1]
      %v9257 = vld [vmem:[%s9215 + $0x74] sm:$0x1]
      %v9258 = vld [vmem:[%s9215 + $0x80] sm:$0x1]
      %v9259 = vld [vmem:[%s9215 + $0x8c] sm:$0x1]
      %v9260 = vld [vmem:[%s9215 + $0x98] sm:$0x1]
      %v9261 = vld [vmem:[%s9215 + $0xa4] sm:$0x1]
      %v9262 = vld [vmem:[%s9215 + $0xb0] sm:$0x1]
      %v9263 = vld [vmem:[%s9215 + $0xbc] sm:$0x1]
      %v9264 = vld [vmem:[%s9215] sm:$0xe]
      %v9265 = vld [vmem:[%s9215 + $0xc] sm:$0xe]
      %v9266 = vld [vmem:[%s9215 + $0x18] sm:$0xe]
      %v9267 = vld [vmem:[%s9215 + $0x24] sm:$0xe]
      %v9268 = vld [vmem:[%s9215 + $0x30] sm:$0xe]
      %v9269 = vld [vmem:[%s9215 + $0x3c] sm:$0xe]
      %v9270 = vld [vmem:[%s9215 + $0x48] sm:$0xe]
      %v9271 = vld [vmem:[%s9215 + $0x54] sm:$0xe]
      %v9272 = vld [vmem:[%s9215 + $0x60] sm:$0xe]
      %v9273 = vld [vmem:[%s9215 + $0x6c] sm:$0xe]
      %v9274 = vld [vmem:[%s9215 + $0x78] sm:$0xe]
      %v9275 = vld [vmem:[%s9215 + $0x84] sm:$0xe]
      %v9276 = vld [vmem:[%s9215 + $0x90] sm:$0xe]
      %v9277 = vld [vmem:[%s9215 + $0x9c] sm:$0xe]
      %v9278 = vld [vmem:[%s9215 + $0xa8] sm:$0xe]
      %v9279 = vld [vmem:[%s9215 + $0xb4] sm:$0xe]
      %v9312 = vunpack.c.l.b16 %v9216
      %v9313 = vunpack.c.l.b16 %v9217
      %v9314 = vunpack.c.l.b16 %v9218
      %v9315 = vunpack.c.l.b16 %v9219
      %v9316 = vunpack.c.l.b16 %v9220
      %v9317 = vunpack.c.l.b16 %v9221
      %v9318 = vunpack.c.l.b16 %v9222
      %v9319 = vunpack.c.l.b16 %v9223
      %v9320 = vunpack.c.l.b16 %v9224
      %v9321 = vunpack.c.l.b16 %v9225
      %v9322 = vunpack.c.l.b16 %v9226
      %v9323 = vunpack.c.l.b16 %v9227
      %v9324 = vunpack.c.l.b16 %v9228
      %v9325 = vunpack.c.l.b16 %v9229
      %v9326 = vunpack.c.l.b16 %v9230
      %v9327 = vunpack.c.l.b16 %v9231
      %v9328 = vunpack.c.l.b16 %v9232
      %v9329 = vunpack.c.l.b16 %v9233
      %v9330 = vunpack.c.l.b16 %v9234
      %v9331 = vunpack.c.l.b16 %v9235
      %v9332 = vunpack.c.l.b16 %v9236
      %v9333 = vunpack.c.l.b16 %v9237
      %v9334 = vunpack.c.l.b16 %v9238
      %v9335 = vunpack.c.l.b16 %v9239
      %v9336 = vunpack.c.l.b16 %v9240
      %v9337 = vunpack.c.l.b16 %v9241
      %v9338 = vunpack.c.l.b16 %v9242
      %v9339 = vunpack.c.l.b16 %v9243
      %v9340 = vunpack.c.l.b16 %v9244
      %v9341 = vunpack.c.l.b16 %v9245
      %v9342 = vunpack.c.l.b16 %v9246
      %v9343 = vunpack.c.l.b16 %v9247
      %v9344 = vpack.c.b16 %v9313, %v9312
      %v9345 = vpack.c.b16 %v9315, %v9314
      %v9346 = vpack.c.b16 %v9317, %v9316
      %v9347 = vpack.c.b16 %v9319, %v9318
      %v9348 = vpack.c.b16 %v9321, %v9320
      %v9349 = vpack.c.b16 %v9323, %v9322
      %v9350 = vpack.c.b16 %v9325, %v9324
      %v9351 = vpack.c.b16 %v9327, %v9326
      %v9352 = vpack.c.b16 %v9329, %v9328
      %v9353 = vpack.c.b16 %v9331, %v9330
      %v9354 = vpack.c.b16 %v9333, %v9332
      %v9355 = vpack.c.b16 %v9335, %v9334
      %v9356 = vpack.c.b16 %v9337, %v9336
      %v9357 = vpack.c.b16 %v9339, %v9338
      %v9358 = vpack.c.b16 %v9341, %v9340
      %v9359 = vpack.c.b16 %v9343, %v9342
      %v9376 = vunpack.c.l.b16 %v9248
      %v9377 = vunpack.c.l.b16 %v9249
      %v9378 = vunpack.c.l.b16 %v9250
      %v9379 = vunpack.c.l.b16 %v9251
      %v9380 = vunpack.c.l.b16 %v9252
      %v9381 = vunpack.c.l.b16 %v9253
      %v9382 = vunpack.c.l.b16 %v9254
      %v9383 = vunpack.c.l.b16 %v9255
      %v9384 = vunpack.c.l.b16 %v9256
      %v9385 = vunpack.c.l.b16 %v9257
      %v9386 = vunpack.c.l.b16 %v9258
      %v9387 = vunpack.c.l.b16 %v9259
      %v9388 = vunpack.c.l.b16 %v9260
      %v9389 = vunpack.c.l.b16 %v9261
      %v9390 = vunpack.c.l.b16 %v9262
      %v9391 = vunpack.c.l.b16 %v9263
      %v9392 = vpack.c.b16 %v9376, %v9376
      %v9393 = vpack.c.b16 %v9377, %v9377
      %v9394 = vpack.c.b16 %v9378, %v9378
      %v9395 = vpack.c.b16 %v9379, %v9379
      %v9396 = vpack.c.b16 %v9380, %v9380
      %v9397 = vpack.c.b16 %v9381, %v9381
      %v9398 = vpack.c.b16 %v9382, %v9382
      %v9399 = vpack.c.b16 %v9383, %v9383
      %v9400 = vpack.c.b16 %v9384, %v9384
      %v9401 = vpack.c.b16 %v9385, %v9385
      %v9402 = vpack.c.b16 %v9386, %v9386
      %v9403 = vpack.c.b16 %v9387, %v9387
      %v9404 = vpack.c.b16 %v9388, %v9388
      %v9405 = vpack.c.b16 %v9389, %v9389
      %v9406 = vpack.c.b16 %v9390, %v9390
      %v9407 = vpack.c.b16 %v9391, %v9391
      %v9409 = vshrl.u32 %v9344, 16
      %v9411 = vshll.u32 %v9344, 16
      %v9413 = vrot.slane %v9411, 1
      %v9414 = vor.u32 %v9409, %v9413
      %v9416 = vshll.u32 %v9392, 16
      %v9418 = vrot.slane %v9416, 1
      %v9419 = vsel %vm1475, %v9414, %v9418
      %v9421 = vshrl.u32 %v9345, 16
      %v9423 = vshll.u32 %v9345, 16
      %v9425 = vrot.slane %v9423, 1
      %v9426 = vor.u32 %v9421, %v9425
      %v9428 = vshll.u32 %v9393, 16
      %v9430 = vrot.slane %v9428, 1
      %v9431 = vsel %vm1475, %v9426, %v9430
      %v9433 = vshrl.u32 %v9346, 16
      %v9435 = vshll.u32 %v9346, 16
      %v9437 = vrot.slane %v9435, 1
      %v9438 = vor.u32 %v9433, %v9437
      %v9440 = vshll.u32 %v9394, 16
      %v9442 = vrot.slane %v9440, 1
      %v9443 = vsel %vm1475, %v9438, %v9442
      %v9445 = vshrl.u32 %v9347, 16
      %v9447 = vshll.u32 %v9347, 16
      %v9449 = vrot.slane %v9447, 1
      %v9450 = vor.u32 %v9445, %v9449
      %v9452 = vshll.u32 %v9395, 16
      %v9454 = vrot.slane %v9452, 1
      %v9455 = vsel %vm1475, %v9450, %v9454
      %v9457 = vshrl.u32 %v9348, 16
      %v9459 = vshll.u32 %v9348, 16
      %v9461 = vrot.slane %v9459, 1
      %v9462 = vor.u32 %v9457, %v9461
      %v9464 = vshll.u32 %v9396, 16
      %v9466 = vrot.slane %v9464, 1
      %v9467 = vsel %vm1475, %v9462, %v9466
      %v9469 = vshrl.u32 %v9349, 16
      %v9471 = vshll.u32 %v9349, 16
      %v9473 = vrot.slane %v9471, 1
      %v9474 = vor.u32 %v9469, %v9473
      %v9476 = vshll.u32 %v9397, 16
      %v9478 = vrot.slane %v9476, 1
      %v9479 = vsel %vm1475, %v9474, %v9478
      %v9481 = vshrl.u32 %v9350, 16
      %v9483 = vshll.u32 %v9350, 16
      %v9485 = vrot.slane %v9483, 1
      %v9486 = vor.u32 %v9481, %v9485
      %v9488 = vshll.u32 %v9398, 16
      %v9490 = vrot.slane %v9488, 1
      %v9491 = vsel %vm1475, %v9486, %v9490
      %v9493 = vshrl.u32 %v9351, 16
      %v9495 = vshll.u32 %v9351, 16
      %v9497 = vrot.slane %v9495, 1
      %v9498 = vor.u32 %v9493, %v9497
      %v9500 = vshll.u32 %v9399, 16
      %v9502 = vrot.slane %v9500, 1
      %v9503 = vsel %vm1475, %v9498, %v9502
      %v9505 = vshrl.u32 %v9352, 16
      %v9507 = vshll.u32 %v9352, 16
      %v9509 = vrot.slane %v9507, 1
      %v9510 = vor.u32 %v9505, %v9509
      %v9512 = vshll.u32 %v9400, 16
      %v9514 = vrot.slane %v9512, 1
      %v9515 = vsel %vm1475, %v9510, %v9514
      %v9517 = vshrl.u32 %v9353, 16
      %v9519 = vshll.u32 %v9353, 16
      %v9521 = vrot.slane %v9519, 1
      %v9522 = vor.u32 %v9517, %v9521
      %v9524 = vshll.u32 %v9401, 16
      %v9526 = vrot.slane %v9524, 1
      %v9527 = vsel %vm1475, %v9522, %v9526
      %v9529 = vshrl.u32 %v9354, 16
      %v9531 = vshll.u32 %v9354, 16
      %v9533 = vrot.slane %v9531, 1
      %v9534 = vor.u32 %v9529, %v9533
      %v9536 = vshll.u32 %v9402, 16
      %v9538 = vrot.slane %v9536, 1
      %v9539 = vsel %vm1475, %v9534, %v9538
      %v9541 = vshrl.u32 %v9355, 16
      %v9543 = vshll.u32 %v9355, 16
      %v9545 = vrot.slane %v9543, 1
      %v9546 = vor.u32 %v9541, %v9545
      %v9548 = vshll.u32 %v9403, 16
      %v9550 = vrot.slane %v9548, 1
      %v9551 = vsel %vm1475, %v9546, %v9550
      %v9553 = vshrl.u32 %v9356, 16
      %v9555 = vshll.u32 %v9356, 16
      %v9557 = vrot.slane %v9555, 1
      %v9558 = vor.u32 %v9553, %v9557
      %v9560 = vshll.u32 %v9404, 16
      %v9562 = vrot.slane %v9560, 1
      %v9563 = vsel %vm1475, %v9558, %v9562
      %v9565 = vshrl.u32 %v9357, 16
      %v9567 = vshll.u32 %v9357, 16
      %v9569 = vrot.slane %v9567, 1
      %v9570 = vor.u32 %v9565, %v9569
      %v9572 = vshll.u32 %v9405, 16
      %v9574 = vrot.slane %v9572, 1
      %v9575 = vsel %vm1475, %v9570, %v9574
      %v9577 = vshrl.u32 %v9358, 16
      %v9579 = vshll.u32 %v9358, 16
      %v9581 = vrot.slane %v9579, 1
      %v9582 = vor.u32 %v9577, %v9581
      %v9584 = vshll.u32 %v9406, 16
      %v9586 = vrot.slane %v9584, 1
      %v9587 = vsel %vm1475, %v9582, %v9586
      %v9589 = vshrl.u32 %v9359, 16
      %v9591 = vshll.u32 %v9359, 16
      %v9593 = vrot.slane %v9591, 1
      %v9594 = vor.u32 %v9589, %v9593
      %v9596 = vshll.u32 %v9407, 16
      %v9598 = vrot.slane %v9596, 1
      %v9599 = vsel %vm1475, %v9594, %v9598
      %9600 = vrot.lane.b32.xlu0 %v9419, 16
      %v9601 = vpop.permute.xlu0 %9600
      %9602 = vrot.lane.b32.xlu0 %v9431, 16
      %v9603 = vpop.permute.xlu0 %9602
      %9604 = vrot.lane.b32.xlu0 %v9443, 16
      %v9605 = vpop.permute.xlu0 %9604
      %9606 = vrot.lane.b32.xlu0 %v9455, 16
      %v9607 = vpop.permute.xlu0 %9606
      %9608 = vrot.lane.b32.xlu0 %v9467, 16
      %v9609 = vpop.permute.xlu0 %9608
      %9610 = vrot.lane.b32.xlu0 %v9479, 16
      %v9611 = vpop.permute.xlu0 %9610
      %9612 = vrot.lane.b32.xlu0 %v9491, 16
      %v9613 = vpop.permute.xlu0 %9612
      %9614 = vrot.lane.b32.xlu0 %v9503, 16
      %v9615 = vpop.permute.xlu0 %9614
      %9616 = vrot.lane.b32.xlu0 %v9515, 16
      %v9617 = vpop.permute.xlu0 %9616
      %9618 = vrot.lane.b32.xlu0 %v9527, 16
      %v9619 = vpop.permute.xlu0 %9618
      %9620 = vrot.lane.b32.xlu0 %v9539, 16
      %v9621 = vpop.permute.xlu0 %9620
      %9622 = vrot.lane.b32.xlu0 %v9551, 16
      %v9623 = vpop.permute.xlu0 %9622
      %9624 = vrot.lane.b32.xlu0 %v9563, 16
      %v9625 = vpop.permute.xlu0 %9624
      %9626 = vrot.lane.b32.xlu0 %v9575, 16
      %v9627 = vpop.permute.xlu0 %9626
      %9628 = vrot.lane.b32.xlu0 %v9587, 16
      %v9629 = vpop.permute.xlu0 %9628
      %9630 = vrot.lane.b32.xlu0 %v9599, 16
      %v9631 = vpop.permute.xlu0 %9630
      %v9648 = vunpack.c.l.b16 %v9264
      %v9649 = vunpack.c.l.b16 %v9265
      %v9650 = vunpack.c.l.b16 %v9266
      %v9651 = vunpack.c.l.b16 %v9267
      %v9652 = vunpack.c.l.b16 %v9268
      %v9653 = vunpack.c.l.b16 %v9269
      %v9654 = vunpack.c.l.b16 %v9270
      %v9655 = vunpack.c.l.b16 %v9271
      %v9656 = vunpack.c.l.b16 %v9272
      %v9657 = vunpack.c.l.b16 %v9273
      %v9658 = vunpack.c.l.b16 %v9274
      %v9659 = vunpack.c.l.b16 %v9275
      %v9660 = vunpack.c.l.b16 %v9276
      %v9661 = vunpack.c.l.b16 %v9277
      %v9662 = vunpack.c.l.b16 %v9278
      %v9663 = vunpack.c.l.b16 %v9279
      %v9664 = vpack.c.b16 %v9313, %v9648
      %v9665 = vpack.c.b16 %v9315, %v9649
      %v9666 = vpack.c.b16 %v9317, %v9650
      %v9667 = vpack.c.b16 %v9319, %v9651
      %v9668 = vpack.c.b16 %v9321, %v9652
      %v9669 = vpack.c.b16 %v9323, %v9653
      %v9670 = vpack.c.b16 %v9325, %v9654
      %v9671 = vpack.c.b16 %v9327, %v9655
      %v9672 = vpack.c.b16 %v9329, %v9656
      %v9673 = vpack.c.b16 %v9331, %v9657
      %v9674 = vpack.c.b16 %v9333, %v9658
      %v9675 = vpack.c.b16 %v9335, %v9659
      %v9676 = vpack.c.b16 %v9337, %v9660
      %v9677 = vpack.c.b16 %v9339, %v9661
      %v9678 = vpack.c.b16 %v9341, %v9662
      %v9679 = vpack.c.b16 %v9343, %v9663
      %v9680 = vrot.slane %v9664, 1
      %v9681 = vrot.slane %v9392, 1
      %v9682 = vsel %vm1748, %v9680, %v9681
      %v9683 = vrot.slane %v9665, 1
      %v9684 = vrot.slane %v9393, 1
      %v9685 = vsel %vm1748, %v9683, %v9684
      %v9686 = vrot.slane %v9666, 1
      %v9687 = vrot.slane %v9394, 1
      %v9688 = vsel %vm1748, %v9686, %v9687
      %v9689 = vrot.slane %v9667, 1
      %v9690 = vrot.slane %v9395, 1
      %v9691 = vsel %vm1748, %v9689, %v9690
      %v9692 = vrot.slane %v9668, 1
      %v9693 = vrot.slane %v9396, 1
      %v9694 = vsel %vm1748, %v9692, %v9693
      %v9695 = vrot.slane %v9669, 1
      %v9696 = vrot.slane %v9397, 1
      %v9697 = vsel %vm1748, %v9695, %v9696
      %v9698 = vrot.slane %v9670, 1
      %v9699 = vrot.slane %v9398, 1
      %v9700 = vsel %vm1748, %v9698, %v9699
      %v9701 = vrot.slane %v9671, 1
      %v9702 = vrot.slane %v9399, 1
      %v9703 = vsel %vm1748, %v9701, %v9702
      %v9704 = vrot.slane %v9672, 1
      %v9705 = vrot.slane %v9400, 1
      %v9706 = vsel %vm1748, %v9704, %v9705
      %v9707 = vrot.slane %v9673, 1
      %v9708 = vrot.slane %v9401, 1
      %v9709 = vsel %vm1748, %v9707, %v9708
      %v9710 = vrot.slane %v9674, 1
      %v9711 = vrot.slane %v9402, 1
      %v9712 = vsel %vm1748, %v9710, %v9711
      %v9713 = vrot.slane %v9675, 1
      %v9714 = vrot.slane %v9403, 1
      %v9715 = vsel %vm1748, %v9713, %v9714
      %v9716 = vrot.slane %v9676, 1
      %v9717 = vrot.slane %v9404, 1
      %v9718 = vsel %vm1748, %v9716, %v9717
      %v9719 = vrot.slane %v9677, 1
      %v9720 = vrot.slane %v9405, 1
      %v9721 = vsel %vm1748, %v9719, %v9720
      %v9722 = vrot.slane %v9678, 1
      %v9723 = vrot.slane %v9406, 1
      %v9724 = vsel %vm1748, %v9722, %v9723
      %v9725 = vrot.slane %v9679, 1
      %v9726 = vrot.slane %v9407, 1
      %v9727 = vsel %vm1748, %v9725, %v9726
      %9728 = vrot.lane.b32.xlu0 %v9682, 32
      %v9729 = vpop.permute.xlu0 %9728
      %9730 = vrot.lane.b32.xlu0 %v9685, 32
      %v9731 = vpop.permute.xlu0 %9730
      %9732 = vrot.lane.b32.xlu0 %v9688, 32
      %v9733 = vpop.permute.xlu0 %9732
      %9734 = vrot.lane.b32.xlu0 %v9691, 32
      %v9735 = vpop.permute.xlu0 %9734
      %9736 = vrot.lane.b32.xlu0 %v9694, 32
      %v9737 = vpop.permute.xlu0 %9736
      %9738 = vrot.lane.b32.xlu0 %v9697, 32
      %v9739 = vpop.permute.xlu0 %9738
      %9740 = vrot.lane.b32.xlu0 %v9700, 32
      %v9741 = vpop.permute.xlu0 %9740
      %9742 = vrot.lane.b32.xlu0 %v9703, 32
      %v9743 = vpop.permute.xlu0 %9742
      %9744 = vrot.lane.b32.xlu0 %v9706, 32
      %v9745 = vpop.permute.xlu0 %9744
      %9746 = vrot.lane.b32.xlu0 %v9709, 32
      %v9747 = vpop.permute.xlu0 %9746
      %9748 = vrot.lane.b32.xlu0 %v9712, 32
      %v9749 = vpop.permute.xlu0 %9748
      %9750 = vrot.lane.b32.xlu0 %v9715, 32
      %v9751 = vpop.permute.xlu0 %9750
      %9752 = vrot.lane.b32.xlu0 %v9718, 32
      %v9753 = vpop.permute.xlu0 %9752
      %9754 = vrot.lane.b32.xlu0 %v9721, 32
      %v9755 = vpop.permute.xlu0 %9754
      %9756 = vrot.lane.b32.xlu0 %v9724, 32
      %v9757 = vpop.permute.xlu0 %9756
      %9758 = vrot.lane.b32.xlu0 %v9727, 32
      %v9759 = vpop.permute.xlu0 %9758
      %v9761 = vsel %vm1862, %v9344, %v9601
      %v9763 = vsel %vm1862, %v9345, %v9603
      %v9765 = vsel %vm1862, %v9346, %v9605
      %v9767 = vsel %vm1862, %v9347, %v9607
      %v9769 = vsel %vm1862, %v9348, %v9609
      %v9771 = vsel %vm1862, %v9349, %v9611
      %v9773 = vsel %vm1862, %v9350, %v9613
      %v9775 = vsel %vm1862, %v9351, %v9615
      %v9777 = vsel %vm1862, %v9352, %v9617
      %v9779 = vsel %vm1862, %v9353, %v9619
      %v9781 = vsel %vm1862, %v9354, %v9621
      %v9783 = vsel %vm1862, %v9355, %v9623
      %v9785 = vsel %vm1862, %v9356, %v9625
      %v9787 = vsel %vm1862, %v9357, %v9627
      %v9789 = vsel %vm1862, %v9358, %v9629
      %v9791 = vsel %vm1862, %v9359, %v9631
      %v9793 = vsel %vm4989, %v9761, %v9729
      %v9795 = vsel %vm4989, %v9763, %v9731
      %v9797 = vsel %vm4989, %v9765, %v9733
      %v9799 = vsel %vm4989, %v9767, %v9735
      %v9801 = vsel %vm4989, %v9769, %v9737
      %v9803 = vsel %vm4989, %v9771, %v9739
      %v9805 = vsel %vm4989, %v9773, %v9741
      %v9807 = vsel %vm4989, %v9775, %v9743
      %v9809 = vsel %vm4989, %v9777, %v9745
      %v9811 = vsel %vm4989, %v9779, %v9747
      %v9813 = vsel %vm4989, %v9781, %v9749
      %v9815 = vsel %vm4989, %v9783, %v9751
      %v9817 = vsel %vm4989, %v9785, %v9753
      %v9819 = vsel %vm4989, %v9787, %v9755
      %v9821 = vsel %vm4989, %v9789, %v9757
      %v9823 = vsel %vm4989, %v9791, %v9759
      %s9824 = scalar_lea.vmem %s7, 48
      %v9825 = vld [vmem:[%s9824] sm:$0xf]
      %v9826 = vld [vmem:[%s9824 + $0x4] sm:$0xf]
      %v9827 = vld [vmem:[%s9824 + $0x8] sm:$0xf]
      %v9828 = vld [vmem:[%s9824 + $0xc] sm:$0xf]
      %v9829 = vld [vmem:[%s9824 + $0x10] sm:$0xf]
      %v9830 = vld [vmem:[%s9824 + $0x14] sm:$0xf]
      %v9837 = vunpack.c.l.b16 %v9825
      %v9838 = vunpack.c.l.b16 %v9826
      %v9839 = vunpack.c.l.b16 %v9827
      %v9840 = vunpack.c.l.b16 %v9828
      %v9841 = vunpack.c.l.b16 %v9829
      %v9842 = vunpack.c.l.b16 %v9830
      %v9843 = vpack.c.b16 %v9838, %v9837
      %v9844 = vpack.c.b16 %v9840, %v9839
      %v9845 = vpack.c.b16 %v9842, %v9841
      %v9849 = vsel %vm5661, %v9793, 0
      %v9851 = vsel %vm5661, %v9795, 0
      %v9853 = vsel %vm5661, %v9797, 0
      %v9855 = vsel %vm5661, %v9799, 0
      %v9857 = vsel %vm5661, %v9801, 0
      %v9859 = vsel %vm5661, %v9803, 0
      %v9861 = vsel %vm5661, %v9805, 0
      %v9863 = vsel %vm5661, %v9807, 0
      %v9865 = vsel %vm5661, %v9809, 0
      %v9867 = vsel %vm5661, %v9811, 0
      %v9869 = vsel %vm5661, %v9813, 0
      %v9871 = vsel %vm5661, %v9815, 0
      %v9873 = vsel %vm5661, %v9817, 0
      %v9875 = vsel %vm5661, %v9819, 0
      %v9877 = vsel %vm5661, %v9821, 0
      %v9879 = vsel %vm5661, %v9823, 0
      %9881 = vmatprep.subr.bf16.mxu0 0
      %9882 = vmatpush1.bf16.msra.mxu0 %v9843
      %9883 = vmatprep.subr.bf16.mxu0 0
      %9884 = vmatpush1.bf16.msra.mxu0 %v9844
      %9885 = vmatprep.subr.bf16.mxu0 0
      %9886 = vmatpush1.bf16.msra.mxu0 %v9845
      %9887 = vmatprep.subr.bf16.mxu0 0
      %9888 = vmatpush1.bf16.msra.mxu0 0
      %9889 = vmatprep.subr.bf16.mxu0 0
      %9890 = vmatpush1.bf16.msra.mxu0 0
      %9891 = vmatprep.subr.bf16.mxu0 0
      %9892 = vmatpush1.bf16.msra.mxu0 0
      %9893 = vmatprep.subr.bf16.mxu0 0
      %9894 = vmatpush1.bf16.msra.mxu0 0
      %9895 = vmatprep.subr.bf16.mxu0 0
      %9896 = vmatpush1.bf16.msra.mxu0 0
      %9897 = vmatprep.subr.bf16.mxu0 0
      %9898 = vmatpush1.bf16.msra.mxu0 0
      %9899 = vmatprep.subr.bf16.mxu0 0
      %9900 = vmatpush1.bf16.msra.mxu0 0
      %9901 = vmatprep.subr.bf16.mxu0 0
      %9902 = vmatpush1.bf16.msra.mxu0 0
      %9903 = vmatprep.subr.bf16.mxu0 0
      %9904 = vmatpush1.bf16.msra.mxu0 0
      %9905 = vmatprep.subr.bf16.mxu0 0
      %9906 = vmatpush1.bf16.msra.mxu0 0
      %9907 = vmatprep.subr.bf16.mxu0 0
      %9908 = vmatpush1.bf16.msra.mxu0 0
      %9909 = vmatprep.subr.bf16.mxu0 0
      %9910 = vmatpush1.bf16.msra.mxu0 0
      %9911 = vmatprep.subr.bf16.mxu0 0
      %9912 = vmatpush1.bf16.msra.mxu0 0
      %9913 = vmatprep.mubr.bf16.mxu0 0
      %9914 = vmatmul.mubr.bf16.gmra.mrb[0].mxu0 %v9849
      %v9915 = vpop.f32.mrb[0].mxu0
      %v9916 = vadd.f32 0.0, %v9915
      %v9917 = vpop.f32.mrb[0].mxu0
      %v9918 = vpop.f32.mrb[0].mxu0
      %v9919 = vadd.f32 0.0, %v9918
      %v9920 = vpop.f32.mrb[0].mxu0
      %9921 = vmatprep.mubr.bf16.mxu0 0
      %9922 = vmatmul.mubr.bf16.gmra.mrb[0].mxu0 %v9851
      %v9923 = vpop.f32.mrb[0].mxu0
      %v9924 = vadd.f32 0.0, %v9923
      %v9925 = vpop.f32.mrb[0].mxu0
      %v9926 = vpop.f32.mrb[0].mxu0
      %v9927 = vadd.f32 0.0, %v9926
      %v9928 = vpop.f32.mrb[0].mxu0
      %9929 = vmatprep.mubr.bf16.mxu0 0
      %9930 = vmatmul.mubr.bf16.gmra.mrb[0].mxu0 %v9853
      %v9931 = vpop.f32.mrb[0].mxu0
      %v9932 = vadd.f32 0.0, %v9931
      %v9933 = vpop.f32.mrb[0].mxu0
      %v9934 = vpop.f32.mrb[0].mxu0
      %v9935 = vadd.f32 0.0, %v9934
      %v9936 = vpop.f32.mrb[0].mxu0
      %9937 = vmatprep.mubr.bf16.mxu0 0
      %9938 = vmatmul.mubr.bf16.gmra.mrb[0].mxu0 %v9855
      %v9939 = vpop.f32.mrb[0].mxu0
      %v9940 = vadd.f32 0.0, %v9939
      %v9941 = vpop.f32.mrb[0].mxu0
      %v9942 = vpop.f32.mrb[0].mxu0
      %v9943 = vadd.f32 0.0, %v9942
      %v9944 = vpop.f32.mrb[0].mxu0
      %9945 = vmatprep.mubr.bf16.mxu0 0
      %9946 = vmatmul.mubr.bf16.gmra.mrb[0].mxu0 %v9857
      %v9947 = vpop.f32.mrb[0].mxu0
      %v9948 = vadd.f32 0.0, %v9947
      %v9949 = vpop.f32.mrb[0].mxu0
      %v9950 = vpop.f32.mrb[0].mxu0
      %v9951 = vadd.f32 0.0, %v9950
      %v9952 = vpop.f32.mrb[0].mxu0
      %9953 = vmatprep.mubr.bf16.mxu0 0
      %9954 = vmatmul.mubr.bf16.gmra.mrb[0].mxu0 %v9859
      %v9955 = vpop.f32.mrb[0].mxu0
      %v9956 = vadd.f32 0.0, %v9955
      %v9957 = vpop.f32.mrb[0].mxu0
      %v9958 = vpop.f32.mrb[0].mxu0
      %v9959 = vadd.f32 0.0, %v9958
      %v9960 = vpop.f32.mrb[0].mxu0
      %9961 = vmatprep.mubr.bf16.mxu0 0
      %9962 = vmatmul.mubr.bf16.gmra.mrb[0].mxu0 %v9861
      %v9963 = vpop.f32.mrb[0].mxu0
      %v9964 = vadd.f32 0.0, %v9963
      %v9965 = vpop.f32.mrb[0].mxu0
      %v9966 = vpop.f32.mrb[0].mxu0
      %v9967 = vadd.f32 0.0, %v9966
      %v9968 = vpop.f32.mrb[0].mxu0
      %9969 = vmatprep.mubr.bf16.mxu0 0
      %9970 = vmatmul.mubr.bf16.gmra.mrb[0].mxu0 %v9863
      %v9971 = vpop.f32.mrb[0].mxu0
      %v9972 = vadd.f32 0.0, %v9971
      %v9973 = vpop.f32.mrb[0].mxu0
      %v9974 = vpop.f32.mrb[0].mxu0
      %v9975 = vadd.f32 0.0, %v9974
      %v9976 = vpop.f32.mrb[0].mxu0
      %9977 = vmatprep.mubr.bf16.mxu0 0
      %9978 = vmatmul.mubr.bf16.gmra.mrb[0].mxu0 %v9865
      %v9979 = vpop.f32.mrb[0].mxu0
      %v9980 = vadd.f32 0.0, %v9979
      %v9981 = vpop.f32.mrb[0].mxu0
      %v9982 = vpop.f32.mrb[0].mxu0
      %v9983 = vadd.f32 0.0, %v9982
      %v9984 = vpop.f32.mrb[0].mxu0
      %9985 = vmatprep.mubr.bf16.mxu0 0
      %9986 = vmatmul.mubr.bf16.gmra.mrb[0].mxu0 %v9867
      %v9987 = vpop.f32.mrb[0].mxu0
      %v9988 = vadd.f32 0.0, %v9987
      %v9989 = vpop.f32.mrb[0].mxu0
      %v9990 = vpop.f32.mrb[0].mxu0
      %v9991 = vadd.f32 0.0, %v9990
      %v9992 = vpop.f32.mrb[0].mxu0
      %9993 = vmatprep.mubr.bf16.mxu0 0
      %9994 = vmatmul.mubr.bf16.gmra.mrb[0].mxu0 %v9869
      %v9995 = vpop.f32.mrb[0].mxu0
      %v9996 = vadd.f32 0.0, %v9995
      %v9997 = vpop.f32.mrb[0].mxu0
      %v9998 = vpop.f32.mrb[0].mxu0
      %v9999 = vadd.f32 0.0, %v9998
      %v10000 = vpop.f32.mrb[0].mxu0
      %10001 = vmatprep.mubr.bf16.mxu0 0
      %10002 = vmatmul.mubr.bf16.gmra.mrb[0].mxu0 %v9871
      %v10003 = vpop.f32.mrb[0].mxu0
      %v10004 = vadd.f32 0.0, %v10003
      %v10005 = vpop.f32.mrb[0].mxu0
      %v10006 = vpop.f32.mrb[0].mxu0
      %v10007 = vadd.f32 0.0, %v10006
      %v10008 = vpop.f32.mrb[0].mxu0
      %10009 = vmatprep.mubr.bf16.mxu0 0
      %10010 = vmatmul.mubr.bf16.gmra.mrb[0].mxu0 %v9873
      %v10011 = vpop.f32.mrb[0].mxu0
      %v10012 = vadd.f32 0.0, %v10011
      %v10013 = vpop.f32.mrb[0].mxu0
      %v10014 = vpop.f32.mrb[0].mxu0
      %v10015 = vadd.f32 0.0, %v10014
      %v10016 = vpop.f32.mrb[0].mxu0
      %10017 = vmatprep.mubr.bf16.mxu0 0
      %10018 = vmatmul.mubr.bf16.gmra.mrb[0].mxu0 %v9875
      %v10019 = vpop.f32.mrb[0].mxu0
      %v10020 = vadd.f32 0.0, %v10019
      %v10021 = vpop.f32.mrb[0].mxu0
      %v10022 = vpop.f32.mrb[0].mxu0
      %v10023 = vadd.f32 0.0, %v10022
      %v10024 = vpop.f32.mrb[0].mxu0
      %10025 = vmatprep.mubr.bf16.mxu0 0
      %10026 = vmatmul.mubr.bf16.gmra.mrb[0].mxu0 %v9877
      %v10027 = vpop.f32.mrb[0].mxu0
      %v10028 = vadd.f32 0.0, %v10027
      %v10029 = vpop.f32.mrb[0].mxu0
      %v10030 = vpop.f32.mrb[0].mxu0
      %v10031 = vadd.f32 0.0, %v10030
      %v10032 = vpop.f32.mrb[0].mxu0
      %10033 = vmatprep.mubr.bf16.mxu0 0
      %10034 = vmatmul.mubr.bf16.gmra.mrb[0].mxu0 %v9879
      %v10035 = vpop.f32.mrb[0].mxu0
      %v10036 = vadd.f32 0.0, %v10035
      %v10037 = vpop.f32.mrb[0].mxu0
      %v10038 = vpop.f32.mrb[0].mxu0
      %v10039 = vadd.f32 0.0, %v10038
      %v10040 = vpop.f32.mrb[0].mxu0
      %10041 = vdwg.mxu0
      %v10042 = vadd.f32 %v9089, %v9916
      %v10043 = vadd.f32 %v9092, %v9919
      %v10044 = vadd.f32 %v9097, %v9924
      %v10045 = vadd.f32 %v9100, %v9927
      %v10046 = vadd.f32 %v9105, %v9932
      %v10047 = vadd.f32 %v9108, %v9935
      %v10048 = vadd.f32 %v9113, %v9940
      %v10049 = vadd.f32 %v9116, %v9943
      %v10050 = vadd.f32 %v9121, %v9948
      %v10051 = vadd.f32 %v9124, %v9951
      %v10052 = vadd.f32 %v9129, %v9956
      %v10053 = vadd.f32 %v9132, %v9959
      %v10054 = vadd.f32 %v9137, %v9964
      %v10055 = vadd.f32 %v9140, %v9967
      %v10056 = vadd.f32 %v9145, %v9972
      %v10057 = vadd.f32 %v9148, %v9975
      %v10058 = vadd.f32 %v9153, %v9980
      %v10059 = vadd.f32 %v9156, %v9983
      %v10060 = vadd.f32 %v9161, %v9988
      %v10061 = vadd.f32 %v9164, %v9991
      %v10062 = vadd.f32 %v9169, %v9996
      %v10063 = vadd.f32 %v9172, %v9999
      %v10064 = vadd.f32 %v9177, %v10004
      %v10065 = vadd.f32 %v9180, %v10007
      %v10066 = vadd.f32 %v9185, %v10012
      %v10067 = vadd.f32 %v9188, %v10015
      %v10068 = vadd.f32 %v9193, %v10020
      %v10069 = vadd.f32 %v9196, %v10023
      %v10070 = vadd.f32 %v9201, %v10028
      %v10071 = vadd.f32 %v9204, %v10031
      %v10072 = vadd.f32 %v9209, %v10036
      %v10073 = vadd.f32 %v9212, %v10039
      %v10074 = vld [vmem:[%s8] sm:$0x1]
      %v10076 = vlaneseq
      %v10077 = vshrl.u32 %v10076, 7
      %v10078 = vsub.s32 0, %v10077
      %v10079 = vrot.slane %v10074, %v10078
      %v10081 = vmul.f32 %v10042, %v10079
      %v10082 = vmul.f32 %v10043, %v10079
      %v10083 = vmul.f32 %v10044, %v10079
      %v10084 = vmul.f32 %v10045, %v10079
      %v10085 = vmul.f32 %v10046, %v10079
      %v10086 = vmul.f32 %v10047, %v10079
      %v10087 = vmul.f32 %v10048, %v10079
      %v10088 = vmul.f32 %v10049, %v10079
      %v10089 = vmul.f32 %v10050, %v10079
      %v10090 = vmul.f32 %v10051, %v10079
      %v10091 = vmul.f32 %v10052, %v10079
      %v10092 = vmul.f32 %v10053, %v10079
      %v10093 = vmul.f32 %v10054, %v10079
      %v10094 = vmul.f32 %v10055, %v10079
      %v10095 = vmul.f32 %v10056, %v10079
      %v10096 = vmul.f32 %v10057, %v10079
      %v10097 = vmul.f32 %v10058, %v10079
      %v10098 = vmul.f32 %v10059, %v10079
      %v10099 = vmul.f32 %v10060, %v10079
      %v10100 = vmul.f32 %v10061, %v10079
      %v10101 = vmul.f32 %v10062, %v10079
      %v10102 = vmul.f32 %v10063, %v10079
      %v10103 = vmul.f32 %v10064, %v10079
      %v10104 = vmul.f32 %v10065, %v10079
      %v10105 = vmul.f32 %v10066, %v10079
      %v10106 = vmul.f32 %v10067, %v10079
      %v10107 = vmul.f32 %v10068, %v10079
      %v10108 = vmul.f32 %v10069, %v10079
      %v10109 = vmul.f32 %v10070, %v10079
      %v10110 = vmul.f32 %v10071, %v10079
      %v10111 = vmul.f32 %v10072, %v10079
      %v10112 = vmul.f32 %v10073, %v10079
      %v10113 = vld [vmem:[%s9] sm:$0x1]
      %v10115 = vlaneseq
      %v10116 = vshrl.u32 %v10115, 7
      %v10117 = vsub.s32 0, %v10116
      %v10118 = vrot.slane %v10113, %v10117
      %v10120 = vadd.f32 %v10081, %v10118
      %v10121 = vadd.f32 %v10082, %v10118
      %v10122 = vadd.f32 %v10083, %v10118
      %v10123 = vadd.f32 %v10084, %v10118
      %v10124 = vadd.f32 %v10085, %v10118
      %v10125 = vadd.f32 %v10086, %v10118
      %v10126 = vadd.f32 %v10087, %v10118
      %v10127 = vadd.f32 %v10088, %v10118
      %v10128 = vadd.f32 %v10089, %v10118
      %v10129 = vadd.f32 %v10090, %v10118
      %v10130 = vadd.f32 %v10091, %v10118
      %v10131 = vadd.f32 %v10092, %v10118
      %v10132 = vadd.f32 %v10093, %v10118
      %v10133 = vadd.f32 %v10094, %v10118
      %v10134 = vadd.f32 %v10095, %v10118
      %v10135 = vadd.f32 %v10096, %v10118
      %v10136 = vadd.f32 %v10097, %v10118
      %v10137 = vadd.f32 %v10098, %v10118
      %v10138 = vadd.f32 %v10099, %v10118
      %v10139 = vadd.f32 %v10100, %v10118
      %v10140 = vadd.f32 %v10101, %v10118
      %v10141 = vadd.f32 %v10102, %v10118
      %v10142 = vadd.f32 %v10103, %v10118
      %v10143 = vadd.f32 %v10104, %v10118
      %v10144 = vadd.f32 %v10105, %v10118
      %v10145 = vadd.f32 %v10106, %v10118
      %v10146 = vadd.f32 %v10107, %v10118
      %v10147 = vadd.f32 %v10108, %v10118
      %v10148 = vadd.f32 %v10109, %v10118
      %v10149 = vadd.f32 %v10110, %v10118
      %v10150 = vadd.f32 %v10111, %v10118
      %v10151 = vadd.f32 %v10112, %v10118
      %v10152 = vmax.f32 %v10120, 0.0
      %v10153 = vmax.f32 %v10121, 0.0
      %v10154 = vmax.f32 %v10122, 0.0
      %v10155 = vmax.f32 %v10123, 0.0
      %v10156 = vmax.f32 %v10124, 0.0
      %v10157 = vmax.f32 %v10125, 0.0
      %v10158 = vmax.f32 %v10126, 0.0
      %v10159 = vmax.f32 %v10127, 0.0
      %v10160 = vmax.f32 %v10128, 0.0
      %v10161 = vmax.f32 %v10129, 0.0
      %v10162 = vmax.f32 %v10130, 0.0
      %v10163 = vmax.f32 %v10131, 0.0
      %v10164 = vmax.f32 %v10132, 0.0
      %v10165 = vmax.f32 %v10133, 0.0
      %v10166 = vmax.f32 %v10134, 0.0
      %v10167 = vmax.f32 %v10135, 0.0
      %v10168 = vmax.f32 %v10136, 0.0
      %v10169 = vmax.f32 %v10137, 0.0
      %v10170 = vmax.f32 %v10138, 0.0
      %v10171 = vmax.f32 %v10139, 0.0
      %v10172 = vmax.f32 %v10140, 0.0
      %v10173 = vmax.f32 %v10141, 0.0
      %v10174 = vmax.f32 %v10142, 0.0
      %v10175 = vmax.f32 %v10143, 0.0
      %v10176 = vmax.f32 %v10144, 0.0
      %v10177 = vmax.f32 %v10145, 0.0
      %v10178 = vmax.f32 %v10146, 0.0
      %v10179 = vmax.f32 %v10147, 0.0
      %v10180 = vmax.f32 %v10148, 0.0
      %v10181 = vmax.f32 %v10149, 0.0
      %v10182 = vmax.f32 %v10150, 0.0
      %v10183 = vmax.f32 %v10151, 0.0
      %10184 = vst.msk [vmem:[%s359] sm:$0xff] %vm1862, %v10152
      %10185 = vst.msk [vmem:[%s359 + $0x8] sm:$0xff] %vm1862, %v10153
      %10186 = vst.msk [vmem:[%s359 + $0x10] sm:$0xff] %vm1862, %v10154
      %10187 = vst.msk [vmem:[%s359 + $0x18] sm:$0xff] %vm1862, %v10155
      %10188 = vst.msk [vmem:[%s359 + $0x20] sm:$0xff] %vm1862, %v10156
      %10189 = vst.msk [vmem:[%s359 + $0x28] sm:$0xff] %vm1862, %v10157
      %10190 = vst.msk [vmem:[%s359 + $0x30] sm:$0xff] %vm1862, %v10158
      %10191 = vst.msk [vmem:[%s359 + $0x38] sm:$0xff] %vm1862, %v10159
      %10192 = vst.msk [vmem:[%s359 + $0x40] sm:$0xff] %vm1862, %v10160
      %10193 = vst.msk [vmem:[%s359 + $0x48] sm:$0xff] %vm1862, %v10161
      %10194 = vst.msk [vmem:[%s359 + $0x50] sm:$0xff] %vm1862, %v10162
      %10195 = vst.msk [vmem:[%s359 + $0x58] sm:$0xff] %vm1862, %v10163
      %10196 = vst.msk [vmem:[%s359 + $0x60] sm:$0xff] %vm1862, %v10164
      %10197 = vst.msk [vmem:[%s359 + $0x68] sm:$0xff] %vm1862, %v10165
      %10198 = vst.msk [vmem:[%s359 + $0x70] sm:$0xff] %vm1862, %v10166
      %10199 = vst.msk [vmem:[%s359 + $0x78] sm:$0xff] %vm1862, %v10167
      %10200 = vst.msk [vmem:[%s359 + $0x80] sm:$0xff] %vm1862, %v10168
      %10201 = vst.msk [vmem:[%s359 + $0x88] sm:$0xff] %vm1862, %v10169
      %10202 = vst.msk [vmem:[%s359 + $0x90] sm:$0xff] %vm1862, %v10170
      %10203 = vst.msk [vmem:[%s359 + $0x98] sm:$0xff] %vm1862, %v10171
      %10204 = vst.msk [vmem:[%s359 + $0xa0] sm:$0xff] %vm1862, %v10172
      %10205 = vst.msk [vmem:[%s359 + $0xa8] sm:$0xff] %vm1862, %v10173
      %10206 = vst.msk [vmem:[%s359 + $0xb0] sm:$0xff] %vm1862, %v10174
      %10207 = vst.msk [vmem:[%s359 + $0xb8] sm:$0xff] %vm1862, %v10175
      %10208 = vst.msk [vmem:[%s359 + $0xc0] sm:$0xff] %vm1862, %v10176
      %10209 = vst.msk [vmem:[%s359 + $0xc8] sm:$0xff] %vm1862, %v10177
      %10210 = vst.msk [vmem:[%s359 + $0xd0] sm:$0xff] %vm1862, %v10178
      %10211 = vst.msk [vmem:[%s359 + $0xd8] sm:$0xff] %vm1862, %v10179
      %10212 = vst.msk [vmem:[%s359 + $0xe0] sm:$0xff] %vm1862, %v10180
      %10213 = vst.msk [vmem:[%s359 + $0xe8] sm:$0xff] %vm1862, %v10181
      %10214 = vst.msk [vmem:[%s359 + $0xf0] sm:$0xff] %vm1862, %v10182
      %10215 = vst.msk [vmem:[%s359 + $0xf8] sm:$0xff] %vm1862, %v10183
      %p10216 = scmp.lt.s32.totalorder %s21, 4
      %s10217 = scalar_select %p10216, %s21, 4
      %s10218 = smul.addr %s10217, 32
      %s10219 = smul.addr %s10218, 8
      %s10220 = scalar_lea.vmem %s10, %s10219
      // Predicated region
      $region61: #{tpu_custom_call.1} parent=59 // pred_check
        %p10221 = pneg %p254
      $region62: #{tpu_custom_call.1} parent=59 // pred_check_branch
        %10223 = sbr.rel (%p10221) target = $region64
      $region63: #{tpu_custom_call.1} parent=59 // pred_region
        _
      $region64: #{tpu_custom_call.1} parent=59 // pred_fallthru
        _
    $region60: #{tpu_custom_call.1} parent=5 // pred_fallthru
      _
    %p10224 = scmp.le.s32.totalorder 2, %s16
    // Predicated region
    $region65: #{tpu_custom_call.1} parent=5 // pred_check
      %p10225 = pneg %p10224
    $region66: #{tpu_custom_call.1} parent=5 // pred_check_branch
      %10227 = sbr.rel (%p10225) target = $region68
    $region67: #{tpu_custom_call.1} parent=5 // pred_region
      %s10228 = ssub.s32 %s16, 2
      // Predicated region
      $region69: #{tpu_custom_call.1} parent=67 // pred_check
        %p10229 = pneg %p260
      $region70: #{tpu_custom_call.1} parent=67 // pred_check_branch
        %10231 = sbr.rel (%p10229) target = $region72
      $region71: #{tpu_custom_call.1} parent=67 // pred_region
        %p10232 = scmp.lt.s32.totalorder %s22, 4
        %s10233 = scalar_select %p10232, %s22, 4
        %s10234 = smul.addr %s10233, 32
        %s10235 = smul.addr %s10234, 8
        %s10236 = scalar_lea.vmem %s10, %s10235
      $region72: #{tpu_custom_call.1} parent=67 // pred_fallthru
        _
    $region68: #{tpu_custom_call.1} parent=5 // pred_fallthru
      _
  $region6: #{tpu_custom_call.1} parent=0 // loop_footer
    %s20 = sadd.s32 1, %s16
  $region7: #{tpu_custom_call.1} parent=0 // loop_footer_branch
    %15 = sbr.rel target = $region3
  $region8: #{tpu_custom_call.1} parent=0 // loop_exit
    _

</llo_original>
